<compile_context>
chip_gen: v6e
topology: v6e:2x2x1
jax: 0.10.0
libtpu: 0.0.40
codegen_flags: <defaults>
</compile_context>

<pallas_src>
import functools

import jax
import jax.numpy as jnp
from jax.experimental import pallas as pl
from jax.experimental.pallas import tpu as pltpu


# ----------------------------------------------------------------- tiling policy

@functools.lru_cache(maxsize=None)
def _num_tensorcores_per_chip():
    """2 for chips whose 'parallel' grid axes shard across TensorCores
    (v4/v5p megacore, v7x); 1 for single-TC chips (v5e, v6e, ...)."""
    try:
        kind = jax.devices()[0].device_kind.lower()
    except Exception:
        return 1
    return 2 if any(tag in kind for tag in ("v4", "v5p", "v7", "7x")) else 1


def _pick_tile(M, cap=4096):
    """Lane tile for the big M = B*OH*OW axis.  Split into 2 'parallel' blocks
    only on dual-TC chips (pure per-step overhead on v5e/v6e); cap the tile so the
    double-buffered bf16 patch block stays inside VMEM if batch grows."""
    tm = M
    if _num_tensorcores_per_chip() >= 2 and M >= 512 and (M // 2) % 128 == 0:
        tm = M // 2
    while tm > cap and tm % 2 == 0 and (tm // 2) % 128 == 0:
        tm //= 2
    return tm


# ------------------------------------------------------------------ Pallas kernels

def _conv_kernel(w_ref, p_ref, b_ref, o_ref):
    # out(R, tm) = relu(W(R, K) @ P(K, tm) + b(R, 1)); BN scale pre-folded into W.
    acc = jnp.dot(w_ref[...], p_ref[...], preferred_element_type=jnp.float32)
    o_ref[...] = jnp.maximum(acc + b_ref[...], 0.0).astype(o_ref.dtype)


def _conv_skip_kernel(wd_ref, pd_ref, we_ref, pe_ref, b_ref, o_ref):
    # Split-K conv: the torch.cat([dec, skip], 1) input arrives as two K-segments
    # (two patch refs + two weight blocks) -> no concatenated activation in HBM.
    acc = jnp.dot(wd_ref[...], pd_ref[...], preferred_element_type=jnp.float32)
    acc = acc + jnp.dot(we_ref[...], pe_ref[...], preferred_element_type=jnp.float32)
    o_ref[...] = jnp.maximum(acc + b_ref[...], 0.0).astype(o_ref.dtype)


def _bott_dec1_kernel(x_ref, wb_ref, bb_ref, wd_ref, bd_ref, o_ref):
    # bottleneck (4x4 full-receptive-field conv == matmul) fused with dec_layer1
    # (1x1-spatial ConvTranspose == matmul).  Flipped orientation: outputs are
    # (N, 128) / (N, 1024), so stores are lane-dense instead of 2-of-128 masked.
    lat = jnp.dot(x_ref[...], wb_ref[...], preferred_element_type=jnp.float32)
    lat = jnp.maximum(lat + bb_ref[...], 0.0)
    d1 = jnp.dot(lat.astype(jnp.bfloat16), wd_ref[...],
                 preferred_element_type=jnp.float32)
    o_ref[...] = jnp.maximum(d1 + bd_ref[...], 0.0).astype(o_ref.dtype)


def _dec5_dec7_kernel(wd_ref, pd_ref, we_ref, pe_ref, b5_ref,
                      a7_ref, b7_ref, xp_ref, c7_ref, o_ref):
    # dec_layer5 (parity conv + BN + ReLU) fused with dec_layer7 (1x1 transpose
    # conv over cat([dec5, x], 1)): two 12x12 channel-mix dots in the epilogue.
    h = jnp.dot(wd_ref[...], pd_ref[...], preferred_element_type=jnp.float32)
    h = h + jnp.dot(we_ref[...], pe_ref[...], preferred_element_type=jnp.float32)
    h = jnp.maximum(h + b5_ref[...], 0.0)
    out = jnp.dot(a7_ref[...], h.astype(jnp.bfloat16),
                  preferred_element_type=jnp.float32)
    out = out + jnp.dot(b7_ref[...], xp_ref[...], preferred_element_type=jnp.float32)
    o_ref[...] = (out + c7_ref[...]).astype(o_ref.dtype)


# ------------------------------------------------------------------ pallas wrappers

def _conv_mm(w, p, bias_col, out_dtype=jnp.bfloat16):
    R, K = w.shape
    M = p.shape[1]
    tm = _pick_tile(M)
    return pl.pallas_call(
        _conv_kernel,
        out_shape=jax.ShapeDtypeStruct((R, M), out_dtype),
        grid=(M // tm,),
        in_specs=[pl.BlockSpec((R, K), lambda i: (0, 0)),
                  pl.BlockSpec((K, tm), lambda i: (0, i)),
                  pl.BlockSpec((R, 1), lambda i: (0, 0))],
        out_specs=pl.BlockSpec((R, tm), lambda i: (0, i)),
        compiler_params=pltpu.CompilerParams(dimension_semantics=("parallel",)),
    )(w, p, bias_col)


def _conv_skip_mm(wd, pd, we, pe, bias_col, out_dtype=jnp.bfloat16):
    R, Kd = wd.shape
    Ke = we.shape[1]
    M = pd.shape[1]
    tm = _pick_tile(M)
    return pl.pallas_call(
        _conv_skip_kernel,
        out_shape=jax.ShapeDtypeStruct((R, M), out_dtype),
        grid=(M // tm,),
        in_specs=[pl.BlockSpec((R, Kd), lambda i: (0, 0)),
                  pl.BlockSpec((Kd, tm), lambda i: (0, i)),
                  pl.BlockSpec((R, Ke), lambda i: (0, 0)),
                  pl.BlockSpec((Ke, tm), lambda i: (0, i)),
                  pl.BlockSpec((R, 1), lambda i: (0, 0))],
        out_specs=pl.BlockSpec((R, tm), lambda i: (0, i)),
        compiler_params=pltpu.CompilerParams(dimension_semantics=("parallel",)),
    )(wd, pd, we, pe, bias_col)


def _bott_dec1_mm(x_flat, wbT, bb_row, wdT, bd_row):
    N = x_flat.shape[0]
    R = wdT.shape[1]
    return pl.pallas_call(
        _bott_dec1_kernel,
        out_shape=jax.ShapeDtypeStruct((N, R), jnp.bfloat16),
        grid=(1,),
        in_specs=[pl.BlockSpec(x_flat.shape, lambda i: (0, 0)),
                  pl.BlockSpec(wbT.shape, lambda i: (0, 0)),
                  pl.BlockSpec(bb_row.shape, lambda i: (0, 0)),
                  pl.BlockSpec(wdT.shape, lambda i: (0, 0)),
                  pl.BlockSpec(bd_row.shape, lambda i: (0, 0))],
        out_specs=pl.BlockSpec((N, R), lambda i: (0, 0)),
        compiler_params=pltpu.CompilerParams(dimension_semantics=("arbitrary",)),
    )(x_flat, wbT, bb_row, wdT, bd_row)


def _dec5_dec7_mm(wd, pd, we, pe, b5, a7, b7, xpar, c7):
    R, Kd = wd.shape
    Ke = we.shape[1]
    M = pd.shape[1]
    tm = _pick_tile(M)
    return pl.pallas_call(
        _dec5_dec7_kernel,
        out_shape=jax.ShapeDtypeStruct((R, M), jnp.float32),
        grid=(M // tm,),
        in_specs=[pl.BlockSpec((R, Kd), lambda i: (0, 0)),
                  pl.BlockSpec((Kd, tm), lambda i: (0, i)),
                  pl.BlockSpec((R, Ke), lambda i: (0, 0)),
                  pl.BlockSpec((Ke, tm), lambda i: (0, i)),
                  pl.BlockSpec((R, 1), lambda i: (0, 0)),
                  pl.BlockSpec((R, R), lambda i: (0, 0)),
                  pl.BlockSpec((R, R), lambda i: (0, 0)),
                  pl.BlockSpec((R, tm), lambda i: (0, i)),
                  pl.BlockSpec((R, 1), lambda i: (0, 0))],
        out_specs=pl.BlockSpec((R, tm), lambda i: (0, i)),
        compiler_params=pltpu.CompilerParams(dimension_semantics=("parallel",)),
    )(wd, pd, we, pe, b5, a7, b7, xpar, c7)


# ------------------------------------------------------------------ conv glue (channel-major)

def _im2col_T(x_cm, kh, kw, stride, padding):
    """x: (C, N, H, W) -> bf16 patches (C*kh*kw, N*OH*OW); K-order = (C, i, j)."""
    C, N, H, W = x_cm.shape
    xp = jnp.pad(x_cm.astype(jnp.bfloat16),
                 ((0, 0), (0, 0), (padding, padding), (padding, padding)))
    OH = (H + 2 * padding - kh) // stride + 1
    OW = (W + 2 * padding - kw) // stride + 1
    taps = [xp[:, :, i:i + stride * OH:stride, j:j + stride * OW:stride]
            for i in range(kh) for j in range(kw)]
    p = jnp.stack(taps, axis=1)                       # (C, kh*kw, N, OH, OW)
    # TODO(synk): move this tap-gather into the kernel (grid axis over taps with
    # pl.when-guarded accumulation) to remove the XLA slices/stack and the
    # K-times-inflated HBM patch buffer.
    return p.reshape(C * kh * kw, N * OH * OW), OH, OW


def conv_block(x_cm, wp, stride, padding):
    """ConvBlock (Conv2d k=4 + folded eval-BN + ReLU); channel-major activations."""
    Cout = wp["wmat"].shape[0]
    N = x_cm.shape[1]
    p, OH, OW = _im2col_T(x_cm, 4, 4, stride, padding)
    return _conv_mm(wp["wmat"], p, wp["bias"]).reshape(Cout, N, OH, OW)


def _pixel_shuffle(out_rm, cout, N, H, W):
    # rows = parity*Cout + co, parity = 2*row_par + col_par -> (Cout, N, 2H, 2W)
    return (out_rm.reshape(2, 2, cout, N, H, W)
            .transpose(2, 3, 4, 0, 5, 1)
            .reshape(cout, N, 2 * H, 2 * W))


def deconv_block_skip(dec_cm, skip_cm, wp):
    """ConvTranBlock (ConvTranspose2d k=4 s=2 p=1 + folded eval-BN + ReLU) applied
    to torch.cat([dec, skip], 1): 4-parity stride-1 3x3 decomposition, split-K."""
    _, N, H, W = dec_cm.shape
    Cout = wp["w_dec"].shape[0] // 4
    pd, _, _ = _im2col_T(dec_cm, 3, 3, 1, 1)
    pe, _, _ = _im2col_T(skip_cm, 3, 3, 1, 1)
    out = _conv_skip_mm(wp["w_dec"], pd, wp["w_enc"], pe, wp["bias"])
    return _pixel_shuffle(out, Cout, N, H, W)


def dec5_dec7_fused(dec4_cm, enc1_cm, x_c, wp5, wp7):
    _, N, H, W = dec4_cm.shape                        # (8, N, 32, 32)
    M = N * H * W
    pd, _, _ = _im2col_T(dec4_cm, 3, 3, 1, 1)
    pe, _, _ = _im2col_T(enc1_cm, 3, 3, 1, 1)
    # x rearranged to the same 4-parity row layout as the dec5 kernel output.
    # TODO(synk): build this inside the kernel from an x_c block instead of XLA ops.
    xpar = (x_c.astype(jnp.bfloat16).reshape(3, N, H, 2, W, 2)
            .transpose(3, 5, 0, 1, 2, 4).reshape(12, M))
    out = _dec5_dec7_mm(wp5["w_dec"], pd, wp5["w_enc"], pe, wp5["bias"],
                        wp7["a7"], wp7["b7"], xpar, wp7["c7"])
    return _pixel_shuffle(out, 3, N, H, W)            # (3, N, 64, 64) f32


# ------------------------------------------------------------------ weight preparation

def _parity_forward_weights(wd):
    """ConvTranspose2d(k=4, s=2, p=1) weight (Cin, Cout, 4, 4) -> equivalent
    stride-1 3x3 forward-conv weight (4*Cout, Cin*9); one 3x3 kernel per output
    parity (r, c), r-major, with structured zeros.
    TODO(synk): validate numerically vs torch / lax.conv_transpose in interpret mode."""
    cin, cout = wd.shape[0], wd.shape[1]
    zr = jnp.zeros((cin, cout, 1, 4), wd.dtype)
    rows = [jnp.concatenate([wd[:, :, 3:4, :], wd[:, :, 1:2, :], zr], axis=2),
            jnp.concatenate([zr, wd[:, :, 2:3, :], wd[:, :, 0:1, :]], axis=2)]
    zc = jnp.zeros((cin, cout, 3, 1), wd.dtype)
    par = []
    for r in range(2):
        wr = rows[r]
        par.append(jnp.concatenate([wr[:, :, :, 3:4], wr[:, :, :, 1:2], zc], axis=3))
        par.append(jnp.concatenate([zc, wr[:, :, :, 2:3], wr[:, :, :, 0:1]], axis=3))
    wf = jnp.stack(par, axis=0)                       # (4, Cin, Cout, 3, 3)
    wf = jnp.transpose(wf, (0, 2, 1, 3, 4))           # (4, Cout, Cin, 3, 3)
    return wf.reshape(4 * cout, cin * 9)


_BN_EPS = 1e-5


def _fold_bn(p):
    # eval-mode BatchNorm2d: scale = gamma/sqrt(var+eps); bias = scale*(b-mean)+beta
    scale = p["gamma"] / jnp.sqrt(p["var"] + _BN_EPS)
    return scale, scale * (p["b"] - p["mean"]) + p["beta"]


def _block_raw(key, cin, cout, k, transpose):
    kw_, kb, kg, kbeta = jax.random.split(key, 4)
    wshape = (cin, cout, k, k) if transpose else (cout, cin, k, k)
    return {"w": 0.1 * jax.random.normal(kw_, wshape, jnp.float32),
            "b": 0.1 * jax.random.normal(kb, (cout,), jnp.float32),
            "gamma": 1.0 + 0.1 * jax.random.normal(kg, (cout,), jnp.float32),
            "beta": 0.1 * jax.random.normal(kbeta, (cout,), jnp.float32),
            "mean": jnp.zeros((cout,), jnp.float32),
            "var": jnp.ones((cout,), jnp.float32)}


def init_params(key):
    """Random weights in the PyTorch module's native layouts (fresh BN stats)."""
    ks = jax.random.split(key, 12)
    return {
        "enc1": _block_raw(ks[0], 3, 8, 4, False),
        "enc2": _block_raw(ks[1], 8, 16, 4, False),
        "enc3": _block_raw(ks[2], 16, 32, 4, False),
        "enc4": _block_raw(ks[3], 32, 64, 4, False),
        "bott": _block_raw(ks[4], 64, 128, 4, False),
        "dec1": _block_raw(ks[5], 128, 64, 4, True),   # s=1, p=0
        "dec2": _block_raw(ks[6], 128, 32, 4, True),   # s=2, p=1
        "dec3": _block_raw(ks[7], 64, 16, 4, True),
        "dec4": _block_raw(ks[8], 32, 8, 4, True),
        "dec5": _block_raw(ks[9], 16, 3, 4, True),
        # final plain ConvTranspose2d(6, 3, k=1): no BN, no activation
        "dec7": {"w": 0.1 * jax.random.normal(ks[10], (6, 3, 1, 1), jnp.float32),
                 "b": 0.1 * jax.random.normal(ks[11], (3,), jnp.float32)},
    }


def prepare_params(raw):
    """One-time, outside the per-step jit: fold eval-BN scale into the weights,
    build parity / transposed / kron weight forms, cast MXU operands to bf16."""
    prep = {}
    for name in ("enc1", "enc2", "enc3", "enc4"):
        p = raw[name]
        scale, bias = _fold_bn(p)
        cout = p["w"].shape[0]
        wmat = (p["w"] * scale[:, None, None, None]).reshape(cout, -1)
        prep[name] = {"wmat": wmat.astype(jnp.bfloat16), "bias": bias.reshape(-1, 1)}

    # bottleneck (R=128, M=N) + dec_layer1 (R=1024, M=N): flipped & fused.
    pb = raw["bott"]
    sb, bb = _fold_bn(pb)
    wb = (pb["w"] * sb[:, None, None, None]).reshape(pb["w"].shape[0], -1)   # (128, 1024)
    pd1 = raw["dec1"]
    s1, b1 = _fold_bn(pd1)
    wd1 = (pd1["w"] * s1[None, :, None, None]).reshape(pd1["w"].shape[0], -1)  # (128, 1024)
    prep["mid"] = {"wbT": wb.T.astype(jnp.bfloat16),
                   "bb": bb.reshape(1, -1),
                   "wdT": wd1.astype(jnp.bfloat16),
                   "bd": jnp.repeat(b1, 16).reshape(1, -1)}

    # stride-2 ConvTranspose blocks, K split at the torch.cat([dec, skip]) boundary.
    for name, cd in (("dec2", 64), ("dec3", 32), ("dec4", 16), ("dec5", 8)):
        p = raw[name]
        scale, bias = _fold_bn(p)
        wf = _parity_forward_weights(p["w"]) * jnp.tile(scale, 4)[:, None]
        prep[name] = {"w_dec": wf[:, :cd * 9].astype(jnp.bfloat16),
                      "w_enc": wf[:, cd * 9:].astype(jnp.bfloat16),
                      "bias": jnp.tile(bias, 4).reshape(-1, 1)}

    # dec_layer7: 1x1 ConvTranspose2d(6->3) over cat([dec5, x], 1) expressed as two
    # block-diagonal 12x12 channel mixes in parity space (input order [dec5, x]).
    w7 = raw["dec7"]["w"][:, :, 0, 0]                 # (6, 3)
    eye4 = jnp.eye(4, dtype=w7.dtype)
    prep["dec7"] = {"a7": jnp.kron(eye4, w7[:3].T).astype(jnp.bfloat16),
                    "b7": jnp.kron(eye4, w7[3:].T).astype(jnp.bfloat16),
                    "c7": jnp.tile(raw["dec7"]["b"], 4).reshape(-1, 1)}
    return prep


# ------------------------------------------------------------------ forward

def generator_forward(prep, x_nchw):
    x_nchw = x_nchw.reshape(-1, 3, 64, 64)
    N = x_nchw.shape[0]
    x_c = jnp.transpose(x_nchw, (1, 0, 2, 3))                     # (3, N, 64, 64)

    enc1 = conv_block(x_c, prep["enc1"], 2, 1)                    # ( 8, N, 32, 32) bf16
    enc2 = conv_block(enc1, prep["enc2"], 2, 1)                   # (16, N, 16, 16)
    enc3 = conv_block(enc2, prep["enc3"], 2, 1)                   # (32, N,  8,  8)
    enc4 = conv_block(enc3, prep["enc4"], 2, 1)                   # (64, N,  4,  4)

    # bottleneck + dec_layer1 fused in one pallas_call (latent never touches HBM).
    enc4_flat = jnp.transpose(enc4, (1, 0, 2, 3)).reshape(N, -1)  # (N, 1024) bf16
    d1 = _bott_dec1_mm(enc4_flat, prep["mid"]["wbT"], prep["mid"]["bb"],
                       prep["mid"]["wdT"], prep["mid"]["bd"])     # (N, 1024) bf16
    dec1 = jnp.transpose(d1.reshape(N, 64, 4, 4), (1, 0, 2, 3))   # (64, N, 4, 4)

    dec2 = deconv_block_skip(dec1, enc4, prep["dec2"])            # (32, N,  8,  8)
    dec3 = deconv_block_skip(dec2, enc3, prep["dec3"])            # (16, N, 16, 16)
    dec4 = deconv_block_skip(dec3, enc2, prep["dec4"])            # ( 8, N, 32, 32)
    out_c = dec5_dec7_fused(dec4, enc1, x_c,
                            prep["dec5"], prep["dec7"])           # (3, N, 64, 64) f32

    return jnp.transpose(out_c, (1, 0, 2, 3))                     # NCHW f32


# ------------------------------------------------------------------ main

if __name__ == "__main__":
    key = jax.random.PRNGKey(0)
    x = jax.random.normal(jax.random.fold_in(key, 0), (2, 3, 64, 64), jnp.float32)
    raw = init_params(jax.random.fold_in(key, 1))
    prep = prepare_params(raw)            # one-time weight prep, outside the step jit

    fwd = jax.jit(generator_forward)
    out = jax.block_until_ready(fwd(prep, x))

    assert out.shape == (2, 3, 64, 64), out.shape
    assert out.dtype == jnp.float32
    assert bool(jnp.all(jnp.isfinite(out)))
    print("KERNEL_OK")
</pallas_src>

<mosaic_0001>
module attributes {stable_mosaic.version = 11 : i64} {
  func.func @_conv_kernel(%arg0: i32, %arg1: memref<8x48xbf16, #tpu.memory_space<vmem>>, %arg2: memref<48x2048xbf16, #tpu.memory_space<vmem>>, %arg3: memref<8x1xf32, #tpu.memory_space<vmem>>, %arg4: memref<8x2048xbf16, #tpu.memory_space<vmem>>) attributes {dimension_semantics = [#tpu.dimension_semantics<parallel>], iteration_bounds = array<i64: 1>, scalar_prefetch = 0 : i64, scratch_operands = 0 : i64, tpu.core_type = #tpu.core_type<tc>, window_params = [{pipeline_mode = #tpu.pipeline_mode<synchronous>, transform_indices = @transform_0, window_bounds = array<i64: 8, 48>}, {transform_indices = @transform_1, window_bounds = array<i64: 48, 2048>}, {pipeline_mode = #tpu.pipeline_mode<synchronous>, transform_indices = @transform_2, window_bounds = array<i64: 8, 1>}, {transform_indices = @transform_3, window_bounds = array<i64: 8, 2048>}]} {
    %c0 = arith.constant 0 : index
    %c0_0 = arith.constant 0 : index
    %0 = vector.load %arg1[%c0, %c0_0] : memref<8x48xbf16, #tpu.memory_space<vmem>>, vector<8x48xbf16>
    %c0_1 = arith.constant 0 : index
    %c0_2 = arith.constant 0 : index
    %1 = vector.load %arg2[%c0_1, %c0_2] : memref<48x2048xbf16, #tpu.memory_space<vmem>>, vector<48x2048xbf16>
    %cst = arith.constant dense<0.000000e+00> : vector<8x2048xf32>
    %2 = tpu.matmul %0, %1, %cst {dimension_numbers = #tpu.dot_dimension_numbers<[1], [0], [0], [1], [0, 0, 1, 1], [], []>} : vector<8x48xbf16>, vector<48x2048xbf16>, vector<8x2048xf32> -> vector<8x2048xf32>
    %c0_3 = arith.constant 0 : index
    %c0_4 = arith.constant 0 : index
    %3 = vector.load %arg3[%c0_3, %c0_4] : memref<8x1xf32, #tpu.memory_space<vmem>>, vector<8x1xf32>
    %4 = vector.broadcast %3 : vector<8x1xf32> to vector<8x2048xf32>
    %5 = arith.addf %2, %4 : vector<8x2048xf32>
    %cst_5 = arith.constant 0.000000e+00 : f32
    %6 = vector.broadcast %cst_5 : f32 to vector<8x2048xf32>
    %7 = arith.maximumf %5, %6 : vector<8x2048xf32>
    %8 = arith.truncf %7 : vector<8x2048xf32> to vector<8x2048xbf16>
    %c0_6 = arith.constant 0 : index
    %c0_7 = arith.constant 0 : index
    %9 = vector.load %arg4[%c0_6, %c0_7] : memref<8x2048xbf16, #tpu.memory_space<vmem>>, vector<8x2048xbf16>
    tpu.vector_store %arg4[%c0_6, %c0_7], %8 {strides = array<i32>} : memref<8x2048xbf16, #tpu.memory_space<vmem>>, vector<8x2048xbf16>,
    return
  }
  func.func @transform_0(%arg0: i32) -> (i32, i32) {
    %c0_i32 = arith.constant 0 : i32
    %c0_i32_0 = arith.constant 0 : i32
    %c0_i32_1 = arith.constant 0 : i32
    return %c0_i32, %c0_i32_0 : i32, i32
  }
  func.func @transform_1(%arg0: i32) -> (i32, i32) {
    %c0_i32 = arith.constant 0 : i32
    %c0_i32_0 = arith.constant 0 : i32
    return %c0_i32, %arg0 : i32, i32
  }
  func.func @transform_2(%arg0: i32) -> (i32, i32) {
    %c0_i32 = arith.constant 0 : i32
    %c0_i32_0 = arith.constant 0 : i32
    %c0_i32_1 = arith.constant 0 : i32
    return %c0_i32, %c0_i32_0 : i32, i32
  }
  func.func @transform_3(%arg0: i32) -> (i32, i32) {
    %c0_i32 = arith.constant 0 : i32
    %c0_i32_0 = arith.constant 0 : i32
    return %c0_i32, %arg0 : i32, i32
  }
}

module attributes {stable_mosaic.version = 11 : i64} {
  func.func @_conv_kernel(%arg0: i32, %arg1: memref<16x128xbf16, #tpu.memory_space<vmem>>, %arg2: memref<128x512xbf16, #tpu.memory_space<vmem>>, %arg3: memref<16x1xf32, #tpu.memory_space<vmem>>, %arg4: memref<16x512xbf16, #tpu.memory_space<vmem>>) attributes {dimension_semantics = [#tpu.dimension_semantics<parallel>], iteration_bounds = array<i64: 1>, scalar_prefetch = 0 : i64, scratch_operands = 0 : i64, tpu.core_type = #tpu.core_type<tc>, window_params = [{pipeline_mode = #tpu.pipeline_mode<synchronous>, transform_indices = @transform_0, window_bounds = array<i64: 16, 128>}, {transform_indices = @transform_1, window_bounds = array<i64: 128, 512>}, {pipeline_mode = #tpu.pipeline_mode<synchronous>, transform_indices = @transform_2, window_bounds = array<i64: 16, 1>}, {transform_indices = @transform_3, window_bounds = array<i64: 16, 512>}]} {
    %c0 = arith.constant 0 : index
    %c0_0 = arith.constant 0 : index
    %0 = vector.load %arg1[%c0, %c0_0] : memref<16x128xbf16, #tpu.memory_space<vmem>>, vector<16x128xbf16>
    %c0_1 = arith.constant 0 : index
    %c0_2 = arith.constant 0 : index
    %1 = vector.load %arg2[%c0_1, %c0_2] : memref<128x512xbf16, #tpu.memory_space<vmem>>, vector<128x512xbf16>
    %cst = arith.constant dense<0.000000e+00> : vector<16x512xf32>
    %2 = tpu.matmul %0, %1, %cst {dimension_numbers = #tpu.dot_dimension_numbers<[1], [0], [0], [1], [0, 0, 1, 1], [], []>} : vector<16x128xbf16>, vector<128x512xbf16>, vector<16x512xf32> -> vector<16x512xf32>
    %c0_3 = arith.constant 0 : index
    %c0_4 = arith.constant 0 : index
    %3 = vector.load %arg3[%c0_3, %c0_4] : memref<16x1xf32, #tpu.memory_space<vmem>>, vector<16x1xf32>
    %4 = vector.broadcast %3 : vector<16x1xf32> to vector<16x512xf32>
    %5 = arith.addf %2, %4 : vector<16x512xf32>
    %cst_5 = arith.constant 0.000000e+00 : f32
    %6 = vector.broadcast %cst_5 : f32 to vector<16x512xf32>
    %7 = arith.maximumf %5, %6 : vector<16x512xf32>
    %8 = arith.truncf %7 : vector<16x512xf32> to vector<16x512xbf16>
    %c0_6 = arith.constant 0 : index
    %c0_7 = arith.constant 0 : index
    %9 = vector.load %arg4[%c0_6, %c0_7] : memref<16x512xbf16, #tpu.memory_space<vmem>>, vector<16x512xbf16>
    tpu.vector_store %arg4[%c0_6, %c0_7], %8 {strides = array<i32>} : memref<16x512xbf16, #tpu.memory_space<vmem>>, vector<16x512xbf16>,
    return
  }
  func.func @transform_0(%arg0: i32) -> (i32, i32) {
    %c0_i32 = arith.constant 0 : i32
    %c0_i32_0 = arith.constant 0 : i32
    %c0_i32_1 = arith.constant 0 : i32
    return %c0_i32, %c0_i32_0 : i32, i32
  }
  func.func @transform_1(%arg0: i32) -> (i32, i32) {
    %c0_i32 = arith.constant 0 : i32
    %c0_i32_0 = arith.constant 0 : i32
    return %c0_i32, %arg0 : i32, i32
  }
  func.func @transform_2(%arg0: i32) -> (i32, i32) {
    %c0_i32 = arith.constant 0 : i32
    %c0_i32_0 = arith.constant 0 : i32
    %c0_i32_1 = arith.constant 0 : i32
    return %c0_i32, %c0_i32_0 : i32, i32
  }
  func.func @transform_3(%arg0: i32) -> (i32, i32) {
    %c0_i32 = arith.constant 0 : i32
    %c0_i32_0 = arith.constant 0 : i32
    return %c0_i32, %arg0 : i32, i32
  }
}

module attributes {stable_mosaic.version = 11 : i64} {
  func.func @_conv_kernel(%arg0: i32, %arg1: memref<32x256xbf16, #tpu.memory_space<vmem>>, %arg2: memref<256x128xbf16, #tpu.memory_space<vmem>>, %arg3: memref<32x1xf32, #tpu.memory_space<vmem>>, %arg4: memref<32x128xbf16, #tpu.memory_space<vmem>>) attributes {dimension_semantics = [#tpu.dimension_semantics<parallel>], iteration_bounds = array<i64: 1>, scalar_prefetch = 0 : i64, scratch_operands = 0 : i64, tpu.core_type = #tpu.core_type<tc>, window_params = [{pipeline_mode = #tpu.pipeline_mode<synchronous>, transform_indices = @transform_0, window_bounds = array<i64: 32, 256>}, {transform_indices = @transform_1, window_bounds = array<i64: 256, 128>}, {pipeline_mode = #tpu.pipeline_mode<synchronous>, transform_indices = @transform_2, window_bounds = array<i64: 32, 1>}, {transform_indices = @transform_3, window_bounds = array<i64: 32, 128>}]} {
    %c0 = arith.constant 0 : index
    %c0_0 = arith.constant 0 : index
    %0 = vector.load %arg1[%c0, %c0_0] : memref<32x256xbf16, #tpu.memory_space<vmem>>, vector<32x256xbf16>
    %c0_1 = arith.constant 0 : index
    %c0_2 = arith.constant 0 : index
    %1 = vector.load %arg2[%c0_1, %c0_2] : memref<256x128xbf16, #tpu.memory_space<vmem>>, vector<256x128xbf16>
    %cst = arith.constant dense<0.000000e+00> : vector<32x128xf32>
    %2 = tpu.matmul %0, %1, %cst {dimension_numbers = #tpu.dot_dimension_numbers<[1], [0], [0], [1], [0, 0, 1, 1], [], []>} : vector<32x256xbf16>, vector<256x128xbf16>, vector<32x128xf32> -> vector<32x128xf32>
    %c0_3 = arith.constant 0 : index
    %c0_4 = arith.constant 0 : index
    %3 = vector.load %arg3[%c0_3, %c0_4] : memref<32x1xf32, #tpu.memory_space<vmem>>, vector<32x1xf32>
    %4 = vector.broadcast %3 : vector<32x1xf32> to vector<32x128xf32>
    %5 = arith.addf %2, %4 : vector<32x128xf32>
    %cst_5 = arith.constant 0.000000e+00 : f32
    %6 = vector.broadcast %cst_5 : f32 to vector<32x128xf32>
    %7 = arith.maximumf %5, %6 : vector<32x128xf32>
    %8 = arith.truncf %7 : vector<32x128xf32> to vector<32x128xbf16>
    %c0_6 = arith.constant 0 : index
    %c0_7 = arith.constant 0 : index
    %9 = vector.load %arg4[%c0_6, %c0_7] : memref<32x128xbf16, #tpu.memory_space<vmem>>, vector<32x128xbf16>
    tpu.vector_store %arg4[%c0_6, %c0_7], %8 {strides = array<i32>} : memref<32x128xbf16, #tpu.memory_space<vmem>>, vector<32x128xbf16>,
    return
  }
  func.func @transform_0(%arg0: i32) -> (i32, i32) {
    %c0_i32 = arith.constant 0 : i32
    %c0_i32_0 = arith.constant 0 : i32
    %c0_i32_1 = arith.constant 0 : i32
    return %c0_i32, %c0_i32_0 : i32, i32
  }
  func.func @transform_1(%arg0: i32) -> (i32, i32) {
    %c0_i32 = arith.constant 0 : i32
    %c0_i32_0 = arith.constant 0 : i32
    return %c0_i32, %arg0 : i32, i32
  }
  func.func @transform_2(%arg0: i32) -> (i32, i32) {
    %c0_i32 = arith.constant 0 : i32
    %c0_i32_0 = arith.constant 0 : i32
    %c0_i32_1 = arith.constant 0 : i32
    return %c0_i32, %c0_i32_0 : i32, i32
  }
  func.func @transform_3(%arg0: i32) -> (i32, i32) {
    %c0_i32 = arith.constant 0 : i32
    %c0_i32_0 = arith.constant 0 : i32
    return %c0_i32, %arg0 : i32, i32
  }
}

module attributes {stable_mosaic.version = 11 : i64} {
  func.func @_conv_kernel(%arg0: i32, %arg1: memref<64x512xbf16, #tpu.memory_space<vmem>>, %arg2: memref<512x32xbf16, #tpu.memory_space<vmem>>, %arg3: memref<64x1xf32, #tpu.memory_space<vmem>>, %arg4: memref<64x32xbf16, #tpu.memory_space<vmem>>) attributes {dimension_semantics = [#tpu.dimension_semantics<parallel>], iteration_bounds = array<i64: 1>, scalar_prefetch = 0 : i64, scratch_operands = 0 : i64, tpu.core_type = #tpu.core_type<tc>, window_params = [{pipeline_mode = #tpu.pipeline_mode<synchronous>, transform_indices = @transform_0, window_bounds = array<i64: 64, 512>}, {transform_indices = @transform_1, window_bounds = array<i64: 512, 32>}, {pipeline_mode = #tpu.pipeline_mode<synchronous>, transform_indices = @transform_2, window_bounds = array<i64: 64, 1>}, {transform_indices = @transform_3, window_bounds = array<i64: 64, 32>}]} {
    %c0 = arith.constant 0 : index
    %c0_0 = arith.constant 0 : index
    %0 = vector.load %arg1[%c0, %c0_0] : memref<64x512xbf16, #tpu.memory_space<vmem>>, vector<64x512xbf16>
    %c0_1 = arith.constant 0 : index
    %c0_2 = arith.constant 0 : index
    %1 = vector.load %arg2[%c0_1, %c0_2] : memref<512x32xbf16, #tpu.memory_space<vmem>>, vector<512x32xbf16>
    %cst = arith.constant dense<0.000000e+00> : vector<64x32xf32>
    %2 = tpu.matmul %0, %1, %cst {dimension_numbers = #tpu.dot_dimension_numbers<[1], [0], [0], [1], [0, 0, 1, 1], [], []>} : vector<64x512xbf16>, vector<512x32xbf16>, vector<64x32xf32> -> vector<64x32xf32>
    %c0_3 = arith.constant 0 : index
    %c0_4 = arith.constant 0 : index
    %3 = vector.load %arg3[%c0_3, %c0_4] : memref<64x1xf32, #tpu.memory_space<vmem>>, vector<64x1xf32>
    %4 = vector.broadcast %3 : vector<64x1xf32> to vector<64x32xf32>
    %5 = arith.addf %2, %4 : vector<64x32xf32>
    %cst_5 = arith.constant 0.000000e+00 : f32
    %6 = vector.broadcast %cst_5 : f32 to vector<64x32xf32>
    %7 = arith.maximumf %5, %6 : vector<64x32xf32>
    %8 = arith.truncf %7 : vector<64x32xf32> to vector<64x32xbf16>
    %c0_6 = arith.constant 0 : index
    %c0_7 = arith.constant 0 : index
    %9 = vector.load %arg4[%c0_6, %c0_7] : memref<64x32xbf16, #tpu.memory_space<vmem>>, vector<64x32xbf16>
    tpu.vector_store %arg4[%c0_6, %c0_7], %8 {strides = array<i32>} : memref<64x32xbf16, #tpu.memory_space<vmem>>, vector<64x32xbf16>,
    return
  }
  func.func @transform_0(%arg0: i32) -> (i32, i32) {
    %c0_i32 = arith.constant 0 : i32
    %c0_i32_0 = arith.constant 0 : i32
    %c0_i32_1 = arith.constant 0 : i32
    return %c0_i32, %c0_i32_0 : i32, i32
  }
  func.func @transform_1(%arg0: i32) -> (i32, i32) {
    %c0_i32 = arith.constant 0 : i32
    %c0_i32_0 = arith.constant 0 : i32
    return %c0_i32, %arg0 : i32, i32
  }
  func.func @transform_2(%arg0: i32) -> (i32, i32) {
    %c0_i32 = arith.constant 0 : i32
    %c0_i32_0 = arith.constant 0 : i32
    %c0_i32_1 = arith.constant 0 : i32
    return %c0_i32, %c0_i32_0 : i32, i32
  }
  func.func @transform_3(%arg0: i32) -> (i32, i32) {
    %c0_i32 = arith.constant 0 : i32
    %c0_i32_0 = arith.constant 0 : i32
    return %c0_i32, %arg0 : i32, i32
  }
}

module attributes {stable_mosaic.version = 11 : i64} {
  func.func @_bott_dec1_kernel(%arg0: i32, %arg1: memref<2x1024xbf16, #tpu.memory_space<vmem>>, %arg2: memref<1024x128xbf16, #tpu.memory_space<vmem>>, %arg3: memref<1x128xf32, #tpu.memory_space<vmem>>, %arg4: memref<128x1024xbf16, #tpu.memory_space<vmem>>, %arg5: memref<1x1024xf32, #tpu.memory_space<vmem>>, %arg6: memref<2x1024xbf16, #tpu.memory_space<vmem>>) attributes {dimension_semantics = [#tpu.dimension_semantics<arbitrary>], iteration_bounds = array<i64: 1>, scalar_prefetch = 0 : i64, scratch_operands = 0 : i64, tpu.core_type = #tpu.core_type<tc>, window_params = [{pipeline_mode = #tpu.pipeline_mode<synchronous>, transform_indices = @transform_0, window_bounds = array<i64: 2, 1024>}, {pipeline_mode = #tpu.pipeline_mode<synchronous>, transform_indices = @transform_1, window_bounds = array<i64: 1024, 128>}, {pipeline_mode = #tpu.pipeline_mode<synchronous>, transform_indices = @transform_2, window_bounds = array<i64: 1, 128>}, {pipeline_mode = #tpu.pipeline_mode<synchronous>, transform_indices = @transform_3, window_bounds = array<i64: 128, 1024>}, {pipeline_mode = #tpu.pipeline_mode<synchronous>, transform_indices = @transform_4, window_bounds = array<i64: 1, 1024>}, {pipeline_mode = #tpu.pipeline_mode<synchronous>, transform_indices = @transform_5, window_bounds = array<i64: 2, 1024>}]} {
    %c0 = arith.constant 0 : index
    %c0_0 = arith.constant 0 : index
    %0 = vector.load %arg1[%c0, %c0_0] : memref<2x1024xbf16, #tpu.memory_space<vmem>>, vector<2x1024xbf16>
    %c0_1 = arith.constant 0 : index
    %c0_2 = arith.constant 0 : index
    %1 = vector.load %arg2[%c0_1, %c0_2] : memref<1024x128xbf16, #tpu.memory_space<vmem>>, vector<1024x128xbf16>
    %cst = arith.constant dense<0.000000e+00> : vector<2x128xf32>
    %2 = tpu.matmul %0, %1, %cst {dimension_numbers = #tpu.dot_dimension_numbers<[1], [0], [0], [1], [0, 0, 1, 1], [], []>} : vector<2x1024xbf16>, vector<1024x128xbf16>, vector<2x128xf32> -> vector<2x128xf32>
    %c0_3 = arith.constant 0 : index
    %c0_4 = arith.constant 0 : index
    %3 = vector.load %arg3[%c0_3, %c0_4] : memref<1x128xf32, #tpu.memory_space<vmem>>, vector<1x128xf32>
    %4 = vector.broadcast %3 : vector<1x128xf32> to vector<2x128xf32>
    %5 = arith.addf %2, %4 : vector<2x128xf32>
    %cst_5 = arith.constant 0.000000e+00 : f32
    %6 = vector.broadcast %cst_5 : f32 to vector<2x128xf32>
    %7 = arith.maximumf %5, %6 : vector<2x128xf32>
    %8 = arith.truncf %7 : vector<2x128xf32> to vector<2x128xbf16>
    %c0_6 = arith.constant 0 : index
    %c0_7 = arith.constant 0 : index
    %9 = vector.load %arg4[%c0_6, %c0_7] : memref<128x1024xbf16, #tpu.memory_space<vmem>>, vector<128x1024xbf16>
    %cst_8 = arith.constant dense<0.000000e+00> : vector<2x1024xf32>
    %10 = tpu.matmul %8, %9, %cst_8 {dimension_numbers = #tpu.dot_dimension_numbers<[1], [0], [0], [1], [0, 0, 1, 1], [], []>} : vector<2x128xbf16>, vector<128x1024xbf16>, vector<2x1024xf32> -> vector<2x1024xf32>
    %c0_9 = arith.constant 0 : index
    %c0_10 = arith.constant 0 : index
    %11 = vector.load %arg5[%c0_9, %c0_10] : memref<1x1024xf32, #tpu.memory_space<vmem>>, vector<1x1024xf32>
    %12 = vector.broadcast %11 : vector<1x1024xf32> to vector<2x1024xf32>
    %13 = arith.addf %10, %12 : vector<2x1024xf32>
    %cst_11 = arith.constant 0.000000e+00 : f32
    %14 = vector.broadcast %cst_11 : f32 to vector<2x1024xf32>
    %15 = arith.maximumf %13, %14 : vector<2x1024xf32>
    %16 = arith.truncf %15 : vector<2x1024xf32> to vector<2x1024xbf16>
    %c0_12 = arith.constant 0 : index
    %c0_13 = arith.constant 0 : index
    %17 = vector.load %arg6[%c0_12, %c0_13] : memref<2x1024xbf16, #tpu.memory_space<vmem>>, vector<2x1024xbf16>
    tpu.vector_store %arg6[%c0_12, %c0_13], %16 {strides = array<i32>} : memref<2x1024xbf16, #tpu.memory_space<vmem>>, vector<2x1024xbf16>,
    return
  }
  func.func @transform_0(%arg0: i32) -> (i32, i32) {
    %c0_i32 = arith.constant 0 : i32
    %c0_i32_0 = arith.constant 0 : i32
    %c0_i32_1 = arith.constant 0 : i32
    return %c0_i32, %c0_i32_0 : i32, i32
  }
  func.func @transform_1(%arg0: i32) -> (i32, i32) {
    %c0_i32 = arith.constant 0 : i32
    %c0_i32_0 = arith.constant 0 : i32
    %c0_i32_1 = arith.constant 0 : i32
    return %c0_i32, %c0_i32_0 : i32, i32
  }
  func.func @transform_2(%arg0: i32) -> (i32, i32) {
    %c0_i32 = arith.constant 0 : i32
    %c0_i32_0 = arith.constant 0 : i32
    %c0_i32_1 = arith.constant 0 : i32
    return %c0_i32, %c0_i32_0 : i32, i32
  }
  func.func @transform_3(%arg0: i32) -> (i32, i32) {
    %c0_i32 = arith.constant 0 : i32
    %c0_i32_0 = arith.constant 0 : i32
    %c0_i32_1 = arith.constant 0 : i32
    return %c0_i32, %c0_i32_0 : i32, i32
  }
  func.func @transform_4(%arg0: i32) -> (i32, i32) {
    %c0_i32 = arith.constant 0 : i32
    %c0_i32_0 = arith.constant 0 : i32
    %c0_i32_1 = arith.constant 0 : i32
    return %c0_i32, %c0_i32_0 : i32, i32
  }
  func.func @transform_5(%arg0: i32) -> (i32, i32) {
    %c0_i32 = arith.constant 0 : i32
    %c0_i32_0 = arith.constant 0 : i32
    %c0_i32_1 = arith.constant 0 : i32
    return %c0_i32, %c0_i32_0 : i32, i32
  }
}

module attributes {stable_mosaic.version = 11 : i64} {
  func.func @_conv_skip_kernel(%arg0: i32, %arg1: memref<128x576xbf16, #tpu.memory_space<vmem>>, %arg2: memref<576x32xbf16, #tpu.memory_space<vmem>>, %arg3: memref<128x576xbf16, #tpu.memory_space<vmem>>, %arg4: memref<576x32xbf16, #tpu.memory_space<vmem>>, %arg5: memref<128x1xf32, #tpu.memory_space<vmem>>, %arg6: memref<128x32xbf16, #tpu.memory_space<vmem>>) attributes {dimension_semantics = [#tpu.dimension_semantics<parallel>], iteration_bounds = array<i64: 1>, scalar_prefetch = 0 : i64, scratch_operands = 0 : i64, tpu.core_type = #tpu.core_type<tc>, window_params = [{pipeline_mode = #tpu.pipeline_mode<synchronous>, transform_indices = @transform_0, window_bounds = array<i64: 128, 576>}, {transform_indices = @transform_1, window_bounds = array<i64: 576, 32>}, {pipeline_mode = #tpu.pipeline_mode<synchronous>, transform_indices = @transform_2, window_bounds = array<i64: 128, 576>}, {transform_indices = @transform_3, window_bounds = array<i64: 576, 32>}, {pipeline_mode = #tpu.pipeline_mode<synchronous>, transform_indices = @transform_4, window_bounds = array<i64: 128, 1>}, {transform_indices = @transform_5, window_bounds = array<i64: 128, 32>}]} {
    %c0 = arith.constant 0 : index
    %c0_0 = arith.constant 0 : index
    %0 = vector.load %arg1[%c0, %c0_0] : memref<128x576xbf16, #tpu.memory_space<vmem>>, vector<128x576xbf16>
    %c0_1 = arith.constant 0 : index
    %c0_2 = arith.constant 0 : index
    %1 = vector.load %arg2[%c0_1, %c0_2] : memref<576x32xbf16, #tpu.memory_space<vmem>>, vector<576x32xbf16>
    %cst = arith.constant dense<0.000000e+00> : vector<128x32xf32>
    %2 = tpu.matmul %0, %1, %cst {dimension_numbers = #tpu.dot_dimension_numbers<[1], [0], [0], [1], [0, 0, 1, 1], [], []>} : vector<128x576xbf16>, vector<576x32xbf16>, vector<128x32xf32> -> vector<128x32xf32>
    %c0_3 = arith.constant 0 : index
    %c0_4 = arith.constant 0 : index
    %3 = vector.load %arg3[%c0_3, %c0_4] : memref<128x576xbf16, #tpu.memory_space<vmem>>, vector<128x576xbf16>
    %c0_5 = arith.constant 0 : index
    %c0_6 = arith.constant 0 : index
    %4 = vector.load %arg4[%c0_5, %c0_6] : memref<576x32xbf16, #tpu.memory_space<vmem>>, vector<576x32xbf16>
    %cst_7 = arith.constant dense<0.000000e+00> : vector<128x32xf32>
    %5 = tpu.matmul %3, %4, %cst_7 {dimension_numbers = #tpu.dot_dimension_numbers<[1], [0], [0], [1], [0, 0, 1, 1], [], []>} : vector<128x576xbf16>, vector<576x32xbf16>, vector<128x32xf32> -> vector<128x32xf32>
    %6 = arith.addf %2, %5 : vector<128x32xf32>
    %c0_8 = arith.constant 0 : index
    %c0_9 = arith.constant 0 : index
    %7 = vector.load %arg5[%c0_8, %c0_9] : memref<128x1xf32, #tpu.memory_space<vmem>>, vector<128x1xf32>
    %8 = vector.broadcast %7 : vector<128x1xf32> to vector<128x32xf32>
    %9 = arith.addf %6, %8 : vector<128x32xf32>
    %cst_10 = arith.constant 0.000000e+00 : f32
    %10 = vector.broadcast %cst_10 : f32 to vector<128x32xf32>
    %11 = arith.maximumf %9, %10 : vector<128x32xf32>
    %12 = arith.truncf %11 : vector<128x32xf32> to vector<128x32xbf16>
    %c0_11 = arith.constant 0 : index
    %c0_12 = arith.constant 0 : index
    %13 = vector.load %arg6[%c0_11, %c0_12] : memref<128x32xbf16, #tpu.memory_space<vmem>>, vector<128x32xbf16>
    tpu.vector_store %arg6[%c0_11, %c0_12], %12 {strides = array<i32>} : memref<128x32xbf16, #tpu.memory_space<vmem>>, vector<128x32xbf16>,
    return
  }
  func.func @transform_0(%arg0: i32) -> (i32, i32) {
    %c0_i32 = arith.constant 0 : i32
    %c0_i32_0 = arith.constant 0 : i32
    %c0_i32_1 = arith.constant 0 : i32
    return %c0_i32, %c0_i32_0 : i32, i32
  }
  func.func @transform_1(%arg0: i32) -> (i32, i32) {
    %c0_i32 = arith.constant 0 : i32
    %c0_i32_0 = arith.constant 0 : i32
    return %c0_i32, %arg0 : i32, i32
  }
  func.func @transform_2(%arg0: i32) -> (i32, i32) {
    %c0_i32 = arith.constant 0 : i32
    %c0_i32_0 = arith.constant 0 : i32
    %c0_i32_1 = arith.constant 0 : i32
    return %c0_i32, %c0_i32_0 : i32, i32
  }
  func.func @transform_3(%arg0: i32) -> (i32, i32) {
    %c0_i32 = arith.constant 0 : i32
    %c0_i32_0 = arith.constant 0 : i32
    return %c0_i32, %arg0 : i32, i32
  }
  func.func @transform_4(%arg0: i32) -> (i32, i32) {
    %c0_i32 = arith.constant 0 : i32
    %c0_i32_0 = arith.constant 0 : i32
    %c0_i32_1 = arith.constant 0 : i32
    return %c0_i32, %c0_i32_0 : i32, i32
  }
  func.func @transform_5(%arg0: i32) -> (i32, i32) {
    %c0_i32 = arith.constant 0 : i32
    %c0_i32_0 = arith.constant 0 : i32
    return %c0_i32, %arg0 : i32, i32
  }
}

module attributes {stable_mosaic.version = 11 : i64} {
  func.func @_conv_skip_kernel(%arg0: i32, %arg1: memref<64x288xbf16, #tpu.memory_space<vmem>>, %arg2: memref<288x128xbf16, #tpu.memory_space<vmem>>, %arg3: memref<64x288xbf16, #tpu.memory_space<vmem>>, %arg4: memref<288x128xbf16, #tpu.memory_space<vmem>>, %arg5: memref<64x1xf32, #tpu.memory_space<vmem>>, %arg6: memref<64x128xbf16, #tpu.memory_space<vmem>>) attributes {dimension_semantics = [#tpu.dimension_semantics<parallel>], iteration_bounds = array<i64: 1>, scalar_prefetch = 0 : i64, scratch_operands = 0 : i64, tpu.core_type = #tpu.core_type<tc>, window_params = [{pipeline_mode = #tpu.pipeline_mode<synchronous>, transform_indices = @transform_0, window_bounds = array<i64: 64, 288>}, {transform_indices = @transform_1, window_bounds = array<i64: 288, 128>}, {pipeline_mode = #tpu.pipeline_mode<synchronous>, transform_indices = @transform_2, window_bounds = array<i64: 64, 288>}, {transform_indices = @transform_3, window_bounds = array<i64: 288, 128>}, {pipeline_mode = #tpu.pipeline_mode<synchronous>, transform_indices = @transform_4, window_bounds = array<i64: 64, 1>}, {transform_indices = @transform_5, window_bounds = array<i64: 64, 128>}]} {
    %c0 = arith.constant 0 : index
    %c0_0 = arith.constant 0 : index
    %0 = vector.load %arg1[%c0, %c0_0] : memref<64x288xbf16, #tpu.memory_space<vmem>>, vector<64x288xbf16>
    %c0_1 = arith.constant 0 : index
    %c0_2 = arith.constant 0 : index
    %1 = vector.load %arg2[%c0_1, %c0_2] : memref<288x128xbf16, #tpu.memory_space<vmem>>, vector<288x128xbf16>
    %cst = arith.constant dense<0.000000e+00> : vector<64x128xf32>
    %2 = tpu.matmul %0, %1, %cst {dimension_numbers = #tpu.dot_dimension_numbers<[1], [0], [0], [1], [0, 0, 1, 1], [], []>} : vector<64x288xbf16>, vector<288x128xbf16>, vector<64x128xf32> -> vector<64x128xf32>
    %c0_3 = arith.constant 0 : index
    %c0_4 = arith.constant 0 : index
    %3 = vector.load %arg3[%c0_3, %c0_4] : memref<64x288xbf16, #tpu.memory_space<vmem>>, vector<64x288xbf16>
    %c0_5 = arith.constant 0 : index
    %c0_6 = arith.constant 0 : index
    %4 = vector.load %arg4[%c0_5, %c0_6] : memref<288x128xbf16, #tpu.memory_space<vmem>>, vector<288x128xbf16>
    %cst_7 = arith.constant dense<0.000000e+00> : vector<64x128xf32>
    %5 = tpu.matmul %3, %4, %cst_7 {dimension_numbers = #tpu.dot_dimension_numbers<[1], [0], [0], [1], [0, 0, 1, 1], [], []>} : vector<64x288xbf16>, vector<288x128xbf16>, vector<64x128xf32> -> vector<64x128xf32>
    %6 = arith.addf %2, %5 : vector<64x128xf32>
    %c0_8 = arith.constant 0 : index
    %c0_9 = arith.constant 0 : index
    %7 = vector.load %arg5[%c0_8, %c0_9] : memref<64x1xf32, #tpu.memory_space<vmem>>, vector<64x1xf32>
    %8 = vector.broadcast %7 : vector<64x1xf32> to vector<64x128xf32>
    %9 = arith.addf %6, %8 : vector<64x128xf32>
    %cst_10 = arith.constant 0.000000e+00 : f32
    %10 = vector.broadcast %cst_10 : f32 to vector<64x128xf32>
    %11 = arith.maximumf %9, %10 : vector<64x128xf32>
    %12 = arith.truncf %11 : vector<64x128xf32> to vector<64x128xbf16>
    %c0_11 = arith.constant 0 : index
    %c0_12 = arith.constant 0 : index
    %13 = vector.load %arg6[%c0_11, %c0_12] : memref<64x128xbf16, #tpu.memory_space<vmem>>, vector<64x128xbf16>
    tpu.vector_store %arg6[%c0_11, %c0_12], %12 {strides = array<i32>} : memref<64x128xbf16, #tpu.memory_space<vmem>>, vector<64x128xbf16>,
    return
  }
  func.func @transform_0(%arg0: i32) -> (i32, i32) {
    %c0_i32 = arith.constant 0 : i32
    %c0_i32_0 = arith.constant 0 : i32
    %c0_i32_1 = arith.constant 0 : i32
    return %c0_i32, %c0_i32_0 : i32, i32
  }
  func.func @transform_1(%arg0: i32) -> (i32, i32) {
    %c0_i32 = arith.constant 0 : i32
    %c0_i32_0 = arith.constant 0 : i32
    return %c0_i32, %arg0 : i32, i32
  }
  func.func @transform_2(%arg0: i32) -> (i32, i32) {
    %c0_i32 = arith.constant 0 : i32
    %c0_i32_0 = arith.constant 0 : i32
    %c0_i32_1 = arith.constant 0 : i32
    return %c0_i32, %c0_i32_0 : i32, i32
  }
  func.func @transform_3(%arg0: i32) -> (i32, i32) {
    %c0_i32 = arith.constant 0 : i32
    %c0_i32_0 = arith.constant 0 : i32
    return %c0_i32, %arg0 : i32, i32
  }
  func.func @transform_4(%arg0: i32) -> (i32, i32) {
    %c0_i32 = arith.constant 0 : i32
    %c0_i32_0 = arith.constant 0 : i32
    %c0_i32_1 = arith.constant 0 : i32
    return %c0_i32, %c0_i32_0 : i32, i32
  }
  func.func @transform_5(%arg0: i32) -> (i32, i32) {
    %c0_i32 = arith.constant 0 : i32
    %c0_i32_0 = arith.constant 0 : i32
    return %c0_i32, %arg0 : i32, i32
  }
}

module attributes {stable_mosaic.version = 11 : i64} {
  func.func @_conv_skip_kernel(%arg0: i32, %arg1: memref<32x144xbf16, #tpu.memory_space<vmem>>, %arg2: memref<144x512xbf16, #tpu.memory_space<vmem>>, %arg3: memref<32x144xbf16, #tpu.memory_space<vmem>>, %arg4: memref<144x512xbf16, #tpu.memory_space<vmem>>, %arg5: memref<32x1xf32, #tpu.memory_space<vmem>>, %arg6: memref<32x512xbf16, #tpu.memory_space<vmem>>) attributes {dimension_semantics = [#tpu.dimension_semantics<parallel>], iteration_bounds = array<i64: 1>, scalar_prefetch = 0 : i64, scratch_operands = 0 : i64, tpu.core_type = #tpu.core_type<tc>, window_params = [{pipeline_mode = #tpu.pipeline_mode<synchronous>, transform_indices = @transform_0, window_bounds = array<i64: 32, 144>}, {transform_indices = @transform_1, window_bounds = array<i64: 144, 512>}, {pipeline_mode = #tpu.pipeline_mode<synchronous>, transform_indices = @transform_2, window_bounds = array<i64: 32, 144>}, {transform_indices = @transform_3, window_bounds = array<i64: 144, 512>}, {pipeline_mode = #tpu.pipeline_mode<synchronous>, transform_indices = @transform_4, window_bounds = array<i64: 32, 1>}, {transform_indices = @transform_5, window_bounds = array<i64: 32, 512>}]} {
    %c0 = arith.constant 0 : index
    %c0_0 = arith.constant 0 : index
    %0 = vector.load %arg1[%c0, %c0_0] : memref<32x144xbf16, #tpu.memory_space<vmem>>, vector<32x144xbf16>
    %c0_1 = arith.constant 0 : index
    %c0_2 = arith.constant 0 : index
    %1 = vector.load %arg2[%c0_1, %c0_2] : memref<144x512xbf16, #tpu.memory_space<vmem>>, vector<144x512xbf16>
    %cst = arith.constant dense<0.000000e+00> : vector<32x512xf32>
    %2 = tpu.matmul %0, %1, %cst {dimension_numbers = #tpu.dot_dimension_numbers<[1], [0], [0], [1], [0, 0, 1, 1], [], []>} : vector<32x144xbf16>, vector<144x512xbf16>, vector<32x512xf32> -> vector<32x512xf32>
    %c0_3 = arith.constant 0 : index
    %c0_4 = arith.constant 0 : index
    %3 = vector.load %arg3[%c0_3, %c0_4] : memref<32x144xbf16, #tpu.memory_space<vmem>>, vector<32x144xbf16>
    %c0_5 = arith.constant 0 : index
    %c0_6 = arith.constant 0 : index
    %4 = vector.load %arg4[%c0_5, %c0_6] : memref<144x512xbf16, #tpu.memory_space<vmem>>, vector<144x512xbf16>
    %cst_7 = arith.constant dense<0.000000e+00> : vector<32x512xf32>
    %5 = tpu.matmul %3, %4, %cst_7 {dimension_numbers = #tpu.dot_dimension_numbers<[1], [0], [0], [1], [0, 0, 1, 1], [], []>} : vector<32x144xbf16>, vector<144x512xbf16>, vector<32x512xf32> -> vector<32x512xf32>
    %6 = arith.addf %2, %5 : vector<32x512xf32>
    %c0_8 = arith.constant 0 : index
    %c0_9 = arith.constant 0 : index
    %7 = vector.load %arg5[%c0_8, %c0_9] : memref<32x1xf32, #tpu.memory_space<vmem>>, vector<32x1xf32>
    %8 = vector.broadcast %7 : vector<32x1xf32> to vector<32x512xf32>
    %9 = arith.addf %6, %8 : vector<32x512xf32>
    %cst_10 = arith.constant 0.000000e+00 : f32
    %10 = vector.broadcast %cst_10 : f32 to vector<32x512xf32>
    %11 = arith.maximumf %9, %10 : vector<32x512xf32>
    %12 = arith.truncf %11 : vector<32x512xf32> to vector<32x512xbf16>
    %c0_11 = arith.constant 0 : index
    %c0_12 = arith.constant 0 : index
    %13 = vector.load %arg6[%c0_11, %c0_12] : memref<32x512xbf16, #tpu.memory_space<vmem>>, vector<32x512xbf16>
    tpu.vector_store %arg6[%c0_11, %c0_12], %12 {strides = array<i32>} : memref<32x512xbf16, #tpu.memory_space<vmem>>, vector<32x512xbf16>,
    return
  }
  func.func @transform_0(%arg0: i32) -> (i32, i32) {
    %c0_i32 = arith.constant 0 : i32
    %c0_i32_0 = arith.constant 0 : i32
    %c0_i32_1 = arith.constant 0 : i32
    return %c0_i32, %c0_i32_0 : i32, i32
  }
  func.func @transform_1(%arg0: i32) -> (i32, i32) {
    %c0_i32 = arith.constant 0 : i32
    %c0_i32_0 = arith.constant 0 : i32
    return %c0_i32, %arg0 : i32, i32
  }
  func.func @transform_2(%arg0: i32) -> (i32, i32) {
    %c0_i32 = arith.constant 0 : i32
    %c0_i32_0 = arith.constant 0 : i32
    %c0_i32_1 = arith.constant 0 : i32
    return %c0_i32, %c0_i32_0 : i32, i32
  }
  func.func @transform_3(%arg0: i32) -> (i32, i32) {
    %c0_i32 = arith.constant 0 : i32
    %c0_i32_0 = arith.constant 0 : i32
    return %c0_i32, %arg0 : i32, i32
  }
  func.func @transform_4(%arg0: i32) -> (i32, i32) {
    %c0_i32 = arith.constant 0 : i32
    %c0_i32_0 = arith.constant 0 : i32
    %c0_i32_1 = arith.constant 0 : i32
    return %c0_i32, %c0_i32_0 : i32, i32
  }
  func.func @transform_5(%arg0: i32) -> (i32, i32) {
    %c0_i32 = arith.constant 0 : i32
    %c0_i32_0 = arith.constant 0 : i32
    return %c0_i32, %arg0 : i32, i32
  }
}

module attributes {stable_mosaic.version = 11 : i64} {
  func.func @_dec5_dec7_kernel(%arg0: i32, %arg1: memref<12x72xbf16, #tpu.memory_space<vmem>>, %arg2: memref<72x2048xbf16, #tpu.memory_space<vmem>>, %arg3: memref<12x72xbf16, #tpu.memory_space<vmem>>, %arg4: memref<72x2048xbf16, #tpu.memory_space<vmem>>, %arg5: memref<12x1xf32, #tpu.memory_space<vmem>>, %arg6: memref<12x12xbf16, #tpu.memory_space<vmem>>, %arg7: memref<12x12xbf16, #tpu.memory_space<vmem>>, %arg8: memref<12x2048xbf16, #tpu.memory_space<vmem>>, %arg9: memref<12x1xf32, #tpu.memory_space<vmem>>, %arg10: memref<12x2048xf32, #tpu.memory_space<vmem>>) attributes {dimension_semantics = [#tpu.dimension_semantics<parallel>], iteration_bounds = array<i64: 1>, scalar_prefetch = 0 : i64, scratch_operands = 0 : i64, tpu.core_type = #tpu.core_type<tc>, window_params = [{pipeline_mode = #tpu.pipeline_mode<synchronous>, transform_indices = @transform_0, window_bounds = array<i64: 12, 72>}, {transform_indices = @transform_1, window_bounds = array<i64: 72, 2048>}, {pipeline_mode = #tpu.pipeline_mode<synchronous>, transform_indices = @transform_2, window_bounds = array<i64: 12, 72>}, {transform_indices = @transform_3, window_bounds = array<i64: 72, 2048>}, {pipeline_mode = #tpu.pipeline_mode<synchronous>, transform_indices = @transform_4, window_bounds = array<i64: 12, 1>}, {pipeline_mode = #tpu.pipeline_mode<synchronous>, transform_indices = @transform_5, window_bounds = array<i64: 12, 12>}, {pipeline_mode = #tpu.pipeline_mode<synchronous>, transform_indices = @transform_6, window_bounds = array<i64: 12, 12>}, {transform_indices = @transform_7, window_bounds = array<i64: 12, 2048>}, {pipeline_mode = #tpu.pipeline_mode<synchronous>, transform_indices = @transform_8, window_bounds = array<i64: 12, 1>}, {transform_indices = @transform_9, window_bounds = array<i64: 12, 2048>}]} {
    %c0 = arith.constant 0 : index
    %c0_0 = arith.constant 0 : index
    %0 = vector.load %arg1[%c0, %c0_0] : memref<12x72xbf16, #tpu.memory_space<vmem>>, vector<12x72xbf16>
    %c0_1 = arith.constant 0 : index
    %c0_2 = arith.constant 0 : index
    %1 = vector.load %arg2[%c0_1, %c0_2] : memref<72x2048xbf16, #tpu.memory_space<vmem>>, vector<72x2048xbf16>
    %cst = arith.constant dense<0.000000e+00> : vector<12x2048xf32>
    %2 = tpu.matmul %0, %1, %cst {dimension_numbers = #tpu.dot_dimension_numbers<[1], [0], [0], [1], [0, 0, 1, 1], [], []>} : vector<12x72xbf16>, vector<72x2048xbf16>, vector<12x2048xf32> -> vector<12x2048xf32>
    %c0_3 = arith.constant 0 : index
    %c0_4 = arith.constant 0 : index
    %3 = vector.load %arg3[%c0_3, %c0_4] : memref<12x72xbf16, #tpu.memory_space<vmem>>, vector<12x72xbf16>
    %c0_5 = arith.constant 0 : index
    %c0_6 = arith.constant 0 : index
    %4 = vector.load %arg4[%c0_5, %c0_6] : memref<72x2048xbf16, #tpu.memory_space<vmem>>, vector<72x2048xbf16>
    %cst_7 = arith.constant dense<0.000000e+00> : vector<12x2048xf32>
    %5 = tpu.matmul %3, %4, %cst_7 {dimension_numbers = #tpu.dot_dimension_numbers<[1], [0], [0], [1], [0, 0, 1, 1], [], []>} : vector<12x72xbf16>, vector<72x2048xbf16>, vector<12x2048xf32> -> vector<12x2048xf32>
    %6 = arith.addf %2, %5 : vector<12x2048xf32>
    %c0_8 = arith.constant 0 : index
    %c0_9 = arith.constant 0 : index
    %7 = vector.load %arg5[%c0_8, %c0_9] : memref<12x1xf32, #tpu.memory_space<vmem>>, vector<12x1xf32>
    %8 = vector.broadcast %7 : vector<12x1xf32> to vector<12x2048xf32>
    %9 = arith.addf %6, %8 : vector<12x2048xf32>
    %cst_10 = arith.constant 0.000000e+00 : f32
    %10 = vector.broadcast %cst_10 : f32 to vector<12x2048xf32>
    %11 = arith.maximumf %9, %10 : vector<12x2048xf32>
    %c0_11 = arith.constant 0 : index
    %c0_12 = arith.constant 0 : index
    %12 = vector.load %arg6[%c0_11, %c0_12] : memref<12x12xbf16, #tpu.memory_space<vmem>>, vector<12x12xbf16>
    %13 = arith.truncf %11 : vector<12x2048xf32> to vector<12x2048xbf16>
    %cst_13 = arith.constant dense<0.000000e+00> : vector<12x2048xf32>
    %14 = tpu.matmul %12, %13, %cst_13 {dimension_numbers = #tpu.dot_dimension_numbers<[1], [0], [0], [1], [0, 0, 1, 1], [], []>} : vector<12x12xbf16>, vector<12x2048xbf16>, vector<12x2048xf32> -> vector<12x2048xf32>
    %c0_14 = arith.constant 0 : index
    %c0_15 = arith.constant 0 : index
    %15 = vector.load %arg7[%c0_14, %c0_15] : memref<12x12xbf16, #tpu.memory_space<vmem>>, vector<12x12xbf16>
    %c0_16 = arith.constant 0 : index
    %c0_17 = arith.constant 0 : index
    %16 = vector.load %arg8[%c0_16, %c0_17] : memref<12x2048xbf16, #tpu.memory_space<vmem>>, vector<12x2048xbf16>
    %cst_18 = arith.constant dense<0.000000e+00> : vector<12x2048xf32>
    %17 = tpu.matmul %15, %16, %cst_18 {dimension_numbers = #tpu.dot_dimension_numbers<[1], [0], [0], [1], [0, 0, 1, 1], [], []>} : vector<12x12xbf16>, vector<12x2048xbf16>, vector<12x2048xf32> -> vector<12x2048xf32>
    %18 = arith.addf %14, %17 : vector<12x2048xf32>
    %c0_19 = arith.constant 0 : index
    %c0_20 = arith.constant 0 : index
    %19 = vector.load %arg9[%c0_19, %c0_20] : memref<12x1xf32, #tpu.memory_space<vmem>>, vector<12x1xf32>
    %20 = vector.broadcast %19 : vector<12x1xf32> to vector<12x2048xf32>
    %21 = arith.addf %18, %20 : vector<12x2048xf32>
    %c0_21 = arith.constant 0 : index
    %c0_22 = arith.constant 0 : index
    %22 = vector.load %arg10[%c0_21, %c0_22] : memref<12x2048xf32, #tpu.memory_space<vmem>>, vector<12x2048xf32>
    tpu.vector_store %arg10[%c0_21, %c0_22], %21 {strides = array<i32>} : memref<12x2048xf32, #tpu.memory_space<vmem>>, vector<12x2048xf32>,
    return
  }
  func.func @transform_0(%arg0: i32) -> (i32, i32) {
    %c0_i32 = arith.constant 0 : i32
    %c0_i32_0 = arith.constant 0 : i32
    %c0_i32_1 = arith.constant 0 : i32
    return %c0_i32, %c0_i32_0 : i32, i32
  }
  func.func @transform_1(%arg0: i32) -> (i32, i32) {
    %c0_i32 = arith.constant 0 : i32
    %c0_i32_0 = arith.constant 0 : i32
    return %c0_i32, %arg0 : i32, i32
  }
  func.func @transform_2(%arg0: i32) -> (i32, i32) {
    %c0_i32 = arith.constant 0 : i32
    %c0_i32_0 = arith.constant 0 : i32
    %c0_i32_1 = arith.constant 0 : i32
    return %c0_i32, %c0_i32_0 : i32, i32
  }
  func.func @transform_3(%arg0: i32) -> (i32, i32) {
    %c0_i32 = arith.constant 0 : i32
    %c0_i32_0 = arith.constant 0 : i32
    return %c0_i32, %arg0 : i32, i32
  }
  func.func @transform_4(%arg0: i32) -> (i32, i32) {
    %c0_i32 = arith.constant 0 : i32
    %c0_i32_0 = arith.constant 0 : i32
    %c0_i32_1 = arith.constant 0 : i32
    return %c0_i32, %c0_i32_0 : i32, i32
  }
  func.func @transform_5(%arg0: i32) -> (i32, i32) {
    %c0_i32 = arith.constant 0 : i32
    %c0_i32_0 = arith.constant 0 : i32
    %c0_i32_1 = arith.constant 0 : i32
    return %c0_i32, %c0_i32_0 : i32, i32
  }
  func.func @transform_6(%arg0: i32) -> (i32, i32) {
    %c0_i32 = arith.constant 0 : i32
    %c0_i32_0 = arith.constant 0 : i32
    %c0_i32_1 = arith.constant 0 : i32
    return %c0_i32, %c0_i32_0 : i32, i32
  }
  func.func @transform_7(%arg0: i32) -> (i32, i32) {
    %c0_i32 = arith.constant 0 : i32
    %c0_i32_0 = arith.constant 0 : i32
    return %c0_i32, %arg0 : i32, i32
  }
  func.func @transform_8(%arg0: i32) -> (i32, i32) {
    %c0_i32 = arith.constant 0 : i32
    %c0_i32_0 = arith.constant 0 : i32
    %c0_i32_1 = arith.constant 0 : i32
    return %c0_i32, %c0_i32_0 : i32, i32
  }
  func.func @transform_9(%arg0: i32) -> (i32, i32) {
    %c0_i32 = arith.constant 0 : i32
    %c0_i32_0 = arith.constant 0 : i32
    return %c0_i32, %arg0 : i32, i32
  }
}

</mosaic_0001>

<llo_original>
// kernel: generator_forward.9
$region0: #{generator_forward.9}
  #allocation0 [shape = 'u32[]', space=smem, size = 0x4, offset = 0x4, fixed_abs, tag = 'smem constant byte address 0x4 - core index']
  #allocation1 [shape = 'u32[144,128]{1,0:T(1,128)}', space=vmem, size = 0x12000, scoped, tag = 'internal scratch']
  %s0 = inlined_call_operand.vmem [shape: bf16[8,48], index: 0, kind: input, shape index: {}]
  %s1 = inlined_call_operand.vmem [shape: bf16[48,2048], index: 1, kind: input, shape index: {}]
  %s2 = inlined_call_operand.vmem [shape: f32[8,1], index: 2, kind: input, shape index: {}]
  %s3 = inlined_call_operand.vmem [shape: bf16[8,2048], index: 3, kind: output, shape index: {}]
  %s4 = sld [smem:[#allocation0]]
  $region22: #{generator_forward.9} parent=0
    _
  %s6 = ssub.s32 1, %s4
  %s7 = scalar_select 0, %s6, %s4
  // Predicated region
  $region2: #{generator_forward.9} parent=0 // pred_check
    _
  $region3: #{generator_forward.9} parent=0 // pred_check_branch
    %9 = sbr.rel (0) target = $region5
  $region4: #{generator_forward.9} parent=0 // pred_region
    _
  $region5: #{generator_forward.9} parent=0 // pred_fallthru
    _
  // Predicated region
  $region6: #{generator_forward.9} parent=0 // pred_check
    _
  $region7: #{generator_forward.9} parent=0 // pred_check_branch
    %11 = sbr.rel (0) target = $region9
  $region8: #{generator_forward.9} parent=0 // pred_region
    _
  $region9: #{generator_forward.9} parent=0 // pred_fallthru
    _
  // Predicated region
  $region10: #{generator_forward.9} parent=0 // pred_check
    _
  $region11: #{generator_forward.9} parent=0 // pred_check_branch
    %13 = sbr.rel (0) target = $region13
  $region12: #{generator_forward.9} parent=0 // pred_region
    _
  $region13: #{generator_forward.9} parent=0 // pred_fallthru
    _
  %v15 = vld [vmem:[%s0] sm:$0xf]
  %v16 = vld [vmem:[%s1] sm:$0xff]
  %v17 = vld [vmem:[%s1 + $0x8] sm:$0xff]
  %v18 = vld [vmem:[%s1 + $0x10] sm:$0xff]
  %v19 = vld [vmem:[%s1 + $0x18] sm:$0xff]
  %v20 = vld [vmem:[%s1 + $0x20] sm:$0xff]
  %v21 = vld [vmem:[%s1 + $0x28] sm:$0xff]
  %v22 = vld [vmem:[%s1 + $0x30] sm:$0xff]
  %v23 = vld [vmem:[%s1 + $0x38] sm:$0xff]
  %v24 = vld [vmem:[%s1 + $0x40] sm:$0xff]
  %v25 = vld [vmem:[%s1 + $0x48] sm:$0xff]
  %v26 = vld [vmem:[%s1 + $0x50] sm:$0xff]
  %v27 = vld [vmem:[%s1 + $0x58] sm:$0xff]
  %v28 = vld [vmem:[%s1 + $0x60] sm:$0xff]
  %v29 = vld [vmem:[%s1 + $0x68] sm:$0xff]
  %v30 = vld [vmem:[%s1 + $0x70] sm:$0xff]
  %v31 = vld [vmem:[%s1 + $0x78] sm:$0xff]
  %v32 = vld [vmem:[%s1 + $0x80] sm:$0xff]
  %v33 = vld [vmem:[%s1 + $0x88] sm:$0xff]
  %v34 = vld [vmem:[%s1 + $0x90] sm:$0xff]
  %v35 = vld [vmem:[%s1 + $0x98] sm:$0xff]
  %v36 = vld [vmem:[%s1 + $0xa0] sm:$0xff]
  %v37 = vld [vmem:[%s1 + $0xa8] sm:$0xff]
  %v38 = vld [vmem:[%s1 + $0xb0] sm:$0xff]
  %v39 = vld [vmem:[%s1 + $0xb8] sm:$0xff]
  %v40 = vld [vmem:[%s1 + $0xc0] sm:$0xff]
  %v41 = vld [vmem:[%s1 + $0xc8] sm:$0xff]
  %v42 = vld [vmem:[%s1 + $0xd0] sm:$0xff]
  %v43 = vld [vmem:[%s1 + $0xd8] sm:$0xff]
  %v44 = vld [vmem:[%s1 + $0xe0] sm:$0xff]
  %v45 = vld [vmem:[%s1 + $0xe8] sm:$0xff]
  %v46 = vld [vmem:[%s1 + $0xf0] sm:$0xff]
  %v47 = vld [vmem:[%s1 + $0xf8] sm:$0xff]
  %v48 = vld [vmem:[%s1 + $0x100] sm:$0xff]
  %v49 = vld [vmem:[%s1 + $0x108] sm:$0xff]
  %v50 = vld [vmem:[%s1 + $0x110] sm:$0xff]
  %v51 = vld [vmem:[%s1 + $0x118] sm:$0xff]
  %v52 = vld [vmem:[%s1 + $0x120] sm:$0xff]
  %v53 = vld [vmem:[%s1 + $0x128] sm:$0xff]
  %v54 = vld [vmem:[%s1 + $0x130] sm:$0xff]
  %v55 = vld [vmem:[%s1 + $0x138] sm:$0xff]
  %v56 = vld [vmem:[%s1 + $0x140] sm:$0xff]
  %v57 = vld [vmem:[%s1 + $0x148] sm:$0xff]
  %v58 = vld [vmem:[%s1 + $0x150] sm:$0xff]
  %v59 = vld [vmem:[%s1 + $0x158] sm:$0xff]
  %v60 = vld [vmem:[%s1 + $0x160] sm:$0xff]
  %v61 = vld [vmem:[%s1 + $0x168] sm:$0xff]
  %v62 = vld [vmem:[%s1 + $0x170] sm:$0xff]
  %v63 = vld [vmem:[%s1 + $0x178] sm:$0xff]
  %v64 = vld [vmem:[%s2] sm:$0xff]
  %66 = vset.pattern.permute.xlu0 0
  %67 = vperm.xlu0 %66, %v64
  %v68 = vpop.permute.xlu0 %67
  %v118 = vunpack.c.l.b16 %v16
  %v119 = vunpack.c.h.b16 %v16
  %v120 = vunpack.c.l.b16 %v17
  %v121 = vunpack.c.h.b16 %v17
  %v122 = vunpack.c.l.b16 %v18
  %v123 = vunpack.c.h.b16 %v18
  %v124 = vunpack.c.l.b16 %v19
  %v125 = vunpack.c.h.b16 %v19
  %v126 = vunpack.c.l.b16 %v20
  %v127 = vunpack.c.h.b16 %v20
  %v128 = vunpack.c.l.b16 %v21
  %v129 = vunpack.c.h.b16 %v21
  %v130 = vunpack.c.l.b16 %v22
  %v131 = vunpack.c.h.b16 %v22
  %v132 = vunpack.c.l.b16 %v23
  %v133 = vunpack.c.h.b16 %v23
  %v134 = vunpack.c.l.b16 %v24
  %v135 = vunpack.c.h.b16 %v24
  %v136 = vunpack.c.l.b16 %v25
  %v137 = vunpack.c.h.b16 %v25
  %v138 = vunpack.c.l.b16 %v26
  %v139 = vunpack.c.h.b16 %v26
  %v140 = vunpack.c.l.b16 %v27
  %v141 = vunpack.c.h.b16 %v27
  %v142 = vunpack.c.l.b16 %v28
  %v143 = vunpack.c.h.b16 %v28
  %v144 = vunpack.c.l.b16 %v29
  %v145 = vunpack.c.h.b16 %v29
  %v146 = vunpack.c.l.b16 %v30
  %v147 = vunpack.c.h.b16 %v30
  %v148 = vunpack.c.l.b16 %v31
  %v149 = vunpack.c.h.b16 %v31
  %v150 = vunpack.c.l.b16 %v32
  %v151 = vunpack.c.h.b16 %v32
  %v152 = vunpack.c.l.b16 %v33
  %v153 = vunpack.c.h.b16 %v33
  %v154 = vunpack.c.l.b16 %v34
  %v155 = vunpack.c.h.b16 %v34
  %v156 = vunpack.c.l.b16 %v35
  %v157 = vunpack.c.h.b16 %v35
  %v158 = vunpack.c.l.b16 %v36
  %v159 = vunpack.c.h.b16 %v36
  %v160 = vunpack.c.l.b16 %v37
  %v161 = vunpack.c.h.b16 %v37
  %v162 = vunpack.c.l.b16 %v38
  %v163 = vunpack.c.h.b16 %v38
  %v164 = vunpack.c.l.b16 %v39
  %v165 = vunpack.c.h.b16 %v39
  %v166 = vunpack.c.l.b16 %v40
  %v167 = vunpack.c.h.b16 %v40
  %v168 = vunpack.c.l.b16 %v41
  %v169 = vunpack.c.h.b16 %v41
  %v170 = vunpack.c.l.b16 %v42
  %v171 = vunpack.c.h.b16 %v42
  %v172 = vunpack.c.l.b16 %v43
  %v173 = vunpack.c.h.b16 %v43
  %v174 = vunpack.c.l.b16 %v44
  %v175 = vunpack.c.h.b16 %v44
  %v176 = vunpack.c.l.b16 %v45
  %v177 = vunpack.c.h.b16 %v45
  %v178 = vunpack.c.l.b16 %v46
  %v179 = vunpack.c.h.b16 %v46
  %v180 = vunpack.c.l.b16 %v47
  %v181 = vunpack.c.h.b16 %v47
  %v182 = vunpack.c.l.b16 %v48
  %v183 = vunpack.c.h.b16 %v48
  %v184 = vunpack.c.l.b16 %v49
  %v185 = vunpack.c.h.b16 %v49
  %v186 = vunpack.c.l.b16 %v50
  %v187 = vunpack.c.h.b16 %v50
  %v188 = vunpack.c.l.b16 %v51
  %v189 = vunpack.c.h.b16 %v51
  %v190 = vunpack.c.l.b16 %v52
  %v191 = vunpack.c.h.b16 %v52
  %v192 = vunpack.c.l.b16 %v53
  %v193 = vunpack.c.h.b16 %v53
  %v194 = vunpack.c.l.b16 %v54
  %v195 = vunpack.c.h.b16 %v54
  %v196 = vunpack.c.l.b16 %v55
  %v197 = vunpack.c.h.b16 %v55
  %v198 = vunpack.c.l.b16 %v56
  %v199 = vunpack.c.h.b16 %v56
  %v200 = vunpack.c.l.b16 %v57
  %v201 = vunpack.c.h.b16 %v57
  %v202 = vunpack.c.l.b16 %v58
  %v203 = vunpack.c.h.b16 %v58
  %v204 = vunpack.c.l.b16 %v59
  %v205 = vunpack.c.h.b16 %v59
  %v206 = vunpack.c.l.b16 %v60
  %v207 = vunpack.c.h.b16 %v60
  %v208 = vunpack.c.l.b16 %v61
  %v209 = vunpack.c.h.b16 %v61
  %v210 = vunpack.c.l.b16 %v62
  %v211 = vunpack.c.h.b16 %v62
  %v212 = vunpack.c.l.b16 %v63
  %v213 = vunpack.c.h.b16 %v63
  %v214 = vpack.c.b16 %v134, %v118
  %v215 = vpack.c.b16 %v135, %v119
  %v216 = vpack.c.b16 %v136, %v120
  %v217 = vpack.c.b16 %v137, %v121
  %v218 = vpack.c.b16 %v138, %v122
  %v219 = vpack.c.b16 %v139, %v123
  %v220 = vpack.c.b16 %v140, %v124
  %v221 = vpack.c.b16 %v141, %v125
  %v222 = vpack.c.b16 %v142, %v126
  %v223 = vpack.c.b16 %v143, %v127
  %v224 = vpack.c.b16 %v144, %v128
  %v225 = vpack.c.b16 %v145, %v129
  %v226 = vpack.c.b16 %v146, %v130
  %v227 = vpack.c.b16 %v147, %v131
  %v228 = vpack.c.b16 %v148, %v132
  %v229 = vpack.c.b16 %v149, %v133
  %v230 = vpack.c.b16 %v166, %v150
  %v231 = vpack.c.b16 %v167, %v151
  %v232 = vpack.c.b16 %v168, %v152
  %v233 = vpack.c.b16 %v169, %v153
  %v234 = vpack.c.b16 %v170, %v154
  %v235 = vpack.c.b16 %v171, %v155
  %v236 = vpack.c.b16 %v172, %v156
  %v237 = vpack.c.b16 %v173, %v157
  %v238 = vpack.c.b16 %v174, %v158
  %v239 = vpack.c.b16 %v175, %v159
  %v240 = vpack.c.b16 %v176, %v160
  %v241 = vpack.c.b16 %v177, %v161
  %v242 = vpack.c.b16 %v178, %v162
  %v243 = vpack.c.b16 %v179, %v163
  %v244 = vpack.c.b16 %v180, %v164
  %v245 = vpack.c.b16 %v181, %v165
  %v246 = vpack.c.b16 %v198, %v182
  %v247 = vpack.c.b16 %v199, %v183
  %v248 = vpack.c.b16 %v200, %v184
  %v249 = vpack.c.b16 %v201, %v185
  %v250 = vpack.c.b16 %v202, %v186
  %v251 = vpack.c.b16 %v203, %v187
  %v252 = vpack.c.b16 %v204, %v188
  %v253 = vpack.c.b16 %v205, %v189
  %v254 = vpack.c.b16 %v206, %v190
  %v255 = vpack.c.b16 %v207, %v191
  %v256 = vpack.c.b16 %v208, %v192
  %v257 = vpack.c.b16 %v209, %v193
  %v258 = vpack.c.b16 %v210, %v194
  %v259 = vpack.c.b16 %v211, %v195
  %v260 = vpack.c.b16 %v212, %v196
  %v261 = vpack.c.b16 %v213, %v197
  %vm310 = vcmask 392192
  %v312 = vsel %vm310, %v15, 0
  %314 = vmatprep.subr.bf16.mxu0 0
  %315 = vmatpush1.bf16.msra.mxu0 0
  %316 = vmatprep.subr.bf16.mxu0 0
  %317 = vmatpush1.bf16.msra.mxu0 0
  %318 = vmatprep.subr.bf16.mxu0 0
  %319 = vmatpush1.bf16.msra.mxu0 0
  %320 = vmatprep.subr.bf16.mxu0 0
  %321 = vmatpush1.bf16.msra.mxu0 0
  %322 = vmatprep.subr.bf16.mxu0 0
  %323 = vmatpush1.bf16.msra.mxu0 0
  %324 = vmatprep.subr.bf16.mxu0 %v247
  %325 = vmatpush1.bf16.msra.mxu0 %v246
  %326 = vmatprep.subr.bf16.mxu0 %v231
  %327 = vmatpush1.bf16.msra.mxu0 %v230
  %328 = vmatprep.subr.bf16.mxu0 %v215
  %329 = vmatpush1.bf16.msra.mxu0 %v214
  %330 = vmatprep.subr.bf16.mxu0 0
  %331 = vmatpush2.bf16.msra.mxu0 0
  %332 = vmatprep.subr.bf16.mxu0 0
  %333 = vmatpush2.bf16.msra.mxu0 0
  %334 = vmatprep.subr.bf16.mxu0 0
  %335 = vmatpush2.bf16.msra.mxu0 0
  %336 = vmatprep.subr.bf16.mxu0 0
  %337 = vmatpush2.bf16.msra.mxu0 0
  %338 = vmatprep.subr.bf16.mxu0 0
  %339 = vmatpush2.bf16.msra.mxu0 0
  %340 = vmatprep.subr.bf16.mxu0 0
  %341 = vmatpush2.bf16.msra.mxu0 0
  %342 = vmatprep.subr.bf16.mxu0 0
  %343 = vmatpush2.bf16.msra.mxu0 0
  %344 = vmatprep.subr.bf16.mxu0 0
  %345 = vmatpush2.bf16.msra.mxu0 0
  %346 = vmatprep.mubr.bf16.mxu0 0
  %347 = vmatmul.mubr.bf16.gmra.mxu0 %v312
  %v348 = vpop.f32.mrf.mxu0
  %v349 = vadd.f32 %v68, %v348
  %v350 = vpop.f32.mrf.mxu0
  %v351 = vadd.f32 %v68, %v350
  %v352 = vpop.f32.mrf.mxu0
  %v353 = vpop.f32.mrf.mxu0
  %354 = vdwg.mxu0
  %355 = vmatprep.subr.bf16.mxu0 0
  %356 = vmatpush1.bf16.msra.mxu0 0
  %357 = vmatprep.subr.bf16.mxu0 0
  %358 = vmatpush1.bf16.msra.mxu0 0
  %359 = vmatprep.subr.bf16.mxu0 0
  %360 = vmatpush1.bf16.msra.mxu0 0
  %361 = vmatprep.subr.bf16.mxu0 0
  %362 = vmatpush1.bf16.msra.mxu0 0
  %363 = vmatprep.subr.bf16.mxu0 0
  %364 = vmatpush1.bf16.msra.mxu0 0
  %365 = vmatprep.subr.bf16.mxu0 %v249
  %366 = vmatpush1.bf16.msra.mxu0 %v248
  %367 = vmatprep.subr.bf16.mxu0 %v233
  %368 = vmatpush1.bf16.msra.mxu0 %v232
  %369 = vmatprep.subr.bf16.mxu0 %v217
  %370 = vmatpush1.bf16.msra.mxu0 %v216
  %371 = vmatprep.subr.bf16.mxu0 0
  %372 = vmatpush2.bf16.msra.mxu0 0
  %373 = vmatprep.subr.bf16.mxu0 0
  %374 = vmatpush2.bf16.msra.mxu0 0
  %375 = vmatprep.subr.bf16.mxu0 0
  %376 = vmatpush2.bf16.msra.mxu0 0
  %377 = vmatprep.subr.bf16.mxu0 0
  %378 = vmatpush2.bf16.msra.mxu0 0
  %379 = vmatprep.subr.bf16.mxu0 0
  %380 = vmatpush2.bf16.msra.mxu0 0
  %381 = vmatprep.subr.bf16.mxu0 0
  %382 = vmatpush2.bf16.msra.mxu0 0
  %383 = vmatprep.subr.bf16.mxu0 0
  %384 = vmatpush2.bf16.msra.mxu0 0
  %385 = vmatprep.subr.bf16.mxu0 0
  %386 = vmatpush2.bf16.msra.mxu0 0
  %387 = vmatprep.mubr.bf16.mxu0 0
  %388 = vmatmul.mubr.bf16.gmra.mxu0 %v312
  %v389 = vpop.f32.mrf.mxu0
  %v390 = vadd.f32 %v68, %v389
  %v391 = vpop.f32.mrf.mxu0
  %v392 = vadd.f32 %v68, %v391
  %v393 = vpop.f32.mrf.mxu0
  %v394 = vpop.f32.mrf.mxu0
  %395 = vdwg.mxu0
  %396 = vmatprep.subr.bf16.mxu0 0
  %397 = vmatpush1.bf16.msra.mxu0 0
  %398 = vmatprep.subr.bf16.mxu0 0
  %399 = vmatpush1.bf16.msra.mxu0 0
  %400 = vmatprep.subr.bf16.mxu0 0
  %401 = vmatpush1.bf16.msra.mxu0 0
  %402 = vmatprep.subr.bf16.mxu0 0
  %403 = vmatpush1.bf16.msra.mxu0 0
  %404 = vmatprep.subr.bf16.mxu0 0
  %405 = vmatpush1.bf16.msra.mxu0 0
  %406 = vmatprep.subr.bf16.mxu0 %v251
  %407 = vmatpush1.bf16.msra.mxu0 %v250
  %408 = vmatprep.subr.bf16.mxu0 %v235
  %409 = vmatpush1.bf16.msra.mxu0 %v234
  %410 = vmatprep.subr.bf16.mxu0 %v219
  %411 = vmatpush1.bf16.msra.mxu0 %v218
  %412 = vmatprep.subr.bf16.mxu0 0
  %413 = vmatpush2.bf16.msra.mxu0 0
  %414 = vmatprep.subr.bf16.mxu0 0
  %415 = vmatpush2.bf16.msra.mxu0 0
  %416 = vmatprep.subr.bf16.mxu0 0
  %417 = vmatpush2.bf16.msra.mxu0 0
  %418 = vmatprep.subr.bf16.mxu0 0
  %419 = vmatpush2.bf16.msra.mxu0 0
  %420 = vmatprep.subr.bf16.mxu0 0
  %421 = vmatpush2.bf16.msra.mxu0 0
  %422 = vmatprep.subr.bf16.mxu0 0
  %423 = vmatpush2.bf16.msra.mxu0 0
  %424 = vmatprep.subr.bf16.mxu0 0
  %425 = vmatpush2.bf16.msra.mxu0 0
  %426 = vmatprep.subr.bf16.mxu0 0
  %427 = vmatpush2.bf16.msra.mxu0 0
  %428 = vmatprep.mubr.bf16.mxu0 0
  %429 = vmatmul.mubr.bf16.gmra.mxu0 %v312
  %v430 = vpop.f32.mrf.mxu0
  %v431 = vadd.f32 %v68, %v430
  %v432 = vpop.f32.mrf.mxu0
  %v433 = vadd.f32 %v68, %v432
  %v434 = vpop.f32.mrf.mxu0
  %v435 = vpop.f32.mrf.mxu0
  %436 = vdwg.mxu0
  %437 = vmatprep.subr.bf16.mxu0 0
  %438 = vmatpush1.bf16.msra.mxu0 0
  %439 = vmatprep.subr.bf16.mxu0 0
  %440 = vmatpush1.bf16.msra.mxu0 0
  %441 = vmatprep.subr.bf16.mxu0 0
  %442 = vmatpush1.bf16.msra.mxu0 0
  %443 = vmatprep.subr.bf16.mxu0 0
  %444 = vmatpush1.bf16.msra.mxu0 0
  %445 = vmatprep.subr.bf16.mxu0 0
  %446 = vmatpush1.bf16.msra.mxu0 0
  %447 = vmatprep.subr.bf16.mxu0 %v253
  %448 = vmatpush1.bf16.msra.mxu0 %v252
  %449 = vmatprep.subr.bf16.mxu0 %v237
  %450 = vmatpush1.bf16.msra.mxu0 %v236
  %451 = vmatprep.subr.bf16.mxu0 %v221
  %452 = vmatpush1.bf16.msra.mxu0 %v220
  %453 = vmatprep.subr.bf16.mxu0 0
  %454 = vmatpush2.bf16.msra.mxu0 0
  %455 = vmatprep.subr.bf16.mxu0 0
  %456 = vmatpush2.bf16.msra.mxu0 0
  %457 = vmatprep.subr.bf16.mxu0 0
  %458 = vmatpush2.bf16.msra.mxu0 0
  %459 = vmatprep.subr.bf16.mxu0 0
  %460 = vmatpush2.bf16.msra.mxu0 0
  %461 = vmatprep.subr.bf16.mxu0 0
  %462 = vmatpush2.bf16.msra.mxu0 0
  %463 = vmatprep.subr.bf16.mxu0 0
  %464 = vmatpush2.bf16.msra.mxu0 0
  %465 = vmatprep.subr.bf16.mxu0 0
  %466 = vmatpush2.bf16.msra.mxu0 0
  %467 = vmatprep.subr.bf16.mxu0 0
  %468 = vmatpush2.bf16.msra.mxu0 0
  %469 = vmatprep.mubr.bf16.mxu0 0
  %470 = vmatmul.mubr.bf16.gmra.mxu0 %v312
  %v471 = vpop.f32.mrf.mxu0
  %v472 = vadd.f32 %v68, %v471
  %v473 = vpop.f32.mrf.mxu0
  %v474 = vadd.f32 %v68, %v473
  %v475 = vpop.f32.mrf.mxu0
  %v476 = vpop.f32.mrf.mxu0
  %477 = vdwg.mxu0
  %478 = vmatprep.subr.bf16.mxu0 0
  %479 = vmatpush1.bf16.msra.mxu0 0
  %480 = vmatprep.subr.bf16.mxu0 0
  %481 = vmatpush1.bf16.msra.mxu0 0
  %482 = vmatprep.subr.bf16.mxu0 0
  %483 = vmatpush1.bf16.msra.mxu0 0
  %484 = vmatprep.subr.bf16.mxu0 0
  %485 = vmatpush1.bf16.msra.mxu0 0
  %486 = vmatprep.subr.bf16.mxu0 0
  %487 = vmatpush1.bf16.msra.mxu0 0
  %488 = vmatprep.subr.bf16.mxu0 %v255
  %489 = vmatpush1.bf16.msra.mxu0 %v254
  %490 = vmatprep.subr.bf16.mxu0 %v239
  %491 = vmatpush1.bf16.msra.mxu0 %v238
  %492 = vmatprep.subr.bf16.mxu0 %v223
  %493 = vmatpush1.bf16.msra.mxu0 %v222
  %494 = vmatprep.subr.bf16.mxu0 0
  %495 = vmatpush2.bf16.msra.mxu0 0
  %496 = vmatprep.subr.bf16.mxu0 0
  %497 = vmatpush2.bf16.msra.mxu0 0
  %498 = vmatprep.subr.bf16.mxu0 0
  %499 = vmatpush2.bf16.msra.mxu0 0
  %500 = vmatprep.subr.bf16.mxu0 0
  %501 = vmatpush2.bf16.msra.mxu0 0
  %502 = vmatprep.subr.bf16.mxu0 0
  %503 = vmatpush2.bf16.msra.mxu0 0
  %504 = vmatprep.subr.bf16.mxu0 0
  %505 = vmatpush2.bf16.msra.mxu0 0
  %506 = vmatprep.subr.bf16.mxu0 0
  %507 = vmatpush2.bf16.msra.mxu0 0
  %508 = vmatprep.subr.bf16.mxu0 0
  %509 = vmatpush2.bf16.msra.mxu0 0
  %510 = vmatprep.mubr.bf16.mxu0 0
  %511 = vmatmul.mubr.bf16.gmra.mxu0 %v312
  %v512 = vpop.f32.mrf.mxu0
  %v513 = vadd.f32 %v68, %v512
  %v514 = vpop.f32.mrf.mxu0
  %v515 = vadd.f32 %v68, %v514
  %v516 = vpop.f32.mrf.mxu0
  %v517 = vpop.f32.mrf.mxu0
  %518 = vdwg.mxu0
  %519 = vmatprep.subr.bf16.mxu0 0
  %520 = vmatpush1.bf16.msra.mxu0 0
  %521 = vmatprep.subr.bf16.mxu0 0
  %522 = vmatpush1.bf16.msra.mxu0 0
  %523 = vmatprep.subr.bf16.mxu0 0
  %524 = vmatpush1.bf16.msra.mxu0 0
  %525 = vmatprep.subr.bf16.mxu0 0
  %526 = vmatpush1.bf16.msra.mxu0 0
  %527 = vmatprep.subr.bf16.mxu0 0
  %528 = vmatpush1.bf16.msra.mxu0 0
  %529 = vmatprep.subr.bf16.mxu0 %v257
  %530 = vmatpush1.bf16.msra.mxu0 %v256
  %531 = vmatprep.subr.bf16.mxu0 %v241
  %532 = vmatpush1.bf16.msra.mxu0 %v240
  %533 = vmatprep.subr.bf16.mxu0 %v225
  %534 = vmatpush1.bf16.msra.mxu0 %v224
  %535 = vmatprep.subr.bf16.mxu0 0
  %536 = vmatpush2.bf16.msra.mxu0 0
  %537 = vmatprep.subr.bf16.mxu0 0
  %538 = vmatpush2.bf16.msra.mxu0 0
  %539 = vmatprep.subr.bf16.mxu0 0
  %540 = vmatpush2.bf16.msra.mxu0 0
  %541 = vmatprep.subr.bf16.mxu0 0
  %542 = vmatpush2.bf16.msra.mxu0 0
  %543 = vmatprep.subr.bf16.mxu0 0
  %544 = vmatpush2.bf16.msra.mxu0 0
  %545 = vmatprep.subr.bf16.mxu0 0
  %546 = vmatpush2.bf16.msra.mxu0 0
  %547 = vmatprep.subr.bf16.mxu0 0
  %548 = vmatpush2.bf16.msra.mxu0 0
  %549 = vmatprep.subr.bf16.mxu0 0
  %550 = vmatpush2.bf16.msra.mxu0 0
  %551 = vmatprep.mubr.bf16.mxu0 0
  %552 = vmatmul.mubr.bf16.gmra.mxu0 %v312
  %v553 = vpop.f32.mrf.mxu0
  %v554 = vadd.f32 %v68, %v553
  %v555 = vpop.f32.mrf.mxu0
  %v556 = vadd.f32 %v68, %v555
  %v557 = vpop.f32.mrf.mxu0
  %v558 = vpop.f32.mrf.mxu0
  %559 = vdwg.mxu0
  %560 = vmatprep.subr.bf16.mxu0 0
  %561 = vmatpush1.bf16.msra.mxu0 0
  %562 = vmatprep.subr.bf16.mxu0 0
  %563 = vmatpush1.bf16.msra.mxu0 0
  %564 = vmatprep.subr.bf16.mxu0 0
  %565 = vmatpush1.bf16.msra.mxu0 0
  %566 = vmatprep.subr.bf16.mxu0 0
  %567 = vmatpush1.bf16.msra.mxu0 0
  %568 = vmatprep.subr.bf16.mxu0 0
  %569 = vmatpush1.bf16.msra.mxu0 0
  %570 = vmatprep.subr.bf16.mxu0 %v259
  %571 = vmatpush1.bf16.msra.mxu0 %v258
  %572 = vmatprep.subr.bf16.mxu0 %v243
  %573 = vmatpush1.bf16.msra.mxu0 %v242
  %574 = vmatprep.subr.bf16.mxu0 %v227
  %575 = vmatpush1.bf16.msra.mxu0 %v226
  %576 = vmatprep.subr.bf16.mxu0 0
  %577 = vmatpush2.bf16.msra.mxu0 0
  %578 = vmatprep.subr.bf16.mxu0 0
  %579 = vmatpush2.bf16.msra.mxu0 0
  %580 = vmatprep.subr.bf16.mxu0 0
  %581 = vmatpush2.bf16.msra.mxu0 0
  %582 = vmatprep.subr.bf16.mxu0 0
  %583 = vmatpush2.bf16.msra.mxu0 0
  %584 = vmatprep.subr.bf16.mxu0 0
  %585 = vmatpush2.bf16.msra.mxu0 0
  %586 = vmatprep.subr.bf16.mxu0 0
  %587 = vmatpush2.bf16.msra.mxu0 0
  %588 = vmatprep.subr.bf16.mxu0 0
  %589 = vmatpush2.bf16.msra.mxu0 0
  %590 = vmatprep.subr.bf16.mxu0 0
  %591 = vmatpush2.bf16.msra.mxu0 0
  %592 = vmatprep.mubr.bf16.mxu0 0
  %593 = vmatmul.mubr.bf16.gmra.mxu0 %v312
  %v594 = vpop.f32.mrf.mxu0
  %v595 = vadd.f32 %v68, %v594
  %v596 = vpop.f32.mrf.mxu0
  %v597 = vadd.f32 %v68, %v596
  %v598 = vpop.f32.mrf.mxu0
  %v599 = vpop.f32.mrf.mxu0
  %600 = vdwg.mxu0
  %601 = vmatprep.subr.bf16.mxu0 0
  %602 = vmatpush1.bf16.msra.mxu0 0
  %603 = vmatprep.subr.bf16.mxu0 0
  %604 = vmatpush1.bf16.msra.mxu0 0
  %605 = vmatprep.subr.bf16.mxu0 0
  %606 = vmatpush1.bf16.msra.mxu0 0
  %607 = vmatprep.subr.bf16.mxu0 0
  %608 = vmatpush1.bf16.msra.mxu0 0
  %609 = vmatprep.subr.bf16.mxu0 0
  %610 = vmatpush1.bf16.msra.mxu0 0
  %611 = vmatprep.subr.bf16.mxu0 %v261
  %612 = vmatpush1.bf16.msra.mxu0 %v260
  %613 = vmatprep.subr.bf16.mxu0 %v245
  %614 = vmatpush1.bf16.msra.mxu0 %v244
  %615 = vmatprep.subr.bf16.mxu0 %v229
  %616 = vmatpush1.bf16.msra.mxu0 %v228
  %617 = vmatprep.subr.bf16.mxu0 0
  %618 = vmatpush2.bf16.msra.mxu0 0
  %619 = vmatprep.subr.bf16.mxu0 0
  %620 = vmatpush2.bf16.msra.mxu0 0
  %621 = vmatprep.subr.bf16.mxu0 0
  %622 = vmatpush2.bf16.msra.mxu0 0
  %623 = vmatprep.subr.bf16.mxu0 0
  %624 = vmatpush2.bf16.msra.mxu0 0
  %625 = vmatprep.subr.bf16.mxu0 0
  %626 = vmatpush2.bf16.msra.mxu0 0
  %627 = vmatprep.subr.bf16.mxu0 0
  %628 = vmatpush2.bf16.msra.mxu0 0
  %629 = vmatprep.subr.bf16.mxu0 0
  %630 = vmatpush2.bf16.msra.mxu0 0
  %631 = vmatprep.subr.bf16.mxu0 0
  %632 = vmatpush2.bf16.msra.mxu0 0
  %633 = vmatprep.mubr.bf16.mxu0 0
  %634 = vmatmul.mubr.bf16.gmra.mxu0 %v312
  %v635 = vpop.f32.mrf.mxu0
  %v636 = vadd.f32 %v68, %v635
  %v637 = vpop.f32.mrf.mxu0
  %v638 = vadd.f32 %v68, %v637
  %v639 = vpop.f32.mrf.mxu0
  %v640 = vpop.f32.mrf.mxu0
  %641 = vdwg.mxu0
  %v642 = vmax.f32 %v349, 0.0
  %v643 = vmax.f32 %v351, 0.0
  %v644 = vmax.f32 %v390, 0.0
  %v645 = vmax.f32 %v392, 0.0
  %v646 = vmax.f32 %v431, 0.0
  %v647 = vmax.f32 %v433, 0.0
  %v648 = vmax.f32 %v472, 0.0
  %v649 = vmax.f32 %v474, 0.0
  %v650 = vmax.f32 %v513, 0.0
  %v651 = vmax.f32 %v515, 0.0
  %v652 = vmax.f32 %v554, 0.0
  %v653 = vmax.f32 %v556, 0.0
  %v654 = vmax.f32 %v595, 0.0
  %v655 = vmax.f32 %v597, 0.0
  %v656 = vmax.f32 %v636, 0.0
  %v657 = vmax.f32 %v638, 0.0
  %v658 = vpack.c.bf16 %v642, %v642
  %v659 = vpack.c.bf16 %v643, %v643
  %v660 = vpack.c.bf16 %v644, %v644
  %v661 = vpack.c.bf16 %v645, %v645
  %v662 = vpack.c.bf16 %v646, %v646
  %v663 = vpack.c.bf16 %v647, %v647
  %v664 = vpack.c.bf16 %v648, %v648
  %v665 = vpack.c.bf16 %v649, %v649
  %v666 = vpack.c.bf16 %v650, %v650
  %v667 = vpack.c.bf16 %v651, %v651
  %v668 = vpack.c.bf16 %v652, %v652
  %v669 = vpack.c.bf16 %v653, %v653
  %v670 = vpack.c.bf16 %v654, %v654
  %v671 = vpack.c.bf16 %v655, %v655
  %v672 = vpack.c.bf16 %v656, %v656
  %v673 = vpack.c.bf16 %v657, %v657
  %v690 = vunpack.c.l.b16 %v658
  %v691 = vunpack.c.l.b16 %v659
  %v692 = vunpack.c.l.b16 %v660
  %v693 = vunpack.c.l.b16 %v661
  %v694 = vunpack.c.l.b16 %v662
  %v695 = vunpack.c.l.b16 %v663
  %v696 = vunpack.c.l.b16 %v664
  %v697 = vunpack.c.l.b16 %v665
  %v698 = vunpack.c.l.b16 %v666
  %v699 = vunpack.c.l.b16 %v667
  %v700 = vunpack.c.l.b16 %v668
  %v701 = vunpack.c.l.b16 %v669
  %v702 = vunpack.c.l.b16 %v670
  %v703 = vunpack.c.l.b16 %v671
  %v704 = vunpack.c.l.b16 %v672
  %v705 = vunpack.c.l.b16 %v673
  %v706 = vpack.c.b16 %v691, %v690
  %v707 = vpack.c.b16 %v693, %v692
  %v708 = vpack.c.b16 %v695, %v694
  %v709 = vpack.c.b16 %v697, %v696
  %v710 = vpack.c.b16 %v699, %v698
  %v711 = vpack.c.b16 %v701, %v700
  %v712 = vpack.c.b16 %v703, %v702
  %v713 = vpack.c.b16 %v705, %v704
  %722 = vst [vmem:[%s3] sm:$0xff] %v706
  %723 = vst [vmem:[%s3 + $0x8] sm:$0xff] %v707
  %724 = vst [vmem:[%s3 + $0x10] sm:$0xff] %v708
  %725 = vst [vmem:[%s3 + $0x18] sm:$0xff] %v709
  %726 = vst [vmem:[%s3 + $0x20] sm:$0xff] %v710
  %727 = vst [vmem:[%s3 + $0x28] sm:$0xff] %v711
  %728 = vst [vmem:[%s3 + $0x30] sm:$0xff] %v712
  %729 = vst [vmem:[%s3 + $0x38] sm:$0xff] %v713
  // Predicated region
  $region14: #{generator_forward.9} parent=0 // pred_check
    _
  $region15: #{generator_forward.9} parent=0 // pred_check_branch
    %731 = sbr.rel (0) target = $region17
  $region16: #{generator_forward.9} parent=0 // pred_region
    _
  $region17: #{generator_forward.9} parent=0 // pred_fallthru
    _
  // Predicated region
  $region18: #{generator_forward.9} parent=0 // pred_check
    _
  $region19: #{generator_forward.9} parent=0 // pred_check_branch
    %733 = sbr.rel (0) target = $region21
  $region20: #{generator_forward.9} parent=0 // pred_region
    _
  $region21: #{generator_forward.9} parent=0 // pred_fallthru
    _

// kernel: generator_forward.10
$region0: #{generator_forward.10}
  #allocation0 [shape = 'u32[]', space=smem, size = 0x4, offset = 0x4, fixed_abs, tag = 'smem constant byte address 0x4 - core index']
  #allocation1 [shape = 'u32[144,128]{1,0:T(1,128)}', space=vmem, size = 0x12000, scoped, tag = 'internal scratch']
  %s0 = inlined_call_operand.vmem [shape: bf16[16,128], index: 0, kind: input, shape index: {}]
  %s1 = inlined_call_operand.vmem [shape: bf16[128,512], index: 1, kind: input, shape index: {}]
  %s2 = inlined_call_operand.vmem [shape: f32[16,1], index: 2, kind: input, shape index: {}]
  %s3 = inlined_call_operand.vmem [shape: bf16[16,512], index: 3, kind: output, shape index: {}]
  %s4 = sld [smem:[#allocation0]]
  $region22: #{generator_forward.10} parent=0
    _
  %s6 = ssub.s32 1, %s4
  %s7 = scalar_select 0, %s6, %s4
  // Predicated region
  $region2: #{generator_forward.10} parent=0 // pred_check
    _
  $region3: #{generator_forward.10} parent=0 // pred_check_branch
    %9 = sbr.rel (0) target = $region5
  $region4: #{generator_forward.10} parent=0 // pred_region
    _
  $region5: #{generator_forward.10} parent=0 // pred_fallthru
    _
  // Predicated region
  $region6: #{generator_forward.10} parent=0 // pred_check
    _
  $region7: #{generator_forward.10} parent=0 // pred_check_branch
    %11 = sbr.rel (0) target = $region9
  $region8: #{generator_forward.10} parent=0 // pred_region
    _
  $region9: #{generator_forward.10} parent=0 // pred_fallthru
    _
  // Predicated region
  $region10: #{generator_forward.10} parent=0 // pred_check
    _
  $region11: #{generator_forward.10} parent=0 // pred_check_branch
    %13 = sbr.rel (0) target = $region13
  $region12: #{generator_forward.10} parent=0 // pred_region
    _
  $region13: #{generator_forward.10} parent=0 // pred_fallthru
    _
  %v15 = vld [vmem:[%s0] sm:$0xf]
  %v16 = vld [vmem:[%s0 + $0x4] sm:$0xf]
  %v17 = vld [vmem:[%s1] sm:$0xff]
  %v18 = vld [vmem:[%s1 + $0x8] sm:$0xff]
  %v19 = vld [vmem:[%s1 + $0x10] sm:$0xff]
  %v20 = vld [vmem:[%s1 + $0x18] sm:$0xff]
  %v21 = vld [vmem:[%s1 + $0x20] sm:$0xff]
  %v22 = vld [vmem:[%s1 + $0x28] sm:$0xff]
  %v23 = vld [vmem:[%s1 + $0x30] sm:$0xff]
  %v24 = vld [vmem:[%s1 + $0x38] sm:$0xff]
  %v25 = vld [vmem:[%s1 + $0x40] sm:$0xff]
  %v26 = vld [vmem:[%s1 + $0x48] sm:$0xff]
  %v27 = vld [vmem:[%s1 + $0x50] sm:$0xff]
  %v28 = vld [vmem:[%s1 + $0x58] sm:$0xff]
  %v29 = vld [vmem:[%s1 + $0x60] sm:$0xff]
  %v30 = vld [vmem:[%s1 + $0x68] sm:$0xff]
  %v31 = vld [vmem:[%s1 + $0x70] sm:$0xff]
  %v32 = vld [vmem:[%s1 + $0x78] sm:$0xff]
  %v33 = vld [vmem:[%s1 + $0x80] sm:$0xff]
  %v34 = vld [vmem:[%s1 + $0x88] sm:$0xff]
  %v35 = vld [vmem:[%s1 + $0x90] sm:$0xff]
  %v36 = vld [vmem:[%s1 + $0x98] sm:$0xff]
  %v37 = vld [vmem:[%s1 + $0xa0] sm:$0xff]
  %v38 = vld [vmem:[%s1 + $0xa8] sm:$0xff]
  %v39 = vld [vmem:[%s1 + $0xb0] sm:$0xff]
  %v40 = vld [vmem:[%s1 + $0xb8] sm:$0xff]
  %v41 = vld [vmem:[%s1 + $0xc0] sm:$0xff]
  %v42 = vld [vmem:[%s1 + $0xc8] sm:$0xff]
  %v43 = vld [vmem:[%s1 + $0xd0] sm:$0xff]
  %v44 = vld [vmem:[%s1 + $0xd8] sm:$0xff]
  %v45 = vld [vmem:[%s1 + $0xe0] sm:$0xff]
  %v46 = vld [vmem:[%s1 + $0xe8] sm:$0xff]
  %v47 = vld [vmem:[%s1 + $0xf0] sm:$0xff]
  %v48 = vld [vmem:[%s1 + $0xf8] sm:$0xff]
  %v49 = vld [vmem:[%s2] sm:$0xff]
  %v50 = vld [vmem:[%s2 + $0x8] sm:$0xff]
  %52 = vset.pattern.permute.xlu0 0
  %53 = vperm.xlu0 %52, %v49
  %v54 = vpop.permute.xlu0 %53
  %57 = vset.pattern.permute.xlu0 0
  %58 = vperm.xlu0 %57, %v50
  %v59 = vpop.permute.xlu0 %58
  %v63 = vunpack.c.l.b16 %v15
  %v64 = vunpack.c.l.b16 %v16
  %v65 = vpack.c.b16 %v64, %v63
  %v99 = vunpack.c.l.b16 %v17
  %v100 = vunpack.c.h.b16 %v17
  %v101 = vunpack.c.l.b16 %v18
  %v102 = vunpack.c.h.b16 %v18
  %v103 = vunpack.c.l.b16 %v19
  %v104 = vunpack.c.h.b16 %v19
  %v105 = vunpack.c.l.b16 %v20
  %v106 = vunpack.c.h.b16 %v20
  %v107 = vunpack.c.l.b16 %v21
  %v108 = vunpack.c.h.b16 %v21
  %v109 = vunpack.c.l.b16 %v22
  %v110 = vunpack.c.h.b16 %v22
  %v111 = vunpack.c.l.b16 %v23
  %v112 = vunpack.c.h.b16 %v23
  %v113 = vunpack.c.l.b16 %v24
  %v114 = vunpack.c.h.b16 %v24
  %v115 = vunpack.c.l.b16 %v25
  %v116 = vunpack.c.h.b16 %v25
  %v117 = vunpack.c.l.b16 %v26
  %v118 = vunpack.c.h.b16 %v26
  %v119 = vunpack.c.l.b16 %v27
  %v120 = vunpack.c.h.b16 %v27
  %v121 = vunpack.c.l.b16 %v28
  %v122 = vunpack.c.h.b16 %v28
  %v123 = vunpack.c.l.b16 %v29
  %v124 = vunpack.c.h.b16 %v29
  %v125 = vunpack.c.l.b16 %v30
  %v126 = vunpack.c.h.b16 %v30
  %v127 = vunpack.c.l.b16 %v31
  %v128 = vunpack.c.h.b16 %v31
  %v129 = vunpack.c.l.b16 %v32
  %v130 = vunpack.c.h.b16 %v32
  %v131 = vunpack.c.l.b16 %v33
  %v132 = vunpack.c.h.b16 %v33
  %v133 = vunpack.c.l.b16 %v34
  %v134 = vunpack.c.h.b16 %v34
  %v135 = vunpack.c.l.b16 %v35
  %v136 = vunpack.c.h.b16 %v35
  %v137 = vunpack.c.l.b16 %v36
  %v138 = vunpack.c.h.b16 %v36
  %v139 = vunpack.c.l.b16 %v37
  %v140 = vunpack.c.h.b16 %v37
  %v141 = vunpack.c.l.b16 %v38
  %v142 = vunpack.c.h.b16 %v38
  %v143 = vunpack.c.l.b16 %v39
  %v144 = vunpack.c.h.b16 %v39
  %v145 = vunpack.c.l.b16 %v40
  %v146 = vunpack.c.h.b16 %v40
  %v147 = vunpack.c.l.b16 %v41
  %v148 = vunpack.c.h.b16 %v41
  %v149 = vunpack.c.l.b16 %v42
  %v150 = vunpack.c.h.b16 %v42
  %v151 = vunpack.c.l.b16 %v43
  %v152 = vunpack.c.h.b16 %v43
  %v153 = vunpack.c.l.b16 %v44
  %v154 = vunpack.c.h.b16 %v44
  %v155 = vunpack.c.l.b16 %v45
  %v156 = vunpack.c.h.b16 %v45
  %v157 = vunpack.c.l.b16 %v46
  %v158 = vunpack.c.h.b16 %v46
  %v159 = vunpack.c.l.b16 %v47
  %v160 = vunpack.c.h.b16 %v47
  %v161 = vunpack.c.l.b16 %v48
  %v162 = vunpack.c.h.b16 %v48
  %v163 = vpack.c.b16 %v103, %v99
  %v164 = vpack.c.b16 %v104, %v100
  %v165 = vpack.c.b16 %v105, %v101
  %v166 = vpack.c.b16 %v106, %v102
  %v167 = vpack.c.b16 %v111, %v107
  %v168 = vpack.c.b16 %v112, %v108
  %v169 = vpack.c.b16 %v113, %v109
  %v170 = vpack.c.b16 %v114, %v110
  %v171 = vpack.c.b16 %v119, %v115
  %v172 = vpack.c.b16 %v120, %v116
  %v173 = vpack.c.b16 %v121, %v117
  %v174 = vpack.c.b16 %v122, %v118
  %v175 = vpack.c.b16 %v127, %v123
  %v176 = vpack.c.b16 %v128, %v124
  %v177 = vpack.c.b16 %v129, %v125
  %v178 = vpack.c.b16 %v130, %v126
  %v179 = vpack.c.b16 %v135, %v131
  %v180 = vpack.c.b16 %v136, %v132
  %v181 = vpack.c.b16 %v137, %v133
  %v182 = vpack.c.b16 %v138, %v134
  %v183 = vpack.c.b16 %v143, %v139
  %v184 = vpack.c.b16 %v144, %v140
  %v185 = vpack.c.b16 %v145, %v141
  %v186 = vpack.c.b16 %v146, %v142
  %v187 = vpack.c.b16 %v151, %v147
  %v188 = vpack.c.b16 %v152, %v148
  %v189 = vpack.c.b16 %v153, %v149
  %v190 = vpack.c.b16 %v154, %v150
  %v191 = vpack.c.b16 %v159, %v155
  %v192 = vpack.c.b16 %v160, %v156
  %v193 = vpack.c.b16 %v161, %v157
  %v194 = vpack.c.b16 %v162, %v158
  %227 = vmatprep.subr.bf16.mxu0 %v192
  %228 = vmatpush1.bf16.msra.mxu0 %v191
  %229 = vmatprep.subr.bf16.mxu0 %v188
  %230 = vmatpush1.bf16.msra.mxu0 %v187
  %231 = vmatprep.subr.bf16.mxu0 %v184
  %232 = vmatpush1.bf16.msra.mxu0 %v183
  %233 = vmatprep.subr.bf16.mxu0 %v180
  %234 = vmatpush1.bf16.msra.mxu0 %v179
  %235 = vmatprep.subr.bf16.mxu0 %v176
  %236 = vmatpush1.bf16.msra.mxu0 %v175
  %237 = vmatprep.subr.bf16.mxu0 %v172
  %238 = vmatpush1.bf16.msra.mxu0 %v171
  %239 = vmatprep.subr.bf16.mxu0 %v168
  %240 = vmatpush1.bf16.msra.mxu0 %v167
  %241 = vmatprep.subr.bf16.mxu0 %v164
  %242 = vmatpush1.bf16.msra.mxu0 %v163
  %243 = vmatprep.subr.bf16.mxu0 0
  %244 = vmatpush2.bf16.msra.mxu0 0
  %245 = vmatprep.subr.bf16.mxu0 0
  %246 = vmatpush2.bf16.msra.mxu0 0
  %247 = vmatprep.subr.bf16.mxu0 0
  %248 = vmatpush2.bf16.msra.mxu0 0
  %249 = vmatprep.subr.bf16.mxu0 0
  %250 = vmatpush2.bf16.msra.mxu0 0
  %251 = vmatprep.subr.bf16.mxu0 0
  %252 = vmatpush2.bf16.msra.mxu0 0
  %253 = vmatprep.subr.bf16.mxu0 0
  %254 = vmatpush2.bf16.msra.mxu0 0
  %255 = vmatprep.subr.bf16.mxu0 0
  %256 = vmatpush2.bf16.msra.mxu0 0
  %257 = vmatprep.subr.bf16.mxu0 0
  %258 = vmatpush2.bf16.msra.mxu0 0
  %259 = vmatprep.mubr.bf16.mxu0 0
  %260 = vmatmul.mubr.bf16.gmra.mxu0 %v65
  %v261 = vpop.f32.mrf.mxu0
  %v262 = vadd.f32 %v54, %v261
  %v263 = vpop.f32.mrf.mxu0
  %v264 = vadd.f32 %v54, %v263
  %v265 = vpop.f32.mrf.mxu0
  %v266 = vadd.f32 %v59, %v265
  %v267 = vpop.f32.mrf.mxu0
  %v268 = vadd.f32 %v59, %v267
  %269 = vdwg.mxu0
  %270 = vmatprep.subr.bf16.mxu0 %v194
  %271 = vmatpush1.bf16.msra.mxu0 %v193
  %272 = vmatprep.subr.bf16.mxu0 %v190
  %273 = vmatpush1.bf16.msra.mxu0 %v189
  %274 = vmatprep.subr.bf16.mxu0 %v186
  %275 = vmatpush1.bf16.msra.mxu0 %v185
  %276 = vmatprep.subr.bf16.mxu0 %v182
  %277 = vmatpush1.bf16.msra.mxu0 %v181
  %278 = vmatprep.subr.bf16.mxu0 %v178
  %279 = vmatpush1.bf16.msra.mxu0 %v177
  %280 = vmatprep.subr.bf16.mxu0 %v174
  %281 = vmatpush1.bf16.msra.mxu0 %v173
  %282 = vmatprep.subr.bf16.mxu0 %v170
  %283 = vmatpush1.bf16.msra.mxu0 %v169
  %284 = vmatprep.subr.bf16.mxu0 %v166
  %285 = vmatpush1.bf16.msra.mxu0 %v165
  %286 = vmatprep.subr.bf16.mxu0 0
  %287 = vmatpush2.bf16.msra.mxu0 0
  %288 = vmatprep.subr.bf16.mxu0 0
  %289 = vmatpush2.bf16.msra.mxu0 0
  %290 = vmatprep.subr.bf16.mxu0 0
  %291 = vmatpush2.bf16.msra.mxu0 0
  %292 = vmatprep.subr.bf16.mxu0 0
  %293 = vmatpush2.bf16.msra.mxu0 0
  %294 = vmatprep.subr.bf16.mxu0 0
  %295 = vmatpush2.bf16.msra.mxu0 0
  %296 = vmatprep.subr.bf16.mxu0 0
  %297 = vmatpush2.bf16.msra.mxu0 0
  %298 = vmatprep.subr.bf16.mxu0 0
  %299 = vmatpush2.bf16.msra.mxu0 0
  %300 = vmatprep.subr.bf16.mxu0 0
  %301 = vmatpush2.bf16.msra.mxu0 0
  %302 = vmatprep.mubr.bf16.mxu0 0
  %303 = vmatmul.mubr.bf16.gmra.mxu0 %v65
  %v304 = vpop.f32.mrf.mxu0
  %v305 = vadd.f32 %v54, %v304
  %v306 = vpop.f32.mrf.mxu0
  %v307 = vadd.f32 %v54, %v306
  %v308 = vpop.f32.mrf.mxu0
  %v309 = vadd.f32 %v59, %v308
  %v310 = vpop.f32.mrf.mxu0
  %v311 = vadd.f32 %v59, %v310
  %312 = vdwg.mxu0
  %v313 = vmax.f32 %v262, 0.0
  %v314 = vmax.f32 %v264, 0.0
  %v315 = vmax.f32 %v305, 0.0
  %v316 = vmax.f32 %v307, 0.0
  %v317 = vmax.f32 %v266, 0.0
  %v318 = vmax.f32 %v268, 0.0
  %v319 = vmax.f32 %v309, 0.0
  %v320 = vmax.f32 %v311, 0.0
  %v321 = vpack.c.bf16 %v317, %v313
  %v322 = vpack.c.bf16 %v318, %v314
  %v323 = vpack.c.bf16 %v319, %v315
  %v324 = vpack.c.bf16 %v320, %v316
  %v329 = vunpack.c.l.b16 %v321
  %v330 = vunpack.c.l.b16 %v322
  %v331 = vunpack.c.l.b16 %v323
  %v332 = vunpack.c.l.b16 %v324
  %v333 = vunpack.c.h.b16 %v321
  %v334 = vunpack.c.h.b16 %v322
  %v335 = vunpack.c.h.b16 %v323
  %v336 = vunpack.c.h.b16 %v324
  %v337 = vpack.c.b16 %v330, %v329
  %v338 = vpack.c.b16 %v332, %v331
  %v339 = vpack.c.b16 %v334, %v333
  %v340 = vpack.c.b16 %v336, %v335
  %345 = vst [vmem:[%s3] sm:$0xff] %v337
  %346 = vst [vmem:[%s3 + $0x8] sm:$0xff] %v338
  %347 = vst [vmem:[%s3 + $0x10] sm:$0xff] %v339
  %348 = vst [vmem:[%s3 + $0x18] sm:$0xff] %v340
  // Predicated region
  $region14: #{generator_forward.10} parent=0 // pred_check
    _
  $region15: #{generator_forward.10} parent=0 // pred_check_branch
    %350 = sbr.rel (0) target = $region17
  $region16: #{generator_forward.10} parent=0 // pred_region
    _
  $region17: #{generator_forward.10} parent=0 // pred_fallthru
    _
  // Predicated region
  $region18: #{generator_forward.10} parent=0 // pred_check
    _
  $region19: #{generator_forward.10} parent=0 // pred_check_branch
    %352 = sbr.rel (0) target = $region21
  $region20: #{generator_forward.10} parent=0 // pred_region
    _
  $region21: #{generator_forward.10} parent=0 // pred_fallthru
    _

// kernel: generator_forward.11
$region0: #{generator_forward.11}
  #allocation0 [shape = 'u32[]', space=smem, size = 0x4, offset = 0x4, fixed_abs, tag = 'smem constant byte address 0x4 - core index']
  #allocation1 [shape = 'u32[144,128]{1,0:T(1,128)}', space=vmem, size = 0x12000, scoped, tag = 'internal scratch']
  %s0 = inlined_call_operand.vmem [shape: bf16[32,256], index: 0, kind: input, shape index: {}]
  %s1 = inlined_call_operand.vmem [shape: bf16[256,128], index: 1, kind: input, shape index: {}]
  %s2 = inlined_call_operand.vmem [shape: f32[32,1], index: 2, kind: input, shape index: {}]
  %s3 = inlined_call_operand.vmem [shape: bf16[32,128], index: 3, kind: output, shape index: {}]
  %s4 = sld [smem:[#allocation0]]
  $region22: #{generator_forward.11} parent=0
    _
  %s6 = ssub.s32 1, %s4
  %s7 = scalar_select 0, %s6, %s4
  // Predicated region
  $region2: #{generator_forward.11} parent=0 // pred_check
    _
  $region3: #{generator_forward.11} parent=0 // pred_check_branch
    %9 = sbr.rel (0) target = $region5
  $region4: #{generator_forward.11} parent=0 // pred_region
    _
  $region5: #{generator_forward.11} parent=0 // pred_fallthru
    _
  // Predicated region
  $region6: #{generator_forward.11} parent=0 // pred_check
    _
  $region7: #{generator_forward.11} parent=0 // pred_check_branch
    %11 = sbr.rel (0) target = $region9
  $region8: #{generator_forward.11} parent=0 // pred_region
    _
  $region9: #{generator_forward.11} parent=0 // pred_fallthru
    _
  // Predicated region
  $region10: #{generator_forward.11} parent=0 // pred_check
    _
  $region11: #{generator_forward.11} parent=0 // pred_check_branch
    %13 = sbr.rel (0) target = $region13
  $region12: #{generator_forward.11} parent=0 // pred_region
    _
  $region13: #{generator_forward.11} parent=0 // pred_fallthru
    _
  %v15 = vld [vmem:[%s0] sm:$0xff]
  %v16 = vld [vmem:[%s0 + $0x8] sm:$0xff]
  %v17 = vld [vmem:[%s0 + $0x10] sm:$0xff]
  %v18 = vld [vmem:[%s0 + $0x18] sm:$0xff]
  %v19 = vld [vmem:[%s1] sm:$0xf]
  %v20 = vld [vmem:[%s1 + $0x4] sm:$0xf]
  %v21 = vld [vmem:[%s1 + $0x8] sm:$0xf]
  %v22 = vld [vmem:[%s1 + $0xc] sm:$0xf]
  %v23 = vld [vmem:[%s1 + $0x10] sm:$0xf]
  %v24 = vld [vmem:[%s1 + $0x14] sm:$0xf]
  %v25 = vld [vmem:[%s1 + $0x18] sm:$0xf]
  %v26 = vld [vmem:[%s1 + $0x1c] sm:$0xf]
  %v27 = vld [vmem:[%s1 + $0x20] sm:$0xf]
  %v28 = vld [vmem:[%s1 + $0x24] sm:$0xf]
  %v29 = vld [vmem:[%s1 + $0x28] sm:$0xf]
  %v30 = vld [vmem:[%s1 + $0x2c] sm:$0xf]
  %v31 = vld [vmem:[%s1 + $0x30] sm:$0xf]
  %v32 = vld [vmem:[%s1 + $0x34] sm:$0xf]
  %v33 = vld [vmem:[%s1 + $0x38] sm:$0xf]
  %v34 = vld [vmem:[%s1 + $0x3c] sm:$0xf]
  %v35 = vld [vmem:[%s1 + $0x40] sm:$0xf]
  %v36 = vld [vmem:[%s1 + $0x44] sm:$0xf]
  %v37 = vld [vmem:[%s1 + $0x48] sm:$0xf]
  %v38 = vld [vmem:[%s1 + $0x4c] sm:$0xf]
  %v39 = vld [vmem:[%s1 + $0x50] sm:$0xf]
  %v40 = vld [vmem:[%s1 + $0x54] sm:$0xf]
  %v41 = vld [vmem:[%s1 + $0x58] sm:$0xf]
  %v42 = vld [vmem:[%s1 + $0x5c] sm:$0xf]
  %v43 = vld [vmem:[%s1 + $0x60] sm:$0xf]
  %v44 = vld [vmem:[%s1 + $0x64] sm:$0xf]
  %v45 = vld [vmem:[%s1 + $0x68] sm:$0xf]
  %v46 = vld [vmem:[%s1 + $0x6c] sm:$0xf]
  %v47 = vld [vmem:[%s1 + $0x70] sm:$0xf]
  %v48 = vld [vmem:[%s1 + $0x74] sm:$0xf]
  %v49 = vld [vmem:[%s1 + $0x78] sm:$0xf]
  %v50 = vld [vmem:[%s1 + $0x7c] sm:$0xf]
  %v51 = vld [vmem:[%s2] sm:$0xff]
  %v52 = vld [vmem:[%s2 + $0x8] sm:$0xff]
  %v53 = vld [vmem:[%s2 + $0x10] sm:$0xff]
  %v54 = vld [vmem:[%s2 + $0x18] sm:$0xff]
  %56 = vset.pattern.permute.xlu0 0
  %57 = vperm.xlu0 %56, %v51
  %v58 = vpop.permute.xlu0 %57
  %61 = vset.pattern.permute.xlu0 0
  %62 = vperm.xlu0 %61, %v52
  %v63 = vpop.permute.xlu0 %62
  %66 = vset.pattern.permute.xlu0 0
  %67 = vperm.xlu0 %66, %v53
  %v68 = vpop.permute.xlu0 %67
  %71 = vset.pattern.permute.xlu0 0
  %72 = vperm.xlu0 %71, %v54
  %v73 = vpop.permute.xlu0 %72
  %v79 = vunpack.c.l.b16 %v15
  %v80 = vunpack.c.h.b16 %v15
  %v81 = vunpack.c.l.b16 %v16
  %v82 = vunpack.c.h.b16 %v16
  %v83 = vunpack.c.l.b16 %v17
  %v84 = vunpack.c.h.b16 %v17
  %v85 = vunpack.c.l.b16 %v18
  %v86 = vunpack.c.h.b16 %v18
  %v87 = vpack.c.b16 %v81, %v79
  %v88 = vpack.c.b16 %v82, %v80
  %v89 = vpack.c.b16 %v85, %v83
  %v90 = vpack.c.b16 %v86, %v84
  %v127 = vunpack.c.l.b16 %v19
  %v128 = vunpack.c.l.b16 %v20
  %v129 = vunpack.c.l.b16 %v21
  %v130 = vunpack.c.l.b16 %v22
  %v131 = vunpack.c.l.b16 %v23
  %v132 = vunpack.c.l.b16 %v24
  %v133 = vunpack.c.l.b16 %v25
  %v134 = vunpack.c.l.b16 %v26
  %v135 = vunpack.c.l.b16 %v27
  %v136 = vunpack.c.l.b16 %v28
  %v137 = vunpack.c.l.b16 %v29
  %v138 = vunpack.c.l.b16 %v30
  %v139 = vunpack.c.l.b16 %v31
  %v140 = vunpack.c.l.b16 %v32
  %v141 = vunpack.c.l.b16 %v33
  %v142 = vunpack.c.l.b16 %v34
  %v143 = vunpack.c.l.b16 %v35
  %v144 = vunpack.c.l.b16 %v36
  %v145 = vunpack.c.l.b16 %v37
  %v146 = vunpack.c.l.b16 %v38
  %v147 = vunpack.c.l.b16 %v39
  %v148 = vunpack.c.l.b16 %v40
  %v149 = vunpack.c.l.b16 %v41
  %v150 = vunpack.c.l.b16 %v42
  %v151 = vunpack.c.l.b16 %v43
  %v152 = vunpack.c.l.b16 %v44
  %v153 = vunpack.c.l.b16 %v45
  %v154 = vunpack.c.l.b16 %v46
  %v155 = vunpack.c.l.b16 %v47
  %v156 = vunpack.c.l.b16 %v48
  %v157 = vunpack.c.l.b16 %v49
  %v158 = vunpack.c.l.b16 %v50
  %v159 = vpack.c.b16 %v128, %v127
  %v160 = vpack.c.b16 %v130, %v129
  %v161 = vpack.c.b16 %v132, %v131
  %v162 = vpack.c.b16 %v134, %v133
  %v163 = vpack.c.b16 %v136, %v135
  %v164 = vpack.c.b16 %v138, %v137
  %v165 = vpack.c.b16 %v140, %v139
  %v166 = vpack.c.b16 %v142, %v141
  %v167 = vpack.c.b16 %v144, %v143
  %v168 = vpack.c.b16 %v146, %v145
  %v169 = vpack.c.b16 %v148, %v147
  %v170 = vpack.c.b16 %v150, %v149
  %v171 = vpack.c.b16 %v152, %v151
  %v172 = vpack.c.b16 %v154, %v153
  %v173 = vpack.c.b16 %v156, %v155
  %v174 = vpack.c.b16 %v158, %v157
  %191 = vmatprep.subr.bf16.mxu0 0
  %192 = vmatpush1.bf16.msra.mxu0 %v166
  %193 = vmatprep.subr.bf16.mxu0 0
  %194 = vmatpush1.bf16.msra.mxu0 %v165
  %195 = vmatprep.subr.bf16.mxu0 0
  %196 = vmatpush1.bf16.msra.mxu0 %v164
  %197 = vmatprep.subr.bf16.mxu0 0
  %198 = vmatpush1.bf16.msra.mxu0 %v163
  %199 = vmatprep.subr.bf16.mxu0 0
  %200 = vmatpush1.bf16.msra.mxu0 %v162
  %201 = vmatprep.subr.bf16.mxu0 0
  %202 = vmatpush1.bf16.msra.mxu0 %v161
  %203 = vmatprep.subr.bf16.mxu0 0
  %204 = vmatpush1.bf16.msra.mxu0 %v160
  %205 = vmatprep.subr.bf16.mxu0 0
  %206 = vmatpush1.bf16.msra.mxu0 %v159
  %207 = vmatprep.subr.bf16.mxu0 0
  %208 = vmatpush2.bf16.msra.mxu0 %v174
  %209 = vmatprep.subr.bf16.mxu0 0
  %210 = vmatpush2.bf16.msra.mxu0 %v173
  %211 = vmatprep.subr.bf16.mxu0 0
  %212 = vmatpush2.bf16.msra.mxu0 %v172
  %213 = vmatprep.subr.bf16.mxu0 0
  %214 = vmatpush2.bf16.msra.mxu0 %v171
  %215 = vmatprep.subr.bf16.mxu0 0
  %216 = vmatpush2.bf16.msra.mxu0 %v170
  %217 = vmatprep.subr.bf16.mxu0 0
  %218 = vmatpush2.bf16.msra.mxu0 %v169
  %219 = vmatprep.subr.bf16.mxu0 0
  %220 = vmatpush2.bf16.msra.mxu0 %v168
  %221 = vmatprep.subr.bf16.mxu0 0
  %222 = vmatpush2.bf16.msra.mxu0 %v167
  %223 = vmatprep.mubr.bf16.mxu0 %v88
  %224 = vmatmul.mubr.bf16.gmra.mxu0 %v87
  %v225 = vpop.f32.mrf.mxu0
  %v226 = vadd.f32 %v58, %v225
  %v227 = vpop.f32.mrf.mxu0
  %v228 = vpop.f32.mrf.mxu0
  %v229 = vadd.f32 %v63, %v228
  %v230 = vpop.f32.mrf.mxu0
  %231 = vmatprep.mubr.bf16.mxu0 %v90
  %232 = vmatmul.mubr.bf16.gmra.mxu0 %v89
  %v233 = vpop.f32.mrf.mxu0
  %v234 = vadd.f32 %v68, %v233
  %v235 = vpop.f32.mrf.mxu0
  %v236 = vpop.f32.mrf.mxu0
  %v237 = vadd.f32 %v73, %v236
  %v238 = vpop.f32.mrf.mxu0
  %239 = vdwg.mxu0
  %v240 = vmax.f32 %v226, 0.0
  %v241 = vmax.f32 %v229, 0.0
  %v242 = vmax.f32 %v234, 0.0
  %v243 = vmax.f32 %v237, 0.0
  %v244 = vpack.c.bf16 %v241, %v240
  %v245 = vpack.c.bf16 %v243, %v242
  %v248 = vunpack.c.l.b16 %v244
  %v249 = vunpack.c.h.b16 %v244
  %v250 = vunpack.c.l.b16 %v245
  %v251 = vunpack.c.h.b16 %v245
  %v252 = vpack.c.b16 %v248, %v248
  %v253 = vpack.c.b16 %v249, %v249
  %v254 = vpack.c.b16 %v250, %v250
  %v255 = vpack.c.b16 %v251, %v251
  %260 = vst [vmem:[%s3] sm:$0xf] %v252
  %261 = vst [vmem:[%s3 + $0x4] sm:$0xf] %v253
  %262 = vst [vmem:[%s3 + $0x8] sm:$0xf] %v254
  %263 = vst [vmem:[%s3 + $0xc] sm:$0xf] %v255
  // Predicated region
  $region14: #{generator_forward.11} parent=0 // pred_check
    _
  $region15: #{generator_forward.11} parent=0 // pred_check_branch
    %265 = sbr.rel (0) target = $region17
  $region16: #{generator_forward.11} parent=0 // pred_region
    _
  $region17: #{generator_forward.11} parent=0 // pred_fallthru
    _
  // Predicated region
  $region18: #{generator_forward.11} parent=0 // pred_check
    _
  $region19: #{generator_forward.11} parent=0 // pred_check_branch
    %267 = sbr.rel (0) target = $region21
  $region20: #{generator_forward.11} parent=0 // pred_region
    _
  $region21: #{generator_forward.11} parent=0 // pred_fallthru
    _

// kernel: generator_forward.12
$region0: #{generator_forward.12}
  #allocation0 [shape = 'u32[]', space=smem, size = 0x4, offset = 0x4, fixed_abs, tag = 'smem constant byte address 0x4 - core index']
  #allocation1 [shape = 'u32[144,128]{1,0:T(1,128)}', space=vmem, size = 0x12000, scoped, tag = 'internal scratch']
  %s0 = inlined_call_operand.vmem [shape: bf16[64,512], index: 0, kind: input, shape index: {}]
  %s1 = inlined_call_operand.vmem [shape: bf16[512,32], index: 1, kind: input, shape index: {}]
  %s2 = inlined_call_operand.vmem [shape: f32[64,1], index: 2, kind: input, shape index: {}]
  %s3 = inlined_call_operand.vmem [shape: bf16[64,32], index: 3, kind: output, shape index: {}]
  %s4 = sld [smem:[#allocation0]]
  $region22: #{generator_forward.12} parent=0
    _
  %s6 = ssub.s32 1, %s4
  %s7 = scalar_select 0, %s6, %s4
  // Predicated region
  $region2: #{generator_forward.12} parent=0 // pred_check
    _
  $region3: #{generator_forward.12} parent=0 // pred_check_branch
    %9 = sbr.rel (0) target = $region5
  $region4: #{generator_forward.12} parent=0 // pred_region
    _
  $region5: #{generator_forward.12} parent=0 // pred_fallthru
    _
  // Predicated region
  $region6: #{generator_forward.12} parent=0 // pred_check
    _
  $region7: #{generator_forward.12} parent=0 // pred_check_branch
    %11 = sbr.rel (0) target = $region9
  $region8: #{generator_forward.12} parent=0 // pred_region
    _
  $region9: #{generator_forward.12} parent=0 // pred_fallthru
    _
  // Predicated region
  $region10: #{generator_forward.12} parent=0 // pred_check
    _
  $region11: #{generator_forward.12} parent=0 // pred_check_branch
    %13 = sbr.rel (0) target = $region13
  $region12: #{generator_forward.12} parent=0 // pred_region
    _
  $region13: #{generator_forward.12} parent=0 // pred_fallthru
    _
  %v15 = vld [vmem:[%s0] sm:$0xff]
  %v16 = vld [vmem:[%s0 + $0x8] sm:$0xff]
  %v17 = vld [vmem:[%s0 + $0x10] sm:$0xff]
  %v18 = vld [vmem:[%s0 + $0x18] sm:$0xff]
  %v19 = vld [vmem:[%s0 + $0x20] sm:$0xff]
  %v20 = vld [vmem:[%s0 + $0x28] sm:$0xff]
  %v21 = vld [vmem:[%s0 + $0x30] sm:$0xff]
  %v22 = vld [vmem:[%s0 + $0x38] sm:$0xff]
  %v23 = vld [vmem:[%s0 + $0x40] sm:$0xff]
  %v24 = vld [vmem:[%s0 + $0x48] sm:$0xff]
  %v25 = vld [vmem:[%s0 + $0x50] sm:$0xff]
  %v26 = vld [vmem:[%s0 + $0x58] sm:$0xff]
  %v27 = vld [vmem:[%s0 + $0x60] sm:$0xff]
  %v28 = vld [vmem:[%s0 + $0x68] sm:$0xff]
  %v29 = vld [vmem:[%s0 + $0x70] sm:$0xff]
  %v30 = vld [vmem:[%s0 + $0x78] sm:$0xff]
  %v31 = vld [vmem:[%s1] sm:$0xf]
  %v32 = vld [vmem:[%s1 + $0x4] sm:$0xf]
  %v33 = vld [vmem:[%s1 + $0x8] sm:$0xf]
  %v34 = vld [vmem:[%s1 + $0xc] sm:$0xf]
  %v35 = vld [vmem:[%s1 + $0x10] sm:$0xf]
  %v36 = vld [vmem:[%s1 + $0x14] sm:$0xf]
  %v37 = vld [vmem:[%s1 + $0x18] sm:$0xf]
  %v38 = vld [vmem:[%s1 + $0x1c] sm:$0xf]
  %v39 = vld [vmem:[%s1 + $0x20] sm:$0xf]
  %v40 = vld [vmem:[%s1 + $0x24] sm:$0xf]
  %v41 = vld [vmem:[%s1 + $0x28] sm:$0xf]
  %v42 = vld [vmem:[%s1 + $0x2c] sm:$0xf]
  %v43 = vld [vmem:[%s1 + $0x30] sm:$0xf]
  %v44 = vld [vmem:[%s1 + $0x34] sm:$0xf]
  %v45 = vld [vmem:[%s1 + $0x38] sm:$0xf]
  %v46 = vld [vmem:[%s1 + $0x3c] sm:$0xf]
  %v47 = vld [vmem:[%s1 + $0x40] sm:$0xf]
  %v48 = vld [vmem:[%s1 + $0x44] sm:$0xf]
  %v49 = vld [vmem:[%s1 + $0x48] sm:$0xf]
  %v50 = vld [vmem:[%s1 + $0x4c] sm:$0xf]
  %v51 = vld [vmem:[%s1 + $0x50] sm:$0xf]
  %v52 = vld [vmem:[%s1 + $0x54] sm:$0xf]
  %v53 = vld [vmem:[%s1 + $0x58] sm:$0xf]
  %v54 = vld [vmem:[%s1 + $0x5c] sm:$0xf]
  %v55 = vld [vmem:[%s1 + $0x60] sm:$0xf]
  %v56 = vld [vmem:[%s1 + $0x64] sm:$0xf]
  %v57 = vld [vmem:[%s1 + $0x68] sm:$0xf]
  %v58 = vld [vmem:[%s1 + $0x6c] sm:$0xf]
  %v59 = vld [vmem:[%s1 + $0x70] sm:$0xf]
  %v60 = vld [vmem:[%s1 + $0x74] sm:$0xf]
  %v61 = vld [vmem:[%s1 + $0x78] sm:$0xf]
  %v62 = vld [vmem:[%s1 + $0x7c] sm:$0xf]
  %v63 = vld [vmem:[%s1 + $0x80] sm:$0xf]
  %v64 = vld [vmem:[%s1 + $0x84] sm:$0xf]
  %v65 = vld [vmem:[%s1 + $0x88] sm:$0xf]
  %v66 = vld [vmem:[%s1 + $0x8c] sm:$0xf]
  %v67 = vld [vmem:[%s1 + $0x90] sm:$0xf]
  %v68 = vld [vmem:[%s1 + $0x94] sm:$0xf]
  %v69 = vld [vmem:[%s1 + $0x98] sm:$0xf]
  %v70 = vld [vmem:[%s1 + $0x9c] sm:$0xf]
  %v71 = vld [vmem:[%s1 + $0xa0] sm:$0xf]
  %v72 = vld [vmem:[%s1 + $0xa4] sm:$0xf]
  %v73 = vld [vmem:[%s1 + $0xa8] sm:$0xf]
  %v74 = vld [vmem:[%s1 + $0xac] sm:$0xf]
  %v75 = vld [vmem:[%s1 + $0xb0] sm:$0xf]
  %v76 = vld [vmem:[%s1 + $0xb4] sm:$0xf]
  %v77 = vld [vmem:[%s1 + $0xb8] sm:$0xf]
  %v78 = vld [vmem:[%s1 + $0xbc] sm:$0xf]
  %v79 = vld [vmem:[%s1 + $0xc0] sm:$0xf]
  %v80 = vld [vmem:[%s1 + $0xc4] sm:$0xf]
  %v81 = vld [vmem:[%s1 + $0xc8] sm:$0xf]
  %v82 = vld [vmem:[%s1 + $0xcc] sm:$0xf]
  %v83 = vld [vmem:[%s1 + $0xd0] sm:$0xf]
  %v84 = vld [vmem:[%s1 + $0xd4] sm:$0xf]
  %v85 = vld [vmem:[%s1 + $0xd8] sm:$0xf]
  %v86 = vld [vmem:[%s1 + $0xdc] sm:$0xf]
  %v87 = vld [vmem:[%s1 + $0xe0] sm:$0xf]
  %v88 = vld [vmem:[%s1 + $0xe4] sm:$0xf]
  %v89 = vld [vmem:[%s1 + $0xe8] sm:$0xf]
  %v90 = vld [vmem:[%s1 + $0xec] sm:$0xf]
  %v91 = vld [vmem:[%s1 + $0xf0] sm:$0xf]
  %v92 = vld [vmem:[%s1 + $0xf4] sm:$0xf]
  %v93 = vld [vmem:[%s1 + $0xf8] sm:$0xf]
  %v94 = vld [vmem:[%s1 + $0xfc] sm:$0xf]
  %v95 = vld [vmem:[%s2] sm:$0xff]
  %v96 = vld [vmem:[%s2 + $0x8] sm:$0xff]
  %v97 = vld [vmem:[%s2 + $0x10] sm:$0xff]
  %v98 = vld [vmem:[%s2 + $0x18] sm:$0xff]
  %v99 = vld [vmem:[%s2 + $0x20] sm:$0xff]
  %v100 = vld [vmem:[%s2 + $0x28] sm:$0xff]
  %v101 = vld [vmem:[%s2 + $0x30] sm:$0xff]
  %v102 = vld [vmem:[%s2 + $0x38] sm:$0xff]
  %104 = vset.pattern.permute.xlu0 0
  %105 = vperm.xlu0 %104, %v95
  %v106 = vpop.permute.xlu0 %105
  %109 = vset.pattern.permute.xlu0 0
  %110 = vperm.xlu0 %109, %v96
  %v111 = vpop.permute.xlu0 %110
  %114 = vset.pattern.permute.xlu0 0
  %115 = vperm.xlu0 %114, %v97
  %v116 = vpop.permute.xlu0 %115
  %119 = vset.pattern.permute.xlu0 0
  %120 = vperm.xlu0 %119, %v98
  %v121 = vpop.permute.xlu0 %120
  %124 = vset.pattern.permute.xlu0 0
  %125 = vperm.xlu0 %124, %v99
  %v126 = vpop.permute.xlu0 %125
  %129 = vset.pattern.permute.xlu0 0
  %130 = vperm.xlu0 %129, %v100
  %v131 = vpop.permute.xlu0 %130
  %134 = vset.pattern.permute.xlu0 0
  %135 = vperm.xlu0 %134, %v101
  %v136 = vpop.permute.xlu0 %135
  %139 = vset.pattern.permute.xlu0 0
  %140 = vperm.xlu0 %139, %v102
  %v141 = vpop.permute.xlu0 %140
  %v159 = vunpack.c.l.b16 %v15
  %v160 = vunpack.c.h.b16 %v15
  %v161 = vunpack.c.l.b16 %v16
  %v162 = vunpack.c.h.b16 %v16
  %v163 = vunpack.c.l.b16 %v17
  %v164 = vunpack.c.h.b16 %v17
  %v165 = vunpack.c.l.b16 %v18
  %v166 = vunpack.c.h.b16 %v18
  %v167 = vunpack.c.l.b16 %v19
  %v168 = vunpack.c.h.b16 %v19
  %v169 = vunpack.c.l.b16 %v20
  %v170 = vunpack.c.h.b16 %v20
  %v171 = vunpack.c.l.b16 %v21
  %v172 = vunpack.c.h.b16 %v21
  %v173 = vunpack.c.l.b16 %v22
  %v174 = vunpack.c.h.b16 %v22
  %v175 = vunpack.c.l.b16 %v23
  %v176 = vunpack.c.h.b16 %v23
  %v177 = vunpack.c.l.b16 %v24
  %v178 = vunpack.c.h.b16 %v24
  %v179 = vunpack.c.l.b16 %v25
  %v180 = vunpack.c.h.b16 %v25
  %v181 = vunpack.c.l.b16 %v26
  %v182 = vunpack.c.h.b16 %v26
  %v183 = vunpack.c.l.b16 %v27
  %v184 = vunpack.c.h.b16 %v27
  %v185 = vunpack.c.l.b16 %v28
  %v186 = vunpack.c.h.b16 %v28
  %v187 = vunpack.c.l.b16 %v29
  %v188 = vunpack.c.h.b16 %v29
  %v189 = vunpack.c.l.b16 %v30
  %v190 = vunpack.c.h.b16 %v30
  %v191 = vpack.c.b16 %v163, %v159
  %v192 = vpack.c.b16 %v164, %v160
  %v193 = vpack.c.b16 %v165, %v161
  %v194 = vpack.c.b16 %v166, %v162
  %v195 = vpack.c.b16 %v171, %v167
  %v196 = vpack.c.b16 %v172, %v168
  %v197 = vpack.c.b16 %v173, %v169
  %v198 = vpack.c.b16 %v174, %v170
  %v199 = vpack.c.b16 %v179, %v175
  %v200 = vpack.c.b16 %v180, %v176
  %v201 = vpack.c.b16 %v181, %v177
  %v202 = vpack.c.b16 %v182, %v178
  %v203 = vpack.c.b16 %v187, %v183
  %v204 = vpack.c.b16 %v188, %v184
  %v205 = vpack.c.b16 %v189, %v185
  %v206 = vpack.c.b16 %v190, %v186
  %v287 = vunpack.c.l.b16 %v31
  %v288 = vunpack.c.l.b16 %v32
  %v289 = vunpack.c.l.b16 %v33
  %v290 = vunpack.c.l.b16 %v34
  %v291 = vunpack.c.l.b16 %v35
  %v292 = vunpack.c.l.b16 %v36
  %v293 = vunpack.c.l.b16 %v37
  %v294 = vunpack.c.l.b16 %v38
  %v295 = vunpack.c.l.b16 %v39
  %v296 = vunpack.c.l.b16 %v40
  %v297 = vunpack.c.l.b16 %v41
  %v298 = vunpack.c.l.b16 %v42
  %v299 = vunpack.c.l.b16 %v43
  %v300 = vunpack.c.l.b16 %v44
  %v301 = vunpack.c.l.b16 %v45
  %v302 = vunpack.c.l.b16 %v46
  %v303 = vunpack.c.l.b16 %v47
  %v304 = vunpack.c.l.b16 %v48
  %v305 = vunpack.c.l.b16 %v49
  %v306 = vunpack.c.l.b16 %v50
  %v307 = vunpack.c.l.b16 %v51
  %v308 = vunpack.c.l.b16 %v52
  %v309 = vunpack.c.l.b16 %v53
  %v310 = vunpack.c.l.b16 %v54
  %v311 = vunpack.c.l.b16 %v55
  %v312 = vunpack.c.l.b16 %v56
  %v313 = vunpack.c.l.b16 %v57
  %v314 = vunpack.c.l.b16 %v58
  %v315 = vunpack.c.l.b16 %v59
  %v316 = vunpack.c.l.b16 %v60
  %v317 = vunpack.c.l.b16 %v61
  %v318 = vunpack.c.l.b16 %v62
  %v319 = vunpack.c.l.b16 %v63
  %v320 = vunpack.c.l.b16 %v64
  %v321 = vunpack.c.l.b16 %v65
  %v322 = vunpack.c.l.b16 %v66
  %v323 = vunpack.c.l.b16 %v67
  %v324 = vunpack.c.l.b16 %v68
  %v325 = vunpack.c.l.b16 %v69
  %v326 = vunpack.c.l.b16 %v70
  %v327 = vunpack.c.l.b16 %v71
  %v328 = vunpack.c.l.b16 %v72
  %v329 = vunpack.c.l.b16 %v73
  %v330 = vunpack.c.l.b16 %v74
  %v331 = vunpack.c.l.b16 %v75
  %v332 = vunpack.c.l.b16 %v76
  %v333 = vunpack.c.l.b16 %v77
  %v334 = vunpack.c.l.b16 %v78
  %v335 = vunpack.c.l.b16 %v79
  %v336 = vunpack.c.l.b16 %v80
  %v337 = vunpack.c.l.b16 %v81
  %v338 = vunpack.c.l.b16 %v82
  %v339 = vunpack.c.l.b16 %v83
  %v340 = vunpack.c.l.b16 %v84
  %v341 = vunpack.c.l.b16 %v85
  %v342 = vunpack.c.l.b16 %v86
  %v343 = vunpack.c.l.b16 %v87
  %v344 = vunpack.c.l.b16 %v88
  %v345 = vunpack.c.l.b16 %v89
  %v346 = vunpack.c.l.b16 %v90
  %v347 = vunpack.c.l.b16 %v91
  %v348 = vunpack.c.l.b16 %v92
  %v349 = vunpack.c.l.b16 %v93
  %v350 = vunpack.c.l.b16 %v94
  %v351 = vpack.c.b16 %v288, %v287
  %v352 = vpack.c.b16 %v290, %v289
  %v353 = vpack.c.b16 %v292, %v291
  %v354 = vpack.c.b16 %v294, %v293
  %v355 = vpack.c.b16 %v296, %v295
  %v356 = vpack.c.b16 %v298, %v297
  %v357 = vpack.c.b16 %v300, %v299
  %v358 = vpack.c.b16 %v302, %v301
  %v359 = vpack.c.b16 %v304, %v303
  %v360 = vpack.c.b16 %v306, %v305
  %v361 = vpack.c.b16 %v308, %v307
  %v362 = vpack.c.b16 %v310, %v309
  %v363 = vpack.c.b16 %v312, %v311
  %v364 = vpack.c.b16 %v314, %v313
  %v365 = vpack.c.b16 %v316, %v315
  %v366 = vpack.c.b16 %v318, %v317
  %v367 = vpack.c.b16 %v320, %v319
  %v368 = vpack.c.b16 %v322, %v321
  %v369 = vpack.c.b16 %v324, %v323
  %v370 = vpack.c.b16 %v326, %v325
  %v371 = vpack.c.b16 %v328, %v327
  %v372 = vpack.c.b16 %v330, %v329
  %v373 = vpack.c.b16 %v332, %v331
  %v374 = vpack.c.b16 %v334, %v333
  %v375 = vpack.c.b16 %v336, %v335
  %v376 = vpack.c.b16 %v338, %v337
  %v377 = vpack.c.b16 %v340, %v339
  %v378 = vpack.c.b16 %v342, %v341
  %v379 = vpack.c.b16 %v344, %v343
  %v380 = vpack.c.b16 %v346, %v345
  %v381 = vpack.c.b16 %v348, %v347
  %v382 = vpack.c.b16 %v350, %v349
  %415 = vmatprep.subr.bf16.mxu0 0
  %416 = vmatpush1.bf16.msra.mxu0 %v358
  %417 = vmatprep.subr.bf16.mxu0 0
  %418 = vmatpush1.bf16.msra.mxu0 %v357
  %419 = vmatprep.subr.bf16.mxu0 0
  %420 = vmatpush1.bf16.msra.mxu0 %v356
  %421 = vmatprep.subr.bf16.mxu0 0
  %422 = vmatpush1.bf16.msra.mxu0 %v355
  %423 = vmatprep.subr.bf16.mxu0 0
  %424 = vmatpush1.bf16.msra.mxu0 %v354
  %425 = vmatprep.subr.bf16.mxu0 0
  %426 = vmatpush1.bf16.msra.mxu0 %v353
  %427 = vmatprep.subr.bf16.mxu0 0
  %428 = vmatpush1.bf16.msra.mxu0 %v352
  %429 = vmatprep.subr.bf16.mxu0 0
  %430 = vmatpush1.bf16.msra.mxu0 %v351
  %431 = vmatprep.subr.bf16.mxu0 0
  %432 = vmatpush2.bf16.msra.mxu0 %v366
  %433 = vmatprep.subr.bf16.mxu0 0
  %434 = vmatpush2.bf16.msra.mxu0 %v365
  %435 = vmatprep.subr.bf16.mxu0 0
  %436 = vmatpush2.bf16.msra.mxu0 %v364
  %437 = vmatprep.subr.bf16.mxu0 0
  %438 = vmatpush2.bf16.msra.mxu0 %v363
  %439 = vmatprep.subr.bf16.mxu0 0
  %440 = vmatpush2.bf16.msra.mxu0 %v362
  %441 = vmatprep.subr.bf16.mxu0 0
  %442 = vmatpush2.bf16.msra.mxu0 %v361
  %443 = vmatprep.subr.bf16.mxu0 0
  %444 = vmatpush2.bf16.msra.mxu0 %v360
  %445 = vmatprep.subr.bf16.mxu0 0
  %446 = vmatpush2.bf16.msra.mxu0 %v359
  %447 = vmatprep.mubr.bf16.mxu0 %v192
  %448 = vmatmul.mubr.bf16.gmra.mxu0 %v191
  %v449 = vpop.f32.mrf.mxu0
  %v450 = vadd.f32 %v106, %v449
  %v451 = vpop.f32.mrf.mxu0
  %v452 = vpop.f32.mrf.mxu0
  %v453 = vadd.f32 %v111, %v452
  %v454 = vpop.f32.mrf.mxu0
  %455 = vmatprep.mubr.bf16.mxu0 %v196
  %456 = vmatmul.mubr.bf16.gmra.mxu0 %v195
  %v457 = vpop.f32.mrf.mxu0
  %v458 = vadd.f32 %v116, %v457
  %v459 = vpop.f32.mrf.mxu0
  %v460 = vpop.f32.mrf.mxu0
  %v461 = vadd.f32 %v121, %v460
  %v462 = vpop.f32.mrf.mxu0
  %463 = vmatprep.mubr.bf16.mxu0 %v200
  %464 = vmatmul.mubr.bf16.gmra.mxu0 %v199
  %v465 = vpop.f32.mrf.mxu0
  %v466 = vadd.f32 %v126, %v465
  %v467 = vpop.f32.mrf.mxu0
  %v468 = vpop.f32.mrf.mxu0
  %v469 = vadd.f32 %v131, %v468
  %v470 = vpop.f32.mrf.mxu0
  %471 = vmatprep.mubr.bf16.mxu0 %v204
  %472 = vmatmul.mubr.bf16.gmra.mxu0 %v203
  %v473 = vpop.f32.mrf.mxu0
  %v474 = vadd.f32 %v136, %v473
  %v475 = vpop.f32.mrf.mxu0
  %v476 = vpop.f32.mrf.mxu0
  %v477 = vadd.f32 %v141, %v476
  %v478 = vpop.f32.mrf.mxu0
  %479 = vdwg.mxu0
  %480 = vmatprep.subr.bf16.mxu0 0
  %481 = vmatpush1.bf16.msra.mxu0 %v374
  %482 = vmatprep.subr.bf16.mxu0 0
  %483 = vmatpush1.bf16.msra.mxu0 %v373
  %484 = vmatprep.subr.bf16.mxu0 0
  %485 = vmatpush1.bf16.msra.mxu0 %v372
  %486 = vmatprep.subr.bf16.mxu0 0
  %487 = vmatpush1.bf16.msra.mxu0 %v371
  %488 = vmatprep.subr.bf16.mxu0 0
  %489 = vmatpush1.bf16.msra.mxu0 %v370
  %490 = vmatprep.subr.bf16.mxu0 0
  %491 = vmatpush1.bf16.msra.mxu0 %v369
  %492 = vmatprep.subr.bf16.mxu0 0
  %493 = vmatpush1.bf16.msra.mxu0 %v368
  %494 = vmatprep.subr.bf16.mxu0 0
  %495 = vmatpush1.bf16.msra.mxu0 %v367
  %496 = vmatprep.subr.bf16.mxu0 0
  %497 = vmatpush2.bf16.msra.mxu0 %v382
  %498 = vmatprep.subr.bf16.mxu0 0
  %499 = vmatpush2.bf16.msra.mxu0 %v381
  %500 = vmatprep.subr.bf16.mxu0 0
  %501 = vmatpush2.bf16.msra.mxu0 %v380
  %502 = vmatprep.subr.bf16.mxu0 0
  %503 = vmatpush2.bf16.msra.mxu0 %v379
  %504 = vmatprep.subr.bf16.mxu0 0
  %505 = vmatpush2.bf16.msra.mxu0 %v378
  %506 = vmatprep.subr.bf16.mxu0 0
  %507 = vmatpush2.bf16.msra.mxu0 %v377
  %508 = vmatprep.subr.bf16.mxu0 0
  %509 = vmatpush2.bf16.msra.mxu0 %v376
  %510 = vmatprep.subr.bf16.mxu0 0
  %511 = vmatpush2.bf16.msra.mxu0 %v375
  %512 = vmatprep.mubr.bf16.mxu0 %v194
  %513 = vmatmul.mubr.bf16.gmra.mxu0 %v193
  %v514 = vpop.f32.mrf.mxu0
  %v515 = vadd.f32 %v450, %v514
  %v516 = vpop.f32.mrf.mxu0
  %v517 = vpop.f32.mrf.mxu0
  %v518 = vadd.f32 %v453, %v517
  %v519 = vpop.f32.mrf.mxu0
  %520 = vmatprep.mubr.bf16.mxu0 %v198
  %521 = vmatmul.mubr.bf16.gmra.mxu0 %v197
  %v522 = vpop.f32.mrf.mxu0
  %v523 = vadd.f32 %v458, %v522
  %v524 = vpop.f32.mrf.mxu0
  %v525 = vpop.f32.mrf.mxu0
  %v526 = vadd.f32 %v461, %v525
  %v527 = vpop.f32.mrf.mxu0
  %528 = vmatprep.mubr.bf16.mxu0 %v202
  %529 = vmatmul.mubr.bf16.gmra.mxu0 %v201
  %v530 = vpop.f32.mrf.mxu0
  %v531 = vadd.f32 %v466, %v530
  %v532 = vpop.f32.mrf.mxu0
  %v533 = vpop.f32.mrf.mxu0
  %v534 = vadd.f32 %v469, %v533
  %v535 = vpop.f32.mrf.mxu0
  %536 = vmatprep.mubr.bf16.mxu0 %v206
  %537 = vmatmul.mubr.bf16.gmra.mxu0 %v205
  %v538 = vpop.f32.mrf.mxu0
  %v539 = vadd.f32 %v474, %v538
  %v540 = vpop.f32.mrf.mxu0
  %v541 = vpop.f32.mrf.mxu0
  %v542 = vadd.f32 %v477, %v541
  %v543 = vpop.f32.mrf.mxu0
  %544 = vdwg.mxu0
  %v545 = vmax.f32 %v515, 0.0
  %v546 = vmax.f32 %v518, 0.0
  %v547 = vmax.f32 %v523, 0.0
  %v548 = vmax.f32 %v526, 0.0
  %v549 = vmax.f32 %v531, 0.0
  %v550 = vmax.f32 %v534, 0.0
  %v551 = vmax.f32 %v539, 0.0
  %v552 = vmax.f32 %v542, 0.0
  %v553 = vpack.c.bf16 %v546, %v545
  %v554 = vpack.c.bf16 %v548, %v547
  %v555 = vpack.c.bf16 %v550, %v549
  %v556 = vpack.c.bf16 %v552, %v551
  %v561 = vunpack.c.l.b16 %v553
  %v562 = vunpack.c.h.b16 %v553
  %v563 = vunpack.c.l.b16 %v554
  %v564 = vunpack.c.h.b16 %v554
  %v565 = vunpack.c.l.b16 %v555
  %v566 = vunpack.c.h.b16 %v555
  %v567 = vunpack.c.l.b16 %v556
  %v568 = vunpack.c.h.b16 %v556
  %v569 = vpack.c.b16 %v561, %v561
  %v570 = vpack.c.b16 %v562, %v562
  %v571 = vpack.c.b16 %v563, %v563
  %v572 = vpack.c.b16 %v564, %v564
  %v573 = vpack.c.b16 %v565, %v565
  %v574 = vpack.c.b16 %v566, %v566
  %v575 = vpack.c.b16 %v567, %v567
  %v576 = vpack.c.b16 %v568, %v568
  %vm585 = vcmask 257024
  %586 = vst.msk [vmem:[%s3] sm:$0xf] %vm585, %v569
  %587 = vst.msk [vmem:[%s3 + $0x4] sm:$0xf] %vm585, %v570
  %588 = vst.msk [vmem:[%s3 + $0x8] sm:$0xf] %vm585, %v571
  %589 = vst.msk [vmem:[%s3 + $0xc] sm:$0xf] %vm585, %v572
  %590 = vst.msk [vmem:[%s3 + $0x10] sm:$0xf] %vm585, %v573
  %591 = vst.msk [vmem:[%s3 + $0x14] sm:$0xf] %vm585, %v574
  %592 = vst.msk [vmem:[%s3 + $0x18] sm:$0xf] %vm585, %v575
  %593 = vst.msk [vmem:[%s3 + $0x1c] sm:$0xf] %vm585, %v576
  // Predicated region
  $region14: #{generator_forward.12} parent=0 // pred_check
    _
  $region15: #{generator_forward.12} parent=0 // pred_check_branch
    %595 = sbr.rel (0) target = $region17
  $region16: #{generator_forward.12} parent=0 // pred_region
    _
  $region17: #{generator_forward.12} parent=0 // pred_fallthru
    _
  // Predicated region
  $region18: #{generator_forward.12} parent=0 // pred_check
    _
  $region19: #{generator_forward.12} parent=0 // pred_check_branch
    %597 = sbr.rel (0) target = $region21
  $region20: #{generator_forward.12} parent=0 // pred_region
    _
  $region21: #{generator_forward.12} parent=0 // pred_fallthru
    _

// kernel: generator_forward.13
$region0: #{generator_forward.13}
  #allocation0 [shape = 'u32[]', space=smem, size = 0x4, offset = 0x4, fixed_abs, tag = 'smem constant byte address 0x4 - core index']
  #allocation1 [shape = 'u32[144,128]{1,0:T(1,128)}', space=vmem, size = 0x12000, scoped, tag = 'internal scratch']
  %s0 = inlined_call_operand.vmem [shape: bf16[2,1024], index: 0, kind: input, shape index: {}]
  %s1 = inlined_call_operand.vmem [shape: bf16[1024,128], index: 1, kind: input, shape index: {}]
  %s2 = inlined_call_operand.vmem [shape: f32[1,128], index: 2, kind: input, shape index: {}]
  %s3 = inlined_call_operand.vmem [shape: bf16[128,1024], index: 3, kind: input, shape index: {}]
  %s4 = inlined_call_operand.vmem [shape: f32[1,1024], index: 4, kind: input, shape index: {}]
  %s5 = inlined_call_operand.vmem [shape: bf16[2,1024], index: 5, kind: output, shape index: {}]
  %s6 = sld [smem:[#allocation0]]
  $region30: #{generator_forward.13} parent=0
    _
  %s8 = ssub.s32 1, %s6
  %s9 = scalar_select 0, %s8, %s6
  // Predicated region
  $region2: #{generator_forward.13} parent=0 // pred_check
    _
  $region3: #{generator_forward.13} parent=0 // pred_check_branch
    %11 = sbr.rel (0) target = $region5
  $region4: #{generator_forward.13} parent=0 // pred_region
    _
  $region5: #{generator_forward.13} parent=0 // pred_fallthru
    _
  // Predicated region
  $region6: #{generator_forward.13} parent=0 // pred_check
    _
  $region7: #{generator_forward.13} parent=0 // pred_check_branch
    %13 = sbr.rel (0) target = $region9
  $region8: #{generator_forward.13} parent=0 // pred_region
    _
  $region9: #{generator_forward.13} parent=0 // pred_fallthru
    _
  // Predicated region
  $region10: #{generator_forward.13} parent=0 // pred_check
    _
  $region11: #{generator_forward.13} parent=0 // pred_check_branch
    %15 = sbr.rel (0) target = $region13
  $region12: #{generator_forward.13} parent=0 // pred_region
    _
  $region13: #{generator_forward.13} parent=0 // pred_fallthru
    _
  // Predicated region
  $region14: #{generator_forward.13} parent=0 // pred_check
    _
  $region15: #{generator_forward.13} parent=0 // pred_check_branch
    %17 = sbr.rel (0) target = $region17
  $region16: #{generator_forward.13} parent=0 // pred_region
    _
  $region17: #{generator_forward.13} parent=0 // pred_fallthru
    _
  // Predicated region
  $region18: #{generator_forward.13} parent=0 // pred_check
    _
  $region19: #{generator_forward.13} parent=0 // pred_check_branch
    %19 = sbr.rel (0) target = $region21
  $region20: #{generator_forward.13} parent=0 // pred_region
    _
  $region21: #{generator_forward.13} parent=0 // pred_fallthru
    _
  %v21 = vld [vmem:[%s0] sm:$0xff]
  %v22 = vld [vmem:[%s1] sm:$0xf]
  %v23 = vld [vmem:[%s1 + $0x4] sm:$0xf]
  %v24 = vld [vmem:[%s1 + $0x8] sm:$0xf]
  %v25 = vld [vmem:[%s1 + $0xc] sm:$0xf]
  %v26 = vld [vmem:[%s1 + $0x10] sm:$0xf]
  %v27 = vld [vmem:[%s1 + $0x14] sm:$0xf]
  %v28 = vld [vmem:[%s1 + $0x18] sm:$0xf]
  %v29 = vld [vmem:[%s1 + $0x1c] sm:$0xf]
  %v30 = vld [vmem:[%s1 + $0x20] sm:$0xf]
  %v31 = vld [vmem:[%s1 + $0x24] sm:$0xf]
  %v32 = vld [vmem:[%s1 + $0x28] sm:$0xf]
  %v33 = vld [vmem:[%s1 + $0x2c] sm:$0xf]
  %v34 = vld [vmem:[%s1 + $0x30] sm:$0xf]
  %v35 = vld [vmem:[%s1 + $0x34] sm:$0xf]
  %v36 = vld [vmem:[%s1 + $0x38] sm:$0xf]
  %v37 = vld [vmem:[%s1 + $0x3c] sm:$0xf]
  %v38 = vld [vmem:[%s1 + $0x40] sm:$0xf]
  %v39 = vld [vmem:[%s1 + $0x44] sm:$0xf]
  %v40 = vld [vmem:[%s1 + $0x48] sm:$0xf]
  %v41 = vld [vmem:[%s1 + $0x4c] sm:$0xf]
  %v42 = vld [vmem:[%s1 + $0x50] sm:$0xf]
  %v43 = vld [vmem:[%s1 + $0x54] sm:$0xf]
  %v44 = vld [vmem:[%s1 + $0x58] sm:$0xf]
  %v45 = vld [vmem:[%s1 + $0x5c] sm:$0xf]
  %v46 = vld [vmem:[%s1 + $0x60] sm:$0xf]
  %v47 = vld [vmem:[%s1 + $0x64] sm:$0xf]
  %v48 = vld [vmem:[%s1 + $0x68] sm:$0xf]
  %v49 = vld [vmem:[%s1 + $0x6c] sm:$0xf]
  %v50 = vld [vmem:[%s1 + $0x70] sm:$0xf]
  %v51 = vld [vmem:[%s1 + $0x74] sm:$0xf]
  %v52 = vld [vmem:[%s1 + $0x78] sm:$0xf]
  %v53 = vld [vmem:[%s1 + $0x7c] sm:$0xf]
  %v54 = vld [vmem:[%s1 + $0x80] sm:$0xf]
  %v55 = vld [vmem:[%s1 + $0x84] sm:$0xf]
  %v56 = vld [vmem:[%s1 + $0x88] sm:$0xf]
  %v57 = vld [vmem:[%s1 + $0x8c] sm:$0xf]
  %v58 = vld [vmem:[%s1 + $0x90] sm:$0xf]
  %v59 = vld [vmem:[%s1 + $0x94] sm:$0xf]
  %v60 = vld [vmem:[%s1 + $0x98] sm:$0xf]
  %v61 = vld [vmem:[%s1 + $0x9c] sm:$0xf]
  %v62 = vld [vmem:[%s1 + $0xa0] sm:$0xf]
  %v63 = vld [vmem:[%s1 + $0xa4] sm:$0xf]
  %v64 = vld [vmem:[%s1 + $0xa8] sm:$0xf]
  %v65 = vld [vmem:[%s1 + $0xac] sm:$0xf]
  %v66 = vld [vmem:[%s1 + $0xb0] sm:$0xf]
  %v67 = vld [vmem:[%s1 + $0xb4] sm:$0xf]
  %v68 = vld [vmem:[%s1 + $0xb8] sm:$0xf]
  %v69 = vld [vmem:[%s1 + $0xbc] sm:$0xf]
  %v70 = vld [vmem:[%s1 + $0xc0] sm:$0xf]
  %v71 = vld [vmem:[%s1 + $0xc4] sm:$0xf]
  %v72 = vld [vmem:[%s1 + $0xc8] sm:$0xf]
  %v73 = vld [vmem:[%s1 + $0xcc] sm:$0xf]
  %v74 = vld [vmem:[%s1 + $0xd0] sm:$0xf]
  %v75 = vld [vmem:[%s1 + $0xd4] sm:$0xf]
  %v76 = vld [vmem:[%s1 + $0xd8] sm:$0xf]
  %v77 = vld [vmem:[%s1 + $0xdc] sm:$0xf]
  %v78 = vld [vmem:[%s1 + $0xe0] sm:$0xf]
  %v79 = vld [vmem:[%s1 + $0xe4] sm:$0xf]
  %v80 = vld [vmem:[%s1 + $0xe8] sm:$0xf]
  %v81 = vld [vmem:[%s1 + $0xec] sm:$0xf]
  %v82 = vld [vmem:[%s1 + $0xf0] sm:$0xf]
  %v83 = vld [vmem:[%s1 + $0xf4] sm:$0xf]
  %v84 = vld [vmem:[%s1 + $0xf8] sm:$0xf]
  %v85 = vld [vmem:[%s1 + $0xfc] sm:$0xf]
  %v86 = vld [vmem:[%s1 + $0x100] sm:$0xf]
  %v87 = vld [vmem:[%s1 + $0x104] sm:$0xf]
  %v88 = vld [vmem:[%s1 + $0x108] sm:$0xf]
  %v89 = vld [vmem:[%s1 + $0x10c] sm:$0xf]
  %v90 = vld [vmem:[%s1 + $0x110] sm:$0xf]
  %v91 = vld [vmem:[%s1 + $0x114] sm:$0xf]
  %v92 = vld [vmem:[%s1 + $0x118] sm:$0xf]
  %v93 = vld [vmem:[%s1 + $0x11c] sm:$0xf]
  %v94 = vld [vmem:[%s1 + $0x120] sm:$0xf]
  %v95 = vld [vmem:[%s1 + $0x124] sm:$0xf]
  %v96 = vld [vmem:[%s1 + $0x128] sm:$0xf]
  %v97 = vld [vmem:[%s1 + $0x12c] sm:$0xf]
  %v98 = vld [vmem:[%s1 + $0x130] sm:$0xf]
  %v99 = vld [vmem:[%s1 + $0x134] sm:$0xf]
  %v100 = vld [vmem:[%s1 + $0x138] sm:$0xf]
  %v101 = vld [vmem:[%s1 + $0x13c] sm:$0xf]
  %v102 = vld [vmem:[%s1 + $0x140] sm:$0xf]
  %v103 = vld [vmem:[%s1 + $0x144] sm:$0xf]
  %v104 = vld [vmem:[%s1 + $0x148] sm:$0xf]
  %v105 = vld [vmem:[%s1 + $0x14c] sm:$0xf]
  %v106 = vld [vmem:[%s1 + $0x150] sm:$0xf]
  %v107 = vld [vmem:[%s1 + $0x154] sm:$0xf]
  %v108 = vld [vmem:[%s1 + $0x158] sm:$0xf]
  %v109 = vld [vmem:[%s1 + $0x15c] sm:$0xf]
  %v110 = vld [vmem:[%s1 + $0x160] sm:$0xf]
  %v111 = vld [vmem:[%s1 + $0x164] sm:$0xf]
  %v112 = vld [vmem:[%s1 + $0x168] sm:$0xf]
  %v113 = vld [vmem:[%s1 + $0x16c] sm:$0xf]
  %v114 = vld [vmem:[%s1 + $0x170] sm:$0xf]
  %v115 = vld [vmem:[%s1 + $0x174] sm:$0xf]
  %v116 = vld [vmem:[%s1 + $0x178] sm:$0xf]
  %v117 = vld [vmem:[%s1 + $0x17c] sm:$0xf]
  %v118 = vld [vmem:[%s1 + $0x180] sm:$0xf]
  %v119 = vld [vmem:[%s1 + $0x184] sm:$0xf]
  %v120 = vld [vmem:[%s1 + $0x188] sm:$0xf]
  %v121 = vld [vmem:[%s1 + $0x18c] sm:$0xf]
  %v122 = vld [vmem:[%s1 + $0x190] sm:$0xf]
  %v123 = vld [vmem:[%s1 + $0x194] sm:$0xf]
  %v124 = vld [vmem:[%s1 + $0x198] sm:$0xf]
  %v125 = vld [vmem:[%s1 + $0x19c] sm:$0xf]
  %v126 = vld [vmem:[%s1 + $0x1a0] sm:$0xf]
  %v127 = vld [vmem:[%s1 + $0x1a4] sm:$0xf]
  %v128 = vld [vmem:[%s1 + $0x1a8] sm:$0xf]
  %v129 = vld [vmem:[%s1 + $0x1ac] sm:$0xf]
  %v130 = vld [vmem:[%s1 + $0x1b0] sm:$0xf]
  %v131 = vld [vmem:[%s1 + $0x1b4] sm:$0xf]
  %v132 = vld [vmem:[%s1 + $0x1b8] sm:$0xf]
  %v133 = vld [vmem:[%s1 + $0x1bc] sm:$0xf]
  %v134 = vld [vmem:[%s1 + $0x1c0] sm:$0xf]
  %v135 = vld [vmem:[%s1 + $0x1c4] sm:$0xf]
  %v136 = vld [vmem:[%s1 + $0x1c8] sm:$0xf]
  %v137 = vld [vmem:[%s1 + $0x1cc] sm:$0xf]
  %v138 = vld [vmem:[%s1 + $0x1d0] sm:$0xf]
  %v139 = vld [vmem:[%s1 + $0x1d4] sm:$0xf]
  %v140 = vld [vmem:[%s1 + $0x1d8] sm:$0xf]
  %v141 = vld [vmem:[%s1 + $0x1dc] sm:$0xf]
  %v142 = vld [vmem:[%s1 + $0x1e0] sm:$0xf]
  %v143 = vld [vmem:[%s1 + $0x1e4] sm:$0xf]
  %v144 = vld [vmem:[%s1 + $0x1e8] sm:$0xf]
  %v145 = vld [vmem:[%s1 + $0x1ec] sm:$0xf]
  %v146 = vld [vmem:[%s1 + $0x1f0] sm:$0xf]
  %v147 = vld [vmem:[%s1 + $0x1f4] sm:$0xf]
  %v148 = vld [vmem:[%s1 + $0x1f8] sm:$0xf]
  %v149 = vld [vmem:[%s1 + $0x1fc] sm:$0xf]
  %v150 = vld [vmem:[%s2] sm:$0x1]
  %v152 = vlaneseq
  %v153 = vshrl.u32 %v152, 7
  %v154 = vsub.s32 0, %v153
  %v155 = vrot.slane %v150, %v154
  %v158 = vcombine.high %v21, %v21
  %v160 = vunpack.c.l.s4 1966171168
  %v161 = vunpack.c.0.s8 %v160
  %v162 = vlaneseq
  %v163 = vshrl.u32 %v162, 7
  %v164 = vsub.s32 %v161, %v163
  %v165 = vrot.slane %v21, %v164
  %v167 = vunpack.c.l.s4 1966171168
  %v168 = vunpack.c.0.s8 %v167
  %v169 = vlaneseq
  %v170 = vshrl.u32 %v169, 7
  %v171 = vsub.s32 %v168, %v170
  %v172 = vrot.slane %v158, %v171
  %v173 = vcombine.high %v165, %v165
  %v174 = vcombine.high %v172, %v172
  %v176 = vunpack.c.l.s4 1966171168
  %v177 = vunpack.c.0.s8 %v176
  %v178 = vlaneseq
  %v179 = vshrl.u32 %v178, 7
  %v180 = vsub.s32 %v177, %v179
  %v181 = vrot.slane %v165, %v180
  %v183 = vunpack.c.l.s4 1966171168
  %v184 = vunpack.c.0.s8 %v183
  %v185 = vlaneseq
  %v186 = vshrl.u32 %v185, 7
  %v187 = vsub.s32 %v184, %v186
  %v188 = vrot.slane %v172, %v187
  %v190 = vunpack.c.l.s4 1966171168
  %v191 = vunpack.c.0.s8 %v190
  %v192 = vlaneseq
  %v193 = vshrl.u32 %v192, 7
  %v194 = vsub.s32 %v191, %v193
  %v195 = vrot.slane %v173, %v194
  %v197 = vunpack.c.l.s4 1966171168
  %v198 = vunpack.c.0.s8 %v197
  %v199 = vlaneseq
  %v200 = vshrl.u32 %v199, 7
  %v201 = vsub.s32 %v198, %v200
  %v202 = vrot.slane %v174, %v201
  %v203 = vcombine.high %v181, %v181
  %v204 = vcombine.high %v188, %v188
  %v205 = vcombine.high %v195, %v195
  %v206 = vcombine.high %v202, %v202
  %v343 = vunpack.c.l.b16 %v22
  %v344 = vunpack.c.l.b16 %v23
  %v345 = vunpack.c.l.b16 %v24
  %v346 = vunpack.c.l.b16 %v25
  %v347 = vunpack.c.l.b16 %v26
  %v348 = vunpack.c.l.b16 %v27
  %v349 = vunpack.c.l.b16 %v28
  %v350 = vunpack.c.l.b16 %v29
  %v351 = vunpack.c.l.b16 %v30
  %v352 = vunpack.c.l.b16 %v31
  %v353 = vunpack.c.l.b16 %v32
  %v354 = vunpack.c.l.b16 %v33
  %v355 = vunpack.c.l.b16 %v34
  %v356 = vunpack.c.l.b16 %v35
  %v357 = vunpack.c.l.b16 %v36
  %v358 = vunpack.c.l.b16 %v37
  %v359 = vunpack.c.l.b16 %v38
  %v360 = vunpack.c.l.b16 %v39
  %v361 = vunpack.c.l.b16 %v40
  %v362 = vunpack.c.l.b16 %v41
  %v363 = vunpack.c.l.b16 %v42
  %v364 = vunpack.c.l.b16 %v43
  %v365 = vunpack.c.l.b16 %v44
  %v366 = vunpack.c.l.b16 %v45
  %v367 = vunpack.c.l.b16 %v46
  %v368 = vunpack.c.l.b16 %v47
  %v369 = vunpack.c.l.b16 %v48
  %v370 = vunpack.c.l.b16 %v49
  %v371 = vunpack.c.l.b16 %v50
  %v372 = vunpack.c.l.b16 %v51
  %v373 = vunpack.c.l.b16 %v52
  %v374 = vunpack.c.l.b16 %v53
  %v375 = vunpack.c.l.b16 %v54
  %v376 = vunpack.c.l.b16 %v55
  %v377 = vunpack.c.l.b16 %v56
  %v378 = vunpack.c.l.b16 %v57
  %v379 = vunpack.c.l.b16 %v58
  %v380 = vunpack.c.l.b16 %v59
  %v381 = vunpack.c.l.b16 %v60
  %v382 = vunpack.c.l.b16 %v61
  %v383 = vunpack.c.l.b16 %v62
  %v384 = vunpack.c.l.b16 %v63
  %v385 = vunpack.c.l.b16 %v64
  %v386 = vunpack.c.l.b16 %v65
  %v387 = vunpack.c.l.b16 %v66
  %v388 = vunpack.c.l.b16 %v67
  %v389 = vunpack.c.l.b16 %v68
  %v390 = vunpack.c.l.b16 %v69
  %v391 = vunpack.c.l.b16 %v70
  %v392 = vunpack.c.l.b16 %v71
  %v393 = vunpack.c.l.b16 %v72
  %v394 = vunpack.c.l.b16 %v73
  %v395 = vunpack.c.l.b16 %v74
  %v396 = vunpack.c.l.b16 %v75
  %v397 = vunpack.c.l.b16 %v76
  %v398 = vunpack.c.l.b16 %v77
  %v399 = vunpack.c.l.b16 %v78
  %v400 = vunpack.c.l.b16 %v79
  %v401 = vunpack.c.l.b16 %v80
  %v402 = vunpack.c.l.b16 %v81
  %v403 = vunpack.c.l.b16 %v82
  %v404 = vunpack.c.l.b16 %v83
  %v405 = vunpack.c.l.b16 %v84
  %v406 = vunpack.c.l.b16 %v85
  %v407 = vunpack.c.l.b16 %v86
  %v408 = vunpack.c.l.b16 %v87
  %v409 = vunpack.c.l.b16 %v88
  %v410 = vunpack.c.l.b16 %v89
  %v411 = vunpack.c.l.b16 %v90
  %v412 = vunpack.c.l.b16 %v91
  %v413 = vunpack.c.l.b16 %v92
  %v414 = vunpack.c.l.b16 %v93
  %v415 = vunpack.c.l.b16 %v94
  %v416 = vunpack.c.l.b16 %v95
  %v417 = vunpack.c.l.b16 %v96
  %v418 = vunpack.c.l.b16 %v97
  %v419 = vunpack.c.l.b16 %v98
  %v420 = vunpack.c.l.b16 %v99
  %v421 = vunpack.c.l.b16 %v100
  %v422 = vunpack.c.l.b16 %v101
  %v423 = vunpack.c.l.b16 %v102
  %v424 = vunpack.c.l.b16 %v103
  %v425 = vunpack.c.l.b16 %v104
  %v426 = vunpack.c.l.b16 %v105
  %v427 = vunpack.c.l.b16 %v106
  %v428 = vunpack.c.l.b16 %v107
  %v429 = vunpack.c.l.b16 %v108
  %v430 = vunpack.c.l.b16 %v109
  %v431 = vunpack.c.l.b16 %v110
  %v432 = vunpack.c.l.b16 %v111
  %v433 = vunpack.c.l.b16 %v112
  %v434 = vunpack.c.l.b16 %v113
  %v435 = vunpack.c.l.b16 %v114
  %v436 = vunpack.c.l.b16 %v115
  %v437 = vunpack.c.l.b16 %v116
  %v438 = vunpack.c.l.b16 %v117
  %v439 = vunpack.c.l.b16 %v118
  %v440 = vunpack.c.l.b16 %v119
  %v441 = vunpack.c.l.b16 %v120
  %v442 = vunpack.c.l.b16 %v121
  %v443 = vunpack.c.l.b16 %v122
  %v444 = vunpack.c.l.b16 %v123
  %v445 = vunpack.c.l.b16 %v124
  %v446 = vunpack.c.l.b16 %v125
  %v447 = vunpack.c.l.b16 %v126
  %v448 = vunpack.c.l.b16 %v127
  %v449 = vunpack.c.l.b16 %v128
  %v450 = vunpack.c.l.b16 %v129
  %v451 = vunpack.c.l.b16 %v130
  %v452 = vunpack.c.l.b16 %v131
  %v453 = vunpack.c.l.b16 %v132
  %v454 = vunpack.c.l.b16 %v133
  %v455 = vunpack.c.l.b16 %v134
  %v456 = vunpack.c.l.b16 %v135
  %v457 = vunpack.c.l.b16 %v136
  %v458 = vunpack.c.l.b16 %v137
  %v459 = vunpack.c.l.b16 %v138
  %v460 = vunpack.c.l.b16 %v139
  %v461 = vunpack.c.l.b16 %v140
  %v462 = vunpack.c.l.b16 %v141
  %v463 = vunpack.c.l.b16 %v142
  %v464 = vunpack.c.l.b16 %v143
  %v465 = vunpack.c.l.b16 %v144
  %v466 = vunpack.c.l.b16 %v145
  %v467 = vunpack.c.l.b16 %v146
  %v468 = vunpack.c.l.b16 %v147
  %v469 = vunpack.c.l.b16 %v148
  %v470 = vunpack.c.l.b16 %v149
  %v471 = vpack.c.b16 %v344, %v343
  %v472 = vpack.c.b16 %v346, %v345
  %v473 = vpack.c.b16 %v348, %v347
  %v474 = vpack.c.b16 %v350, %v349
  %v475 = vpack.c.b16 %v352, %v351
  %v476 = vpack.c.b16 %v354, %v353
  %v477 = vpack.c.b16 %v356, %v355
  %v478 = vpack.c.b16 %v358, %v357
  %v479 = vpack.c.b16 %v360, %v359
  %v480 = vpack.c.b16 %v362, %v361
  %v481 = vpack.c.b16 %v364, %v363
  %v482 = vpack.c.b16 %v366, %v365
  %v483 = vpack.c.b16 %v368, %v367
  %v484 = vpack.c.b16 %v370, %v369
  %v485 = vpack.c.b16 %v372, %v371
  %v486 = vpack.c.b16 %v374, %v373
  %v487 = vpack.c.b16 %v376, %v375
  %v488 = vpack.c.b16 %v378, %v377
  %v489 = vpack.c.b16 %v380, %v379
  %v490 = vpack.c.b16 %v382, %v381
  %v491 = vpack.c.b16 %v384, %v383
  %v492 = vpack.c.b16 %v386, %v385
  %v493 = vpack.c.b16 %v388, %v387
  %v494 = vpack.c.b16 %v390, %v389
  %v495 = vpack.c.b16 %v392, %v391
  %v496 = vpack.c.b16 %v394, %v393
  %v497 = vpack.c.b16 %v396, %v395
  %v498 = vpack.c.b16 %v398, %v397
  %v499 = vpack.c.b16 %v400, %v399
  %v500 = vpack.c.b16 %v402, %v401
  %v501 = vpack.c.b16 %v404, %v403
  %v502 = vpack.c.b16 %v406, %v405
  %v503 = vpack.c.b16 %v408, %v407
  %v504 = vpack.c.b16 %v410, %v409
  %v505 = vpack.c.b16 %v412, %v411
  %v506 = vpack.c.b16 %v414, %v413
  %v507 = vpack.c.b16 %v416, %v415
  %v508 = vpack.c.b16 %v418, %v417
  %v509 = vpack.c.b16 %v420, %v419
  %v510 = vpack.c.b16 %v422, %v421
  %v511 = vpack.c.b16 %v424, %v423
  %v512 = vpack.c.b16 %v426, %v425
  %v513 = vpack.c.b16 %v428, %v427
  %v514 = vpack.c.b16 %v430, %v429
  %v515 = vpack.c.b16 %v432, %v431
  %v516 = vpack.c.b16 %v434, %v433
  %v517 = vpack.c.b16 %v436, %v435
  %v518 = vpack.c.b16 %v438, %v437
  %v519 = vpack.c.b16 %v440, %v439
  %v520 = vpack.c.b16 %v442, %v441
  %v521 = vpack.c.b16 %v444, %v443
  %v522 = vpack.c.b16 %v446, %v445
  %v523 = vpack.c.b16 %v448, %v447
  %v524 = vpack.c.b16 %v450, %v449
  %v525 = vpack.c.b16 %v452, %v451
  %v526 = vpack.c.b16 %v454, %v453
  %v527 = vpack.c.b16 %v456, %v455
  %v528 = vpack.c.b16 %v458, %v457
  %v529 = vpack.c.b16 %v460, %v459
  %v530 = vpack.c.b16 %v462, %v461
  %v531 = vpack.c.b16 %v464, %v463
  %v532 = vpack.c.b16 %v466, %v465
  %v533 = vpack.c.b16 %v468, %v467
  %v534 = vpack.c.b16 %v470, %v469
  %599 = vmatprep.subr.bf16.mxu0 0
  %600 = vmatpush1.bf16.msra.mxu0 %v478
  %601 = vmatprep.subr.bf16.mxu0 0
  %602 = vmatpush1.bf16.msra.mxu0 %v477
  %603 = vmatprep.subr.bf16.mxu0 0
  %604 = vmatpush1.bf16.msra.mxu0 %v476
  %605 = vmatprep.subr.bf16.mxu0 0
  %606 = vmatpush1.bf16.msra.mxu0 %v475
  %607 = vmatprep.subr.bf16.mxu0 0
  %608 = vmatpush1.bf16.msra.mxu0 %v474
  %609 = vmatprep.subr.bf16.mxu0 0
  %610 = vmatpush1.bf16.msra.mxu0 %v473
  %611 = vmatprep.subr.bf16.mxu0 0
  %612 = vmatpush1.bf16.msra.mxu0 %v472
  %613 = vmatprep.subr.bf16.mxu0 0
  %614 = vmatpush1.bf16.msra.mxu0 %v471
  %615 = vmatprep.subr.bf16.mxu0 0
  %616 = vmatpush2.bf16.msra.mxu0 %v486
  %617 = vmatprep.subr.bf16.mxu0 0
  %618 = vmatpush2.bf16.msra.mxu0 %v485
  %619 = vmatprep.subr.bf16.mxu0 0
  %620 = vmatpush2.bf16.msra.mxu0 %v484
  %621 = vmatprep.subr.bf16.mxu0 0
  %622 = vmatpush2.bf16.msra.mxu0 %v483
  %623 = vmatprep.subr.bf16.mxu0 0
  %624 = vmatpush2.bf16.msra.mxu0 %v482
  %625 = vmatprep.subr.bf16.mxu0 0
  %626 = vmatpush2.bf16.msra.mxu0 %v481
  %627 = vmatprep.subr.bf16.mxu0 0
  %628 = vmatpush2.bf16.msra.mxu0 %v480
  %629 = vmatprep.subr.bf16.mxu0 0
  %630 = vmatpush2.bf16.msra.mxu0 %v479
  %631 = vmatprep.mubr.bf16.mxu0 %v195
  %632 = vmatmul.mubr.bf16.gmra.mxu0 %v181
  %v633 = vpop.f32.mrf.mxu0
  %v634 = vadd.f32 %v155, %v633
  %v635 = vpop.f32.mrf.mxu0
  %v636 = vpop.f32.mrf.mxu0
  %v637 = vpop.f32.mrf.mxu0
  %638 = vdwg.mxu0
  %639 = vmatprep.subr.bf16.mxu0 0
  %640 = vmatpush1.bf16.msra.mxu0 %v494
  %641 = vmatprep.subr.bf16.mxu0 0
  %642 = vmatpush1.bf16.msra.mxu0 %v493
  %643 = vmatprep.subr.bf16.mxu0 0
  %644 = vmatpush1.bf16.msra.mxu0 %v492
  %645 = vmatprep.subr.bf16.mxu0 0
  %646 = vmatpush1.bf16.msra.mxu0 %v491
  %647 = vmatprep.subr.bf16.mxu0 0
  %648 = vmatpush1.bf16.msra.mxu0 %v490
  %649 = vmatprep.subr.bf16.mxu0 0
  %650 = vmatpush1.bf16.msra.mxu0 %v489
  %651 = vmatprep.subr.bf16.mxu0 0
  %652 = vmatpush1.bf16.msra.mxu0 %v488
  %653 = vmatprep.subr.bf16.mxu0 0
  %654 = vmatpush1.bf16.msra.mxu0 %v487
  %655 = vmatprep.subr.bf16.mxu0 0
  %656 = vmatpush2.bf16.msra.mxu0 %v502
  %657 = vmatprep.subr.bf16.mxu0 0
  %658 = vmatpush2.bf16.msra.mxu0 %v501
  %659 = vmatprep.subr.bf16.mxu0 0
  %660 = vmatpush2.bf16.msra.mxu0 %v500
  %661 = vmatprep.subr.bf16.mxu0 0
  %662 = vmatpush2.bf16.msra.mxu0 %v499
  %663 = vmatprep.subr.bf16.mxu0 0
  %664 = vmatpush2.bf16.msra.mxu0 %v498
  %665 = vmatprep.subr.bf16.mxu0 0
  %666 = vmatpush2.bf16.msra.mxu0 %v497
  %667 = vmatprep.subr.bf16.mxu0 0
  %668 = vmatpush2.bf16.msra.mxu0 %v496
  %669 = vmatprep.subr.bf16.mxu0 0
  %670 = vmatpush2.bf16.msra.mxu0 %v495
  %671 = vmatprep.mubr.bf16.mxu0 %v205
  %672 = vmatmul.mubr.bf16.gmra.mxu0 %v203
  %v673 = vpop.f32.mrf.mxu0
  %v674 = vadd.f32 %v634, %v673
  %v675 = vpop.f32.mrf.mxu0
  %v676 = vpop.f32.mrf.mxu0
  %v677 = vpop.f32.mrf.mxu0
  %678 = vdwg.mxu0
  %679 = vmatprep.subr.bf16.mxu0 0
  %680 = vmatpush1.bf16.msra.mxu0 %v510
  %681 = vmatprep.subr.bf16.mxu0 0
  %682 = vmatpush1.bf16.msra.mxu0 %v509
  %683 = vmatprep.subr.bf16.mxu0 0
  %684 = vmatpush1.bf16.msra.mxu0 %v508
  %685 = vmatprep.subr.bf16.mxu0 0
  %686 = vmatpush1.bf16.msra.mxu0 %v507
  %687 = vmatprep.subr.bf16.mxu0 0
  %688 = vmatpush1.bf16.msra.mxu0 %v506
  %689 = vmatprep.subr.bf16.mxu0 0
  %690 = vmatpush1.bf16.msra.mxu0 %v505
  %691 = vmatprep.subr.bf16.mxu0 0
  %692 = vmatpush1.bf16.msra.mxu0 %v504
  %693 = vmatprep.subr.bf16.mxu0 0
  %694 = vmatpush1.bf16.msra.mxu0 %v503
  %695 = vmatprep.subr.bf16.mxu0 0
  %696 = vmatpush2.bf16.msra.mxu0 %v518
  %697 = vmatprep.subr.bf16.mxu0 0
  %698 = vmatpush2.bf16.msra.mxu0 %v517
  %699 = vmatprep.subr.bf16.mxu0 0
  %700 = vmatpush2.bf16.msra.mxu0 %v516
  %701 = vmatprep.subr.bf16.mxu0 0
  %702 = vmatpush2.bf16.msra.mxu0 %v515
  %703 = vmatprep.subr.bf16.mxu0 0
  %704 = vmatpush2.bf16.msra.mxu0 %v514
  %705 = vmatprep.subr.bf16.mxu0 0
  %706 = vmatpush2.bf16.msra.mxu0 %v513
  %707 = vmatprep.subr.bf16.mxu0 0
  %708 = vmatpush2.bf16.msra.mxu0 %v512
  %709 = vmatprep.subr.bf16.mxu0 0
  %710 = vmatpush2.bf16.msra.mxu0 %v511
  %711 = vmatprep.mubr.bf16.mxu0 %v202
  %712 = vmatmul.mubr.bf16.gmra.mxu0 %v188
  %v713 = vpop.f32.mrf.mxu0
  %v714 = vadd.f32 %v674, %v713
  %v715 = vpop.f32.mrf.mxu0
  %v716 = vpop.f32.mrf.mxu0
  %v717 = vpop.f32.mrf.mxu0
  %718 = vdwg.mxu0
  %719 = vmatprep.subr.bf16.mxu0 0
  %720 = vmatpush1.bf16.msra.mxu0 %v526
  %721 = vmatprep.subr.bf16.mxu0 0
  %722 = vmatpush1.bf16.msra.mxu0 %v525
  %723 = vmatprep.subr.bf16.mxu0 0
  %724 = vmatpush1.bf16.msra.mxu0 %v524
  %725 = vmatprep.subr.bf16.mxu0 0
  %726 = vmatpush1.bf16.msra.mxu0 %v523
  %727 = vmatprep.subr.bf16.mxu0 0
  %728 = vmatpush1.bf16.msra.mxu0 %v522
  %729 = vmatprep.subr.bf16.mxu0 0
  %730 = vmatpush1.bf16.msra.mxu0 %v521
  %731 = vmatprep.subr.bf16.mxu0 0
  %732 = vmatpush1.bf16.msra.mxu0 %v520
  %733 = vmatprep.subr.bf16.mxu0 0
  %734 = vmatpush1.bf16.msra.mxu0 %v519
  %735 = vmatprep.subr.bf16.mxu0 0
  %736 = vmatpush2.bf16.msra.mxu0 %v534
  %737 = vmatprep.subr.bf16.mxu0 0
  %738 = vmatpush2.bf16.msra.mxu0 %v533
  %739 = vmatprep.subr.bf16.mxu0 0
  %740 = vmatpush2.bf16.msra.mxu0 %v532
  %741 = vmatprep.subr.bf16.mxu0 0
  %742 = vmatpush2.bf16.msra.mxu0 %v531
  %743 = vmatprep.subr.bf16.mxu0 0
  %744 = vmatpush2.bf16.msra.mxu0 %v530
  %745 = vmatprep.subr.bf16.mxu0 0
  %746 = vmatpush2.bf16.msra.mxu0 %v529
  %747 = vmatprep.subr.bf16.mxu0 0
  %748 = vmatpush2.bf16.msra.mxu0 %v528
  %749 = vmatprep.subr.bf16.mxu0 0
  %750 = vmatpush2.bf16.msra.mxu0 %v527
  %751 = vmatprep.mubr.bf16.mxu0 %v206
  %752 = vmatmul.mubr.bf16.gmra.mxu0 %v204
  %v753 = vpop.f32.mrf.mxu0
  %v754 = vadd.f32 %v714, %v753
  %v755 = vpop.f32.mrf.mxu0
  %v756 = vpop.f32.mrf.mxu0
  %v757 = vpop.f32.mrf.mxu0
  %758 = vdwg.mxu0
  %v759 = vmax.f32 %v754, 0.0
  %v760 = vpack.c.bf16 %v759, %v759
  %v761 = vld [vmem:[%s3] sm:$0xff]
  %v762 = vld [vmem:[%s3 + $0x8] sm:$0xff]
  %v763 = vld [vmem:[%s3 + $0x10] sm:$0xff]
  %v764 = vld [vmem:[%s3 + $0x18] sm:$0xff]
  %v765 = vld [vmem:[%s3 + $0x20] sm:$0xff]
  %v766 = vld [vmem:[%s3 + $0x28] sm:$0xff]
  %v767 = vld [vmem:[%s3 + $0x30] sm:$0xff]
  %v768 = vld [vmem:[%s3 + $0x38] sm:$0xff]
  %v769 = vld [vmem:[%s3 + $0x40] sm:$0xff]
  %v770 = vld [vmem:[%s3 + $0x48] sm:$0xff]
  %v771 = vld [vmem:[%s3 + $0x50] sm:$0xff]
  %v772 = vld [vmem:[%s3 + $0x58] sm:$0xff]
  %v773 = vld [vmem:[%s3 + $0x60] sm:$0xff]
  %v774 = vld [vmem:[%s3 + $0x68] sm:$0xff]
  %v775 = vld [vmem:[%s3 + $0x70] sm:$0xff]
  %v776 = vld [vmem:[%s3 + $0x78] sm:$0xff]
  %v777 = vld [vmem:[%s3 + $0x80] sm:$0xff]
  %v778 = vld [vmem:[%s3 + $0x88] sm:$0xff]
  %v779 = vld [vmem:[%s3 + $0x90] sm:$0xff]
  %v780 = vld [vmem:[%s3 + $0x98] sm:$0xff]
  %v781 = vld [vmem:[%s3 + $0xa0] sm:$0xff]
  %v782 = vld [vmem:[%s3 + $0xa8] sm:$0xff]
  %v783 = vld [vmem:[%s3 + $0xb0] sm:$0xff]
  %v784 = vld [vmem:[%s3 + $0xb8] sm:$0xff]
  %v785 = vld [vmem:[%s3 + $0xc0] sm:$0xff]
  %v786 = vld [vmem:[%s3 + $0xc8] sm:$0xff]
  %v787 = vld [vmem:[%s3 + $0xd0] sm:$0xff]
  %v788 = vld [vmem:[%s3 + $0xd8] sm:$0xff]
  %v789 = vld [vmem:[%s3 + $0xe0] sm:$0xff]
  %v790 = vld [vmem:[%s3 + $0xe8] sm:$0xff]
  %v791 = vld [vmem:[%s3 + $0xf0] sm:$0xff]
  %v792 = vld [vmem:[%s3 + $0xf8] sm:$0xff]
  %v793 = vld [vmem:[%s3 + $0x100] sm:$0xff]
  %v794 = vld [vmem:[%s3 + $0x108] sm:$0xff]
  %v795 = vld [vmem:[%s3 + $0x110] sm:$0xff]
  %v796 = vld [vmem:[%s3 + $0x118] sm:$0xff]
  %v797 = vld [vmem:[%s3 + $0x120] sm:$0xff]
  %v798 = vld [vmem:[%s3 + $0x128] sm:$0xff]
  %v799 = vld [vmem:[%s3 + $0x130] sm:$0xff]
  %v800 = vld [vmem:[%s3 + $0x138] sm:$0xff]
  %v801 = vld [vmem:[%s3 + $0x140] sm:$0xff]
  %v802 = vld [vmem:[%s3 + $0x148] sm:$0xff]
  %v803 = vld [vmem:[%s3 + $0x150] sm:$0xff]
  %v804 = vld [vmem:[%s3 + $0x158] sm:$0xff]
  %v805 = vld [vmem:[%s3 + $0x160] sm:$0xff]
  %v806 = vld [vmem:[%s3 + $0x168] sm:$0xff]
  %v807 = vld [vmem:[%s3 + $0x170] sm:$0xff]
  %v808 = vld [vmem:[%s3 + $0x178] sm:$0xff]
  %v809 = vld [vmem:[%s3 + $0x180] sm:$0xff]
  %v810 = vld [vmem:[%s3 + $0x188] sm:$0xff]
  %v811 = vld [vmem:[%s3 + $0x190] sm:$0xff]
  %v812 = vld [vmem:[%s3 + $0x198] sm:$0xff]
  %v813 = vld [vmem:[%s3 + $0x1a0] sm:$0xff]
  %v814 = vld [vmem:[%s3 + $0x1a8] sm:$0xff]
  %v815 = vld [vmem:[%s3 + $0x1b0] sm:$0xff]
  %v816 = vld [vmem:[%s3 + $0x1b8] sm:$0xff]
  %v817 = vld [vmem:[%s3 + $0x1c0] sm:$0xff]
  %v818 = vld [vmem:[%s3 + $0x1c8] sm:$0xff]
  %v819 = vld [vmem:[%s3 + $0x1d0] sm:$0xff]
  %v820 = vld [vmem:[%s3 + $0x1d8] sm:$0xff]
  %v821 = vld [vmem:[%s3 + $0x1e0] sm:$0xff]
  %v822 = vld [vmem:[%s3 + $0x1e8] sm:$0xff]
  %v823 = vld [vmem:[%s3 + $0x1f0] sm:$0xff]
  %v824 = vld [vmem:[%s3 + $0x1f8] sm:$0xff]
  %v825 = vld [vmem:[%s4] sm:$0xff]
  %v827 = vlaneseq
  %v828 = vshrl.u32 %v827, 7
  %v829 = vsub.s32 0, %v828
  %v830 = vrot.slane %v825, %v829
  %v831 = vlaneseq
  %v832 = vshrl.u32 %v831, 7
  %v833 = vsub.s32 1, %v832
  %v834 = vrot.slane %v825, %v833
  %v835 = vlaneseq
  %v836 = vshrl.u32 %v835, 7
  %v837 = vsub.s32 2, %v836
  %v838 = vrot.slane %v825, %v837
  %v839 = vlaneseq
  %v840 = vshrl.u32 %v839, 7
  %v841 = vsub.s32 3, %v840
  %v842 = vrot.slane %v825, %v841
  %v843 = vlaneseq
  %v844 = vshrl.u32 %v843, 7
  %v845 = vsub.s32 4, %v844
  %v846 = vrot.slane %v825, %v845
  %v847 = vlaneseq
  %v848 = vshrl.u32 %v847, 7
  %v849 = vsub.s32 5, %v848
  %v850 = vrot.slane %v825, %v849
  %v851 = vlaneseq
  %v852 = vshrl.u32 %v851, 7
  %v853 = vsub.s32 6, %v852
  %v854 = vrot.slane %v825, %v853
  %v855 = vlaneseq
  %v856 = vshrl.u32 %v855, 7
  %v857 = vsub.s32 7, %v856
  %v858 = vrot.slane %v825, %v857
  %v931 = vunpack.c.l.b16 %v761
  %v932 = vunpack.c.h.b16 %v761
  %v933 = vunpack.c.l.b16 %v762
  %v934 = vunpack.c.h.b16 %v762
  %v935 = vunpack.c.l.b16 %v763
  %v936 = vunpack.c.h.b16 %v763
  %v937 = vunpack.c.l.b16 %v764
  %v938 = vunpack.c.h.b16 %v764
  %v939 = vunpack.c.l.b16 %v765
  %v940 = vunpack.c.h.b16 %v765
  %v941 = vunpack.c.l.b16 %v766
  %v942 = vunpack.c.h.b16 %v766
  %v943 = vunpack.c.l.b16 %v767
  %v944 = vunpack.c.h.b16 %v767
  %v945 = vunpack.c.l.b16 %v768
  %v946 = vunpack.c.h.b16 %v768
  %v947 = vunpack.c.l.b16 %v769
  %v948 = vunpack.c.h.b16 %v769
  %v949 = vunpack.c.l.b16 %v770
  %v950 = vunpack.c.h.b16 %v770
  %v951 = vunpack.c.l.b16 %v771
  %v952 = vunpack.c.h.b16 %v771
  %v953 = vunpack.c.l.b16 %v772
  %v954 = vunpack.c.h.b16 %v772
  %v955 = vunpack.c.l.b16 %v773
  %v956 = vunpack.c.h.b16 %v773
  %v957 = vunpack.c.l.b16 %v774
  %v958 = vunpack.c.h.b16 %v774
  %v959 = vunpack.c.l.b16 %v775
  %v960 = vunpack.c.h.b16 %v775
  %v961 = vunpack.c.l.b16 %v776
  %v962 = vunpack.c.h.b16 %v776
  %v963 = vunpack.c.l.b16 %v777
  %v964 = vunpack.c.h.b16 %v777
  %v965 = vunpack.c.l.b16 %v778
  %v966 = vunpack.c.h.b16 %v778
  %v967 = vunpack.c.l.b16 %v779
  %v968 = vunpack.c.h.b16 %v779
  %v969 = vunpack.c.l.b16 %v780
  %v970 = vunpack.c.h.b16 %v780
  %v971 = vunpack.c.l.b16 %v781
  %v972 = vunpack.c.h.b16 %v781
  %v973 = vunpack.c.l.b16 %v782
  %v974 = vunpack.c.h.b16 %v782
  %v975 = vunpack.c.l.b16 %v783
  %v976 = vunpack.c.h.b16 %v783
  %v977 = vunpack.c.l.b16 %v784
  %v978 = vunpack.c.h.b16 %v784
  %v979 = vunpack.c.l.b16 %v785
  %v980 = vunpack.c.h.b16 %v785
  %v981 = vunpack.c.l.b16 %v786
  %v982 = vunpack.c.h.b16 %v786
  %v983 = vunpack.c.l.b16 %v787
  %v984 = vunpack.c.h.b16 %v787
  %v985 = vunpack.c.l.b16 %v788
  %v986 = vunpack.c.h.b16 %v788
  %v987 = vunpack.c.l.b16 %v789
  %v988 = vunpack.c.h.b16 %v789
  %v989 = vunpack.c.l.b16 %v790
  %v990 = vunpack.c.h.b16 %v790
  %v991 = vunpack.c.l.b16 %v791
  %v992 = vunpack.c.h.b16 %v791
  %v993 = vunpack.c.l.b16 %v792
  %v994 = vunpack.c.h.b16 %v792
  %v995 = vunpack.c.l.b16 %v793
  %v996 = vunpack.c.h.b16 %v793
  %v997 = vunpack.c.l.b16 %v794
  %v998 = vunpack.c.h.b16 %v794
  %v999 = vunpack.c.l.b16 %v795
  %v1000 = vunpack.c.h.b16 %v795
  %v1001 = vunpack.c.l.b16 %v796
  %v1002 = vunpack.c.h.b16 %v796
  %v1003 = vunpack.c.l.b16 %v797
  %v1004 = vunpack.c.h.b16 %v797
  %v1005 = vunpack.c.l.b16 %v798
  %v1006 = vunpack.c.h.b16 %v798
  %v1007 = vunpack.c.l.b16 %v799
  %v1008 = vunpack.c.h.b16 %v799
  %v1009 = vunpack.c.l.b16 %v800
  %v1010 = vunpack.c.h.b16 %v800
  %v1011 = vunpack.c.l.b16 %v801
  %v1012 = vunpack.c.h.b16 %v801
  %v1013 = vunpack.c.l.b16 %v802
  %v1014 = vunpack.c.h.b16 %v802
  %v1015 = vunpack.c.l.b16 %v803
  %v1016 = vunpack.c.h.b16 %v803
  %v1017 = vunpack.c.l.b16 %v804
  %v1018 = vunpack.c.h.b16 %v804
  %v1019 = vunpack.c.l.b16 %v805
  %v1020 = vunpack.c.h.b16 %v805
  %v1021 = vunpack.c.l.b16 %v806
  %v1022 = vunpack.c.h.b16 %v806
  %v1023 = vunpack.c.l.b16 %v807
  %v1024 = vunpack.c.h.b16 %v807
  %v1025 = vunpack.c.l.b16 %v808
  %v1026 = vunpack.c.h.b16 %v808
  %v1027 = vunpack.c.l.b16 %v809
  %v1028 = vunpack.c.h.b16 %v809
  %v1029 = vunpack.c.l.b16 %v810
  %v1030 = vunpack.c.h.b16 %v810
  %v1031 = vunpack.c.l.b16 %v811
  %v1032 = vunpack.c.h.b16 %v811
  %v1033 = vunpack.c.l.b16 %v812
  %v1034 = vunpack.c.h.b16 %v812
  %v1035 = vunpack.c.l.b16 %v813
  %v1036 = vunpack.c.h.b16 %v813
  %v1037 = vunpack.c.l.b16 %v814
  %v1038 = vunpack.c.h.b16 %v814
  %v1039 = vunpack.c.l.b16 %v815
  %v1040 = vunpack.c.h.b16 %v815
  %v1041 = vunpack.c.l.b16 %v816
  %v1042 = vunpack.c.h.b16 %v816
  %v1043 = vunpack.c.l.b16 %v817
  %v1044 = vunpack.c.h.b16 %v817
  %v1045 = vunpack.c.l.b16 %v818
  %v1046 = vunpack.c.h.b16 %v818
  %v1047 = vunpack.c.l.b16 %v819
  %v1048 = vunpack.c.h.b16 %v819
  %v1049 = vunpack.c.l.b16 %v820
  %v1050 = vunpack.c.h.b16 %v820
  %v1051 = vunpack.c.l.b16 %v821
  %v1052 = vunpack.c.h.b16 %v821
  %v1053 = vunpack.c.l.b16 %v822
  %v1054 = vunpack.c.h.b16 %v822
  %v1055 = vunpack.c.l.b16 %v823
  %v1056 = vunpack.c.h.b16 %v823
  %v1057 = vunpack.c.l.b16 %v824
  %v1058 = vunpack.c.h.b16 %v824
  %v1059 = vpack.c.b16 %v939, %v931
  %v1060 = vpack.c.b16 %v940, %v932
  %v1061 = vpack.c.b16 %v941, %v933
  %v1062 = vpack.c.b16 %v942, %v934
  %v1063 = vpack.c.b16 %v943, %v935
  %v1064 = vpack.c.b16 %v944, %v936
  %v1065 = vpack.c.b16 %v945, %v937
  %v1066 = vpack.c.b16 %v946, %v938
  %v1067 = vpack.c.b16 %v955, %v947
  %v1068 = vpack.c.b16 %v956, %v948
  %v1069 = vpack.c.b16 %v957, %v949
  %v1070 = vpack.c.b16 %v958, %v950
  %v1071 = vpack.c.b16 %v959, %v951
  %v1072 = vpack.c.b16 %v960, %v952
  %v1073 = vpack.c.b16 %v961, %v953
  %v1074 = vpack.c.b16 %v962, %v954
  %v1075 = vpack.c.b16 %v971, %v963
  %v1076 = vpack.c.b16 %v972, %v964
  %v1077 = vpack.c.b16 %v973, %v965
  %v1078 = vpack.c.b16 %v974, %v966
  %v1079 = vpack.c.b16 %v975, %v967
  %v1080 = vpack.c.b16 %v976, %v968
  %v1081 = vpack.c.b16 %v977, %v969
  %v1082 = vpack.c.b16 %v978, %v970
  %v1083 = vpack.c.b16 %v987, %v979
  %v1084 = vpack.c.b16 %v988, %v980
  %v1085 = vpack.c.b16 %v989, %v981
  %v1086 = vpack.c.b16 %v990, %v982
  %v1087 = vpack.c.b16 %v991, %v983
  %v1088 = vpack.c.b16 %v992, %v984
  %v1089 = vpack.c.b16 %v993, %v985
  %v1090 = vpack.c.b16 %v994, %v986
  %v1091 = vpack.c.b16 %v1003, %v995
  %v1092 = vpack.c.b16 %v1004, %v996
  %v1093 = vpack.c.b16 %v1005, %v997
  %v1094 = vpack.c.b16 %v1006, %v998
  %v1095 = vpack.c.b16 %v1007, %v999
  %v1096 = vpack.c.b16 %v1008, %v1000
  %v1097 = vpack.c.b16 %v1009, %v1001
  %v1098 = vpack.c.b16 %v1010, %v1002
  %v1099 = vpack.c.b16 %v1019, %v1011
  %v1100 = vpack.c.b16 %v1020, %v1012
  %v1101 = vpack.c.b16 %v1021, %v1013
  %v1102 = vpack.c.b16 %v1022, %v1014
  %v1103 = vpack.c.b16 %v1023, %v1015
  %v1104 = vpack.c.b16 %v1024, %v1016
  %v1105 = vpack.c.b16 %v1025, %v1017
  %v1106 = vpack.c.b16 %v1026, %v1018
  %v1107 = vpack.c.b16 %v1035, %v1027
  %v1108 = vpack.c.b16 %v1036, %v1028
  %v1109 = vpack.c.b16 %v1037, %v1029
  %v1110 = vpack.c.b16 %v1038, %v1030
  %v1111 = vpack.c.b16 %v1039, %v1031
  %v1112 = vpack.c.b16 %v1040, %v1032
  %v1113 = vpack.c.b16 %v1041, %v1033
  %v1114 = vpack.c.b16 %v1042, %v1034
  %v1115 = vpack.c.b16 %v1051, %v1043
  %v1116 = vpack.c.b16 %v1052, %v1044
  %v1117 = vpack.c.b16 %v1053, %v1045
  %v1118 = vpack.c.b16 %v1054, %v1046
  %v1119 = vpack.c.b16 %v1055, %v1047
  %v1120 = vpack.c.b16 %v1056, %v1048
  %v1121 = vpack.c.b16 %v1057, %v1049
  %v1122 = vpack.c.b16 %v1058, %v1050
  %1187 = vmatprep.subr.bf16.mxu0 %v1116
  %1188 = vmatpush1.bf16.msra.mxu0 %v1115
  %1189 = vmatprep.subr.bf16.mxu0 %v1108
  %1190 = vmatpush1.bf16.msra.mxu0 %v1107
  %1191 = vmatprep.subr.bf16.mxu0 %v1100
  %1192 = vmatpush1.bf16.msra.mxu0 %v1099
  %1193 = vmatprep.subr.bf16.mxu0 %v1092
  %1194 = vmatpush1.bf16.msra.mxu0 %v1091
  %1195 = vmatprep.subr.bf16.mxu0 %v1084
  %1196 = vmatpush1.bf16.msra.mxu0 %v1083
  %1197 = vmatprep.subr.bf16.mxu0 %v1076
  %1198 = vmatpush1.bf16.msra.mxu0 %v1075
  %1199 = vmatprep.subr.bf16.mxu0 %v1068
  %1200 = vmatpush1.bf16.msra.mxu0 %v1067
  %1201 = vmatprep.subr.bf16.mxu0 %v1060
  %1202 = vmatpush1.bf16.msra.mxu0 %v1059
  %1203 = vmatprep.subr.bf16.mxu0 0
  %1204 = vmatpush2.bf16.msra.mxu0 0
  %1205 = vmatprep.subr.bf16.mxu0 0
  %1206 = vmatpush2.bf16.msra.mxu0 0
  %1207 = vmatprep.subr.bf16.mxu0 0
  %1208 = vmatpush2.bf16.msra.mxu0 0
  %1209 = vmatprep.subr.bf16.mxu0 0
  %1210 = vmatpush2.bf16.msra.mxu0 0
  %1211 = vmatprep.subr.bf16.mxu0 0
  %1212 = vmatpush2.bf16.msra.mxu0 0
  %1213 = vmatprep.subr.bf16.mxu0 0
  %1214 = vmatpush2.bf16.msra.mxu0 0
  %1215 = vmatprep.subr.bf16.mxu0 0
  %1216 = vmatpush2.bf16.msra.mxu0 0
  %1217 = vmatprep.subr.bf16.mxu0 0
  %1218 = vmatpush2.bf16.msra.mxu0 0
  %1219 = vmatprep.mubr.bf16.mxu0 0
  %1220 = vmatmul.mubr.bf16.gmra.mxu0 %v760
  %v1221 = vpop.f32.mrf.mxu0
  %v1222 = vadd.f32 %v830, %v1221
  %v1223 = vpop.f32.mrf.mxu0
  %v1224 = vadd.f32 %v834, %v1223
  %v1225 = vpop.f32.mrf.mxu0
  %v1226 = vpop.f32.mrf.mxu0
  %1227 = vdwg.mxu0
  %1228 = vmatprep.subr.bf16.mxu0 %v1118
  %1229 = vmatpush1.bf16.msra.mxu0 %v1117
  %1230 = vmatprep.subr.bf16.mxu0 %v1110
  %1231 = vmatpush1.bf16.msra.mxu0 %v1109
  %1232 = vmatprep.subr.bf16.mxu0 %v1102
  %1233 = vmatpush1.bf16.msra.mxu0 %v1101
  %1234 = vmatprep.subr.bf16.mxu0 %v1094
  %1235 = vmatpush1.bf16.msra.mxu0 %v1093
  %1236 = vmatprep.subr.bf16.mxu0 %v1086
  %1237 = vmatpush1.bf16.msra.mxu0 %v1085
  %1238 = vmatprep.subr.bf16.mxu0 %v1078
  %1239 = vmatpush1.bf16.msra.mxu0 %v1077
  %1240 = vmatprep.subr.bf16.mxu0 %v1070
  %1241 = vmatpush1.bf16.msra.mxu0 %v1069
  %1242 = vmatprep.subr.bf16.mxu0 %v1062
  %1243 = vmatpush1.bf16.msra.mxu0 %v1061
  %1244 = vmatprep.subr.bf16.mxu0 0
  %1245 = vmatpush2.bf16.msra.mxu0 0
  %1246 = vmatprep.subr.bf16.mxu0 0
  %1247 = vmatpush2.bf16.msra.mxu0 0
  %1248 = vmatprep.subr.bf16.mxu0 0
  %1249 = vmatpush2.bf16.msra.mxu0 0
  %1250 = vmatprep.subr.bf16.mxu0 0
  %1251 = vmatpush2.bf16.msra.mxu0 0
  %1252 = vmatprep.subr.bf16.mxu0 0
  %1253 = vmatpush2.bf16.msra.mxu0 0
  %1254 = vmatprep.subr.bf16.mxu0 0
  %1255 = vmatpush2.bf16.msra.mxu0 0
  %1256 = vmatprep.subr.bf16.mxu0 0
  %1257 = vmatpush2.bf16.msra.mxu0 0
  %1258 = vmatprep.subr.bf16.mxu0 0
  %1259 = vmatpush2.bf16.msra.mxu0 0
  %1260 = vmatprep.mubr.bf16.mxu0 0
  %1261 = vmatmul.mubr.bf16.gmra.mxu0 %v760
  %v1262 = vpop.f32.mrf.mxu0
  %v1263 = vadd.f32 %v838, %v1262
  %v1264 = vpop.f32.mrf.mxu0
  %v1265 = vadd.f32 %v842, %v1264
  %v1266 = vpop.f32.mrf.mxu0
  %v1267 = vpop.f32.mrf.mxu0
  %1268 = vdwg.mxu0
  %1269 = vmatprep.subr.bf16.mxu0 %v1120
  %1270 = vmatpush1.bf16.msra.mxu0 %v1119
  %1271 = vmatprep.subr.bf16.mxu0 %v1112
  %1272 = vmatpush1.bf16.msra.mxu0 %v1111
  %1273 = vmatprep.subr.bf16.mxu0 %v1104
  %1274 = vmatpush1.bf16.msra.mxu0 %v1103
  %1275 = vmatprep.subr.bf16.mxu0 %v1096
  %1276 = vmatpush1.bf16.msra.mxu0 %v1095
  %1277 = vmatprep.subr.bf16.mxu0 %v1088
  %1278 = vmatpush1.bf16.msra.mxu0 %v1087
  %1279 = vmatprep.subr.bf16.mxu0 %v1080
  %1280 = vmatpush1.bf16.msra.mxu0 %v1079
  %1281 = vmatprep.subr.bf16.mxu0 %v1072
  %1282 = vmatpush1.bf16.msra.mxu0 %v1071
  %1283 = vmatprep.subr.bf16.mxu0 %v1064
  %1284 = vmatpush1.bf16.msra.mxu0 %v1063
  %1285 = vmatprep.subr.bf16.mxu0 0
  %1286 = vmatpush2.bf16.msra.mxu0 0
  %1287 = vmatprep.subr.bf16.mxu0 0
  %1288 = vmatpush2.bf16.msra.mxu0 0
  %1289 = vmatprep.subr.bf16.mxu0 0
  %1290 = vmatpush2.bf16.msra.mxu0 0
  %1291 = vmatprep.subr.bf16.mxu0 0
  %1292 = vmatpush2.bf16.msra.mxu0 0
  %1293 = vmatprep.subr.bf16.mxu0 0
  %1294 = vmatpush2.bf16.msra.mxu0 0
  %1295 = vmatprep.subr.bf16.mxu0 0
  %1296 = vmatpush2.bf16.msra.mxu0 0
  %1297 = vmatprep.subr.bf16.mxu0 0
  %1298 = vmatpush2.bf16.msra.mxu0 0
  %1299 = vmatprep.subr.bf16.mxu0 0
  %1300 = vmatpush2.bf16.msra.mxu0 0
  %1301 = vmatprep.mubr.bf16.mxu0 0
  %1302 = vmatmul.mubr.bf16.gmra.mxu0 %v760
  %v1303 = vpop.f32.mrf.mxu0
  %v1304 = vadd.f32 %v846, %v1303
  %v1305 = vpop.f32.mrf.mxu0
  %v1306 = vadd.f32 %v850, %v1305
  %v1307 = vpop.f32.mrf.mxu0
  %v1308 = vpop.f32.mrf.mxu0
  %1309 = vdwg.mxu0
  %1310 = vmatprep.subr.bf16.mxu0 %v1122
  %1311 = vmatpush1.bf16.msra.mxu0 %v1121
  %1312 = vmatprep.subr.bf16.mxu0 %v1114
  %1313 = vmatpush1.bf16.msra.mxu0 %v1113
  %1314 = vmatprep.subr.bf16.mxu0 %v1106
  %1315 = vmatpush1.bf16.msra.mxu0 %v1105
  %1316 = vmatprep.subr.bf16.mxu0 %v1098
  %1317 = vmatpush1.bf16.msra.mxu0 %v1097
  %1318 = vmatprep.subr.bf16.mxu0 %v1090
  %1319 = vmatpush1.bf16.msra.mxu0 %v1089
  %1320 = vmatprep.subr.bf16.mxu0 %v1082
  %1321 = vmatpush1.bf16.msra.mxu0 %v1081
  %1322 = vmatprep.subr.bf16.mxu0 %v1074
  %1323 = vmatpush1.bf16.msra.mxu0 %v1073
  %1324 = vmatprep.subr.bf16.mxu0 %v1066
  %1325 = vmatpush1.bf16.msra.mxu0 %v1065
  %1326 = vmatprep.subr.bf16.mxu0 0
  %1327 = vmatpush2.bf16.msra.mxu0 0
  %1328 = vmatprep.subr.bf16.mxu0 0
  %1329 = vmatpush2.bf16.msra.mxu0 0
  %1330 = vmatprep.subr.bf16.mxu0 0
  %1331 = vmatpush2.bf16.msra.mxu0 0
  %1332 = vmatprep.subr.bf16.mxu0 0
  %1333 = vmatpush2.bf16.msra.mxu0 0
  %1334 = vmatprep.subr.bf16.mxu0 0
  %1335 = vmatpush2.bf16.msra.mxu0 0
  %1336 = vmatprep.subr.bf16.mxu0 0
  %1337 = vmatpush2.bf16.msra.mxu0 0
  %1338 = vmatprep.subr.bf16.mxu0 0
  %1339 = vmatpush2.bf16.msra.mxu0 0
  %1340 = vmatprep.subr.bf16.mxu0 0
  %1341 = vmatpush2.bf16.msra.mxu0 0
  %1342 = vmatprep.mubr.bf16.mxu0 0
  %1343 = vmatmul.mubr.bf16.gmra.mxu0 %v760
  %v1344 = vpop.f32.mrf.mxu0
  %v1345 = vadd.f32 %v854, %v1344
  %v1346 = vpop.f32.mrf.mxu0
  %v1347 = vadd.f32 %v858, %v1346
  %v1348 = vpop.f32.mrf.mxu0
  %v1349 = vpop.f32.mrf.mxu0
  %1350 = vdwg.mxu0
  %v1351 = vmax.f32 %v1222, 0.0
  %v1352 = vmax.f32 %v1224, 0.0
  %v1353 = vmax.f32 %v1263, 0.0
  %v1354 = vmax.f32 %v1265, 0.0
  %v1355 = vmax.f32 %v1304, 0.0
  %v1356 = vmax.f32 %v1306, 0.0
  %v1357 = vmax.f32 %v1345, 0.0
  %v1358 = vmax.f32 %v1347, 0.0
  %v1359 = vpack.c.bf16 %v1351, %v1351
  %v1360 = vpack.c.bf16 %v1352, %v1352
  %v1361 = vpack.c.bf16 %v1353, %v1353
  %v1362 = vpack.c.bf16 %v1354, %v1354
  %v1363 = vpack.c.bf16 %v1355, %v1355
  %v1364 = vpack.c.bf16 %v1356, %v1356
  %v1365 = vpack.c.bf16 %v1357, %v1357
  %v1366 = vpack.c.bf16 %v1358, %v1358
  %v1375 = vcombine.low %v1359, %v1360
  %v1376 = vcombine.low %v1361, %v1362
  %v1377 = vcombine.low %v1363, %v1364
  %v1378 = vcombine.low %v1365, %v1366
  %v1380 = vunpack.c.l.s4 1966171168
  %v1381 = vunpack.c.0.s8 %v1380
  %v1382 = vlaneseq
  %v1383 = vshrl.u32 %v1382, 7
  %v1384 = vsub.s32 %v1381, %v1383
  %v1385 = vrot.slane %v1375, %v1384
  %v1387 = vunpack.c.l.s4 1966171168
  %v1388 = vunpack.c.0.s8 %v1387
  %v1389 = vlaneseq
  %v1390 = vshrl.u32 %v1389, 7
  %v1391 = vsub.s32 %v1388, %v1390
  %v1392 = vrot.slane %v1376, %v1391
  %v1394 = vunpack.c.l.s4 1966171168
  %v1395 = vunpack.c.0.s8 %v1394
  %v1396 = vlaneseq
  %v1397 = vshrl.u32 %v1396, 7
  %v1398 = vsub.s32 %v1395, %v1397
  %v1399 = vrot.slane %v1377, %v1398
  %v1401 = vunpack.c.l.s4 1966171168
  %v1402 = vunpack.c.0.s8 %v1401
  %v1403 = vlaneseq
  %v1404 = vshrl.u32 %v1403, 7
  %v1405 = vsub.s32 %v1402, %v1404
  %v1406 = vrot.slane %v1378, %v1405
  %v1407 = vcombine.low %v1385, %v1392
  %v1408 = vcombine.low %v1399, %v1406
  %v1410 = vunpack.c.l.s4 1966171168
  %v1411 = vunpack.c.0.s8 %v1410
  %v1412 = vlaneseq
  %v1413 = vshrl.u32 %v1412, 7
  %v1414 = vsub.s32 %v1411, %v1413
  %v1415 = vrot.slane %v1407, %v1414
  %v1417 = vunpack.c.l.s4 1966171168
  %v1418 = vunpack.c.0.s8 %v1417
  %v1419 = vlaneseq
  %v1420 = vshrl.u32 %v1419, 7
  %v1421 = vsub.s32 %v1418, %v1420
  %v1422 = vrot.slane %v1408, %v1421
  %v1423 = vcombine.low %v1415, %v1422
  %1425 = vst [vmem:[%s5] sm:$0xff] %v1423
  // Predicated region
  $region22: #{generator_forward.13} parent=0 // pred_check
    _
  $region23: #{generator_forward.13} parent=0 // pred_check_branch
    %1427 = sbr.rel (0) target = $region25
  $region24: #{generator_forward.13} parent=0 // pred_region
    _
  $region25: #{generator_forward.13} parent=0 // pred_fallthru
    _
  // Predicated region
  $region26: #{generator_forward.13} parent=0 // pred_check
    _
  $region27: #{generator_forward.13} parent=0 // pred_check_branch
    %1429 = sbr.rel (0) target = $region29
  $region28: #{generator_forward.13} parent=0 // pred_region
    _
  $region29: #{generator_forward.13} parent=0 // pred_fallthru
    _

// kernel: generator_forward.14
$region0: #{generator_forward.14}
  #allocation0 [shape = 'u32[]', space=smem, size = 0x4, offset = 0x4, fixed_abs, tag = 'smem constant byte address 0x4 - core index']
  #allocation1 [shape = 'u32[144,128]{1,0:T(1,128)}', space=vmem, size = 0x12000, scoped, tag = 'internal scratch']
  %s0 = inlined_call_operand.vmem [shape: bf16[128,576], index: 0, kind: input, shape index: {}]
  %s1 = inlined_call_operand.vmem [shape: bf16[576,32], index: 1, kind: input, shape index: {}]
  %s2 = inlined_call_operand.vmem [shape: bf16[128,576], index: 2, kind: input, shape index: {}]
  %s3 = inlined_call_operand.vmem [shape: bf16[576,32], index: 3, kind: input, shape index: {}]
  %s4 = inlined_call_operand.vmem [shape: f32[128,1], index: 4, kind: input, shape index: {}]
  %s5 = inlined_call_operand.vmem [shape: bf16[128,32], index: 5, kind: output, shape index: {}]
  %s6 = sld [smem:[#allocation0]]
  $region30: #{generator_forward.14} parent=0
    _
  %s8 = ssub.s32 1, %s6
  %s9 = scalar_select 0, %s8, %s6
  // Predicated region
  $region2: #{generator_forward.14} parent=0 // pred_check
    _
  $region3: #{generator_forward.14} parent=0 // pred_check_branch
    %11 = sbr.rel (0) target = $region5
  $region4: #{generator_forward.14} parent=0 // pred_region
    _
  $region5: #{generator_forward.14} parent=0 // pred_fallthru
    _
  // Predicated region
  $region6: #{generator_forward.14} parent=0 // pred_check
    _
  $region7: #{generator_forward.14} parent=0 // pred_check_branch
    %13 = sbr.rel (0) target = $region9
  $region8: #{generator_forward.14} parent=0 // pred_region
    _
  $region9: #{generator_forward.14} parent=0 // pred_fallthru
    _
  // Predicated region
  $region10: #{generator_forward.14} parent=0 // pred_check
    _
  $region11: #{generator_forward.14} parent=0 // pred_check_branch
    %15 = sbr.rel (0) target = $region13
  $region12: #{generator_forward.14} parent=0 // pred_region
    _
  $region13: #{generator_forward.14} parent=0 // pred_fallthru
    _
  // Predicated region
  $region14: #{generator_forward.14} parent=0 // pred_check
    _
  $region15: #{generator_forward.14} parent=0 // pred_check_branch
    %17 = sbr.rel (0) target = $region17
  $region16: #{generator_forward.14} parent=0 // pred_region
    _
  $region17: #{generator_forward.14} parent=0 // pred_fallthru
    _
  // Predicated region
  $region18: #{generator_forward.14} parent=0 // pred_check
    _
  $region19: #{generator_forward.14} parent=0 // pred_check_branch
    %19 = sbr.rel (0) target = $region21
  $region20: #{generator_forward.14} parent=0 // pred_region
    _
  $region21: #{generator_forward.14} parent=0 // pred_fallthru
    _
  %v21 = vld [vmem:[%s0] sm:$0xff]
  %v22 = vld [vmem:[%s0 + $0x8] sm:$0xff]
  %v23 = vld [vmem:[%s0 + $0x10] sm:$0xf]
  %v24 = vld [vmem:[%s0 + $0x14] sm:$0xff]
  %v25 = vld [vmem:[%s0 + $0x1c] sm:$0xff]
  %v26 = vld [vmem:[%s0 + $0x24] sm:$0xf]
  %v27 = vld [vmem:[%s0 + $0x28] sm:$0xff]
  %v28 = vld [vmem:[%s0 + $0x30] sm:$0xff]
  %v29 = vld [vmem:[%s0 + $0x38] sm:$0xf]
  %v30 = vld [vmem:[%s0 + $0x3c] sm:$0xff]
  %v31 = vld [vmem:[%s0 + $0x44] sm:$0xff]
  %v32 = vld [vmem:[%s0 + $0x4c] sm:$0xf]
  %v33 = vld [vmem:[%s0 + $0x50] sm:$0xff]
  %v34 = vld [vmem:[%s0 + $0x58] sm:$0xff]
  %v35 = vld [vmem:[%s0 + $0x60] sm:$0xf]
  %v36 = vld [vmem:[%s0 + $0x64] sm:$0xff]
  %v37 = vld [vmem:[%s0 + $0x6c] sm:$0xff]
  %v38 = vld [vmem:[%s0 + $0x74] sm:$0xf]
  %v39 = vld [vmem:[%s0 + $0x78] sm:$0xff]
  %v40 = vld [vmem:[%s0 + $0x80] sm:$0xff]
  %v41 = vld [vmem:[%s0 + $0x88] sm:$0xf]
  %v42 = vld [vmem:[%s0 + $0x8c] sm:$0xff]
  %v43 = vld [vmem:[%s0 + $0x94] sm:$0xff]
  %v44 = vld [vmem:[%s0 + $0x9c] sm:$0xf]
  %v45 = vld [vmem:[%s0 + $0xa0] sm:$0xff]
  %v46 = vld [vmem:[%s0 + $0xa8] sm:$0xff]
  %v47 = vld [vmem:[%s0 + $0xb0] sm:$0xf]
  %v48 = vld [vmem:[%s0 + $0xb4] sm:$0xff]
  %v49 = vld [vmem:[%s0 + $0xbc] sm:$0xff]
  %v50 = vld [vmem:[%s0 + $0xc4] sm:$0xf]
  %v51 = vld [vmem:[%s0 + $0xc8] sm:$0xff]
  %v52 = vld [vmem:[%s0 + $0xd0] sm:$0xff]
  %v53 = vld [vmem:[%s0 + $0xd8] sm:$0xf]
  %v54 = vld [vmem:[%s0 + $0xdc] sm:$0xff]
  %v55 = vld [vmem:[%s0 + $0xe4] sm:$0xff]
  %v56 = vld [vmem:[%s0 + $0xec] sm:$0xf]
  %v57 = vld [vmem:[%s0 + $0xf0] sm:$0xff]
  %v58 = vld [vmem:[%s0 + $0xf8] sm:$0xff]
  %v59 = vld [vmem:[%s0 + $0x100] sm:$0xf]
  %v60 = vld [vmem:[%s0 + $0x104] sm:$0xff]
  %v61 = vld [vmem:[%s0 + $0x10c] sm:$0xff]
  %v62 = vld [vmem:[%s0 + $0x114] sm:$0xf]
  %v63 = vld [vmem:[%s0 + $0x118] sm:$0xff]
  %v64 = vld [vmem:[%s0 + $0x120] sm:$0xff]
  %v65 = vld [vmem:[%s0 + $0x128] sm:$0xf]
  %v66 = vld [vmem:[%s0 + $0x12c] sm:$0xff]
  %v67 = vld [vmem:[%s0 + $0x134] sm:$0xff]
  %v68 = vld [vmem:[%s0 + $0x13c] sm:$0xf]
  %v69 = vld [vmem:[%s1] sm:$0xf]
  %v70 = vld [vmem:[%s1 + $0x4] sm:$0xf]
  %v71 = vld [vmem:[%s1 + $0x8] sm:$0xf]
  %v72 = vld [vmem:[%s1 + $0xc] sm:$0xf]
  %v73 = vld [vmem:[%s1 + $0x10] sm:$0xf]
  %v74 = vld [vmem:[%s1 + $0x14] sm:$0xf]
  %v75 = vld [vmem:[%s1 + $0x18] sm:$0xf]
  %v76 = vld [vmem:[%s1 + $0x1c] sm:$0xf]
  %v77 = vld [vmem:[%s1 + $0x20] sm:$0xf]
  %v78 = vld [vmem:[%s1 + $0x24] sm:$0xf]
  %v79 = vld [vmem:[%s1 + $0x28] sm:$0xf]
  %v80 = vld [vmem:[%s1 + $0x2c] sm:$0xf]
  %v81 = vld [vmem:[%s1 + $0x30] sm:$0xf]
  %v82 = vld [vmem:[%s1 + $0x34] sm:$0xf]
  %v83 = vld [vmem:[%s1 + $0x38] sm:$0xf]
  %v84 = vld [vmem:[%s1 + $0x3c] sm:$0xf]
  %v85 = vld [vmem:[%s1 + $0x40] sm:$0xf]
  %v86 = vld [vmem:[%s1 + $0x44] sm:$0xf]
  %v87 = vld [vmem:[%s1 + $0x48] sm:$0xf]
  %v88 = vld [vmem:[%s1 + $0x4c] sm:$0xf]
  %v89 = vld [vmem:[%s1 + $0x50] sm:$0xf]
  %v90 = vld [vmem:[%s1 + $0x54] sm:$0xf]
  %v91 = vld [vmem:[%s1 + $0x58] sm:$0xf]
  %v92 = vld [vmem:[%s1 + $0x5c] sm:$0xf]
  %v93 = vld [vmem:[%s1 + $0x60] sm:$0xf]
  %v94 = vld [vmem:[%s1 + $0x64] sm:$0xf]
  %v95 = vld [vmem:[%s1 + $0x68] sm:$0xf]
  %v96 = vld [vmem:[%s1 + $0x6c] sm:$0xf]
  %v97 = vld [vmem:[%s1 + $0x70] sm:$0xf]
  %v98 = vld [vmem:[%s1 + $0x74] sm:$0xf]
  %v99 = vld [vmem:[%s1 + $0x78] sm:$0xf]
  %v100 = vld [vmem:[%s1 + $0x7c] sm:$0xf]
  %v101 = vld [vmem:[%s1 + $0x80] sm:$0xf]
  %v102 = vld [vmem:[%s1 + $0x84] sm:$0xf]
  %v103 = vld [vmem:[%s1 + $0x88] sm:$0xf]
  %v104 = vld [vmem:[%s1 + $0x8c] sm:$0xf]
  %v105 = vld [vmem:[%s1 + $0x90] sm:$0xf]
  %v106 = vld [vmem:[%s1 + $0x94] sm:$0xf]
  %v107 = vld [vmem:[%s1 + $0x98] sm:$0xf]
  %v108 = vld [vmem:[%s1 + $0x9c] sm:$0xf]
  %v109 = vld [vmem:[%s1 + $0xa0] sm:$0xf]
  %v110 = vld [vmem:[%s1 + $0xa4] sm:$0xf]
  %v111 = vld [vmem:[%s1 + $0xa8] sm:$0xf]
  %v112 = vld [vmem:[%s1 + $0xac] sm:$0xf]
  %v113 = vld [vmem:[%s1 + $0xb0] sm:$0xf]
  %v114 = vld [vmem:[%s1 + $0xb4] sm:$0xf]
  %v115 = vld [vmem:[%s1 + $0xb8] sm:$0xf]
  %v116 = vld [vmem:[%s1 + $0xbc] sm:$0xf]
  %v117 = vld [vmem:[%s1 + $0xc0] sm:$0xf]
  %v118 = vld [vmem:[%s1 + $0xc4] sm:$0xf]
  %v119 = vld [vmem:[%s1 + $0xc8] sm:$0xf]
  %v120 = vld [vmem:[%s1 + $0xcc] sm:$0xf]
  %v121 = vld [vmem:[%s1 + $0xd0] sm:$0xf]
  %v122 = vld [vmem:[%s1 + $0xd4] sm:$0xf]
  %v123 = vld [vmem:[%s1 + $0xd8] sm:$0xf]
  %v124 = vld [vmem:[%s1 + $0xdc] sm:$0xf]
  %v125 = vld [vmem:[%s1 + $0xe0] sm:$0xf]
  %v126 = vld [vmem:[%s1 + $0xe4] sm:$0xf]
  %v127 = vld [vmem:[%s1 + $0xe8] sm:$0xf]
  %v128 = vld [vmem:[%s1 + $0xec] sm:$0xf]
  %v129 = vld [vmem:[%s1 + $0xf0] sm:$0xf]
  %v130 = vld [vmem:[%s1 + $0xf4] sm:$0xf]
  %v131 = vld [vmem:[%s1 + $0xf8] sm:$0xf]
  %v132 = vld [vmem:[%s1 + $0xfc] sm:$0xf]
  %v133 = vld [vmem:[%s1 + $0x100] sm:$0xf]
  %v134 = vld [vmem:[%s1 + $0x104] sm:$0xf]
  %v135 = vld [vmem:[%s1 + $0x108] sm:$0xf]
  %v136 = vld [vmem:[%s1 + $0x10c] sm:$0xf]
  %v137 = vld [vmem:[%s1 + $0x110] sm:$0xf]
  %v138 = vld [vmem:[%s1 + $0x114] sm:$0xf]
  %v139 = vld [vmem:[%s1 + $0x118] sm:$0xf]
  %v140 = vld [vmem:[%s1 + $0x11c] sm:$0xf]
  %v141 = vld [vmem:[%s2] sm:$0xff]
  %v142 = vld [vmem:[%s2 + $0x8] sm:$0xff]
  %v143 = vld [vmem:[%s2 + $0x10] sm:$0xf]
  %v144 = vld [vmem:[%s2 + $0x14] sm:$0xff]
  %v145 = vld [vmem:[%s2 + $0x1c] sm:$0xff]
  %v146 = vld [vmem:[%s2 + $0x24] sm:$0xf]
  %v147 = vld [vmem:[%s2 + $0x28] sm:$0xff]
  %v148 = vld [vmem:[%s2 + $0x30] sm:$0xff]
  %v149 = vld [vmem:[%s2 + $0x38] sm:$0xf]
  %v150 = vld [vmem:[%s2 + $0x3c] sm:$0xff]
  %v151 = vld [vmem:[%s2 + $0x44] sm:$0xff]
  %v152 = vld [vmem:[%s2 + $0x4c] sm:$0xf]
  %v153 = vld [vmem:[%s2 + $0x50] sm:$0xff]
  %v154 = vld [vmem:[%s2 + $0x58] sm:$0xff]
  %v155 = vld [vmem:[%s2 + $0x60] sm:$0xf]
  %v156 = vld [vmem:[%s2 + $0x64] sm:$0xff]
  %v157 = vld [vmem:[%s2 + $0x6c] sm:$0xff]
  %v158 = vld [vmem:[%s2 + $0x74] sm:$0xf]
  %v159 = vld [vmem:[%s2 + $0x78] sm:$0xff]
  %v160 = vld [vmem:[%s2 + $0x80] sm:$0xff]
  %v161 = vld [vmem:[%s2 + $0x88] sm:$0xf]
  %v162 = vld [vmem:[%s2 + $0x8c] sm:$0xff]
  %v163 = vld [vmem:[%s2 + $0x94] sm:$0xff]
  %v164 = vld [vmem:[%s2 + $0x9c] sm:$0xf]
  %v165 = vld [vmem:[%s2 + $0xa0] sm:$0xff]
  %v166 = vld [vmem:[%s2 + $0xa8] sm:$0xff]
  %v167 = vld [vmem:[%s2 + $0xb0] sm:$0xf]
  %v168 = vld [vmem:[%s2 + $0xb4] sm:$0xff]
  %v169 = vld [vmem:[%s2 + $0xbc] sm:$0xff]
  %v170 = vld [vmem:[%s2 + $0xc4] sm:$0xf]
  %v171 = vld [vmem:[%s2 + $0xc8] sm:$0xff]
  %v172 = vld [vmem:[%s2 + $0xd0] sm:$0xff]
  %v173 = vld [vmem:[%s2 + $0xd8] sm:$0xf]
  %v174 = vld [vmem:[%s2 + $0xdc] sm:$0xff]
  %v175 = vld [vmem:[%s2 + $0xe4] sm:$0xff]
  %v176 = vld [vmem:[%s2 + $0xec] sm:$0xf]
  %v177 = vld [vmem:[%s2 + $0xf0] sm:$0xff]
  %v178 = vld [vmem:[%s2 + $0xf8] sm:$0xff]
  %v179 = vld [vmem:[%s2 + $0x100] sm:$0xf]
  %v180 = vld [vmem:[%s2 + $0x104] sm:$0xff]
  %v181 = vld [vmem:[%s2 + $0x10c] sm:$0xff]
  %v182 = vld [vmem:[%s2 + $0x114] sm:$0xf]
  %v183 = vld [vmem:[%s2 + $0x118] sm:$0xff]
  %v184 = vld [vmem:[%s2 + $0x120] sm:$0xff]
  %v185 = vld [vmem:[%s2 + $0x128] sm:$0xf]
  %v186 = vld [vmem:[%s2 + $0x12c] sm:$0xff]
  %v187 = vld [vmem:[%s2 + $0x134] sm:$0xff]
  %v188 = vld [vmem:[%s2 + $0x13c] sm:$0xf]
  %v189 = vld [vmem:[%s3] sm:$0xf]
  %v190 = vld [vmem:[%s3 + $0x4] sm:$0xf]
  %v191 = vld [vmem:[%s3 + $0x8] sm:$0xf]
  %v192 = vld [vmem:[%s3 + $0xc] sm:$0xf]
  %v193 = vld [vmem:[%s3 + $0x10] sm:$0xf]
  %v194 = vld [vmem:[%s3 + $0x14] sm:$0xf]
  %v195 = vld [vmem:[%s3 + $0x18] sm:$0xf]
  %v196 = vld [vmem:[%s3 + $0x1c] sm:$0xf]
  %v197 = vld [vmem:[%s3 + $0x20] sm:$0xf]
  %v198 = vld [vmem:[%s3 + $0x24] sm:$0xf]
  %v199 = vld [vmem:[%s3 + $0x28] sm:$0xf]
  %v200 = vld [vmem:[%s3 + $0x2c] sm:$0xf]
  %v201 = vld [vmem:[%s3 + $0x30] sm:$0xf]
  %v202 = vld [vmem:[%s3 + $0x34] sm:$0xf]
  %v203 = vld [vmem:[%s3 + $0x38] sm:$0xf]
  %v204 = vld [vmem:[%s3 + $0x3c] sm:$0xf]
  %v205 = vld [vmem:[%s3 + $0x40] sm:$0xf]
  %v206 = vld [vmem:[%s3 + $0x44] sm:$0xf]
  %v207 = vld [vmem:[%s3 + $0x48] sm:$0xf]
  %v208 = vld [vmem:[%s3 + $0x4c] sm:$0xf]
  %v209 = vld [vmem:[%s3 + $0x50] sm:$0xf]
  %v210 = vld [vmem:[%s3 + $0x54] sm:$0xf]
  %v211 = vld [vmem:[%s3 + $0x58] sm:$0xf]
  %v212 = vld [vmem:[%s3 + $0x5c] sm:$0xf]
  %v213 = vld [vmem:[%s3 + $0x60] sm:$0xf]
  %v214 = vld [vmem:[%s3 + $0x64] sm:$0xf]
  %v215 = vld [vmem:[%s3 + $0x68] sm:$0xf]
  %v216 = vld [vmem:[%s3 + $0x6c] sm:$0xf]
  %v217 = vld [vmem:[%s3 + $0x70] sm:$0xf]
  %v218 = vld [vmem:[%s3 + $0x74] sm:$0xf]
  %v219 = vld [vmem:[%s3 + $0x78] sm:$0xf]
  %v220 = vld [vmem:[%s3 + $0x7c] sm:$0xf]
  %v221 = vld [vmem:[%s3 + $0x80] sm:$0xf]
  %v222 = vld [vmem:[%s3 + $0x84] sm:$0xf]
  %v223 = vld [vmem:[%s3 + $0x88] sm:$0xf]
  %v224 = vld [vmem:[%s3 + $0x8c] sm:$0xf]
  %v225 = vld [vmem:[%s3 + $0x90] sm:$0xf]
  %v226 = vld [vmem:[%s3 + $0x94] sm:$0xf]
  %v227 = vld [vmem:[%s3 + $0x98] sm:$0xf]
  %v228 = vld [vmem:[%s3 + $0x9c] sm:$0xf]
  %v229 = vld [vmem:[%s3 + $0xa0] sm:$0xf]
  %v230 = vld [vmem:[%s3 + $0xa4] sm:$0xf]
  %v231 = vld [vmem:[%s3 + $0xa8] sm:$0xf]
  %v232 = vld [vmem:[%s3 + $0xac] sm:$0xf]
  %v233 = vld [vmem:[%s3 + $0xb0] sm:$0xf]
  %v234 = vld [vmem:[%s3 + $0xb4] sm:$0xf]
  %v235 = vld [vmem:[%s3 + $0xb8] sm:$0xf]
  %v236 = vld [vmem:[%s3 + $0xbc] sm:$0xf]
  %v237 = vld [vmem:[%s3 + $0xc0] sm:$0xf]
  %v238 = vld [vmem:[%s3 + $0xc4] sm:$0xf]
  %v239 = vld [vmem:[%s3 + $0xc8] sm:$0xf]
  %v240 = vld [vmem:[%s3 + $0xcc] sm:$0xf]
  %v241 = vld [vmem:[%s3 + $0xd0] sm:$0xf]
  %v242 = vld [vmem:[%s3 + $0xd4] sm:$0xf]
  %v243 = vld [vmem:[%s3 + $0xd8] sm:$0xf]
  %v244 = vld [vmem:[%s3 + $0xdc] sm:$0xf]
  %v245 = vld [vmem:[%s3 + $0xe0] sm:$0xf]
  %v246 = vld [vmem:[%s3 + $0xe4] sm:$0xf]
  %v247 = vld [vmem:[%s3 + $0xe8] sm:$0xf]
  %v248 = vld [vmem:[%s3 + $0xec] sm:$0xf]
  %v249 = vld [vmem:[%s3 + $0xf0] sm:$0xf]
  %v250 = vld [vmem:[%s3 + $0xf4] sm:$0xf]
  %v251 = vld [vmem:[%s3 + $0xf8] sm:$0xf]
  %v252 = vld [vmem:[%s3 + $0xfc] sm:$0xf]
  %v253 = vld [vmem:[%s3 + $0x100] sm:$0xf]
  %v254 = vld [vmem:[%s3 + $0x104] sm:$0xf]
  %v255 = vld [vmem:[%s3 + $0x108] sm:$0xf]
  %v256 = vld [vmem:[%s3 + $0x10c] sm:$0xf]
  %v257 = vld [vmem:[%s3 + $0x110] sm:$0xf]
  %v258 = vld [vmem:[%s3 + $0x114] sm:$0xf]
  %v259 = vld [vmem:[%s3 + $0x118] sm:$0xf]
  %v260 = vld [vmem:[%s3 + $0x11c] sm:$0xf]
  %v309 = vunpack.c.l.b16 %v141
  %v310 = vunpack.c.h.b16 %v141
  %v311 = vunpack.c.l.b16 %v142
  %v312 = vunpack.c.h.b16 %v142
  %v313 = vunpack.c.l.b16 %v143
  %v314 = vunpack.c.l.b16 %v144
  %v315 = vunpack.c.h.b16 %v144
  %v316 = vunpack.c.l.b16 %v145
  %v317 = vunpack.c.h.b16 %v145
  %v318 = vunpack.c.l.b16 %v146
  %v319 = vunpack.c.l.b16 %v147
  %v320 = vunpack.c.h.b16 %v147
  %v321 = vunpack.c.l.b16 %v148
  %v322 = vunpack.c.h.b16 %v148
  %v323 = vunpack.c.l.b16 %v149
  %v324 = vunpack.c.l.b16 %v150
  %v325 = vunpack.c.h.b16 %v150
  %v326 = vunpack.c.l.b16 %v151
  %v327 = vunpack.c.h.b16 %v151
  %v328 = vunpack.c.l.b16 %v152
  %v329 = vunpack.c.l.b16 %v153
  %v330 = vunpack.c.h.b16 %v153
  %v331 = vunpack.c.l.b16 %v154
  %v332 = vunpack.c.h.b16 %v154
  %v333 = vunpack.c.l.b16 %v155
  %v334 = vunpack.c.l.b16 %v156
  %v335 = vunpack.c.h.b16 %v156
  %v336 = vunpack.c.l.b16 %v157
  %v337 = vunpack.c.h.b16 %v157
  %v338 = vunpack.c.l.b16 %v158
  %v339 = vunpack.c.l.b16 %v159
  %v340 = vunpack.c.h.b16 %v159
  %v341 = vunpack.c.l.b16 %v160
  %v342 = vunpack.c.h.b16 %v160
  %v343 = vunpack.c.l.b16 %v161
  %v344 = vunpack.c.l.b16 %v162
  %v345 = vunpack.c.h.b16 %v162
  %v346 = vunpack.c.l.b16 %v163
  %v347 = vunpack.c.h.b16 %v163
  %v348 = vunpack.c.l.b16 %v164
  %v349 = vunpack.c.l.b16 %v165
  %v350 = vunpack.c.h.b16 %v165
  %v351 = vunpack.c.l.b16 %v166
  %v352 = vunpack.c.h.b16 %v166
  %v353 = vunpack.c.l.b16 %v167
  %v354 = vunpack.c.l.b16 %v168
  %v355 = vunpack.c.h.b16 %v168
  %v356 = vunpack.c.l.b16 %v169
  %v357 = vunpack.c.h.b16 %v169
  %v358 = vunpack.c.l.b16 %v170
  %v359 = vunpack.c.l.b16 %v171
  %v360 = vunpack.c.h.b16 %v171
  %v361 = vunpack.c.l.b16 %v172
  %v362 = vunpack.c.h.b16 %v172
  %v363 = vunpack.c.l.b16 %v173
  %v364 = vunpack.c.l.b16 %v174
  %v365 = vunpack.c.h.b16 %v174
  %v366 = vunpack.c.l.b16 %v175
  %v367 = vunpack.c.h.b16 %v175
  %v368 = vunpack.c.l.b16 %v176
  %v369 = vunpack.c.l.b16 %v177
  %v370 = vunpack.c.h.b16 %v177
  %v371 = vunpack.c.l.b16 %v178
  %v372 = vunpack.c.h.b16 %v178
  %v373 = vunpack.c.l.b16 %v179
  %v374 = vunpack.c.l.b16 %v180
  %v375 = vunpack.c.h.b16 %v180
  %v376 = vunpack.c.l.b16 %v181
  %v377 = vunpack.c.h.b16 %v181
  %v378 = vunpack.c.l.b16 %v182
  %v379 = vunpack.c.l.b16 %v183
  %v380 = vunpack.c.h.b16 %v183
  %v381 = vunpack.c.l.b16 %v184
  %v382 = vunpack.c.h.b16 %v184
  %v383 = vunpack.c.l.b16 %v185
  %v384 = vunpack.c.l.b16 %v186
  %v385 = vunpack.c.h.b16 %v186
  %v386 = vunpack.c.l.b16 %v187
  %v387 = vunpack.c.h.b16 %v187
  %v388 = vunpack.c.l.b16 %v188
  %v389 = vpack.c.b16 %v314, %v309
  %v390 = vpack.c.b16 %v315, %v310
  %v391 = vpack.c.b16 %v316, %v311
  %v392 = vpack.c.b16 %v317, %v312
  %v393 = vpack.c.b16 %v318, %v313
  %v394 = vpack.c.b16 %v324, %v319
  %v395 = vpack.c.b16 %v325, %v320
  %v396 = vpack.c.b16 %v326, %v321
  %v397 = vpack.c.b16 %v327, %v322
  %v398 = vpack.c.b16 %v328, %v323
  %v399 = vpack.c.b16 %v334, %v329
  %v400 = vpack.c.b16 %v335, %v330
  %v401 = vpack.c.b16 %v336, %v331
  %v402 = vpack.c.b16 %v337, %v332
  %v403 = vpack.c.b16 %v338, %v333
  %v404 = vpack.c.b16 %v344, %v339
  %v405 = vpack.c.b16 %v345, %v340
  %v406 = vpack.c.b16 %v346, %v341
  %v407 = vpack.c.b16 %v347, %v342
  %v408 = vpack.c.b16 %v348, %v343
  %v409 = vpack.c.b16 %v354, %v349
  %v410 = vpack.c.b16 %v355, %v350
  %v411 = vpack.c.b16 %v356, %v351
  %v412 = vpack.c.b16 %v357, %v352
  %v413 = vpack.c.b16 %v358, %v353
  %v414 = vpack.c.b16 %v364, %v359
  %v415 = vpack.c.b16 %v365, %v360
  %v416 = vpack.c.b16 %v366, %v361
  %v417 = vpack.c.b16 %v367, %v362
  %v418 = vpack.c.b16 %v368, %v363
  %v419 = vpack.c.b16 %v374, %v369
  %v420 = vpack.c.b16 %v375, %v370
  %v421 = vpack.c.b16 %v376, %v371
  %v422 = vpack.c.b16 %v377, %v372
  %v423 = vpack.c.b16 %v378, %v373
  %v424 = vpack.c.b16 %v384, %v379
  %v425 = vpack.c.b16 %v385, %v380
  %v426 = vpack.c.b16 %v386, %v381
  %v427 = vpack.c.b16 %v387, %v382
  %v428 = vpack.c.b16 %v388, %v383
  %v533 = vunpack.c.l.b16 %v189
  %v534 = vunpack.c.l.b16 %v190
  %v535 = vunpack.c.l.b16 %v191
  %v536 = vunpack.c.l.b16 %v192
  %v537 = vunpack.c.l.b16 %v193
  %v538 = vunpack.c.l.b16 %v194
  %v539 = vunpack.c.l.b16 %v195
  %v540 = vunpack.c.l.b16 %v196
  %v541 = vunpack.c.l.b16 %v197
  %v542 = vunpack.c.l.b16 %v198
  %v543 = vunpack.c.l.b16 %v199
  %v544 = vunpack.c.l.b16 %v200
  %v545 = vunpack.c.l.b16 %v201
  %v546 = vunpack.c.l.b16 %v202
  %v547 = vunpack.c.l.b16 %v203
  %v548 = vunpack.c.l.b16 %v204
  %v549 = vunpack.c.l.b16 %v205
  %v550 = vunpack.c.l.b16 %v206
  %v551 = vunpack.c.l.b16 %v207
  %v552 = vunpack.c.l.b16 %v208
  %v553 = vunpack.c.l.b16 %v209
  %v554 = vunpack.c.l.b16 %v210
  %v555 = vunpack.c.l.b16 %v211
  %v556 = vunpack.c.l.b16 %v212
  %v557 = vunpack.c.l.b16 %v213
  %v558 = vunpack.c.l.b16 %v214
  %v559 = vunpack.c.l.b16 %v215
  %v560 = vunpack.c.l.b16 %v216
  %v561 = vunpack.c.l.b16 %v217
  %v562 = vunpack.c.l.b16 %v218
  %v563 = vunpack.c.l.b16 %v219
  %v564 = vunpack.c.l.b16 %v220
  %v565 = vunpack.c.l.b16 %v221
  %v566 = vunpack.c.l.b16 %v222
  %v567 = vunpack.c.l.b16 %v223
  %v568 = vunpack.c.l.b16 %v224
  %v569 = vunpack.c.l.b16 %v225
  %v570 = vunpack.c.l.b16 %v226
  %v571 = vunpack.c.l.b16 %v227
  %v572 = vunpack.c.l.b16 %v228
  %v573 = vunpack.c.l.b16 %v229
  %v574 = vunpack.c.l.b16 %v230
  %v575 = vunpack.c.l.b16 %v231
  %v576 = vunpack.c.l.b16 %v232
  %v577 = vunpack.c.l.b16 %v233
  %v578 = vunpack.c.l.b16 %v234
  %v579 = vunpack.c.l.b16 %v235
  %v580 = vunpack.c.l.b16 %v236
  %v581 = vunpack.c.l.b16 %v237
  %v582 = vunpack.c.l.b16 %v238
  %v583 = vunpack.c.l.b16 %v239
  %v584 = vunpack.c.l.b16 %v240
  %v585 = vunpack.c.l.b16 %v241
  %v586 = vunpack.c.l.b16 %v242
  %v587 = vunpack.c.l.b16 %v243
  %v588 = vunpack.c.l.b16 %v244
  %v589 = vunpack.c.l.b16 %v245
  %v590 = vunpack.c.l.b16 %v246
  %v591 = vunpack.c.l.b16 %v247
  %v592 = vunpack.c.l.b16 %v248
  %v593 = vunpack.c.l.b16 %v249
  %v594 = vunpack.c.l.b16 %v250
  %v595 = vunpack.c.l.b16 %v251
  %v596 = vunpack.c.l.b16 %v252
  %v597 = vunpack.c.l.b16 %v253
  %v598 = vunpack.c.l.b16 %v254
  %v599 = vunpack.c.l.b16 %v255
  %v600 = vunpack.c.l.b16 %v256
  %v601 = vunpack.c.l.b16 %v257
  %v602 = vunpack.c.l.b16 %v258
  %v603 = vunpack.c.l.b16 %v259
  %v604 = vunpack.c.l.b16 %v260
  %v605 = vpack.c.b16 %v534, %v533
  %v606 = vpack.c.b16 %v536, %v535
  %v607 = vpack.c.b16 %v538, %v537
  %v608 = vpack.c.b16 %v540, %v539
  %v609 = vpack.c.b16 %v542, %v541
  %v610 = vpack.c.b16 %v544, %v543
  %v611 = vpack.c.b16 %v546, %v545
  %v612 = vpack.c.b16 %v548, %v547
  %v613 = vpack.c.b16 %v550, %v549
  %v614 = vpack.c.b16 %v552, %v551
  %v615 = vpack.c.b16 %v554, %v553
  %v616 = vpack.c.b16 %v556, %v555
  %v617 = vpack.c.b16 %v558, %v557
  %v618 = vpack.c.b16 %v560, %v559
  %v619 = vpack.c.b16 %v562, %v561
  %v620 = vpack.c.b16 %v564, %v563
  %v621 = vpack.c.b16 %v566, %v565
  %v622 = vpack.c.b16 %v568, %v567
  %v623 = vpack.c.b16 %v570, %v569
  %v624 = vpack.c.b16 %v572, %v571
  %v625 = vpack.c.b16 %v574, %v573
  %v626 = vpack.c.b16 %v576, %v575
  %v627 = vpack.c.b16 %v578, %v577
  %v628 = vpack.c.b16 %v580, %v579
  %v629 = vpack.c.b16 %v582, %v581
  %v630 = vpack.c.b16 %v584, %v583
  %v631 = vpack.c.b16 %v586, %v585
  %v632 = vpack.c.b16 %v588, %v587
  %v633 = vpack.c.b16 %v590, %v589
  %v634 = vpack.c.b16 %v592, %v591
  %v635 = vpack.c.b16 %v594, %v593
  %v636 = vpack.c.b16 %v596, %v595
  %v637 = vpack.c.b16 %v598, %v597
  %v638 = vpack.c.b16 %v600, %v599
  %v639 = vpack.c.b16 %v602, %v601
  %v640 = vpack.c.b16 %v604, %v603
  %vm677 = vcmask 523264
  %v679 = vsel %vm677, %v393, 0
  %v682 = vsel %vm677, %v398, 0
  %v685 = vsel %vm677, %v403, 0
  %v688 = vsel %vm677, %v408, 0
  %v691 = vsel %vm677, %v413, 0
  %v694 = vsel %vm677, %v418, 0
  %v697 = vsel %vm677, %v423, 0
  %v700 = vsel %vm677, %v428, 0
  %702 = vmatprep.subr.bf16.mxu0 0
  %703 = vmatpush1.bf16.msra.mxu0 %v612
  %704 = vmatprep.subr.bf16.mxu0 0
  %705 = vmatpush1.bf16.msra.mxu0 %v611
  %706 = vmatprep.subr.bf16.mxu0 0
  %707 = vmatpush1.bf16.msra.mxu0 %v610
  %708 = vmatprep.subr.bf16.mxu0 0
  %709 = vmatpush1.bf16.msra.mxu0 %v609
  %710 = vmatprep.subr.bf16.mxu0 0
  %711 = vmatpush1.bf16.msra.mxu0 %v608
  %712 = vmatprep.subr.bf16.mxu0 0
  %713 = vmatpush1.bf16.msra.mxu0 %v607
  %714 = vmatprep.subr.bf16.mxu0 0
  %715 = vmatpush1.bf16.msra.mxu0 %v606
  %716 = vmatprep.subr.bf16.mxu0 0
  %717 = vmatpush1.bf16.msra.mxu0 %v605
  %718 = vmatprep.subr.bf16.mxu0 0
  %719 = vmatpush2.bf16.msra.mxu0 %v620
  %720 = vmatprep.subr.bf16.mxu0 0
  %721 = vmatpush2.bf16.msra.mxu0 %v619
  %722 = vmatprep.subr.bf16.mxu0 0
  %723 = vmatpush2.bf16.msra.mxu0 %v618
  %724 = vmatprep.subr.bf16.mxu0 0
  %725 = vmatpush2.bf16.msra.mxu0 %v617
  %726 = vmatprep.subr.bf16.mxu0 0
  %727 = vmatpush2.bf16.msra.mxu0 %v616
  %728 = vmatprep.subr.bf16.mxu0 0
  %729 = vmatpush2.bf16.msra.mxu0 %v615
  %730 = vmatprep.subr.bf16.mxu0 0
  %731 = vmatpush2.bf16.msra.mxu0 %v614
  %732 = vmatprep.subr.bf16.mxu0 0
  %733 = vmatpush2.bf16.msra.mxu0 %v613
  %734 = vmatprep.mubr.bf16.mxu0 %v390
  %735 = vmatmul.mubr.bf16.gmra.mxu0 %v389
  %v736 = vpop.f32.mrf.mxu0
  %v737 = vadd.f32 0.0, %v736
  %v738 = vpop.f32.mrf.mxu0
  %v739 = vpop.f32.mrf.mxu0
  %v740 = vadd.f32 0.0, %v739
  %v741 = vpop.f32.mrf.mxu0
  %742 = vmatprep.mubr.bf16.mxu0 %v395
  %743 = vmatmul.mubr.bf16.gmra.mxu0 %v394
  %v744 = vpop.f32.mrf.mxu0
  %v745 = vadd.f32 0.0, %v744
  %v746 = vpop.f32.mrf.mxu0
  %v747 = vpop.f32.mrf.mxu0
  %v748 = vadd.f32 0.0, %v747
  %v749 = vpop.f32.mrf.mxu0
  %750 = vmatprep.mubr.bf16.mxu0 %v400
  %751 = vmatmul.mubr.bf16.gmra.mxu0 %v399
  %v752 = vpop.f32.mrf.mxu0
  %v753 = vadd.f32 0.0, %v752
  %v754 = vpop.f32.mrf.mxu0
  %v755 = vpop.f32.mrf.mxu0
  %v756 = vadd.f32 0.0, %v755
  %v757 = vpop.f32.mrf.mxu0
  %758 = vmatprep.mubr.bf16.mxu0 %v405
  %759 = vmatmul.mubr.bf16.gmra.mxu0 %v404
  %v760 = vpop.f32.mrf.mxu0
  %v761 = vadd.f32 0.0, %v760
  %v762 = vpop.f32.mrf.mxu0
  %v763 = vpop.f32.mrf.mxu0
  %v764 = vadd.f32 0.0, %v763
  %v765 = vpop.f32.mrf.mxu0
  %766 = vmatprep.mubr.bf16.mxu0 %v410
  %767 = vmatmul.mubr.bf16.gmra.mxu0 %v409
  %v768 = vpop.f32.mrf.mxu0
  %v769 = vadd.f32 0.0, %v768
  %v770 = vpop.f32.mrf.mxu0
  %v771 = vpop.f32.mrf.mxu0
  %v772 = vadd.f32 0.0, %v771
  %v773 = vpop.f32.mrf.mxu0
  %774 = vmatprep.mubr.bf16.mxu0 %v415
  %775 = vmatmul.mubr.bf16.gmra.mxu0 %v414
  %v776 = vpop.f32.mrf.mxu0
  %v777 = vadd.f32 0.0, %v776
  %v778 = vpop.f32.mrf.mxu0
  %v779 = vpop.f32.mrf.mxu0
  %v780 = vadd.f32 0.0, %v779
  %v781 = vpop.f32.mrf.mxu0
  %782 = vmatprep.mubr.bf16.mxu0 %v420
  %783 = vmatmul.mubr.bf16.gmra.mxu0 %v419
  %v784 = vpop.f32.mrf.mxu0
  %v785 = vadd.f32 0.0, %v784
  %v786 = vpop.f32.mrf.mxu0
  %v787 = vpop.f32.mrf.mxu0
  %v788 = vadd.f32 0.0, %v787
  %v789 = vpop.f32.mrf.mxu0
  %790 = vmatprep.mubr.bf16.mxu0 %v425
  %791 = vmatmul.mubr.bf16.gmra.mxu0 %v424
  %v792 = vpop.f32.mrf.mxu0
  %v793 = vadd.f32 0.0, %v792
  %v794 = vpop.f32.mrf.mxu0
  %v795 = vpop.f32.mrf.mxu0
  %v796 = vadd.f32 0.0, %v795
  %v797 = vpop.f32.mrf.mxu0
  %798 = vdwg.mxu0
  %799 = vmatprep.subr.bf16.mxu0 0
  %800 = vmatpush1.bf16.msra.mxu0 %v628
  %801 = vmatprep.subr.bf16.mxu0 0
  %802 = vmatpush1.bf16.msra.mxu0 %v627
  %803 = vmatprep.subr.bf16.mxu0 0
  %804 = vmatpush1.bf16.msra.mxu0 %v626
  %805 = vmatprep.subr.bf16.mxu0 0
  %806 = vmatpush1.bf16.msra.mxu0 %v625
  %807 = vmatprep.subr.bf16.mxu0 0
  %808 = vmatpush1.bf16.msra.mxu0 %v624
  %809 = vmatprep.subr.bf16.mxu0 0
  %810 = vmatpush1.bf16.msra.mxu0 %v623
  %811 = vmatprep.subr.bf16.mxu0 0
  %812 = vmatpush1.bf16.msra.mxu0 %v622
  %813 = vmatprep.subr.bf16.mxu0 0
  %814 = vmatpush1.bf16.msra.mxu0 %v621
  %815 = vmatprep.subr.bf16.mxu0 0
  %816 = vmatpush2.bf16.msra.mxu0 %v636
  %817 = vmatprep.subr.bf16.mxu0 0
  %818 = vmatpush2.bf16.msra.mxu0 %v635
  %819 = vmatprep.subr.bf16.mxu0 0
  %820 = vmatpush2.bf16.msra.mxu0 %v634
  %821 = vmatprep.subr.bf16.mxu0 0
  %822 = vmatpush2.bf16.msra.mxu0 %v633
  %823 = vmatprep.subr.bf16.mxu0 0
  %824 = vmatpush2.bf16.msra.mxu0 %v632
  %825 = vmatprep.subr.bf16.mxu0 0
  %826 = vmatpush2.bf16.msra.mxu0 %v631
  %827 = vmatprep.subr.bf16.mxu0 0
  %828 = vmatpush2.bf16.msra.mxu0 %v630
  %829 = vmatprep.subr.bf16.mxu0 0
  %830 = vmatpush2.bf16.msra.mxu0 %v629
  %831 = vmatprep.mubr.bf16.mxu0 %v392
  %832 = vmatmul.mubr.bf16.gmra.mxu0 %v391
  %v833 = vpop.f32.mrf.mxu0
  %v834 = vadd.f32 %v737, %v833
  %v835 = vpop.f32.mrf.mxu0
  %v836 = vpop.f32.mrf.mxu0
  %v837 = vadd.f32 %v740, %v836
  %v838 = vpop.f32.mrf.mxu0
  %839 = vmatprep.mubr.bf16.mxu0 %v397
  %840 = vmatmul.mubr.bf16.gmra.mxu0 %v396
  %v841 = vpop.f32.mrf.mxu0
  %v842 = vadd.f32 %v745, %v841
  %v843 = vpop.f32.mrf.mxu0
  %v844 = vpop.f32.mrf.mxu0
  %v845 = vadd.f32 %v748, %v844
  %v846 = vpop.f32.mrf.mxu0
  %847 = vmatprep.mubr.bf16.mxu0 %v402
  %848 = vmatmul.mubr.bf16.gmra.mxu0 %v401
  %v849 = vpop.f32.mrf.mxu0
  %v850 = vadd.f32 %v753, %v849
  %v851 = vpop.f32.mrf.mxu0
  %v852 = vpop.f32.mrf.mxu0
  %v853 = vadd.f32 %v756, %v852
  %v854 = vpop.f32.mrf.mxu0
  %855 = vmatprep.mubr.bf16.mxu0 %v407
  %856 = vmatmul.mubr.bf16.gmra.mxu0 %v406
  %v857 = vpop.f32.mrf.mxu0
  %v858 = vadd.f32 %v761, %v857
  %v859 = vpop.f32.mrf.mxu0
  %v860 = vpop.f32.mrf.mxu0
  %v861 = vadd.f32 %v764, %v860
  %v862 = vpop.f32.mrf.mxu0
  %863 = vmatprep.mubr.bf16.mxu0 %v412
  %864 = vmatmul.mubr.bf16.gmra.mxu0 %v411
  %v865 = vpop.f32.mrf.mxu0
  %v866 = vadd.f32 %v769, %v865
  %v867 = vpop.f32.mrf.mxu0
  %v868 = vpop.f32.mrf.mxu0
  %v869 = vadd.f32 %v772, %v868
  %v870 = vpop.f32.mrf.mxu0
  %871 = vmatprep.mubr.bf16.mxu0 %v417
  %872 = vmatmul.mubr.bf16.gmra.mxu0 %v416
  %v873 = vpop.f32.mrf.mxu0
  %v874 = vadd.f32 %v777, %v873
  %v875 = vpop.f32.mrf.mxu0
  %v876 = vpop.f32.mrf.mxu0
  %v877 = vadd.f32 %v780, %v876
  %v878 = vpop.f32.mrf.mxu0
  %879 = vmatprep.mubr.bf16.mxu0 %v422
  %880 = vmatmul.mubr.bf16.gmra.mxu0 %v421
  %v881 = vpop.f32.mrf.mxu0
  %v882 = vadd.f32 %v785, %v881
  %v883 = vpop.f32.mrf.mxu0
  %v884 = vpop.f32.mrf.mxu0
  %v885 = vadd.f32 %v788, %v884
  %v886 = vpop.f32.mrf.mxu0
  %887 = vmatprep.mubr.bf16.mxu0 %v427
  %888 = vmatmul.mubr.bf16.gmra.mxu0 %v426
  %v889 = vpop.f32.mrf.mxu0
  %v890 = vadd.f32 %v793, %v889
  %v891 = vpop.f32.mrf.mxu0
  %v892 = vpop.f32.mrf.mxu0
  %v893 = vadd.f32 %v796, %v892
  %v894 = vpop.f32.mrf.mxu0
  %895 = vdwg.mxu0
  %896 = vmatprep.subr.bf16.mxu0 0
  %897 = vmatpush1.bf16.msra.mxu0 0
  %898 = vmatprep.subr.bf16.mxu0 0
  %899 = vmatpush1.bf16.msra.mxu0 0
  %900 = vmatprep.subr.bf16.mxu0 0
  %901 = vmatpush1.bf16.msra.mxu0 0
  %902 = vmatprep.subr.bf16.mxu0 0
  %903 = vmatpush1.bf16.msra.mxu0 0
  %904 = vmatprep.subr.bf16.mxu0 0
  %905 = vmatpush1.bf16.msra.mxu0 %v640
  %906 = vmatprep.subr.bf16.mxu0 0
  %907 = vmatpush1.bf16.msra.mxu0 %v639
  %908 = vmatprep.subr.bf16.mxu0 0
  %909 = vmatpush1.bf16.msra.mxu0 %v638
  %910 = vmatprep.subr.bf16.mxu0 0
  %911 = vmatpush1.bf16.msra.mxu0 %v637
  %912 = vmatprep.subr.bf16.mxu0 0
  %913 = vmatpush2.bf16.msra.mxu0 0
  %914 = vmatprep.subr.bf16.mxu0 0
  %915 = vmatpush2.bf16.msra.mxu0 0
  %916 = vmatprep.subr.bf16.mxu0 0
  %917 = vmatpush2.bf16.msra.mxu0 0
  %918 = vmatprep.subr.bf16.mxu0 0
  %919 = vmatpush2.bf16.msra.mxu0 0
  %920 = vmatprep.subr.bf16.mxu0 0
  %921 = vmatpush2.bf16.msra.mxu0 0
  %922 = vmatprep.subr.bf16.mxu0 0
  %923 = vmatpush2.bf16.msra.mxu0 0
  %924 = vmatprep.subr.bf16.mxu0 0
  %925 = vmatpush2.bf16.msra.mxu0 0
  %926 = vmatprep.subr.bf16.mxu0 0
  %927 = vmatpush2.bf16.msra.mxu0 0
  %928 = vmatprep.mubr.bf16.mxu0 0
  %929 = vmatmul.mubr.bf16.gmra.mxu0 %v679
  %v930 = vpop.f32.mrf.mxu0
  %v931 = vadd.f32 %v834, %v930
  %v932 = vpop.f32.mrf.mxu0
  %v933 = vpop.f32.mrf.mxu0
  %v934 = vadd.f32 %v837, %v933
  %v935 = vpop.f32.mrf.mxu0
  %936 = vmatprep.mubr.bf16.mxu0 0
  %937 = vmatmul.mubr.bf16.gmra.mxu0 %v682
  %v938 = vpop.f32.mrf.mxu0
  %v939 = vadd.f32 %v842, %v938
  %v940 = vpop.f32.mrf.mxu0
  %v941 = vpop.f32.mrf.mxu0
  %v942 = vadd.f32 %v845, %v941
  %v943 = vpop.f32.mrf.mxu0
  %944 = vmatprep.mubr.bf16.mxu0 0
  %945 = vmatmul.mubr.bf16.gmra.mxu0 %v685
  %v946 = vpop.f32.mrf.mxu0
  %v947 = vadd.f32 %v850, %v946
  %v948 = vpop.f32.mrf.mxu0
  %v949 = vpop.f32.mrf.mxu0
  %v950 = vadd.f32 %v853, %v949
  %v951 = vpop.f32.mrf.mxu0
  %952 = vmatprep.mubr.bf16.mxu0 0
  %953 = vmatmul.mubr.bf16.gmra.mxu0 %v688
  %v954 = vpop.f32.mrf.mxu0
  %v955 = vadd.f32 %v858, %v954
  %v956 = vpop.f32.mrf.mxu0
  %v957 = vpop.f32.mrf.mxu0
  %v958 = vadd.f32 %v861, %v957
  %v959 = vpop.f32.mrf.mxu0
  %960 = vmatprep.mubr.bf16.mxu0 0
  %961 = vmatmul.mubr.bf16.gmra.mxu0 %v691
  %v962 = vpop.f32.mrf.mxu0
  %v963 = vadd.f32 %v866, %v962
  %v964 = vpop.f32.mrf.mxu0
  %v965 = vpop.f32.mrf.mxu0
  %v966 = vadd.f32 %v869, %v965
  %v967 = vpop.f32.mrf.mxu0
  %968 = vmatprep.mubr.bf16.mxu0 0
  %969 = vmatmul.mubr.bf16.gmra.mxu0 %v694
  %v970 = vpop.f32.mrf.mxu0
  %v971 = vadd.f32 %v874, %v970
  %v972 = vpop.f32.mrf.mxu0
  %v973 = vpop.f32.mrf.mxu0
  %v974 = vadd.f32 %v877, %v973
  %v975 = vpop.f32.mrf.mxu0
  %976 = vmatprep.mubr.bf16.mxu0 0
  %977 = vmatmul.mubr.bf16.gmra.mxu0 %v697
  %v978 = vpop.f32.mrf.mxu0
  %v979 = vadd.f32 %v882, %v978
  %v980 = vpop.f32.mrf.mxu0
  %v981 = vpop.f32.mrf.mxu0
  %v982 = vadd.f32 %v885, %v981
  %v983 = vpop.f32.mrf.mxu0
  %984 = vmatprep.mubr.bf16.mxu0 0
  %985 = vmatmul.mubr.bf16.gmra.mxu0 %v700
  %v986 = vpop.f32.mrf.mxu0
  %v987 = vadd.f32 %v890, %v986
  %v988 = vpop.f32.mrf.mxu0
  %v989 = vpop.f32.mrf.mxu0
  %v990 = vadd.f32 %v893, %v989
  %v991 = vpop.f32.mrf.mxu0
  %992 = vdwg.mxu0
  %v1041 = vunpack.c.l.b16 %v21
  %v1042 = vunpack.c.h.b16 %v21
  %v1043 = vunpack.c.l.b16 %v22
  %v1044 = vunpack.c.h.b16 %v22
  %v1045 = vunpack.c.l.b16 %v23
  %v1046 = vunpack.c.l.b16 %v24
  %v1047 = vunpack.c.h.b16 %v24
  %v1048 = vunpack.c.l.b16 %v25
  %v1049 = vunpack.c.h.b16 %v25
  %v1050 = vunpack.c.l.b16 %v26
  %v1051 = vunpack.c.l.b16 %v27
  %v1052 = vunpack.c.h.b16 %v27
  %v1053 = vunpack.c.l.b16 %v28
  %v1054 = vunpack.c.h.b16 %v28
  %v1055 = vunpack.c.l.b16 %v29
  %v1056 = vunpack.c.l.b16 %v30
  %v1057 = vunpack.c.h.b16 %v30
  %v1058 = vunpack.c.l.b16 %v31
  %v1059 = vunpack.c.h.b16 %v31
  %v1060 = vunpack.c.l.b16 %v32
  %v1061 = vunpack.c.l.b16 %v33
  %v1062 = vunpack.c.h.b16 %v33
  %v1063 = vunpack.c.l.b16 %v34
  %v1064 = vunpack.c.h.b16 %v34
  %v1065 = vunpack.c.l.b16 %v35
  %v1066 = vunpack.c.l.b16 %v36
  %v1067 = vunpack.c.h.b16 %v36
  %v1068 = vunpack.c.l.b16 %v37
  %v1069 = vunpack.c.h.b16 %v37
  %v1070 = vunpack.c.l.b16 %v38
  %v1071 = vunpack.c.l.b16 %v39
  %v1072 = vunpack.c.h.b16 %v39
  %v1073 = vunpack.c.l.b16 %v40
  %v1074 = vunpack.c.h.b16 %v40
  %v1075 = vunpack.c.l.b16 %v41
  %v1076 = vunpack.c.l.b16 %v42
  %v1077 = vunpack.c.h.b16 %v42
  %v1078 = vunpack.c.l.b16 %v43
  %v1079 = vunpack.c.h.b16 %v43
  %v1080 = vunpack.c.l.b16 %v44
  %v1081 = vunpack.c.l.b16 %v45
  %v1082 = vunpack.c.h.b16 %v45
  %v1083 = vunpack.c.l.b16 %v46
  %v1084 = vunpack.c.h.b16 %v46
  %v1085 = vunpack.c.l.b16 %v47
  %v1086 = vunpack.c.l.b16 %v48
  %v1087 = vunpack.c.h.b16 %v48
  %v1088 = vunpack.c.l.b16 %v49
  %v1089 = vunpack.c.h.b16 %v49
  %v1090 = vunpack.c.l.b16 %v50
  %v1091 = vunpack.c.l.b16 %v51
  %v1092 = vunpack.c.h.b16 %v51
  %v1093 = vunpack.c.l.b16 %v52
  %v1094 = vunpack.c.h.b16 %v52
  %v1095 = vunpack.c.l.b16 %v53
  %v1096 = vunpack.c.l.b16 %v54
  %v1097 = vunpack.c.h.b16 %v54
  %v1098 = vunpack.c.l.b16 %v55
  %v1099 = vunpack.c.h.b16 %v55
  %v1100 = vunpack.c.l.b16 %v56
  %v1101 = vunpack.c.l.b16 %v57
  %v1102 = vunpack.c.h.b16 %v57
  %v1103 = vunpack.c.l.b16 %v58
  %v1104 = vunpack.c.h.b16 %v58
  %v1105 = vunpack.c.l.b16 %v59
  %v1106 = vunpack.c.l.b16 %v60
  %v1107 = vunpack.c.h.b16 %v60
  %v1108 = vunpack.c.l.b16 %v61
  %v1109 = vunpack.c.h.b16 %v61
  %v1110 = vunpack.c.l.b16 %v62
  %v1111 = vunpack.c.l.b16 %v63
  %v1112 = vunpack.c.h.b16 %v63
  %v1113 = vunpack.c.l.b16 %v64
  %v1114 = vunpack.c.h.b16 %v64
  %v1115 = vunpack.c.l.b16 %v65
  %v1116 = vunpack.c.l.b16 %v66
  %v1117 = vunpack.c.h.b16 %v66
  %v1118 = vunpack.c.l.b16 %v67
  %v1119 = vunpack.c.h.b16 %v67
  %v1120 = vunpack.c.l.b16 %v68
  %v1121 = vpack.c.b16 %v1046, %v1041
  %v1122 = vpack.c.b16 %v1047, %v1042
  %v1123 = vpack.c.b16 %v1048, %v1043
  %v1124 = vpack.c.b16 %v1049, %v1044
  %v1125 = vpack.c.b16 %v1050, %v1045
  %v1126 = vpack.c.b16 %v1056, %v1051
  %v1127 = vpack.c.b16 %v1057, %v1052
  %v1128 = vpack.c.b16 %v1058, %v1053
  %v1129 = vpack.c.b16 %v1059, %v1054
  %v1130 = vpack.c.b16 %v1060, %v1055
  %v1131 = vpack.c.b16 %v1066, %v1061
  %v1132 = vpack.c.b16 %v1067, %v1062
  %v1133 = vpack.c.b16 %v1068, %v1063
  %v1134 = vpack.c.b16 %v1069, %v1064
  %v1135 = vpack.c.b16 %v1070, %v1065
  %v1136 = vpack.c.b16 %v1076, %v1071
  %v1137 = vpack.c.b16 %v1077, %v1072
  %v1138 = vpack.c.b16 %v1078, %v1073
  %v1139 = vpack.c.b16 %v1079, %v1074
  %v1140 = vpack.c.b16 %v1080, %v1075
  %v1141 = vpack.c.b16 %v1086, %v1081
  %v1142 = vpack.c.b16 %v1087, %v1082
  %v1143 = vpack.c.b16 %v1088, %v1083
  %v1144 = vpack.c.b16 %v1089, %v1084
  %v1145 = vpack.c.b16 %v1090, %v1085
  %v1146 = vpack.c.b16 %v1096, %v1091
  %v1147 = vpack.c.b16 %v1097, %v1092
  %v1148 = vpack.c.b16 %v1098, %v1093
  %v1149 = vpack.c.b16 %v1099, %v1094
  %v1150 = vpack.c.b16 %v1100, %v1095
  %v1151 = vpack.c.b16 %v1106, %v1101
  %v1152 = vpack.c.b16 %v1107, %v1102
  %v1153 = vpack.c.b16 %v1108, %v1103
  %v1154 = vpack.c.b16 %v1109, %v1104
  %v1155 = vpack.c.b16 %v1110, %v1105
  %v1156 = vpack.c.b16 %v1116, %v1111
  %v1157 = vpack.c.b16 %v1117, %v1112
  %v1158 = vpack.c.b16 %v1118, %v1113
  %v1159 = vpack.c.b16 %v1119, %v1114
  %v1160 = vpack.c.b16 %v1120, %v1115
  %v1265 = vunpack.c.l.b16 %v69
  %v1266 = vunpack.c.l.b16 %v70
  %v1267 = vunpack.c.l.b16 %v71
  %v1268 = vunpack.c.l.b16 %v72
  %v1269 = vunpack.c.l.b16 %v73
  %v1270 = vunpack.c.l.b16 %v74
  %v1271 = vunpack.c.l.b16 %v75
  %v1272 = vunpack.c.l.b16 %v76
  %v1273 = vunpack.c.l.b16 %v77
  %v1274 = vunpack.c.l.b16 %v78
  %v1275 = vunpack.c.l.b16 %v79
  %v1276 = vunpack.c.l.b16 %v80
  %v1277 = vunpack.c.l.b16 %v81
  %v1278 = vunpack.c.l.b16 %v82
  %v1279 = vunpack.c.l.b16 %v83
  %v1280 = vunpack.c.l.b16 %v84
  %v1281 = vunpack.c.l.b16 %v85
  %v1282 = vunpack.c.l.b16 %v86
  %v1283 = vunpack.c.l.b16 %v87
  %v1284 = vunpack.c.l.b16 %v88
  %v1285 = vunpack.c.l.b16 %v89
  %v1286 = vunpack.c.l.b16 %v90
  %v1287 = vunpack.c.l.b16 %v91
  %v1288 = vunpack.c.l.b16 %v92
  %v1289 = vunpack.c.l.b16 %v93
  %v1290 = vunpack.c.l.b16 %v94
  %v1291 = vunpack.c.l.b16 %v95
  %v1292 = vunpack.c.l.b16 %v96
  %v1293 = vunpack.c.l.b16 %v97
  %v1294 = vunpack.c.l.b16 %v98
  %v1295 = vunpack.c.l.b16 %v99
  %v1296 = vunpack.c.l.b16 %v100
  %v1297 = vunpack.c.l.b16 %v101
  %v1298 = vunpack.c.l.b16 %v102
  %v1299 = vunpack.c.l.b16 %v103
  %v1300 = vunpack.c.l.b16 %v104
  %v1301 = vunpack.c.l.b16 %v105
  %v1302 = vunpack.c.l.b16 %v106
  %v1303 = vunpack.c.l.b16 %v107
  %v1304 = vunpack.c.l.b16 %v108
  %v1305 = vunpack.c.l.b16 %v109
  %v1306 = vunpack.c.l.b16 %v110
  %v1307 = vunpack.c.l.b16 %v111
  %v1308 = vunpack.c.l.b16 %v112
  %v1309 = vunpack.c.l.b16 %v113
  %v1310 = vunpack.c.l.b16 %v114
  %v1311 = vunpack.c.l.b16 %v115
  %v1312 = vunpack.c.l.b16 %v116
  %v1313 = vunpack.c.l.b16 %v117
  %v1314 = vunpack.c.l.b16 %v118
  %v1315 = vunpack.c.l.b16 %v119
  %v1316 = vunpack.c.l.b16 %v120
  %v1317 = vunpack.c.l.b16 %v121
  %v1318 = vunpack.c.l.b16 %v122
  %v1319 = vunpack.c.l.b16 %v123
  %v1320 = vunpack.c.l.b16 %v124
  %v1321 = vunpack.c.l.b16 %v125
  %v1322 = vunpack.c.l.b16 %v126
  %v1323 = vunpack.c.l.b16 %v127
  %v1324 = vunpack.c.l.b16 %v128
  %v1325 = vunpack.c.l.b16 %v129
  %v1326 = vunpack.c.l.b16 %v130
  %v1327 = vunpack.c.l.b16 %v131
  %v1328 = vunpack.c.l.b16 %v132
  %v1329 = vunpack.c.l.b16 %v133
  %v1330 = vunpack.c.l.b16 %v134
  %v1331 = vunpack.c.l.b16 %v135
  %v1332 = vunpack.c.l.b16 %v136
  %v1333 = vunpack.c.l.b16 %v137
  %v1334 = vunpack.c.l.b16 %v138
  %v1335 = vunpack.c.l.b16 %v139
  %v1336 = vunpack.c.l.b16 %v140
  %v1337 = vpack.c.b16 %v1266, %v1265
  %v1338 = vpack.c.b16 %v1268, %v1267
  %v1339 = vpack.c.b16 %v1270, %v1269
  %v1340 = vpack.c.b16 %v1272, %v1271
  %v1341 = vpack.c.b16 %v1274, %v1273
  %v1342 = vpack.c.b16 %v1276, %v1275
  %v1343 = vpack.c.b16 %v1278, %v1277
  %v1344 = vpack.c.b16 %v1280, %v1279
  %v1345 = vpack.c.b16 %v1282, %v1281
  %v1346 = vpack.c.b16 %v1284, %v1283
  %v1347 = vpack.c.b16 %v1286, %v1285
  %v1348 = vpack.c.b16 %v1288, %v1287
  %v1349 = vpack.c.b16 %v1290, %v1289
  %v1350 = vpack.c.b16 %v1292, %v1291
  %v1351 = vpack.c.b16 %v1294, %v1293
  %v1352 = vpack.c.b16 %v1296, %v1295
  %v1353 = vpack.c.b16 %v1298, %v1297
  %v1354 = vpack.c.b16 %v1300, %v1299
  %v1355 = vpack.c.b16 %v1302, %v1301
  %v1356 = vpack.c.b16 %v1304, %v1303
  %v1357 = vpack.c.b16 %v1306, %v1305
  %v1358 = vpack.c.b16 %v1308, %v1307
  %v1359 = vpack.c.b16 %v1310, %v1309
  %v1360 = vpack.c.b16 %v1312, %v1311
  %v1361 = vpack.c.b16 %v1314, %v1313
  %v1362 = vpack.c.b16 %v1316, %v1315
  %v1363 = vpack.c.b16 %v1318, %v1317
  %v1364 = vpack.c.b16 %v1320, %v1319
  %v1365 = vpack.c.b16 %v1322, %v1321
  %v1366 = vpack.c.b16 %v1324, %v1323
  %v1367 = vpack.c.b16 %v1326, %v1325
  %v1368 = vpack.c.b16 %v1328, %v1327
  %v1369 = vpack.c.b16 %v1330, %v1329
  %v1370 = vpack.c.b16 %v1332, %v1331
  %v1371 = vpack.c.b16 %v1334, %v1333
  %v1372 = vpack.c.b16 %v1336, %v1335
  %v1410 = vsel %vm677, %v1125, 0
  %v1413 = vsel %vm677, %v1130, 0
  %v1416 = vsel %vm677, %v1135, 0
  %v1419 = vsel %vm677, %v1140, 0
  %v1422 = vsel %vm677, %v1145, 0
  %v1425 = vsel %vm677, %v1150, 0
  %v1428 = vsel %vm677, %v1155, 0
  %v1431 = vsel %vm677, %v1160, 0
  %1433 = vmatprep.subr.bf16.mxu0 0
  %1434 = vmatpush1.bf16.msra.mxu0 %v1344
  %1435 = vmatprep.subr.bf16.mxu0 0
  %1436 = vmatpush1.bf16.msra.mxu0 %v1343
  %1437 = vmatprep.subr.bf16.mxu0 0
  %1438 = vmatpush1.bf16.msra.mxu0 %v1342
  %1439 = vmatprep.subr.bf16.mxu0 0
  %1440 = vmatpush1.bf16.msra.mxu0 %v1341
  %1441 = vmatprep.subr.bf16.mxu0 0
  %1442 = vmatpush1.bf16.msra.mxu0 %v1340
  %1443 = vmatprep.subr.bf16.mxu0 0
  %1444 = vmatpush1.bf16.msra.mxu0 %v1339
  %1445 = vmatprep.subr.bf16.mxu0 0
  %1446 = vmatpush1.bf16.msra.mxu0 %v1338
  %1447 = vmatprep.subr.bf16.mxu0 0
  %1448 = vmatpush1.bf16.msra.mxu0 %v1337
  %1449 = vmatprep.subr.bf16.mxu0 0
  %1450 = vmatpush2.bf16.msra.mxu0 %v1352
  %1451 = vmatprep.subr.bf16.mxu0 0
  %1452 = vmatpush2.bf16.msra.mxu0 %v1351
  %1453 = vmatprep.subr.bf16.mxu0 0
  %1454 = vmatpush2.bf16.msra.mxu0 %v1350
  %1455 = vmatprep.subr.bf16.mxu0 0
  %1456 = vmatpush2.bf16.msra.mxu0 %v1349
  %1457 = vmatprep.subr.bf16.mxu0 0
  %1458 = vmatpush2.bf16.msra.mxu0 %v1348
  %1459 = vmatprep.subr.bf16.mxu0 0
  %1460 = vmatpush2.bf16.msra.mxu0 %v1347
  %1461 = vmatprep.subr.bf16.mxu0 0
  %1462 = vmatpush2.bf16.msra.mxu0 %v1346
  %1463 = vmatprep.subr.bf16.mxu0 0
  %1464 = vmatpush2.bf16.msra.mxu0 %v1345
  %1465 = vmatprep.mubr.bf16.mxu0 %v1122
  %1466 = vmatmul.mubr.bf16.gmra.mxu0 %v1121
  %v1467 = vpop.f32.mrf.mxu0
  %v1468 = vadd.f32 %v931, %v1467
  %v1469 = vpop.f32.mrf.mxu0
  %v1470 = vpop.f32.mrf.mxu0
  %v1471 = vadd.f32 %v934, %v1470
  %v1472 = vpop.f32.mrf.mxu0
  %1473 = vmatprep.mubr.bf16.mxu0 %v1127
  %1474 = vmatmul.mubr.bf16.gmra.mxu0 %v1126
  %v1475 = vpop.f32.mrf.mxu0
  %v1476 = vadd.f32 %v939, %v1475
  %v1477 = vpop.f32.mrf.mxu0
  %v1478 = vpop.f32.mrf.mxu0
  %v1479 = vadd.f32 %v942, %v1478
  %v1480 = vpop.f32.mrf.mxu0
  %1481 = vmatprep.mubr.bf16.mxu0 %v1132
  %1482 = vmatmul.mubr.bf16.gmra.mxu0 %v1131
  %v1483 = vpop.f32.mrf.mxu0
  %v1484 = vadd.f32 %v947, %v1483
  %v1485 = vpop.f32.mrf.mxu0
  %v1486 = vpop.f32.mrf.mxu0
  %v1487 = vadd.f32 %v950, %v1486
  %v1488 = vpop.f32.mrf.mxu0
  %1489 = vmatprep.mubr.bf16.mxu0 %v1137
  %1490 = vmatmul.mubr.bf16.gmra.mxu0 %v1136
  %v1491 = vpop.f32.mrf.mxu0
  %v1492 = vadd.f32 %v955, %v1491
  %v1493 = vpop.f32.mrf.mxu0
  %v1494 = vpop.f32.mrf.mxu0
  %v1495 = vadd.f32 %v958, %v1494
  %v1496 = vpop.f32.mrf.mxu0
  %1497 = vmatprep.mubr.bf16.mxu0 %v1142
  %1498 = vmatmul.mubr.bf16.gmra.mxu0 %v1141
  %v1499 = vpop.f32.mrf.mxu0
  %v1500 = vadd.f32 %v963, %v1499
  %v1501 = vpop.f32.mrf.mxu0
  %v1502 = vpop.f32.mrf.mxu0
  %v1503 = vadd.f32 %v966, %v1502
  %v1504 = vpop.f32.mrf.mxu0
  %1505 = vmatprep.mubr.bf16.mxu0 %v1147
  %1506 = vmatmul.mubr.bf16.gmra.mxu0 %v1146
  %v1507 = vpop.f32.mrf.mxu0
  %v1508 = vadd.f32 %v971, %v1507
  %v1509 = vpop.f32.mrf.mxu0
  %v1510 = vpop.f32.mrf.mxu0
  %v1511 = vadd.f32 %v974, %v1510
  %v1512 = vpop.f32.mrf.mxu0
  %1513 = vmatprep.mubr.bf16.mxu0 %v1152
  %1514 = vmatmul.mubr.bf16.gmra.mxu0 %v1151
  %v1515 = vpop.f32.mrf.mxu0
  %v1516 = vadd.f32 %v979, %v1515
  %v1517 = vpop.f32.mrf.mxu0
  %v1518 = vpop.f32.mrf.mxu0
  %v1519 = vadd.f32 %v982, %v1518
  %v1520 = vpop.f32.mrf.mxu0
  %1521 = vmatprep.mubr.bf16.mxu0 %v1157
  %1522 = vmatmul.mubr.bf16.gmra.mxu0 %v1156
  %v1523 = vpop.f32.mrf.mxu0
  %v1524 = vadd.f32 %v987, %v1523
  %v1525 = vpop.f32.mrf.mxu0
  %v1526 = vpop.f32.mrf.mxu0
  %v1527 = vadd.f32 %v990, %v1526
  %v1528 = vpop.f32.mrf.mxu0
  %1529 = vdwg.mxu0
  %1530 = vmatprep.subr.bf16.mxu0 0
  %1531 = vmatpush1.bf16.msra.mxu0 %v1360
  %1532 = vmatprep.subr.bf16.mxu0 0
  %1533 = vmatpush1.bf16.msra.mxu0 %v1359
  %1534 = vmatprep.subr.bf16.mxu0 0
  %1535 = vmatpush1.bf16.msra.mxu0 %v1358
  %1536 = vmatprep.subr.bf16.mxu0 0
  %1537 = vmatpush1.bf16.msra.mxu0 %v1357
  %1538 = vmatprep.subr.bf16.mxu0 0
  %1539 = vmatpush1.bf16.msra.mxu0 %v1356
  %1540 = vmatprep.subr.bf16.mxu0 0
  %1541 = vmatpush1.bf16.msra.mxu0 %v1355
  %1542 = vmatprep.subr.bf16.mxu0 0
  %1543 = vmatpush1.bf16.msra.mxu0 %v1354
  %1544 = vmatprep.subr.bf16.mxu0 0
  %1545 = vmatpush1.bf16.msra.mxu0 %v1353
  %1546 = vmatprep.subr.bf16.mxu0 0
  %1547 = vmatpush2.bf16.msra.mxu0 %v1368
  %1548 = vmatprep.subr.bf16.mxu0 0
  %1549 = vmatpush2.bf16.msra.mxu0 %v1367
  %1550 = vmatprep.subr.bf16.mxu0 0
  %1551 = vmatpush2.bf16.msra.mxu0 %v1366
  %1552 = vmatprep.subr.bf16.mxu0 0
  %1553 = vmatpush2.bf16.msra.mxu0 %v1365
  %1554 = vmatprep.subr.bf16.mxu0 0
  %1555 = vmatpush2.bf16.msra.mxu0 %v1364
  %1556 = vmatprep.subr.bf16.mxu0 0
  %1557 = vmatpush2.bf16.msra.mxu0 %v1363
  %1558 = vmatprep.subr.bf16.mxu0 0
  %1559 = vmatpush2.bf16.msra.mxu0 %v1362
  %1560 = vmatprep.subr.bf16.mxu0 0
  %1561 = vmatpush2.bf16.msra.mxu0 %v1361
  %1562 = vmatprep.mubr.bf16.mxu0 %v1124
  %1563 = vmatmul.mubr.bf16.gmra.mxu0 %v1123
  %v1564 = vpop.f32.mrf.mxu0
  %v1565 = vadd.f32 %v1468, %v1564
  %v1566 = vpop.f32.mrf.mxu0
  %v1567 = vpop.f32.mrf.mxu0
  %v1568 = vadd.f32 %v1471, %v1567
  %v1569 = vpop.f32.mrf.mxu0
  %1570 = vmatprep.mubr.bf16.mxu0 %v1129
  %1571 = vmatmul.mubr.bf16.gmra.mxu0 %v1128
  %v1572 = vpop.f32.mrf.mxu0
  %v1573 = vadd.f32 %v1476, %v1572
  %v1574 = vpop.f32.mrf.mxu0
  %v1575 = vpop.f32.mrf.mxu0
  %v1576 = vadd.f32 %v1479, %v1575
  %v1577 = vpop.f32.mrf.mxu0
  %1578 = vmatprep.mubr.bf16.mxu0 %v1134
  %1579 = vmatmul.mubr.bf16.gmra.mxu0 %v1133
  %v1580 = vpop.f32.mrf.mxu0
  %v1581 = vadd.f32 %v1484, %v1580
  %v1582 = vpop.f32.mrf.mxu0
  %v1583 = vpop.f32.mrf.mxu0
  %v1584 = vadd.f32 %v1487, %v1583
  %v1585 = vpop.f32.mrf.mxu0
  %1586 = vmatprep.mubr.bf16.mxu0 %v1139
  %1587 = vmatmul.mubr.bf16.gmra.mxu0 %v1138
  %v1588 = vpop.f32.mrf.mxu0
  %v1589 = vadd.f32 %v1492, %v1588
  %v1590 = vpop.f32.mrf.mxu0
  %v1591 = vpop.f32.mrf.mxu0
  %v1592 = vadd.f32 %v1495, %v1591
  %v1593 = vpop.f32.mrf.mxu0
  %1594 = vmatprep.mubr.bf16.mxu0 %v1144
  %1595 = vmatmul.mubr.bf16.gmra.mxu0 %v1143
  %v1596 = vpop.f32.mrf.mxu0
  %v1597 = vadd.f32 %v1500, %v1596
  %v1598 = vpop.f32.mrf.mxu0
  %v1599 = vpop.f32.mrf.mxu0
  %v1600 = vadd.f32 %v1503, %v1599
  %v1601 = vpop.f32.mrf.mxu0
  %1602 = vmatprep.mubr.bf16.mxu0 %v1149
  %1603 = vmatmul.mubr.bf16.gmra.mxu0 %v1148
  %v1604 = vpop.f32.mrf.mxu0
  %v1605 = vadd.f32 %v1508, %v1604
  %v1606 = vpop.f32.mrf.mxu0
  %v1607 = vpop.f32.mrf.mxu0
  %v1608 = vadd.f32 %v1511, %v1607
  %v1609 = vpop.f32.mrf.mxu0
  %1610 = vmatprep.mubr.bf16.mxu0 %v1154
  %1611 = vmatmul.mubr.bf16.gmra.mxu0 %v1153
  %v1612 = vpop.f32.mrf.mxu0
  %v1613 = vadd.f32 %v1516, %v1612
  %v1614 = vpop.f32.mrf.mxu0
  %v1615 = vpop.f32.mrf.mxu0
  %v1616 = vadd.f32 %v1519, %v1615
  %v1617 = vpop.f32.mrf.mxu0
  %1618 = vmatprep.mubr.bf16.mxu0 %v1159
  %1619 = vmatmul.mubr.bf16.gmra.mxu0 %v1158
  %v1620 = vpop.f32.mrf.mxu0
  %v1621 = vadd.f32 %v1524, %v1620
  %v1622 = vpop.f32.mrf.mxu0
  %v1623 = vpop.f32.mrf.mxu0
  %v1624 = vadd.f32 %v1527, %v1623
  %v1625 = vpop.f32.mrf.mxu0
  %1626 = vdwg.mxu0
  %1627 = vmatprep.subr.bf16.mxu0 0
  %1628 = vmatpush1.bf16.msra.mxu0 0
  %1629 = vmatprep.subr.bf16.mxu0 0
  %1630 = vmatpush1.bf16.msra.mxu0 0
  %1631 = vmatprep.subr.bf16.mxu0 0
  %1632 = vmatpush1.bf16.msra.mxu0 0
  %1633 = vmatprep.subr.bf16.mxu0 0
  %1634 = vmatpush1.bf16.msra.mxu0 0
  %1635 = vmatprep.subr.bf16.mxu0 0
  %1636 = vmatpush1.bf16.msra.mxu0 %v1372
  %1637 = vmatprep.subr.bf16.mxu0 0
  %1638 = vmatpush1.bf16.msra.mxu0 %v1371
  %1639 = vmatprep.subr.bf16.mxu0 0
  %1640 = vmatpush1.bf16.msra.mxu0 %v1370
  %1641 = vmatprep.subr.bf16.mxu0 0
  %1642 = vmatpush1.bf16.msra.mxu0 %v1369
  %1643 = vmatprep.subr.bf16.mxu0 0
  %1644 = vmatpush2.bf16.msra.mxu0 0
  %1645 = vmatprep.subr.bf16.mxu0 0
  %1646 = vmatpush2.bf16.msra.mxu0 0
  %1647 = vmatprep.subr.bf16.mxu0 0
  %1648 = vmatpush2.bf16.msra.mxu0 0
  %1649 = vmatprep.subr.bf16.mxu0 0
  %1650 = vmatpush2.bf16.msra.mxu0 0
  %1651 = vmatprep.subr.bf16.mxu0 0
  %1652 = vmatpush2.bf16.msra.mxu0 0
  %1653 = vmatprep.subr.bf16.mxu0 0
  %1654 = vmatpush2.bf16.msra.mxu0 0
  %1655 = vmatprep.subr.bf16.mxu0 0
  %1656 = vmatpush2.bf16.msra.mxu0 0
  %1657 = vmatprep.subr.bf16.mxu0 0
  %1658 = vmatpush2.bf16.msra.mxu0 0
  %1659 = vmatprep.mubr.bf16.mxu0 0
  %1660 = vmatmul.mubr.bf16.gmra.mxu0 %v1410
  %v1661 = vpop.f32.mrf.mxu0
  %v1662 = vadd.f32 %v1565, %v1661
  %v1663 = vpop.f32.mrf.mxu0
  %v1664 = vpop.f32.mrf.mxu0
  %v1665 = vadd.f32 %v1568, %v1664
  %v1666 = vpop.f32.mrf.mxu0
  %1667 = vmatprep.mubr.bf16.mxu0 0
  %1668 = vmatmul.mubr.bf16.gmra.mxu0 %v1413
  %v1669 = vpop.f32.mrf.mxu0
  %v1670 = vadd.f32 %v1573, %v1669
  %v1671 = vpop.f32.mrf.mxu0
  %v1672 = vpop.f32.mrf.mxu0
  %v1673 = vadd.f32 %v1576, %v1672
  %v1674 = vpop.f32.mrf.mxu0
  %1675 = vmatprep.mubr.bf16.mxu0 0
  %1676 = vmatmul.mubr.bf16.gmra.mxu0 %v1416
  %v1677 = vpop.f32.mrf.mxu0
  %v1678 = vadd.f32 %v1581, %v1677
  %v1679 = vpop.f32.mrf.mxu0
  %v1680 = vpop.f32.mrf.mxu0
  %v1681 = vadd.f32 %v1584, %v1680
  %v1682 = vpop.f32.mrf.mxu0
  %1683 = vmatprep.mubr.bf16.mxu0 0
  %1684 = vmatmul.mubr.bf16.gmra.mxu0 %v1419
  %v1685 = vpop.f32.mrf.mxu0
  %v1686 = vadd.f32 %v1589, %v1685
  %v1687 = vpop.f32.mrf.mxu0
  %v1688 = vpop.f32.mrf.mxu0
  %v1689 = vadd.f32 %v1592, %v1688
  %v1690 = vpop.f32.mrf.mxu0
  %1691 = vmatprep.mubr.bf16.mxu0 0
  %1692 = vmatmul.mubr.bf16.gmra.mxu0 %v1422
  %v1693 = vpop.f32.mrf.mxu0
  %v1694 = vadd.f32 %v1597, %v1693
  %v1695 = vpop.f32.mrf.mxu0
  %v1696 = vpop.f32.mrf.mxu0
  %v1697 = vadd.f32 %v1600, %v1696
  %v1698 = vpop.f32.mrf.mxu0
  %1699 = vmatprep.mubr.bf16.mxu0 0
  %1700 = vmatmul.mubr.bf16.gmra.mxu0 %v1425
  %v1701 = vpop.f32.mrf.mxu0
  %v1702 = vadd.f32 %v1605, %v1701
  %v1703 = vpop.f32.mrf.mxu0
  %v1704 = vpop.f32.mrf.mxu0
  %v1705 = vadd.f32 %v1608, %v1704
  %v1706 = vpop.f32.mrf.mxu0
  %1707 = vmatprep.mubr.bf16.mxu0 0
  %1708 = vmatmul.mubr.bf16.gmra.mxu0 %v1428
  %v1709 = vpop.f32.mrf.mxu0
  %v1710 = vadd.f32 %v1613, %v1709
  %v1711 = vpop.f32.mrf.mxu0
  %v1712 = vpop.f32.mrf.mxu0
  %v1713 = vadd.f32 %v1616, %v1712
  %v1714 = vpop.f32.mrf.mxu0
  %1715 = vmatprep.mubr.bf16.mxu0 0
  %1716 = vmatmul.mubr.bf16.gmra.mxu0 %v1431
  %v1717 = vpop.f32.mrf.mxu0
  %v1718 = vadd.f32 %v1621, %v1717
  %v1719 = vpop.f32.mrf.mxu0
  %v1720 = vpop.f32.mrf.mxu0
  %v1721 = vadd.f32 %v1624, %v1720
  %v1722 = vpop.f32.mrf.mxu0
  %1723 = vdwg.mxu0
  %v1724 = vld [vmem:[%s4] sm:$0xff]
  %v1725 = vld [vmem:[%s4 + $0x8] sm:$0xff]
  %v1726 = vld [vmem:[%s4 + $0x10] sm:$0xff]
  %v1727 = vld [vmem:[%s4 + $0x18] sm:$0xff]
  %v1728 = vld [vmem:[%s4 + $0x20] sm:$0xff]
  %v1729 = vld [vmem:[%s4 + $0x28] sm:$0xff]
  %v1730 = vld [vmem:[%s4 + $0x30] sm:$0xff]
  %v1731 = vld [vmem:[%s4 + $0x38] sm:$0xff]
  %v1732 = vld [vmem:[%s4 + $0x40] sm:$0xff]
  %v1733 = vld [vmem:[%s4 + $0x48] sm:$0xff]
  %v1734 = vld [vmem:[%s4 + $0x50] sm:$0xff]
  %v1735 = vld [vmem:[%s4 + $0x58] sm:$0xff]
  %v1736 = vld [vmem:[%s4 + $0x60] sm:$0xff]
  %v1737 = vld [vmem:[%s4 + $0x68] sm:$0xff]
  %v1738 = vld [vmem:[%s4 + $0x70] sm:$0xff]
  %v1739 = vld [vmem:[%s4 + $0x78] sm:$0xff]
  %1741 = vset.pattern.permute.xlu0 0
  %1742 = vperm.xlu0 %1741, %v1724
  %v1743 = vpop.permute.xlu0 %1742
  %1746 = vset.pattern.permute.xlu0 0
  %1747 = vperm.xlu0 %1746, %v1725
  %v1748 = vpop.permute.xlu0 %1747
  %1751 = vset.pattern.permute.xlu0 0
  %1752 = vperm.xlu0 %1751, %v1726
  %v1753 = vpop.permute.xlu0 %1752
  %1756 = vset.pattern.permute.xlu0 0
  %1757 = vperm.xlu0 %1756, %v1727
  %v1758 = vpop.permute.xlu0 %1757
  %1761 = vset.pattern.permute.xlu0 0
  %1762 = vperm.xlu0 %1761, %v1728
  %v1763 = vpop.permute.xlu0 %1762
  %1766 = vset.pattern.permute.xlu0 0
  %1767 = vperm.xlu0 %1766, %v1729
  %v1768 = vpop.permute.xlu0 %1767
  %1771 = vset.pattern.permute.xlu0 0
  %1772 = vperm.xlu0 %1771, %v1730
  %v1773 = vpop.permute.xlu0 %1772
  %1776 = vset.pattern.permute.xlu0 0
  %1777 = vperm.xlu0 %1776, %v1731
  %v1778 = vpop.permute.xlu0 %1777
  %1781 = vset.pattern.permute.xlu0 0
  %1782 = vperm.xlu0 %1781, %v1732
  %v1783 = vpop.permute.xlu0 %1782
  %1786 = vset.pattern.permute.xlu0 0
  %1787 = vperm.xlu0 %1786, %v1733
  %v1788 = vpop.permute.xlu0 %1787
  %1791 = vset.pattern.permute.xlu0 0
  %1792 = vperm.xlu0 %1791, %v1734
  %v1793 = vpop.permute.xlu0 %1792
  %1796 = vset.pattern.permute.xlu0 0
  %1797 = vperm.xlu0 %1796, %v1735
  %v1798 = vpop.permute.xlu0 %1797
  %1801 = vset.pattern.permute.xlu0 0
  %1802 = vperm.xlu0 %1801, %v1736
  %v1803 = vpop.permute.xlu0 %1802
  %1806 = vset.pattern.permute.xlu0 0
  %1807 = vperm.xlu0 %1806, %v1737
  %v1808 = vpop.permute.xlu0 %1807
  %1811 = vset.pattern.permute.xlu0 0
  %1812 = vperm.xlu0 %1811, %v1738
  %v1813 = vpop.permute.xlu0 %1812
  %1816 = vset.pattern.permute.xlu0 0
  %1817 = vperm.xlu0 %1816, %v1739
  %v1818 = vpop.permute.xlu0 %1817
  %v1820 = vadd.f32 %v1662, %v1743
  %v1821 = vadd.f32 %v1665, %v1748
  %v1822 = vadd.f32 %v1670, %v1753
  %v1823 = vadd.f32 %v1673, %v1758
  %v1824 = vadd.f32 %v1678, %v1763
  %v1825 = vadd.f32 %v1681, %v1768
  %v1826 = vadd.f32 %v1686, %v1773
  %v1827 = vadd.f32 %v1689, %v1778
  %v1828 = vadd.f32 %v1694, %v1783
  %v1829 = vadd.f32 %v1697, %v1788
  %v1830 = vadd.f32 %v1702, %v1793
  %v1831 = vadd.f32 %v1705, %v1798
  %v1832 = vadd.f32 %v1710, %v1803
  %v1833 = vadd.f32 %v1713, %v1808
  %v1834 = vadd.f32 %v1718, %v1813
  %v1835 = vadd.f32 %v1721, %v1818
  %v1836 = vmax.f32 %v1820, 0.0
  %v1837 = vmax.f32 %v1821, 0.0
  %v1838 = vmax.f32 %v1822, 0.0
  %v1839 = vmax.f32 %v1823, 0.0
  %v1840 = vmax.f32 %v1824, 0.0
  %v1841 = vmax.f32 %v1825, 0.0
  %v1842 = vmax.f32 %v1826, 0.0
  %v1843 = vmax.f32 %v1827, 0.0
  %v1844 = vmax.f32 %v1828, 0.0
  %v1845 = vmax.f32 %v1829, 0.0
  %v1846 = vmax.f32 %v1830, 0.0
  %v1847 = vmax.f32 %v1831, 0.0
  %v1848 = vmax.f32 %v1832, 0.0
  %v1849 = vmax.f32 %v1833, 0.0
  %v1850 = vmax.f32 %v1834, 0.0
  %v1851 = vmax.f32 %v1835, 0.0
  %v1852 = vpack.c.bf16 %v1837, %v1836
  %v1853 = vpack.c.bf16 %v1839, %v1838
  %v1854 = vpack.c.bf16 %v1841, %v1840
  %v1855 = vpack.c.bf16 %v1843, %v1842
  %v1856 = vpack.c.bf16 %v1845, %v1844
  %v1857 = vpack.c.bf16 %v1847, %v1846
  %v1858 = vpack.c.bf16 %v1849, %v1848
  %v1859 = vpack.c.bf16 %v1851, %v1850
  %v1868 = vunpack.c.l.b16 %v1852
  %v1869 = vunpack.c.h.b16 %v1852
  %v1870 = vunpack.c.l.b16 %v1853
  %v1871 = vunpack.c.h.b16 %v1853
  %v1872 = vunpack.c.l.b16 %v1854
  %v1873 = vunpack.c.h.b16 %v1854
  %v1874 = vunpack.c.l.b16 %v1855
  %v1875 = vunpack.c.h.b16 %v1855
  %v1876 = vunpack.c.l.b16 %v1856
  %v1877 = vunpack.c.h.b16 %v1856
  %v1878 = vunpack.c.l.b16 %v1857
  %v1879 = vunpack.c.h.b16 %v1857
  %v1880 = vunpack.c.l.b16 %v1858
  %v1881 = vunpack.c.h.b16 %v1858
  %v1882 = vunpack.c.l.b16 %v1859
  %v1883 = vunpack.c.h.b16 %v1859
  %v1884 = vpack.c.b16 %v1868, %v1868
  %v1885 = vpack.c.b16 %v1869, %v1869
  %v1886 = vpack.c.b16 %v1870, %v1870
  %v1887 = vpack.c.b16 %v1871, %v1871
  %v1888 = vpack.c.b16 %v1872, %v1872
  %v1889 = vpack.c.b16 %v1873, %v1873
  %v1890 = vpack.c.b16 %v1874, %v1874
  %v1891 = vpack.c.b16 %v1875, %v1875
  %v1892 = vpack.c.b16 %v1876, %v1876
  %v1893 = vpack.c.b16 %v1877, %v1877
  %v1894 = vpack.c.b16 %v1878, %v1878
  %v1895 = vpack.c.b16 %v1879, %v1879
  %v1896 = vpack.c.b16 %v1880, %v1880
  %v1897 = vpack.c.b16 %v1881, %v1881
  %v1898 = vpack.c.b16 %v1882, %v1882
  %v1899 = vpack.c.b16 %v1883, %v1883
  %vm1916 = vcmask 257024
  %1917 = vst.msk [vmem:[%s5] sm:$0xf] %vm1916, %v1884
  %1918 = vst.msk [vmem:[%s5 + $0x4] sm:$0xf] %vm1916, %v1885
  %1919 = vst.msk [vmem:[%s5 + $0x8] sm:$0xf] %vm1916, %v1886
  %1920 = vst.msk [vmem:[%s5 + $0xc] sm:$0xf] %vm1916, %v1887
  %1921 = vst.msk [vmem:[%s5 + $0x10] sm:$0xf] %vm1916, %v1888
  %1922 = vst.msk [vmem:[%s5 + $0x14] sm:$0xf] %vm1916, %v1889
  %1923 = vst.msk [vmem:[%s5 + $0x18] sm:$0xf] %vm1916, %v1890
  %1924 = vst.msk [vmem:[%s5 + $0x1c] sm:$0xf] %vm1916, %v1891
  %1925 = vst.msk [vmem:[%s5 + $0x20] sm:$0xf] %vm1916, %v1892
  %1926 = vst.msk [vmem:[%s5 + $0x24] sm:$0xf] %vm1916, %v1893
  %1927 = vst.msk [vmem:[%s5 + $0x28] sm:$0xf] %vm1916, %v1894
  %1928 = vst.msk [vmem:[%s5 + $0x2c] sm:$0xf] %vm1916, %v1895
  %1929 = vst.msk [vmem:[%s5 + $0x30] sm:$0xf] %vm1916, %v1896
  %1930 = vst.msk [vmem:[%s5 + $0x34] sm:$0xf] %vm1916, %v1897
  %1931 = vst.msk [vmem:[%s5 + $0x38] sm:$0xf] %vm1916, %v1898
  %1932 = vst.msk [vmem:[%s5 + $0x3c] sm:$0xf] %vm1916, %v1899
  // Predicated region
  $region22: #{generator_forward.14} parent=0 // pred_check
    _
  $region23: #{generator_forward.14} parent=0 // pred_check_branch
    %1934 = sbr.rel (0) target = $region25
  $region24: #{generator_forward.14} parent=0 // pred_region
    _
  $region25: #{generator_forward.14} parent=0 // pred_fallthru
    _
  // Predicated region
  $region26: #{generator_forward.14} parent=0 // pred_check
    _
  $region27: #{generator_forward.14} parent=0 // pred_check_branch
    %1936 = sbr.rel (0) target = $region29
  $region28: #{generator_forward.14} parent=0 // pred_region
    _
  $region29: #{generator_forward.14} parent=0 // pred_fallthru
    _

// kernel: generator_forward.15
$region0: #{generator_forward.15}
  #allocation0 [shape = 'u32[]', space=smem, size = 0x4, offset = 0x4, fixed_abs, tag = 'smem constant byte address 0x4 - core index']
  #allocation1 [shape = 'u32[144,128]{1,0:T(1,128)}', space=vmem, size = 0x12000, scoped, tag = 'internal scratch']
  %s0 = inlined_call_operand.vmem [shape: bf16[64,288], index: 0, kind: input, shape index: {}]
  %s1 = inlined_call_operand.vmem [shape: bf16[288,128], index: 1, kind: input, shape index: {}]
  %s2 = inlined_call_operand.vmem [shape: bf16[64,288], index: 2, kind: input, shape index: {}]
  %s3 = inlined_call_operand.vmem [shape: bf16[288,128], index: 3, kind: input, shape index: {}]
  %s4 = inlined_call_operand.vmem [shape: f32[64,1], index: 4, kind: input, shape index: {}]
  %s5 = inlined_call_operand.vmem [shape: bf16[64,128], index: 5, kind: output, shape index: {}]
  %s6 = sld [smem:[#allocation0]]
  $region30: #{generator_forward.15} parent=0
    _
  %s8 = ssub.s32 1, %s6
  %s9 = scalar_select 0, %s8, %s6
  // Predicated region
  $region2: #{generator_forward.15} parent=0 // pred_check
    _
  $region3: #{generator_forward.15} parent=0 // pred_check_branch
    %11 = sbr.rel (0) target = $region5
  $region4: #{generator_forward.15} parent=0 // pred_region
    _
  $region5: #{generator_forward.15} parent=0 // pred_fallthru
    _
  // Predicated region
  $region6: #{generator_forward.15} parent=0 // pred_check
    _
  $region7: #{generator_forward.15} parent=0 // pred_check_branch
    %13 = sbr.rel (0) target = $region9
  $region8: #{generator_forward.15} parent=0 // pred_region
    _
  $region9: #{generator_forward.15} parent=0 // pred_fallthru
    _
  // Predicated region
  $region10: #{generator_forward.15} parent=0 // pred_check
    _
  $region11: #{generator_forward.15} parent=0 // pred_check_branch
    %15 = sbr.rel (0) target = $region13
  $region12: #{generator_forward.15} parent=0 // pred_region
    _
  $region13: #{generator_forward.15} parent=0 // pred_fallthru
    _
  // Predicated region
  $region14: #{generator_forward.15} parent=0 // pred_check
    _
  $region15: #{generator_forward.15} parent=0 // pred_check_branch
    %17 = sbr.rel (0) target = $region17
  $region16: #{generator_forward.15} parent=0 // pred_region
    _
  $region17: #{generator_forward.15} parent=0 // pred_fallthru
    _
  // Predicated region
  $region18: #{generator_forward.15} parent=0 // pred_check
    _
  $region19: #{generator_forward.15} parent=0 // pred_check_branch
    %19 = sbr.rel (0) target = $region21
  $region20: #{generator_forward.15} parent=0 // pred_region
    _
  $region21: #{generator_forward.15} parent=0 // pred_fallthru
    _
  %v21 = vld [vmem:[%s0] sm:$0xff]
  %v22 = vld [vmem:[%s0 + $0x8] sm:$0xf]
  %v23 = vld [vmem:[%s0 + $0xc] sm:$0xff]
  %v24 = vld [vmem:[%s0 + $0x14] sm:$0xf]
  %v25 = vld [vmem:[%s0 + $0x18] sm:$0xff]
  %v26 = vld [vmem:[%s0 + $0x20] sm:$0xf]
  %v27 = vld [vmem:[%s0 + $0x24] sm:$0xff]
  %v28 = vld [vmem:[%s0 + $0x2c] sm:$0xf]
  %v29 = vld [vmem:[%s0 + $0x30] sm:$0xff]
  %v30 = vld [vmem:[%s0 + $0x38] sm:$0xf]
  %v31 = vld [vmem:[%s0 + $0x3c] sm:$0xff]
  %v32 = vld [vmem:[%s0 + $0x44] sm:$0xf]
  %v33 = vld [vmem:[%s0 + $0x48] sm:$0xff]
  %v34 = vld [vmem:[%s0 + $0x50] sm:$0xf]
  %v35 = vld [vmem:[%s0 + $0x54] sm:$0xff]
  %v36 = vld [vmem:[%s0 + $0x5c] sm:$0xf]
  %v37 = vld [vmem:[%s1] sm:$0xf]
  %v38 = vld [vmem:[%s1 + $0x4] sm:$0xf]
  %v39 = vld [vmem:[%s1 + $0x8] sm:$0xf]
  %v40 = vld [vmem:[%s1 + $0xc] sm:$0xf]
  %v41 = vld [vmem:[%s1 + $0x10] sm:$0xf]
  %v42 = vld [vmem:[%s1 + $0x14] sm:$0xf]
  %v43 = vld [vmem:[%s1 + $0x18] sm:$0xf]
  %v44 = vld [vmem:[%s1 + $0x1c] sm:$0xf]
  %v45 = vld [vmem:[%s1 + $0x20] sm:$0xf]
  %v46 = vld [vmem:[%s1 + $0x24] sm:$0xf]
  %v47 = vld [vmem:[%s1 + $0x28] sm:$0xf]
  %v48 = vld [vmem:[%s1 + $0x2c] sm:$0xf]
  %v49 = vld [vmem:[%s1 + $0x30] sm:$0xf]
  %v50 = vld [vmem:[%s1 + $0x34] sm:$0xf]
  %v51 = vld [vmem:[%s1 + $0x38] sm:$0xf]
  %v52 = vld [vmem:[%s1 + $0x3c] sm:$0xf]
  %v53 = vld [vmem:[%s1 + $0x40] sm:$0xf]
  %v54 = vld [vmem:[%s1 + $0x44] sm:$0xf]
  %v55 = vld [vmem:[%s1 + $0x48] sm:$0xf]
  %v56 = vld [vmem:[%s1 + $0x4c] sm:$0xf]
  %v57 = vld [vmem:[%s1 + $0x50] sm:$0xf]
  %v58 = vld [vmem:[%s1 + $0x54] sm:$0xf]
  %v59 = vld [vmem:[%s1 + $0x58] sm:$0xf]
  %v60 = vld [vmem:[%s1 + $0x5c] sm:$0xf]
  %v61 = vld [vmem:[%s1 + $0x60] sm:$0xf]
  %v62 = vld [vmem:[%s1 + $0x64] sm:$0xf]
  %v63 = vld [vmem:[%s1 + $0x68] sm:$0xf]
  %v64 = vld [vmem:[%s1 + $0x6c] sm:$0xf]
  %v65 = vld [vmem:[%s1 + $0x70] sm:$0xf]
  %v66 = vld [vmem:[%s1 + $0x74] sm:$0xf]
  %v67 = vld [vmem:[%s1 + $0x78] sm:$0xf]
  %v68 = vld [vmem:[%s1 + $0x7c] sm:$0xf]
  %v69 = vld [vmem:[%s1 + $0x80] sm:$0xf]
  %v70 = vld [vmem:[%s1 + $0x84] sm:$0xf]
  %v71 = vld [vmem:[%s1 + $0x88] sm:$0xf]
  %v72 = vld [vmem:[%s1 + $0x8c] sm:$0xf]
  %v73 = vld [vmem:[%s2] sm:$0xff]
  %v74 = vld [vmem:[%s2 + $0x8] sm:$0xf]
  %v75 = vld [vmem:[%s2 + $0xc] sm:$0xff]
  %v76 = vld [vmem:[%s2 + $0x14] sm:$0xf]
  %v77 = vld [vmem:[%s2 + $0x18] sm:$0xff]
  %v78 = vld [vmem:[%s2 + $0x20] sm:$0xf]
  %v79 = vld [vmem:[%s2 + $0x24] sm:$0xff]
  %v80 = vld [vmem:[%s2 + $0x2c] sm:$0xf]
  %v81 = vld [vmem:[%s2 + $0x30] sm:$0xff]
  %v82 = vld [vmem:[%s2 + $0x38] sm:$0xf]
  %v83 = vld [vmem:[%s2 + $0x3c] sm:$0xff]
  %v84 = vld [vmem:[%s2 + $0x44] sm:$0xf]
  %v85 = vld [vmem:[%s2 + $0x48] sm:$0xff]
  %v86 = vld [vmem:[%s2 + $0x50] sm:$0xf]
  %v87 = vld [vmem:[%s2 + $0x54] sm:$0xff]
  %v88 = vld [vmem:[%s2 + $0x5c] sm:$0xf]
  %v89 = vld [vmem:[%s3] sm:$0xf]
  %v90 = vld [vmem:[%s3 + $0x4] sm:$0xf]
  %v91 = vld [vmem:[%s3 + $0x8] sm:$0xf]
  %v92 = vld [vmem:[%s3 + $0xc] sm:$0xf]
  %v93 = vld [vmem:[%s3 + $0x10] sm:$0xf]
  %v94 = vld [vmem:[%s3 + $0x14] sm:$0xf]
  %v95 = vld [vmem:[%s3 + $0x18] sm:$0xf]
  %v96 = vld [vmem:[%s3 + $0x1c] sm:$0xf]
  %v97 = vld [vmem:[%s3 + $0x20] sm:$0xf]
  %v98 = vld [vmem:[%s3 + $0x24] sm:$0xf]
  %v99 = vld [vmem:[%s3 + $0x28] sm:$0xf]
  %v100 = vld [vmem:[%s3 + $0x2c] sm:$0xf]
  %v101 = vld [vmem:[%s3 + $0x30] sm:$0xf]
  %v102 = vld [vmem:[%s3 + $0x34] sm:$0xf]
  %v103 = vld [vmem:[%s3 + $0x38] sm:$0xf]
  %v104 = vld [vmem:[%s3 + $0x3c] sm:$0xf]
  %v105 = vld [vmem:[%s3 + $0x40] sm:$0xf]
  %v106 = vld [vmem:[%s3 + $0x44] sm:$0xf]
  %v107 = vld [vmem:[%s3 + $0x48] sm:$0xf]
  %v108 = vld [vmem:[%s3 + $0x4c] sm:$0xf]
  %v109 = vld [vmem:[%s3 + $0x50] sm:$0xf]
  %v110 = vld [vmem:[%s3 + $0x54] sm:$0xf]
  %v111 = vld [vmem:[%s3 + $0x58] sm:$0xf]
  %v112 = vld [vmem:[%s3 + $0x5c] sm:$0xf]
  %v113 = vld [vmem:[%s3 + $0x60] sm:$0xf]
  %v114 = vld [vmem:[%s3 + $0x64] sm:$0xf]
  %v115 = vld [vmem:[%s3 + $0x68] sm:$0xf]
  %v116 = vld [vmem:[%s3 + $0x6c] sm:$0xf]
  %v117 = vld [vmem:[%s3 + $0x70] sm:$0xf]
  %v118 = vld [vmem:[%s3 + $0x74] sm:$0xf]
  %v119 = vld [vmem:[%s3 + $0x78] sm:$0xf]
  %v120 = vld [vmem:[%s3 + $0x7c] sm:$0xf]
  %v121 = vld [vmem:[%s3 + $0x80] sm:$0xf]
  %v122 = vld [vmem:[%s3 + $0x84] sm:$0xf]
  %v123 = vld [vmem:[%s3 + $0x88] sm:$0xf]
  %v124 = vld [vmem:[%s3 + $0x8c] sm:$0xf]
  %v141 = vunpack.c.l.b16 %v73
  %v142 = vunpack.c.h.b16 %v73
  %v143 = vunpack.c.l.b16 %v74
  %v144 = vunpack.c.l.b16 %v75
  %v145 = vunpack.c.h.b16 %v75
  %v146 = vunpack.c.l.b16 %v76
  %v147 = vunpack.c.l.b16 %v77
  %v148 = vunpack.c.h.b16 %v77
  %v149 = vunpack.c.l.b16 %v78
  %v150 = vunpack.c.l.b16 %v79
  %v151 = vunpack.c.h.b16 %v79
  %v152 = vunpack.c.l.b16 %v80
  %v153 = vunpack.c.l.b16 %v81
  %v154 = vunpack.c.h.b16 %v81
  %v155 = vunpack.c.l.b16 %v82
  %v156 = vunpack.c.l.b16 %v83
  %v157 = vunpack.c.h.b16 %v83
  %v158 = vunpack.c.l.b16 %v84
  %v159 = vunpack.c.l.b16 %v85
  %v160 = vunpack.c.h.b16 %v85
  %v161 = vunpack.c.l.b16 %v86
  %v162 = vunpack.c.l.b16 %v87
  %v163 = vunpack.c.h.b16 %v87
  %v164 = vunpack.c.l.b16 %v88
  %v165 = vpack.c.b16 %v144, %v141
  %v166 = vpack.c.b16 %v145, %v142
  %v167 = vpack.c.b16 %v146, %v143
  %v168 = vpack.c.b16 %v150, %v147
  %v169 = vpack.c.b16 %v151, %v148
  %v170 = vpack.c.b16 %v152, %v149
  %v171 = vpack.c.b16 %v156, %v153
  %v172 = vpack.c.b16 %v157, %v154
  %v173 = vpack.c.b16 %v158, %v155
  %v174 = vpack.c.b16 %v162, %v159
  %v175 = vpack.c.b16 %v163, %v160
  %v176 = vpack.c.b16 %v164, %v161
  %v221 = vunpack.c.l.b16 %v89
  %v222 = vunpack.c.l.b16 %v90
  %v223 = vunpack.c.l.b16 %v91
  %v224 = vunpack.c.l.b16 %v92
  %v225 = vunpack.c.l.b16 %v93
  %v226 = vunpack.c.l.b16 %v94
  %v227 = vunpack.c.l.b16 %v95
  %v228 = vunpack.c.l.b16 %v96
  %v229 = vunpack.c.l.b16 %v97
  %v230 = vunpack.c.l.b16 %v98
  %v231 = vunpack.c.l.b16 %v99
  %v232 = vunpack.c.l.b16 %v100
  %v233 = vunpack.c.l.b16 %v101
  %v234 = vunpack.c.l.b16 %v102
  %v235 = vunpack.c.l.b16 %v103
  %v236 = vunpack.c.l.b16 %v104
  %v237 = vunpack.c.l.b16 %v105
  %v238 = vunpack.c.l.b16 %v106
  %v239 = vunpack.c.l.b16 %v107
  %v240 = vunpack.c.l.b16 %v108
  %v241 = vunpack.c.l.b16 %v109
  %v242 = vunpack.c.l.b16 %v110
  %v243 = vunpack.c.l.b16 %v111
  %v244 = vunpack.c.l.b16 %v112
  %v245 = vunpack.c.l.b16 %v113
  %v246 = vunpack.c.l.b16 %v114
  %v247 = vunpack.c.l.b16 %v115
  %v248 = vunpack.c.l.b16 %v116
  %v249 = vunpack.c.l.b16 %v117
  %v250 = vunpack.c.l.b16 %v118
  %v251 = vunpack.c.l.b16 %v119
  %v252 = vunpack.c.l.b16 %v120
  %v253 = vunpack.c.l.b16 %v121
  %v254 = vunpack.c.l.b16 %v122
  %v255 = vunpack.c.l.b16 %v123
  %v256 = vunpack.c.l.b16 %v124
  %v257 = vpack.c.b16 %v222, %v221
  %v258 = vpack.c.b16 %v224, %v223
  %v259 = vpack.c.b16 %v226, %v225
  %v260 = vpack.c.b16 %v228, %v227
  %v261 = vpack.c.b16 %v230, %v229
  %v262 = vpack.c.b16 %v232, %v231
  %v263 = vpack.c.b16 %v234, %v233
  %v264 = vpack.c.b16 %v236, %v235
  %v265 = vpack.c.b16 %v238, %v237
  %v266 = vpack.c.b16 %v240, %v239
  %v267 = vpack.c.b16 %v242, %v241
  %v268 = vpack.c.b16 %v244, %v243
  %v269 = vpack.c.b16 %v246, %v245
  %v270 = vpack.c.b16 %v248, %v247
  %v271 = vpack.c.b16 %v250, %v249
  %v272 = vpack.c.b16 %v252, %v251
  %v273 = vpack.c.b16 %v254, %v253
  %v274 = vpack.c.b16 %v256, %v255
  %vm293 = vcmask 261120
  %v295 = vsel %vm293, %v167, 0
  %v298 = vsel %vm293, %v170, 0
  %v301 = vsel %vm293, %v173, 0
  %v304 = vsel %vm293, %v176, 0
  %306 = vmatprep.subr.bf16.mxu0 0
  %307 = vmatpush1.bf16.msra.mxu0 %v264
  %308 = vmatprep.subr.bf16.mxu0 0
  %309 = vmatpush1.bf16.msra.mxu0 %v263
  %310 = vmatprep.subr.bf16.mxu0 0
  %311 = vmatpush1.bf16.msra.mxu0 %v262
  %312 = vmatprep.subr.bf16.mxu0 0
  %313 = vmatpush1.bf16.msra.mxu0 %v261
  %314 = vmatprep.subr.bf16.mxu0 0
  %315 = vmatpush1.bf16.msra.mxu0 %v260
  %316 = vmatprep.subr.bf16.mxu0 0
  %317 = vmatpush1.bf16.msra.mxu0 %v259
  %318 = vmatprep.subr.bf16.mxu0 0
  %319 = vmatpush1.bf16.msra.mxu0 %v258
  %320 = vmatprep.subr.bf16.mxu0 0
  %321 = vmatpush1.bf16.msra.mxu0 %v257
  %322 = vmatprep.subr.bf16.mxu0 0
  %323 = vmatpush2.bf16.msra.mxu0 %v272
  %324 = vmatprep.subr.bf16.mxu0 0
  %325 = vmatpush2.bf16.msra.mxu0 %v271
  %326 = vmatprep.subr.bf16.mxu0 0
  %327 = vmatpush2.bf16.msra.mxu0 %v270
  %328 = vmatprep.subr.bf16.mxu0 0
  %329 = vmatpush2.bf16.msra.mxu0 %v269
  %330 = vmatprep.subr.bf16.mxu0 0
  %331 = vmatpush2.bf16.msra.mxu0 %v268
  %332 = vmatprep.subr.bf16.mxu0 0
  %333 = vmatpush2.bf16.msra.mxu0 %v267
  %334 = vmatprep.subr.bf16.mxu0 0
  %335 = vmatpush2.bf16.msra.mxu0 %v266
  %336 = vmatprep.subr.bf16.mxu0 0
  %337 = vmatpush2.bf16.msra.mxu0 %v265
  %338 = vmatprep.mubr.bf16.mxu0 %v166
  %339 = vmatmul.mubr.bf16.gmra.mxu0 %v165
  %v340 = vpop.f32.mrf.mxu0
  %v341 = vadd.f32 0.0, %v340
  %v342 = vpop.f32.mrf.mxu0
  %v343 = vpop.f32.mrf.mxu0
  %v344 = vadd.f32 0.0, %v343
  %v345 = vpop.f32.mrf.mxu0
  %346 = vmatprep.mubr.bf16.mxu0 %v169
  %347 = vmatmul.mubr.bf16.gmra.mxu0 %v168
  %v348 = vpop.f32.mrf.mxu0
  %v349 = vadd.f32 0.0, %v348
  %v350 = vpop.f32.mrf.mxu0
  %v351 = vpop.f32.mrf.mxu0
  %v352 = vadd.f32 0.0, %v351
  %v353 = vpop.f32.mrf.mxu0
  %354 = vmatprep.mubr.bf16.mxu0 %v172
  %355 = vmatmul.mubr.bf16.gmra.mxu0 %v171
  %v356 = vpop.f32.mrf.mxu0
  %v357 = vadd.f32 0.0, %v356
  %v358 = vpop.f32.mrf.mxu0
  %v359 = vpop.f32.mrf.mxu0
  %v360 = vadd.f32 0.0, %v359
  %v361 = vpop.f32.mrf.mxu0
  %362 = vmatprep.mubr.bf16.mxu0 %v175
  %363 = vmatmul.mubr.bf16.gmra.mxu0 %v174
  %v364 = vpop.f32.mrf.mxu0
  %v365 = vadd.f32 0.0, %v364
  %v366 = vpop.f32.mrf.mxu0
  %v367 = vpop.f32.mrf.mxu0
  %v368 = vadd.f32 0.0, %v367
  %v369 = vpop.f32.mrf.mxu0
  %370 = vdwg.mxu0
  %371 = vmatprep.subr.bf16.mxu0 0
  %372 = vmatpush1.bf16.msra.mxu0 0
  %373 = vmatprep.subr.bf16.mxu0 0
  %374 = vmatpush1.bf16.msra.mxu0 0
  %375 = vmatprep.subr.bf16.mxu0 0
  %376 = vmatpush1.bf16.msra.mxu0 0
  %377 = vmatprep.subr.bf16.mxu0 0
  %378 = vmatpush1.bf16.msra.mxu0 0
  %379 = vmatprep.subr.bf16.mxu0 0
  %380 = vmatpush1.bf16.msra.mxu0 0
  %381 = vmatprep.subr.bf16.mxu0 0
  %382 = vmatpush1.bf16.msra.mxu0 0
  %383 = vmatprep.subr.bf16.mxu0 0
  %384 = vmatpush1.bf16.msra.mxu0 %v274
  %385 = vmatprep.subr.bf16.mxu0 0
  %386 = vmatpush1.bf16.msra.mxu0 %v273
  %387 = vmatprep.subr.bf16.mxu0 0
  %388 = vmatpush2.bf16.msra.mxu0 0
  %389 = vmatprep.subr.bf16.mxu0 0
  %390 = vmatpush2.bf16.msra.mxu0 0
  %391 = vmatprep.subr.bf16.mxu0 0
  %392 = vmatpush2.bf16.msra.mxu0 0
  %393 = vmatprep.subr.bf16.mxu0 0
  %394 = vmatpush2.bf16.msra.mxu0 0
  %395 = vmatprep.subr.bf16.mxu0 0
  %396 = vmatpush2.bf16.msra.mxu0 0
  %397 = vmatprep.subr.bf16.mxu0 0
  %398 = vmatpush2.bf16.msra.mxu0 0
  %399 = vmatprep.subr.bf16.mxu0 0
  %400 = vmatpush2.bf16.msra.mxu0 0
  %401 = vmatprep.subr.bf16.mxu0 0
  %402 = vmatpush2.bf16.msra.mxu0 0
  %403 = vmatprep.mubr.bf16.mxu0 0
  %404 = vmatmul.mubr.bf16.gmra.mxu0 %v295
  %v405 = vpop.f32.mrf.mxu0
  %v406 = vadd.f32 %v341, %v405
  %v407 = vpop.f32.mrf.mxu0
  %v408 = vpop.f32.mrf.mxu0
  %v409 = vadd.f32 %v344, %v408
  %v410 = vpop.f32.mrf.mxu0
  %411 = vmatprep.mubr.bf16.mxu0 0
  %412 = vmatmul.mubr.bf16.gmra.mxu0 %v298
  %v413 = vpop.f32.mrf.mxu0
  %v414 = vadd.f32 %v349, %v413
  %v415 = vpop.f32.mrf.mxu0
  %v416 = vpop.f32.mrf.mxu0
  %v417 = vadd.f32 %v352, %v416
  %v418 = vpop.f32.mrf.mxu0
  %419 = vmatprep.mubr.bf16.mxu0 0
  %420 = vmatmul.mubr.bf16.gmra.mxu0 %v301
  %v421 = vpop.f32.mrf.mxu0
  %v422 = vadd.f32 %v357, %v421
  %v423 = vpop.f32.mrf.mxu0
  %v424 = vpop.f32.mrf.mxu0
  %v425 = vadd.f32 %v360, %v424
  %v426 = vpop.f32.mrf.mxu0
  %427 = vmatprep.mubr.bf16.mxu0 0
  %428 = vmatmul.mubr.bf16.gmra.mxu0 %v304
  %v429 = vpop.f32.mrf.mxu0
  %v430 = vadd.f32 %v365, %v429
  %v431 = vpop.f32.mrf.mxu0
  %v432 = vpop.f32.mrf.mxu0
  %v433 = vadd.f32 %v368, %v432
  %v434 = vpop.f32.mrf.mxu0
  %435 = vdwg.mxu0
  %v452 = vunpack.c.l.b16 %v21
  %v453 = vunpack.c.h.b16 %v21
  %v454 = vunpack.c.l.b16 %v22
  %v455 = vunpack.c.l.b16 %v23
  %v456 = vunpack.c.h.b16 %v23
  %v457 = vunpack.c.l.b16 %v24
  %v458 = vunpack.c.l.b16 %v25
  %v459 = vunpack.c.h.b16 %v25
  %v460 = vunpack.c.l.b16 %v26
  %v461 = vunpack.c.l.b16 %v27
  %v462 = vunpack.c.h.b16 %v27
  %v463 = vunpack.c.l.b16 %v28
  %v464 = vunpack.c.l.b16 %v29
  %v465 = vunpack.c.h.b16 %v29
  %v466 = vunpack.c.l.b16 %v30
  %v467 = vunpack.c.l.b16 %v31
  %v468 = vunpack.c.h.b16 %v31
  %v469 = vunpack.c.l.b16 %v32
  %v470 = vunpack.c.l.b16 %v33
  %v471 = vunpack.c.h.b16 %v33
  %v472 = vunpack.c.l.b16 %v34
  %v473 = vunpack.c.l.b16 %v35
  %v474 = vunpack.c.h.b16 %v35
  %v475 = vunpack.c.l.b16 %v36
  %v476 = vpack.c.b16 %v455, %v452
  %v477 = vpack.c.b16 %v456, %v453
  %v478 = vpack.c.b16 %v457, %v454
  %v479 = vpack.c.b16 %v461, %v458
  %v480 = vpack.c.b16 %v462, %v459
  %v481 = vpack.c.b16 %v463, %v460
  %v482 = vpack.c.b16 %v467, %v464
  %v483 = vpack.c.b16 %v468, %v465
  %v484 = vpack.c.b16 %v469, %v466
  %v485 = vpack.c.b16 %v473, %v470
  %v486 = vpack.c.b16 %v474, %v471
  %v487 = vpack.c.b16 %v475, %v472
  %v532 = vunpack.c.l.b16 %v37
  %v533 = vunpack.c.l.b16 %v38
  %v534 = vunpack.c.l.b16 %v39
  %v535 = vunpack.c.l.b16 %v40
  %v536 = vunpack.c.l.b16 %v41
  %v537 = vunpack.c.l.b16 %v42
  %v538 = vunpack.c.l.b16 %v43
  %v539 = vunpack.c.l.b16 %v44
  %v540 = vunpack.c.l.b16 %v45
  %v541 = vunpack.c.l.b16 %v46
  %v542 = vunpack.c.l.b16 %v47
  %v543 = vunpack.c.l.b16 %v48
  %v544 = vunpack.c.l.b16 %v49
  %v545 = vunpack.c.l.b16 %v50
  %v546 = vunpack.c.l.b16 %v51
  %v547 = vunpack.c.l.b16 %v52
  %v548 = vunpack.c.l.b16 %v53
  %v549 = vunpack.c.l.b16 %v54
  %v550 = vunpack.c.l.b16 %v55
  %v551 = vunpack.c.l.b16 %v56
  %v552 = vunpack.c.l.b16 %v57
  %v553 = vunpack.c.l.b16 %v58
  %v554 = vunpack.c.l.b16 %v59
  %v555 = vunpack.c.l.b16 %v60
  %v556 = vunpack.c.l.b16 %v61
  %v557 = vunpack.c.l.b16 %v62
  %v558 = vunpack.c.l.b16 %v63
  %v559 = vunpack.c.l.b16 %v64
  %v560 = vunpack.c.l.b16 %v65
  %v561 = vunpack.c.l.b16 %v66
  %v562 = vunpack.c.l.b16 %v67
  %v563 = vunpack.c.l.b16 %v68
  %v564 = vunpack.c.l.b16 %v69
  %v565 = vunpack.c.l.b16 %v70
  %v566 = vunpack.c.l.b16 %v71
  %v567 = vunpack.c.l.b16 %v72
  %v568 = vpack.c.b16 %v533, %v532
  %v569 = vpack.c.b16 %v535, %v534
  %v570 = vpack.c.b16 %v537, %v536
  %v571 = vpack.c.b16 %v539, %v538
  %v572 = vpack.c.b16 %v541, %v540
  %v573 = vpack.c.b16 %v543, %v542
  %v574 = vpack.c.b16 %v545, %v544
  %v575 = vpack.c.b16 %v547, %v546
  %v576 = vpack.c.b16 %v549, %v548
  %v577 = vpack.c.b16 %v551, %v550
  %v578 = vpack.c.b16 %v553, %v552
  %v579 = vpack.c.b16 %v555, %v554
  %v580 = vpack.c.b16 %v557, %v556
  %v581 = vpack.c.b16 %v559, %v558
  %v582 = vpack.c.b16 %v561, %v560
  %v583 = vpack.c.b16 %v563, %v562
  %v584 = vpack.c.b16 %v565, %v564
  %v585 = vpack.c.b16 %v567, %v566
  %v605 = vsel %vm293, %v478, 0
  %v608 = vsel %vm293, %v481, 0
  %v611 = vsel %vm293, %v484, 0
  %v614 = vsel %vm293, %v487, 0
  %616 = vmatprep.subr.bf16.mxu0 0
  %617 = vmatpush1.bf16.msra.mxu0 %v575
  %618 = vmatprep.subr.bf16.mxu0 0
  %619 = vmatpush1.bf16.msra.mxu0 %v574
  %620 = vmatprep.subr.bf16.mxu0 0
  %621 = vmatpush1.bf16.msra.mxu0 %v573
  %622 = vmatprep.subr.bf16.mxu0 0
  %623 = vmatpush1.bf16.msra.mxu0 %v572
  %624 = vmatprep.subr.bf16.mxu0 0
  %625 = vmatpush1.bf16.msra.mxu0 %v571
  %626 = vmatprep.subr.bf16.mxu0 0
  %627 = vmatpush1.bf16.msra.mxu0 %v570
  %628 = vmatprep.subr.bf16.mxu0 0
  %629 = vmatpush1.bf16.msra.mxu0 %v569
  %630 = vmatprep.subr.bf16.mxu0 0
  %631 = vmatpush1.bf16.msra.mxu0 %v568
  %632 = vmatprep.subr.bf16.mxu0 0
  %633 = vmatpush2.bf16.msra.mxu0 %v583
  %634 = vmatprep.subr.bf16.mxu0 0
  %635 = vmatpush2.bf16.msra.mxu0 %v582
  %636 = vmatprep.subr.bf16.mxu0 0
  %637 = vmatpush2.bf16.msra.mxu0 %v581
  %638 = vmatprep.subr.bf16.mxu0 0
  %639 = vmatpush2.bf16.msra.mxu0 %v580
  %640 = vmatprep.subr.bf16.mxu0 0
  %641 = vmatpush2.bf16.msra.mxu0 %v579
  %642 = vmatprep.subr.bf16.mxu0 0
  %643 = vmatpush2.bf16.msra.mxu0 %v578
  %644 = vmatprep.subr.bf16.mxu0 0
  %645 = vmatpush2.bf16.msra.mxu0 %v577
  %646 = vmatprep.subr.bf16.mxu0 0
  %647 = vmatpush2.bf16.msra.mxu0 %v576
  %648 = vmatprep.mubr.bf16.mxu0 %v477
  %649 = vmatmul.mubr.bf16.gmra.mxu0 %v476
  %v650 = vpop.f32.mrf.mxu0
  %v651 = vadd.f32 %v406, %v650
  %v652 = vpop.f32.mrf.mxu0
  %v653 = vpop.f32.mrf.mxu0
  %v654 = vadd.f32 %v409, %v653
  %v655 = vpop.f32.mrf.mxu0
  %656 = vmatprep.mubr.bf16.mxu0 %v480
  %657 = vmatmul.mubr.bf16.gmra.mxu0 %v479
  %v658 = vpop.f32.mrf.mxu0
  %v659 = vadd.f32 %v414, %v658
  %v660 = vpop.f32.mrf.mxu0
  %v661 = vpop.f32.mrf.mxu0
  %v662 = vadd.f32 %v417, %v661
  %v663 = vpop.f32.mrf.mxu0
  %664 = vmatprep.mubr.bf16.mxu0 %v483
  %665 = vmatmul.mubr.bf16.gmra.mxu0 %v482
  %v666 = vpop.f32.mrf.mxu0
  %v667 = vadd.f32 %v422, %v666
  %v668 = vpop.f32.mrf.mxu0
  %v669 = vpop.f32.mrf.mxu0
  %v670 = vadd.f32 %v425, %v669
  %v671 = vpop.f32.mrf.mxu0
  %672 = vmatprep.mubr.bf16.mxu0 %v486
  %673 = vmatmul.mubr.bf16.gmra.mxu0 %v485
  %v674 = vpop.f32.mrf.mxu0
  %v675 = vadd.f32 %v430, %v674
  %v676 = vpop.f32.mrf.mxu0
  %v677 = vpop.f32.mrf.mxu0
  %v678 = vadd.f32 %v433, %v677
  %v679 = vpop.f32.mrf.mxu0
  %680 = vdwg.mxu0
  %681 = vmatprep.subr.bf16.mxu0 0
  %682 = vmatpush1.bf16.msra.mxu0 0
  %683 = vmatprep.subr.bf16.mxu0 0
  %684 = vmatpush1.bf16.msra.mxu0 0
  %685 = vmatprep.subr.bf16.mxu0 0
  %686 = vmatpush1.bf16.msra.mxu0 0
  %687 = vmatprep.subr.bf16.mxu0 0
  %688 = vmatpush1.bf16.msra.mxu0 0
  %689 = vmatprep.subr.bf16.mxu0 0
  %690 = vmatpush1.bf16.msra.mxu0 0
  %691 = vmatprep.subr.bf16.mxu0 0
  %692 = vmatpush1.bf16.msra.mxu0 0
  %693 = vmatprep.subr.bf16.mxu0 0
  %694 = vmatpush1.bf16.msra.mxu0 %v585
  %695 = vmatprep.subr.bf16.mxu0 0
  %696 = vmatpush1.bf16.msra.mxu0 %v584
  %697 = vmatprep.subr.bf16.mxu0 0
  %698 = vmatpush2.bf16.msra.mxu0 0
  %699 = vmatprep.subr.bf16.mxu0 0
  %700 = vmatpush2.bf16.msra.mxu0 0
  %701 = vmatprep.subr.bf16.mxu0 0
  %702 = vmatpush2.bf16.msra.mxu0 0
  %703 = vmatprep.subr.bf16.mxu0 0
  %704 = vmatpush2.bf16.msra.mxu0 0
  %705 = vmatprep.subr.bf16.mxu0 0
  %706 = vmatpush2.bf16.msra.mxu0 0
  %707 = vmatprep.subr.bf16.mxu0 0
  %708 = vmatpush2.bf16.msra.mxu0 0
  %709 = vmatprep.subr.bf16.mxu0 0
  %710 = vmatpush2.bf16.msra.mxu0 0
  %711 = vmatprep.subr.bf16.mxu0 0
  %712 = vmatpush2.bf16.msra.mxu0 0
  %713 = vmatprep.mubr.bf16.mxu0 0
  %714 = vmatmul.mubr.bf16.gmra.mxu0 %v605
  %v715 = vpop.f32.mrf.mxu0
  %v716 = vadd.f32 %v651, %v715
  %v717 = vpop.f32.mrf.mxu0
  %v718 = vpop.f32.mrf.mxu0
  %v719 = vadd.f32 %v654, %v718
  %v720 = vpop.f32.mrf.mxu0
  %721 = vmatprep.mubr.bf16.mxu0 0
  %722 = vmatmul.mubr.bf16.gmra.mxu0 %v608
  %v723 = vpop.f32.mrf.mxu0
  %v724 = vadd.f32 %v659, %v723
  %v725 = vpop.f32.mrf.mxu0
  %v726 = vpop.f32.mrf.mxu0
  %v727 = vadd.f32 %v662, %v726
  %v728 = vpop.f32.mrf.mxu0
  %729 = vmatprep.mubr.bf16.mxu0 0
  %730 = vmatmul.mubr.bf16.gmra.mxu0 %v611
  %v731 = vpop.f32.mrf.mxu0
  %v732 = vadd.f32 %v667, %v731
  %v733 = vpop.f32.mrf.mxu0
  %v734 = vpop.f32.mrf.mxu0
  %v735 = vadd.f32 %v670, %v734
  %v736 = vpop.f32.mrf.mxu0
  %737 = vmatprep.mubr.bf16.mxu0 0
  %738 = vmatmul.mubr.bf16.gmra.mxu0 %v614
  %v739 = vpop.f32.mrf.mxu0
  %v740 = vadd.f32 %v675, %v739
  %v741 = vpop.f32.mrf.mxu0
  %v742 = vpop.f32.mrf.mxu0
  %v743 = vadd.f32 %v678, %v742
  %v744 = vpop.f32.mrf.mxu0
  %745 = vdwg.mxu0
  %v746 = vld [vmem:[%s4] sm:$0xff]
  %v747 = vld [vmem:[%s4 + $0x8] sm:$0xff]
  %v748 = vld [vmem:[%s4 + $0x10] sm:$0xff]
  %v749 = vld [vmem:[%s4 + $0x18] sm:$0xff]
  %v750 = vld [vmem:[%s4 + $0x20] sm:$0xff]
  %v751 = vld [vmem:[%s4 + $0x28] sm:$0xff]
  %v752 = vld [vmem:[%s4 + $0x30] sm:$0xff]
  %v753 = vld [vmem:[%s4 + $0x38] sm:$0xff]
  %755 = vset.pattern.permute.xlu0 0
  %756 = vperm.xlu0 %755, %v746
  %v757 = vpop.permute.xlu0 %756
  %760 = vset.pattern.permute.xlu0 0
  %761 = vperm.xlu0 %760, %v747
  %v762 = vpop.permute.xlu0 %761
  %765 = vset.pattern.permute.xlu0 0
  %766 = vperm.xlu0 %765, %v748
  %v767 = vpop.permute.xlu0 %766
  %770 = vset.pattern.permute.xlu0 0
  %771 = vperm.xlu0 %770, %v749
  %v772 = vpop.permute.xlu0 %771
  %775 = vset.pattern.permute.xlu0 0
  %776 = vperm.xlu0 %775, %v750
  %v777 = vpop.permute.xlu0 %776
  %780 = vset.pattern.permute.xlu0 0
  %781 = vperm.xlu0 %780, %v751
  %v782 = vpop.permute.xlu0 %781
  %785 = vset.pattern.permute.xlu0 0
  %786 = vperm.xlu0 %785, %v752
  %v787 = vpop.permute.xlu0 %786
  %790 = vset.pattern.permute.xlu0 0
  %791 = vperm.xlu0 %790, %v753
  %v792 = vpop.permute.xlu0 %791
  %v794 = vadd.f32 %v716, %v757
  %v795 = vadd.f32 %v719, %v762
  %v796 = vadd.f32 %v724, %v767
  %v797 = vadd.f32 %v727, %v772
  %v798 = vadd.f32 %v732, %v777
  %v799 = vadd.f32 %v735, %v782
  %v800 = vadd.f32 %v740, %v787
  %v801 = vadd.f32 %v743, %v792
  %v802 = vmax.f32 %v794, 0.0
  %v803 = vmax.f32 %v795, 0.0
  %v804 = vmax.f32 %v796, 0.0
  %v805 = vmax.f32 %v797, 0.0
  %v806 = vmax.f32 %v798, 0.0
  %v807 = vmax.f32 %v799, 0.0
  %v808 = vmax.f32 %v800, 0.0
  %v809 = vmax.f32 %v801, 0.0
  %v810 = vpack.c.bf16 %v803, %v802
  %v811 = vpack.c.bf16 %v805, %v804
  %v812 = vpack.c.bf16 %v807, %v806
  %v813 = vpack.c.bf16 %v809, %v808
  %v818 = vunpack.c.l.b16 %v810
  %v819 = vunpack.c.h.b16 %v810
  %v820 = vunpack.c.l.b16 %v811
  %v821 = vunpack.c.h.b16 %v811
  %v822 = vunpack.c.l.b16 %v812
  %v823 = vunpack.c.h.b16 %v812
  %v824 = vunpack.c.l.b16 %v813
  %v825 = vunpack.c.h.b16 %v813
  %v826 = vpack.c.b16 %v818, %v818
  %v827 = vpack.c.b16 %v819, %v819
  %v828 = vpack.c.b16 %v820, %v820
  %v829 = vpack.c.b16 %v821, %v821
  %v830 = vpack.c.b16 %v822, %v822
  %v831 = vpack.c.b16 %v823, %v823
  %v832 = vpack.c.b16 %v824, %v824
  %v833 = vpack.c.b16 %v825, %v825
  %842 = vst [vmem:[%s5] sm:$0xf] %v826
  %843 = vst [vmem:[%s5 + $0x4] sm:$0xf] %v827
  %844 = vst [vmem:[%s5 + $0x8] sm:$0xf] %v828
  %845 = vst [vmem:[%s5 + $0xc] sm:$0xf] %v829
  %846 = vst [vmem:[%s5 + $0x10] sm:$0xf] %v830
  %847 = vst [vmem:[%s5 + $0x14] sm:$0xf] %v831
  %848 = vst [vmem:[%s5 + $0x18] sm:$0xf] %v832
  %849 = vst [vmem:[%s5 + $0x1c] sm:$0xf] %v833
  // Predicated region
  $region22: #{generator_forward.15} parent=0 // pred_check
    _
  $region23: #{generator_forward.15} parent=0 // pred_check_branch
    %851 = sbr.rel (0) target = $region25
  $region24: #{generator_forward.15} parent=0 // pred_region
    _
  $region25: #{generator_forward.15} parent=0 // pred_fallthru
    _
  // Predicated region
  $region26: #{generator_forward.15} parent=0 // pred_check
    _
  $region27: #{generator_forward.15} parent=0 // pred_check_branch
    %853 = sbr.rel (0) target = $region29
  $region28: #{generator_forward.15} parent=0 // pred_region
    _
  $region29: #{generator_forward.15} parent=0 // pred_fallthru
    _

// kernel: generator_forward.16
$region0: #{generator_forward.16}
  #allocation0 [shape = 'u32[]', space=smem, size = 0x4, offset = 0x4, fixed_abs, tag = 'smem constant byte address 0x4 - core index']
  #allocation1 [shape = 'u32[144,128]{1,0:T(1,128)}', space=vmem, size = 0x12000, scoped, tag = 'internal scratch']
  %s0 = inlined_call_operand.vmem [shape: bf16[32,144], index: 0, kind: input, shape index: {}]
  %s1 = inlined_call_operand.vmem [shape: bf16[144,512], index: 1, kind: input, shape index: {}]
  %s2 = inlined_call_operand.vmem [shape: bf16[32,144], index: 2, kind: input, shape index: {}]
  %s3 = inlined_call_operand.vmem [shape: bf16[144,512], index: 3, kind: input, shape index: {}]
  %s4 = inlined_call_operand.vmem [shape: f32[32,1], index: 4, kind: input, shape index: {}]
  %s5 = inlined_call_operand.vmem [shape: bf16[32,512], index: 5, kind: output, shape index: {}]
  %s6 = sld [smem:[#allocation0]]
  $region30: #{generator_forward.16} parent=0
    _
  %s8 = ssub.s32 1, %s6
  %s9 = scalar_select 0, %s8, %s6
  // Predicated region
  $region2: #{generator_forward.16} parent=0 // pred_check
    _
  $region3: #{generator_forward.16} parent=0 // pred_check_branch
    %11 = sbr.rel (0) target = $region5
  $region4: #{generator_forward.16} parent=0 // pred_region
    _
  $region5: #{generator_forward.16} parent=0 // pred_fallthru
    _
  // Predicated region
  $region6: #{generator_forward.16} parent=0 // pred_check
    _
  $region7: #{generator_forward.16} parent=0 // pred_check_branch
    %13 = sbr.rel (0) target = $region9
  $region8: #{generator_forward.16} parent=0 // pred_region
    _
  $region9: #{generator_forward.16} parent=0 // pred_fallthru
    _
  // Predicated region
  $region10: #{generator_forward.16} parent=0 // pred_check
    _
  $region11: #{generator_forward.16} parent=0 // pred_check_branch
    %15 = sbr.rel (0) target = $region13
  $region12: #{generator_forward.16} parent=0 // pred_region
    _
  $region13: #{generator_forward.16} parent=0 // pred_fallthru
    _
  // Predicated region
  $region14: #{generator_forward.16} parent=0 // pred_check
    _
  $region15: #{generator_forward.16} parent=0 // pred_check_branch
    %17 = sbr.rel (0) target = $region17
  $region16: #{generator_forward.16} parent=0 // pred_region
    _
  $region17: #{generator_forward.16} parent=0 // pred_fallthru
    _
  // Predicated region
  $region18: #{generator_forward.16} parent=0 // pred_check
    _
  $region19: #{generator_forward.16} parent=0 // pred_check_branch
    %19 = sbr.rel (0) target = $region21
  $region20: #{generator_forward.16} parent=0 // pred_region
    _
  $region21: #{generator_forward.16} parent=0 // pred_fallthru
    _
  %v21 = vld [vmem:[%s0] sm:$0xff]
  %v22 = vld [vmem:[%s0 + $0x8] sm:$0xff]
  %v23 = vld [vmem:[%s0 + $0x10] sm:$0xff]
  %v24 = vld [vmem:[%s0 + $0x18] sm:$0xff]
  %v25 = vld [vmem:[%s1] sm:$0xff]
  %v26 = vld [vmem:[%s1 + $0x8] sm:$0xff]
  %v27 = vld [vmem:[%s1 + $0x10] sm:$0xff]
  %v28 = vld [vmem:[%s1 + $0x18] sm:$0xff]
  %v29 = vld [vmem:[%s1 + $0x20] sm:$0xff]
  %v30 = vld [vmem:[%s1 + $0x28] sm:$0xff]
  %v31 = vld [vmem:[%s1 + $0x30] sm:$0xff]
  %v32 = vld [vmem:[%s1 + $0x38] sm:$0xff]
  %v33 = vld [vmem:[%s1 + $0x40] sm:$0xff]
  %v34 = vld [vmem:[%s1 + $0x48] sm:$0xff]
  %v35 = vld [vmem:[%s1 + $0x50] sm:$0xff]
  %v36 = vld [vmem:[%s1 + $0x58] sm:$0xff]
  %v37 = vld [vmem:[%s1 + $0x60] sm:$0xff]
  %v38 = vld [vmem:[%s1 + $0x68] sm:$0xff]
  %v39 = vld [vmem:[%s1 + $0x70] sm:$0xff]
  %v40 = vld [vmem:[%s1 + $0x78] sm:$0xff]
  %v41 = vld [vmem:[%s1 + $0x80] sm:$0xff]
  %v42 = vld [vmem:[%s1 + $0x88] sm:$0xff]
  %v43 = vld [vmem:[%s1 + $0x90] sm:$0xff]
  %v44 = vld [vmem:[%s1 + $0x98] sm:$0xff]
  %v45 = vld [vmem:[%s1 + $0xa0] sm:$0xff]
  %v46 = vld [vmem:[%s1 + $0xa8] sm:$0xff]
  %v47 = vld [vmem:[%s1 + $0xb0] sm:$0xff]
  %v48 = vld [vmem:[%s1 + $0xb8] sm:$0xff]
  %v49 = vld [vmem:[%s1 + $0xc0] sm:$0xff]
  %v50 = vld [vmem:[%s1 + $0xc8] sm:$0xff]
  %v51 = vld [vmem:[%s1 + $0xd0] sm:$0xff]
  %v52 = vld [vmem:[%s1 + $0xd8] sm:$0xff]
  %v53 = vld [vmem:[%s1 + $0xe0] sm:$0xff]
  %v54 = vld [vmem:[%s1 + $0xe8] sm:$0xff]
  %v55 = vld [vmem:[%s1 + $0xf0] sm:$0xff]
  %v56 = vld [vmem:[%s1 + $0xf8] sm:$0xff]
  %v57 = vld [vmem:[%s1 + $0x100] sm:$0xff]
  %v58 = vld [vmem:[%s1 + $0x108] sm:$0xff]
  %v59 = vld [vmem:[%s1 + $0x110] sm:$0xff]
  %v60 = vld [vmem:[%s1 + $0x118] sm:$0xff]
  %v61 = vld [vmem:[%s2] sm:$0xff]
  %v62 = vld [vmem:[%s2 + $0x8] sm:$0xff]
  %v63 = vld [vmem:[%s2 + $0x10] sm:$0xff]
  %v64 = vld [vmem:[%s2 + $0x18] sm:$0xff]
  %v65 = vld [vmem:[%s3] sm:$0xff]
  %v66 = vld [vmem:[%s3 + $0x8] sm:$0xff]
  %v67 = vld [vmem:[%s3 + $0x10] sm:$0xff]
  %v68 = vld [vmem:[%s3 + $0x18] sm:$0xff]
  %v69 = vld [vmem:[%s3 + $0x20] sm:$0xff]
  %v70 = vld [vmem:[%s3 + $0x28] sm:$0xff]
  %v71 = vld [vmem:[%s3 + $0x30] sm:$0xff]
  %v72 = vld [vmem:[%s3 + $0x38] sm:$0xff]
  %v73 = vld [vmem:[%s3 + $0x40] sm:$0xff]
  %v74 = vld [vmem:[%s3 + $0x48] sm:$0xff]
  %v75 = vld [vmem:[%s3 + $0x50] sm:$0xff]
  %v76 = vld [vmem:[%s3 + $0x58] sm:$0xff]
  %v77 = vld [vmem:[%s3 + $0x60] sm:$0xff]
  %v78 = vld [vmem:[%s3 + $0x68] sm:$0xff]
  %v79 = vld [vmem:[%s3 + $0x70] sm:$0xff]
  %v80 = vld [vmem:[%s3 + $0x78] sm:$0xff]
  %v81 = vld [vmem:[%s3 + $0x80] sm:$0xff]
  %v82 = vld [vmem:[%s3 + $0x88] sm:$0xff]
  %v83 = vld [vmem:[%s3 + $0x90] sm:$0xff]
  %v84 = vld [vmem:[%s3 + $0x98] sm:$0xff]
  %v85 = vld [vmem:[%s3 + $0xa0] sm:$0xff]
  %v86 = vld [vmem:[%s3 + $0xa8] sm:$0xff]
  %v87 = vld [vmem:[%s3 + $0xb0] sm:$0xff]
  %v88 = vld [vmem:[%s3 + $0xb8] sm:$0xff]
  %v89 = vld [vmem:[%s3 + $0xc0] sm:$0xff]
  %v90 = vld [vmem:[%s3 + $0xc8] sm:$0xff]
  %v91 = vld [vmem:[%s3 + $0xd0] sm:$0xff]
  %v92 = vld [vmem:[%s3 + $0xd8] sm:$0xff]
  %v93 = vld [vmem:[%s3 + $0xe0] sm:$0xff]
  %v94 = vld [vmem:[%s3 + $0xe8] sm:$0xff]
  %v95 = vld [vmem:[%s3 + $0xf0] sm:$0xff]
  %v96 = vld [vmem:[%s3 + $0xf8] sm:$0xff]
  %v97 = vld [vmem:[%s3 + $0x100] sm:$0xff]
  %v98 = vld [vmem:[%s3 + $0x108] sm:$0xff]
  %v99 = vld [vmem:[%s3 + $0x110] sm:$0xff]
  %v100 = vld [vmem:[%s3 + $0x118] sm:$0xff]
  %v105 = vunpack.c.l.b16 %v61
  %v106 = vunpack.c.h.b16 %v61
  %v107 = vunpack.c.l.b16 %v62
  %v108 = vunpack.c.h.b16 %v62
  %v109 = vunpack.c.l.b16 %v63
  %v110 = vunpack.c.h.b16 %v63
  %v111 = vunpack.c.l.b16 %v64
  %v112 = vunpack.c.h.b16 %v64
  %v113 = vpack.c.b16 %v107, %v105
  %v114 = vpack.c.b16 %v108, %v106
  %v115 = vpack.c.b16 %v111, %v109
  %v116 = vpack.c.b16 %v112, %v110
  %v155 = vunpack.c.l.b16 %v65
  %v156 = vunpack.c.h.b16 %v65
  %v157 = vunpack.c.l.b16 %v66
  %v158 = vunpack.c.h.b16 %v66
  %v159 = vunpack.c.l.b16 %v67
  %v160 = vunpack.c.h.b16 %v67
  %v161 = vunpack.c.l.b16 %v68
  %v162 = vunpack.c.h.b16 %v68
  %v163 = vunpack.c.l.b16 %v69
  %v164 = vunpack.c.h.b16 %v69
  %v165 = vunpack.c.l.b16 %v70
  %v166 = vunpack.c.h.b16 %v70
  %v167 = vunpack.c.l.b16 %v71
  %v168 = vunpack.c.h.b16 %v71
  %v169 = vunpack.c.l.b16 %v72
  %v170 = vunpack.c.h.b16 %v72
  %v171 = vunpack.c.l.b16 %v73
  %v172 = vunpack.c.h.b16 %v73
  %v173 = vunpack.c.l.b16 %v74
  %v174 = vunpack.c.h.b16 %v74
  %v175 = vunpack.c.l.b16 %v75
  %v176 = vunpack.c.h.b16 %v75
  %v177 = vunpack.c.l.b16 %v76
  %v178 = vunpack.c.h.b16 %v76
  %v179 = vunpack.c.l.b16 %v77
  %v180 = vunpack.c.h.b16 %v77
  %v181 = vunpack.c.l.b16 %v78
  %v182 = vunpack.c.h.b16 %v78
  %v183 = vunpack.c.l.b16 %v79
  %v184 = vunpack.c.h.b16 %v79
  %v185 = vunpack.c.l.b16 %v80
  %v186 = vunpack.c.h.b16 %v80
  %v187 = vunpack.c.l.b16 %v81
  %v188 = vunpack.c.h.b16 %v81
  %v189 = vunpack.c.l.b16 %v82
  %v190 = vunpack.c.h.b16 %v82
  %v191 = vunpack.c.l.b16 %v83
  %v192 = vunpack.c.h.b16 %v83
  %v193 = vunpack.c.l.b16 %v84
  %v194 = vunpack.c.h.b16 %v84
  %v195 = vunpack.c.l.b16 %v85
  %v196 = vunpack.c.h.b16 %v85
  %v197 = vunpack.c.l.b16 %v86
  %v198 = vunpack.c.h.b16 %v86
  %v199 = vunpack.c.l.b16 %v87
  %v200 = vunpack.c.h.b16 %v87
  %v201 = vunpack.c.l.b16 %v88
  %v202 = vunpack.c.h.b16 %v88
  %v203 = vunpack.c.l.b16 %v89
  %v204 = vunpack.c.h.b16 %v89
  %v205 = vunpack.c.l.b16 %v90
  %v206 = vunpack.c.h.b16 %v90
  %v207 = vunpack.c.l.b16 %v91
  %v208 = vunpack.c.h.b16 %v91
  %v209 = vunpack.c.l.b16 %v92
  %v210 = vunpack.c.h.b16 %v92
  %v211 = vunpack.c.l.b16 %v93
  %v212 = vunpack.c.h.b16 %v93
  %v213 = vunpack.c.l.b16 %v94
  %v214 = vunpack.c.h.b16 %v94
  %v215 = vunpack.c.l.b16 %v95
  %v216 = vunpack.c.h.b16 %v95
  %v217 = vunpack.c.l.b16 %v96
  %v218 = vunpack.c.h.b16 %v96
  %v219 = vunpack.c.l.b16 %v97
  %v220 = vunpack.c.h.b16 %v97
  %v221 = vunpack.c.l.b16 %v98
  %v222 = vunpack.c.h.b16 %v98
  %v223 = vunpack.c.l.b16 %v99
  %v224 = vunpack.c.h.b16 %v99
  %v225 = vunpack.c.l.b16 %v100
  %v226 = vunpack.c.h.b16 %v100
  %v227 = vpack.c.b16 %v159, %v155
  %v228 = vpack.c.b16 %v160, %v156
  %v229 = vpack.c.b16 %v161, %v157
  %v230 = vpack.c.b16 %v162, %v158
  %v231 = vpack.c.b16 %v167, %v163
  %v232 = vpack.c.b16 %v168, %v164
  %v233 = vpack.c.b16 %v169, %v165
  %v234 = vpack.c.b16 %v170, %v166
  %v235 = vpack.c.b16 %v175, %v171
  %v236 = vpack.c.b16 %v176, %v172
  %v237 = vpack.c.b16 %v177, %v173
  %v238 = vpack.c.b16 %v178, %v174
  %v239 = vpack.c.b16 %v183, %v179
  %v240 = vpack.c.b16 %v184, %v180
  %v241 = vpack.c.b16 %v185, %v181
  %v242 = vpack.c.b16 %v186, %v182
  %v243 = vpack.c.b16 %v191, %v187
  %v244 = vpack.c.b16 %v192, %v188
  %v245 = vpack.c.b16 %v193, %v189
  %v246 = vpack.c.b16 %v194, %v190
  %v247 = vpack.c.b16 %v199, %v195
  %v248 = vpack.c.b16 %v200, %v196
  %v249 = vpack.c.b16 %v201, %v197
  %v250 = vpack.c.b16 %v202, %v198
  %v251 = vpack.c.b16 %v207, %v203
  %v252 = vpack.c.b16 %v208, %v204
  %v253 = vpack.c.b16 %v209, %v205
  %v254 = vpack.c.b16 %v210, %v206
  %v255 = vpack.c.b16 %v215, %v211
  %v256 = vpack.c.b16 %v216, %v212
  %v257 = vpack.c.b16 %v217, %v213
  %v258 = vpack.c.b16 %v218, %v214
  %v259 = vpack.c.b16 %v223, %v219
  %v260 = vpack.c.b16 %v224, %v220
  %v261 = vpack.c.b16 %v225, %v221
  %v262 = vpack.c.b16 %v226, %v222
  %vm299 = vcmask 130048
  %v301 = vsel %vm299, %v114, 0
  %v304 = vsel %vm299, %v116, 0
  %306 = vmatprep.subr.bf16.mxu0 %v256
  %307 = vmatpush1.bf16.msra.mxu0 %v255
  %308 = vmatprep.subr.bf16.mxu0 %v252
  %309 = vmatpush1.bf16.msra.mxu0 %v251
  %310 = vmatprep.subr.bf16.mxu0 %v248
  %311 = vmatpush1.bf16.msra.mxu0 %v247
  %312 = vmatprep.subr.bf16.mxu0 %v244
  %313 = vmatpush1.bf16.msra.mxu0 %v243
  %314 = vmatprep.subr.bf16.mxu0 %v240
  %315 = vmatpush1.bf16.msra.mxu0 %v239
  %316 = vmatprep.subr.bf16.mxu0 %v236
  %317 = vmatpush1.bf16.msra.mxu0 %v235
  %318 = vmatprep.subr.bf16.mxu0 %v232
  %319 = vmatpush1.bf16.msra.mxu0 %v231
  %320 = vmatprep.subr.bf16.mxu0 %v228
  %321 = vmatpush1.bf16.msra.mxu0 %v227
  %322 = vmatprep.subr.bf16.mxu0 0
  %323 = vmatpush2.bf16.msra.mxu0 0
  %324 = vmatprep.subr.bf16.mxu0 0
  %325 = vmatpush2.bf16.msra.mxu0 0
  %326 = vmatprep.subr.bf16.mxu0 0
  %327 = vmatpush2.bf16.msra.mxu0 0
  %328 = vmatprep.subr.bf16.mxu0 0
  %329 = vmatpush2.bf16.msra.mxu0 0
  %330 = vmatprep.subr.bf16.mxu0 0
  %331 = vmatpush2.bf16.msra.mxu0 0
  %332 = vmatprep.subr.bf16.mxu0 0
  %333 = vmatpush2.bf16.msra.mxu0 0
  %334 = vmatprep.subr.bf16.mxu0 0
  %335 = vmatpush2.bf16.msra.mxu0 0
  %336 = vmatprep.subr.bf16.mxu0 %v260
  %337 = vmatpush2.bf16.msra.mxu0 %v259
  %338 = vmatprep.mubr.bf16.mxu0 %v301
  %339 = vmatmul.mubr.bf16.gmra.mxu0 %v113
  %v340 = vpop.f32.mrf.mxu0
  %v341 = vadd.f32 0.0, %v340
  %v342 = vpop.f32.mrf.mxu0
  %v343 = vadd.f32 0.0, %v342
  %v344 = vpop.f32.mrf.mxu0
  %v345 = vadd.f32 0.0, %v344
  %v346 = vpop.f32.mrf.mxu0
  %v347 = vadd.f32 0.0, %v346
  %348 = vmatprep.mubr.bf16.mxu0 %v304
  %349 = vmatmul.mubr.bf16.gmra.mxu0 %v115
  %v350 = vpop.f32.mrf.mxu0
  %v351 = vadd.f32 0.0, %v350
  %v352 = vpop.f32.mrf.mxu0
  %v353 = vadd.f32 0.0, %v352
  %v354 = vpop.f32.mrf.mxu0
  %v355 = vadd.f32 0.0, %v354
  %v356 = vpop.f32.mrf.mxu0
  %v357 = vadd.f32 0.0, %v356
  %358 = vdwg.mxu0
  %359 = vmatprep.subr.bf16.mxu0 %v258
  %360 = vmatpush1.bf16.msra.mxu0 %v257
  %361 = vmatprep.subr.bf16.mxu0 %v254
  %362 = vmatpush1.bf16.msra.mxu0 %v253
  %363 = vmatprep.subr.bf16.mxu0 %v250
  %364 = vmatpush1.bf16.msra.mxu0 %v249
  %365 = vmatprep.subr.bf16.mxu0 %v246
  %366 = vmatpush1.bf16.msra.mxu0 %v245
  %367 = vmatprep.subr.bf16.mxu0 %v242
  %368 = vmatpush1.bf16.msra.mxu0 %v241
  %369 = vmatprep.subr.bf16.mxu0 %v238
  %370 = vmatpush1.bf16.msra.mxu0 %v237
  %371 = vmatprep.subr.bf16.mxu0 %v234
  %372 = vmatpush1.bf16.msra.mxu0 %v233
  %373 = vmatprep.subr.bf16.mxu0 %v230
  %374 = vmatpush1.bf16.msra.mxu0 %v229
  %375 = vmatprep.subr.bf16.mxu0 0
  %376 = vmatpush2.bf16.msra.mxu0 0
  %377 = vmatprep.subr.bf16.mxu0 0
  %378 = vmatpush2.bf16.msra.mxu0 0
  %379 = vmatprep.subr.bf16.mxu0 0
  %380 = vmatpush2.bf16.msra.mxu0 0
  %381 = vmatprep.subr.bf16.mxu0 0
  %382 = vmatpush2.bf16.msra.mxu0 0
  %383 = vmatprep.subr.bf16.mxu0 0
  %384 = vmatpush2.bf16.msra.mxu0 0
  %385 = vmatprep.subr.bf16.mxu0 0
  %386 = vmatpush2.bf16.msra.mxu0 0
  %387 = vmatprep.subr.bf16.mxu0 0
  %388 = vmatpush2.bf16.msra.mxu0 0
  %389 = vmatprep.subr.bf16.mxu0 %v262
  %390 = vmatpush2.bf16.msra.mxu0 %v261
  %391 = vmatprep.mubr.bf16.mxu0 %v301
  %392 = vmatmul.mubr.bf16.gmra.mxu0 %v113
  %v393 = vpop.f32.mrf.mxu0
  %v394 = vadd.f32 0.0, %v393
  %v395 = vpop.f32.mrf.mxu0
  %v396 = vadd.f32 0.0, %v395
  %v397 = vpop.f32.mrf.mxu0
  %v398 = vadd.f32 0.0, %v397
  %v399 = vpop.f32.mrf.mxu0
  %v400 = vadd.f32 0.0, %v399
  %401 = vmatprep.mubr.bf16.mxu0 %v304
  %402 = vmatmul.mubr.bf16.gmra.mxu0 %v115
  %v403 = vpop.f32.mrf.mxu0
  %v404 = vadd.f32 0.0, %v403
  %v405 = vpop.f32.mrf.mxu0
  %v406 = vadd.f32 0.0, %v405
  %v407 = vpop.f32.mrf.mxu0
  %v408 = vadd.f32 0.0, %v407
  %v409 = vpop.f32.mrf.mxu0
  %v410 = vadd.f32 0.0, %v409
  %411 = vdwg.mxu0
  %v416 = vunpack.c.l.b16 %v21
  %v417 = vunpack.c.h.b16 %v21
  %v418 = vunpack.c.l.b16 %v22
  %v419 = vunpack.c.h.b16 %v22
  %v420 = vunpack.c.l.b16 %v23
  %v421 = vunpack.c.h.b16 %v23
  %v422 = vunpack.c.l.b16 %v24
  %v423 = vunpack.c.h.b16 %v24
  %v424 = vpack.c.b16 %v418, %v416
  %v425 = vpack.c.b16 %v419, %v417
  %v426 = vpack.c.b16 %v422, %v420
  %v427 = vpack.c.b16 %v423, %v421
  %v466 = vunpack.c.l.b16 %v25
  %v467 = vunpack.c.h.b16 %v25
  %v468 = vunpack.c.l.b16 %v26
  %v469 = vunpack.c.h.b16 %v26
  %v470 = vunpack.c.l.b16 %v27
  %v471 = vunpack.c.h.b16 %v27
  %v472 = vunpack.c.l.b16 %v28
  %v473 = vunpack.c.h.b16 %v28
  %v474 = vunpack.c.l.b16 %v29
  %v475 = vunpack.c.h.b16 %v29
  %v476 = vunpack.c.l.b16 %v30
  %v477 = vunpack.c.h.b16 %v30
  %v478 = vunpack.c.l.b16 %v31
  %v479 = vunpack.c.h.b16 %v31
  %v480 = vunpack.c.l.b16 %v32
  %v481 = vunpack.c.h.b16 %v32
  %v482 = vunpack.c.l.b16 %v33
  %v483 = vunpack.c.h.b16 %v33
  %v484 = vunpack.c.l.b16 %v34
  %v485 = vunpack.c.h.b16 %v34
  %v486 = vunpack.c.l.b16 %v35
  %v487 = vunpack.c.h.b16 %v35
  %v488 = vunpack.c.l.b16 %v36
  %v489 = vunpack.c.h.b16 %v36
  %v490 = vunpack.c.l.b16 %v37
  %v491 = vunpack.c.h.b16 %v37
  %v492 = vunpack.c.l.b16 %v38
  %v493 = vunpack.c.h.b16 %v38
  %v494 = vunpack.c.l.b16 %v39
  %v495 = vunpack.c.h.b16 %v39
  %v496 = vunpack.c.l.b16 %v40
  %v497 = vunpack.c.h.b16 %v40
  %v498 = vunpack.c.l.b16 %v41
  %v499 = vunpack.c.h.b16 %v41
  %v500 = vunpack.c.l.b16 %v42
  %v501 = vunpack.c.h.b16 %v42
  %v502 = vunpack.c.l.b16 %v43
  %v503 = vunpack.c.h.b16 %v43
  %v504 = vunpack.c.l.b16 %v44
  %v505 = vunpack.c.h.b16 %v44
  %v506 = vunpack.c.l.b16 %v45
  %v507 = vunpack.c.h.b16 %v45
  %v508 = vunpack.c.l.b16 %v46
  %v509 = vunpack.c.h.b16 %v46
  %v510 = vunpack.c.l.b16 %v47
  %v511 = vunpack.c.h.b16 %v47
  %v512 = vunpack.c.l.b16 %v48
  %v513 = vunpack.c.h.b16 %v48
  %v514 = vunpack.c.l.b16 %v49
  %v515 = vunpack.c.h.b16 %v49
  %v516 = vunpack.c.l.b16 %v50
  %v517 = vunpack.c.h.b16 %v50
  %v518 = vunpack.c.l.b16 %v51
  %v519 = vunpack.c.h.b16 %v51
  %v520 = vunpack.c.l.b16 %v52
  %v521 = vunpack.c.h.b16 %v52
  %v522 = vunpack.c.l.b16 %v53
  %v523 = vunpack.c.h.b16 %v53
  %v524 = vunpack.c.l.b16 %v54
  %v525 = vunpack.c.h.b16 %v54
  %v526 = vunpack.c.l.b16 %v55
  %v527 = vunpack.c.h.b16 %v55
  %v528 = vunpack.c.l.b16 %v56
  %v529 = vunpack.c.h.b16 %v56
  %v530 = vunpack.c.l.b16 %v57
  %v531 = vunpack.c.h.b16 %v57
  %v532 = vunpack.c.l.b16 %v58
  %v533 = vunpack.c.h.b16 %v58
  %v534 = vunpack.c.l.b16 %v59
  %v535 = vunpack.c.h.b16 %v59
  %v536 = vunpack.c.l.b16 %v60
  %v537 = vunpack.c.h.b16 %v60
  %v538 = vpack.c.b16 %v470, %v466
  %v539 = vpack.c.b16 %v471, %v467
  %v540 = vpack.c.b16 %v472, %v468
  %v541 = vpack.c.b16 %v473, %v469
  %v542 = vpack.c.b16 %v478, %v474
  %v543 = vpack.c.b16 %v479, %v475
  %v544 = vpack.c.b16 %v480, %v476
  %v545 = vpack.c.b16 %v481, %v477
  %v546 = vpack.c.b16 %v486, %v482
  %v547 = vpack.c.b16 %v487, %v483
  %v548 = vpack.c.b16 %v488, %v484
  %v549 = vpack.c.b16 %v489, %v485
  %v550 = vpack.c.b16 %v494, %v490
  %v551 = vpack.c.b16 %v495, %v491
  %v552 = vpack.c.b16 %v496, %v492
  %v553 = vpack.c.b16 %v497, %v493
  %v554 = vpack.c.b16 %v502, %v498
  %v555 = vpack.c.b16 %v503, %v499
  %v556 = vpack.c.b16 %v504, %v500
  %v557 = vpack.c.b16 %v505, %v501
  %v558 = vpack.c.b16 %v510, %v506
  %v559 = vpack.c.b16 %v511, %v507
  %v560 = vpack.c.b16 %v512, %v508
  %v561 = vpack.c.b16 %v513, %v509
  %v562 = vpack.c.b16 %v518, %v514
  %v563 = vpack.c.b16 %v519, %v515
  %v564 = vpack.c.b16 %v520, %v516
  %v565 = vpack.c.b16 %v521, %v517
  %v566 = vpack.c.b16 %v526, %v522
  %v567 = vpack.c.b16 %v527, %v523
  %v568 = vpack.c.b16 %v528, %v524
  %v569 = vpack.c.b16 %v529, %v525
  %v570 = vpack.c.b16 %v534, %v530
  %v571 = vpack.c.b16 %v535, %v531
  %v572 = vpack.c.b16 %v536, %v532
  %v573 = vpack.c.b16 %v537, %v533
  %v611 = vsel %vm299, %v425, 0
  %v614 = vsel %vm299, %v427, 0
  %616 = vmatprep.subr.bf16.mxu0 %v567
  %617 = vmatpush1.bf16.msra.mxu0 %v566
  %618 = vmatprep.subr.bf16.mxu0 %v563
  %619 = vmatpush1.bf16.msra.mxu0 %v562
  %620 = vmatprep.subr.bf16.mxu0 %v559
  %621 = vmatpush1.bf16.msra.mxu0 %v558
  %622 = vmatprep.subr.bf16.mxu0 %v555
  %623 = vmatpush1.bf16.msra.mxu0 %v554
  %624 = vmatprep.subr.bf16.mxu0 %v551
  %625 = vmatpush1.bf16.msra.mxu0 %v550
  %626 = vmatprep.subr.bf16.mxu0 %v547
  %627 = vmatpush1.bf16.msra.mxu0 %v546
  %628 = vmatprep.subr.bf16.mxu0 %v543
  %629 = vmatpush1.bf16.msra.mxu0 %v542
  %630 = vmatprep.subr.bf16.mxu0 %v539
  %631 = vmatpush1.bf16.msra.mxu0 %v538
  %632 = vmatprep.subr.bf16.mxu0 0
  %633 = vmatpush2.bf16.msra.mxu0 0
  %634 = vmatprep.subr.bf16.mxu0 0
  %635 = vmatpush2.bf16.msra.mxu0 0
  %636 = vmatprep.subr.bf16.mxu0 0
  %637 = vmatpush2.bf16.msra.mxu0 0
  %638 = vmatprep.subr.bf16.mxu0 0
  %639 = vmatpush2.bf16.msra.mxu0 0
  %640 = vmatprep.subr.bf16.mxu0 0
  %641 = vmatpush2.bf16.msra.mxu0 0
  %642 = vmatprep.subr.bf16.mxu0 0
  %643 = vmatpush2.bf16.msra.mxu0 0
  %644 = vmatprep.subr.bf16.mxu0 0
  %645 = vmatpush2.bf16.msra.mxu0 0
  %646 = vmatprep.subr.bf16.mxu0 %v571
  %647 = vmatpush2.bf16.msra.mxu0 %v570
  %648 = vmatprep.mubr.bf16.mxu0 %v611
  %649 = vmatmul.mubr.bf16.gmra.mxu0 %v424
  %v650 = vpop.f32.mrf.mxu0
  %v651 = vadd.f32 %v341, %v650
  %v652 = vpop.f32.mrf.mxu0
  %v653 = vadd.f32 %v343, %v652
  %v654 = vpop.f32.mrf.mxu0
  %v655 = vadd.f32 %v345, %v654
  %v656 = vpop.f32.mrf.mxu0
  %v657 = vadd.f32 %v347, %v656
  %658 = vmatprep.mubr.bf16.mxu0 %v614
  %659 = vmatmul.mubr.bf16.gmra.mxu0 %v426
  %v660 = vpop.f32.mrf.mxu0
  %v661 = vadd.f32 %v351, %v660
  %v662 = vpop.f32.mrf.mxu0
  %v663 = vadd.f32 %v353, %v662
  %v664 = vpop.f32.mrf.mxu0
  %v665 = vadd.f32 %v355, %v664
  %v666 = vpop.f32.mrf.mxu0
  %v667 = vadd.f32 %v357, %v666
  %668 = vdwg.mxu0
  %669 = vmatprep.subr.bf16.mxu0 %v569
  %670 = vmatpush1.bf16.msra.mxu0 %v568
  %671 = vmatprep.subr.bf16.mxu0 %v565
  %672 = vmatpush1.bf16.msra.mxu0 %v564
  %673 = vmatprep.subr.bf16.mxu0 %v561
  %674 = vmatpush1.bf16.msra.mxu0 %v560
  %675 = vmatprep.subr.bf16.mxu0 %v557
  %676 = vmatpush1.bf16.msra.mxu0 %v556
  %677 = vmatprep.subr.bf16.mxu0 %v553
  %678 = vmatpush1.bf16.msra.mxu0 %v552
  %679 = vmatprep.subr.bf16.mxu0 %v549
  %680 = vmatpush1.bf16.msra.mxu0 %v548
  %681 = vmatprep.subr.bf16.mxu0 %v545
  %682 = vmatpush1.bf16.msra.mxu0 %v544
  %683 = vmatprep.subr.bf16.mxu0 %v541
  %684 = vmatpush1.bf16.msra.mxu0 %v540
  %685 = vmatprep.subr.bf16.mxu0 0
  %686 = vmatpush2.bf16.msra.mxu0 0
  %687 = vmatprep.subr.bf16.mxu0 0
  %688 = vmatpush2.bf16.msra.mxu0 0
  %689 = vmatprep.subr.bf16.mxu0 0
  %690 = vmatpush2.bf16.msra.mxu0 0
  %691 = vmatprep.subr.bf16.mxu0 0
  %692 = vmatpush2.bf16.msra.mxu0 0
  %693 = vmatprep.subr.bf16.mxu0 0
  %694 = vmatpush2.bf16.msra.mxu0 0
  %695 = vmatprep.subr.bf16.mxu0 0
  %696 = vmatpush2.bf16.msra.mxu0 0
  %697 = vmatprep.subr.bf16.mxu0 0
  %698 = vmatpush2.bf16.msra.mxu0 0
  %699 = vmatprep.subr.bf16.mxu0 %v573
  %700 = vmatpush2.bf16.msra.mxu0 %v572
  %701 = vmatprep.mubr.bf16.mxu0 %v611
  %702 = vmatmul.mubr.bf16.gmra.mxu0 %v424
  %v703 = vpop.f32.mrf.mxu0
  %v704 = vadd.f32 %v394, %v703
  %v705 = vpop.f32.mrf.mxu0
  %v706 = vadd.f32 %v396, %v705
  %v707 = vpop.f32.mrf.mxu0
  %v708 = vadd.f32 %v398, %v707
  %v709 = vpop.f32.mrf.mxu0
  %v710 = vadd.f32 %v400, %v709
  %711 = vmatprep.mubr.bf16.mxu0 %v614
  %712 = vmatmul.mubr.bf16.gmra.mxu0 %v426
  %v713 = vpop.f32.mrf.mxu0
  %v714 = vadd.f32 %v404, %v713
  %v715 = vpop.f32.mrf.mxu0
  %v716 = vadd.f32 %v406, %v715
  %v717 = vpop.f32.mrf.mxu0
  %v718 = vadd.f32 %v408, %v717
  %v719 = vpop.f32.mrf.mxu0
  %v720 = vadd.f32 %v410, %v719
  %721 = vdwg.mxu0
  %v722 = vld [vmem:[%s4] sm:$0xff]
  %v723 = vld [vmem:[%s4 + $0x8] sm:$0xff]
  %v724 = vld [vmem:[%s4 + $0x10] sm:$0xff]
  %v725 = vld [vmem:[%s4 + $0x18] sm:$0xff]
  %727 = vset.pattern.permute.xlu0 0
  %728 = vperm.xlu0 %727, %v722
  %v729 = vpop.permute.xlu0 %728
  %732 = vset.pattern.permute.xlu0 0
  %733 = vperm.xlu0 %732, %v723
  %v734 = vpop.permute.xlu0 %733
  %737 = vset.pattern.permute.xlu0 0
  %738 = vperm.xlu0 %737, %v724
  %v739 = vpop.permute.xlu0 %738
  %742 = vset.pattern.permute.xlu0 0
  %743 = vperm.xlu0 %742, %v725
  %v744 = vpop.permute.xlu0 %743
  %v746 = vadd.f32 %v651, %v729
  %v747 = vadd.f32 %v653, %v729
  %v748 = vadd.f32 %v704, %v729
  %v749 = vadd.f32 %v706, %v729
  %v750 = vadd.f32 %v655, %v734
  %v751 = vadd.f32 %v657, %v734
  %v752 = vadd.f32 %v708, %v734
  %v753 = vadd.f32 %v710, %v734
  %v754 = vadd.f32 %v661, %v739
  %v755 = vadd.f32 %v663, %v739
  %v756 = vadd.f32 %v714, %v739
  %v757 = vadd.f32 %v716, %v739
  %v758 = vadd.f32 %v665, %v744
  %v759 = vadd.f32 %v667, %v744
  %v760 = vadd.f32 %v718, %v744
  %v761 = vadd.f32 %v720, %v744
  %v762 = vmax.f32 %v746, 0.0
  %v763 = vmax.f32 %v747, 0.0
  %v764 = vmax.f32 %v748, 0.0
  %v765 = vmax.f32 %v749, 0.0
  %v766 = vmax.f32 %v750, 0.0
  %v767 = vmax.f32 %v751, 0.0
  %v768 = vmax.f32 %v752, 0.0
  %v769 = vmax.f32 %v753, 0.0
  %v770 = vmax.f32 %v754, 0.0
  %v771 = vmax.f32 %v755, 0.0
  %v772 = vmax.f32 %v756, 0.0
  %v773 = vmax.f32 %v757, 0.0
  %v774 = vmax.f32 %v758, 0.0
  %v775 = vmax.f32 %v759, 0.0
  %v776 = vmax.f32 %v760, 0.0
  %v777 = vmax.f32 %v761, 0.0
  %v778 = vpack.c.bf16 %v766, %v762
  %v779 = vpack.c.bf16 %v767, %v763
  %v780 = vpack.c.bf16 %v768, %v764
  %v781 = vpack.c.bf16 %v769, %v765
  %v782 = vpack.c.bf16 %v774, %v770
  %v783 = vpack.c.bf16 %v775, %v771
  %v784 = vpack.c.bf16 %v776, %v772
  %v785 = vpack.c.bf16 %v777, %v773
  %v794 = vunpack.c.l.b16 %v778
  %v795 = vunpack.c.l.b16 %v779
  %v796 = vunpack.c.l.b16 %v780
  %v797 = vunpack.c.l.b16 %v781
  %v798 = vunpack.c.h.b16 %v778
  %v799 = vunpack.c.h.b16 %v779
  %v800 = vunpack.c.h.b16 %v780
  %v801 = vunpack.c.h.b16 %v781
  %v802 = vunpack.c.l.b16 %v782
  %v803 = vunpack.c.l.b16 %v783
  %v804 = vunpack.c.l.b16 %v784
  %v805 = vunpack.c.l.b16 %v785
  %v806 = vunpack.c.h.b16 %v782
  %v807 = vunpack.c.h.b16 %v783
  %v808 = vunpack.c.h.b16 %v784
  %v809 = vunpack.c.h.b16 %v785
  %v810 = vpack.c.b16 %v795, %v794
  %v811 = vpack.c.b16 %v797, %v796
  %v812 = vpack.c.b16 %v799, %v798
  %v813 = vpack.c.b16 %v801, %v800
  %v814 = vpack.c.b16 %v803, %v802
  %v815 = vpack.c.b16 %v805, %v804
  %v816 = vpack.c.b16 %v807, %v806
  %v817 = vpack.c.b16 %v809, %v808
  %826 = vst [vmem:[%s5] sm:$0xff] %v810
  %827 = vst [vmem:[%s5 + $0x8] sm:$0xff] %v811
  %828 = vst [vmem:[%s5 + $0x10] sm:$0xff] %v812
  %829 = vst [vmem:[%s5 + $0x18] sm:$0xff] %v813
  %830 = vst [vmem:[%s5 + $0x20] sm:$0xff] %v814
  %831 = vst [vmem:[%s5 + $0x28] sm:$0xff] %v815
  %832 = vst [vmem:[%s5 + $0x30] sm:$0xff] %v816
  %833 = vst [vmem:[%s5 + $0x38] sm:$0xff] %v817
  // Predicated region
  $region22: #{generator_forward.16} parent=0 // pred_check
    _
  $region23: #{generator_forward.16} parent=0 // pred_check_branch
    %835 = sbr.rel (0) target = $region25
  $region24: #{generator_forward.16} parent=0 // pred_region
    _
  $region25: #{generator_forward.16} parent=0 // pred_fallthru
    _
  // Predicated region
  $region26: #{generator_forward.16} parent=0 // pred_check
    _
  $region27: #{generator_forward.16} parent=0 // pred_check_branch
    %837 = sbr.rel (0) target = $region29
  $region28: #{generator_forward.16} parent=0 // pred_region
    _
  $region29: #{generator_forward.16} parent=0 // pred_fallthru
    _

// kernel: generator_forward.17
$region0: #{generator_forward.17}
  #allocation0 [shape = 'u32[]', space=smem, size = 0x4, offset = 0x4, fixed_abs, tag = 'smem constant byte address 0x4 - core index']
  #allocation1 [shape = 'u32[144,128]{1,0:T(1,128)}', space=vmem, size = 0x12000, scoped, tag = 'internal scratch']
  %s0 = inlined_call_operand.vmem [shape: bf16[12,72], index: 0, kind: input, shape index: {}]
  %s1 = inlined_call_operand.vmem [shape: bf16[72,2048], index: 1, kind: input, shape index: {}]
  %s2 = inlined_call_operand.vmem [shape: bf16[12,72], index: 2, kind: input, shape index: {}]
  %s3 = inlined_call_operand.vmem [shape: bf16[72,2048], index: 3, kind: input, shape index: {}]
  %s4 = inlined_call_operand.vmem [shape: f32[12,1], index: 4, kind: input, shape index: {}]
  %s5 = inlined_call_operand.vmem [shape: bf16[12,12], index: 5, kind: input, shape index: {}]
  %s6 = inlined_call_operand.vmem [shape: bf16[12,12], index: 6, kind: input, shape index: {}]
  %s7 = inlined_call_operand.vmem [shape: bf16[12,2048], index: 7, kind: input, shape index: {}]
  %s8 = inlined_call_operand.vmem [shape: f32[12,1], index: 8, kind: input, shape index: {}]
  %s9 = inlined_call_operand.vmem [shape: f32[12,2048], index: 9, kind: output, shape index: {}]
  %s10 = sld [smem:[#allocation0]]
  $region46: #{generator_forward.17} parent=0
    _
  %s12 = ssub.s32 1, %s10
  %s13 = scalar_select 0, %s12, %s10
  // Predicated region
  $region2: #{generator_forward.17} parent=0 // pred_check
    _
  $region3: #{generator_forward.17} parent=0 // pred_check_branch
    %15 = sbr.rel (0) target = $region5
  $region4: #{generator_forward.17} parent=0 // pred_region
    _
  $region5: #{generator_forward.17} parent=0 // pred_fallthru
    _
  // Predicated region
  $region6: #{generator_forward.17} parent=0 // pred_check
    _
  $region7: #{generator_forward.17} parent=0 // pred_check_branch
    %17 = sbr.rel (0) target = $region9
  $region8: #{generator_forward.17} parent=0 // pred_region
    _
  $region9: #{generator_forward.17} parent=0 // pred_fallthru
    _
  // Predicated region
  $region10: #{generator_forward.17} parent=0 // pred_check
    _
  $region11: #{generator_forward.17} parent=0 // pred_check_branch
    %19 = sbr.rel (0) target = $region13
  $region12: #{generator_forward.17} parent=0 // pred_region
    _
  $region13: #{generator_forward.17} parent=0 // pred_fallthru
    _
  // Predicated region
  $region14: #{generator_forward.17} parent=0 // pred_check
    _
  $region15: #{generator_forward.17} parent=0 // pred_check_branch
    %21 = sbr.rel (0) target = $region17
  $region16: #{generator_forward.17} parent=0 // pred_region
    _
  $region17: #{generator_forward.17} parent=0 // pred_fallthru
    _
  // Predicated region
  $region18: #{generator_forward.17} parent=0 // pred_check
    _
  $region19: #{generator_forward.17} parent=0 // pred_check_branch
    %23 = sbr.rel (0) target = $region21
  $region20: #{generator_forward.17} parent=0 // pred_region
    _
  $region21: #{generator_forward.17} parent=0 // pred_fallthru
    _
  // Predicated region
  $region22: #{generator_forward.17} parent=0 // pred_check
    _
  $region23: #{generator_forward.17} parent=0 // pred_check_branch
    %25 = sbr.rel (0) target = $region25
  $region24: #{generator_forward.17} parent=0 // pred_region
    _
  $region25: #{generator_forward.17} parent=0 // pred_fallthru
    _
  // Predicated region
  $region26: #{generator_forward.17} parent=0 // pred_check
    _
  $region27: #{generator_forward.17} parent=0 // pred_check_branch
    %27 = sbr.rel (0) target = $region29
  $region28: #{generator_forward.17} parent=0 // pred_region
    _
  $region29: #{generator_forward.17} parent=0 // pred_fallthru
    _
  // Predicated region
  $region30: #{generator_forward.17} parent=0 // pred_check
    _
  $region31: #{generator_forward.17} parent=0 // pred_check_branch
    %29 = sbr.rel (0) target = $region33
  $region32: #{generator_forward.17} parent=0 // pred_region
    _
  $region33: #{generator_forward.17} parent=0 // pred_fallthru
    _
  // Predicated region
  $region34: #{generator_forward.17} parent=0 // pred_check
    _
  $region35: #{generator_forward.17} parent=0 // pred_check_branch
    %31 = sbr.rel (0) target = $region37
  $region36: #{generator_forward.17} parent=0 // pred_region
    _
  $region37: #{generator_forward.17} parent=0 // pred_fallthru
    _
  %v33 = vld [vmem:[%s0] sm:$0xf]
  %v34 = vld [vmem:[%s0 + $0x4] sm:$0x3]
  %v35 = vld [vmem:[%s1] sm:$0xff]
  %v36 = vld [vmem:[%s1 + $0x8] sm:$0xff]
  %v37 = vld [vmem:[%s1 + $0x10] sm:$0xff]
  %v38 = vld [vmem:[%s1 + $0x18] sm:$0xff]
  %v39 = vld [vmem:[%s1 + $0x20] sm:$0xff]
  %v40 = vld [vmem:[%s1 + $0x28] sm:$0xff]
  %v41 = vld [vmem:[%s1 + $0x30] sm:$0xff]
  %v42 = vld [vmem:[%s1 + $0x38] sm:$0xff]
  %v43 = vld [vmem:[%s1 + $0x40] sm:$0xff]
  %v44 = vld [vmem:[%s1 + $0x48] sm:$0xff]
  %v45 = vld [vmem:[%s1 + $0x50] sm:$0xff]
  %v46 = vld [vmem:[%s1 + $0x58] sm:$0xff]
  %v47 = vld [vmem:[%s1 + $0x60] sm:$0xff]
  %v48 = vld [vmem:[%s1 + $0x68] sm:$0xff]
  %v49 = vld [vmem:[%s1 + $0x70] sm:$0xff]
  %v50 = vld [vmem:[%s1 + $0x78] sm:$0xff]
  %v51 = vld [vmem:[%s1 + $0x80] sm:$0xff]
  %v52 = vld [vmem:[%s1 + $0x88] sm:$0xff]
  %v53 = vld [vmem:[%s1 + $0x90] sm:$0xff]
  %v54 = vld [vmem:[%s1 + $0x98] sm:$0xff]
  %v55 = vld [vmem:[%s1 + $0xa0] sm:$0xff]
  %v56 = vld [vmem:[%s1 + $0xa8] sm:$0xff]
  %v57 = vld [vmem:[%s1 + $0xb0] sm:$0xff]
  %v58 = vld [vmem:[%s1 + $0xb8] sm:$0xff]
  %v59 = vld [vmem:[%s1 + $0xc0] sm:$0xff]
  %v60 = vld [vmem:[%s1 + $0xc8] sm:$0xff]
  %v61 = vld [vmem:[%s1 + $0xd0] sm:$0xff]
  %v62 = vld [vmem:[%s1 + $0xd8] sm:$0xff]
  %v63 = vld [vmem:[%s1 + $0xe0] sm:$0xff]
  %v64 = vld [vmem:[%s1 + $0xe8] sm:$0xff]
  %v65 = vld [vmem:[%s1 + $0xf0] sm:$0xff]
  %v66 = vld [vmem:[%s1 + $0xf8] sm:$0xff]
  %v67 = vld [vmem:[%s1 + $0x100] sm:$0xff]
  %v68 = vld [vmem:[%s1 + $0x108] sm:$0xff]
  %v69 = vld [vmem:[%s1 + $0x110] sm:$0xff]
  %v70 = vld [vmem:[%s1 + $0x118] sm:$0xff]
  %v71 = vld [vmem:[%s1 + $0x120] sm:$0xff]
  %v72 = vld [vmem:[%s1 + $0x128] sm:$0xff]
  %v73 = vld [vmem:[%s1 + $0x130] sm:$0xff]
  %v74 = vld [vmem:[%s1 + $0x138] sm:$0xff]
  %v75 = vld [vmem:[%s1 + $0x140] sm:$0xff]
  %v76 = vld [vmem:[%s1 + $0x148] sm:$0xff]
  %v77 = vld [vmem:[%s1 + $0x150] sm:$0xff]
  %v78 = vld [vmem:[%s1 + $0x158] sm:$0xff]
  %v79 = vld [vmem:[%s1 + $0x160] sm:$0xff]
  %v80 = vld [vmem:[%s1 + $0x168] sm:$0xff]
  %v81 = vld [vmem:[%s1 + $0x170] sm:$0xff]
  %v82 = vld [vmem:[%s1 + $0x178] sm:$0xff]
  %v83 = vld [vmem:[%s1 + $0x180] sm:$0xff]
  %v84 = vld [vmem:[%s1 + $0x188] sm:$0xff]
  %v85 = vld [vmem:[%s1 + $0x190] sm:$0xff]
  %v86 = vld [vmem:[%s1 + $0x198] sm:$0xff]
  %v87 = vld [vmem:[%s1 + $0x1a0] sm:$0xff]
  %v88 = vld [vmem:[%s1 + $0x1a8] sm:$0xff]
  %v89 = vld [vmem:[%s1 + $0x1b0] sm:$0xff]
  %v90 = vld [vmem:[%s1 + $0x1b8] sm:$0xff]
  %v91 = vld [vmem:[%s1 + $0x1c0] sm:$0xff]
  %v92 = vld [vmem:[%s1 + $0x1c8] sm:$0xff]
  %v93 = vld [vmem:[%s1 + $0x1d0] sm:$0xff]
  %v94 = vld [vmem:[%s1 + $0x1d8] sm:$0xff]
  %v95 = vld [vmem:[%s1 + $0x1e0] sm:$0xff]
  %v96 = vld [vmem:[%s1 + $0x1e8] sm:$0xff]
  %v97 = vld [vmem:[%s1 + $0x1f0] sm:$0xff]
  %v98 = vld [vmem:[%s1 + $0x1f8] sm:$0xff]
  %v99 = vld [vmem:[%s1 + $0x200] sm:$0xff]
  %v100 = vld [vmem:[%s1 + $0x208] sm:$0xff]
  %v101 = vld [vmem:[%s1 + $0x210] sm:$0xff]
  %v102 = vld [vmem:[%s1 + $0x218] sm:$0xff]
  %v103 = vld [vmem:[%s1 + $0x220] sm:$0xff]
  %v104 = vld [vmem:[%s1 + $0x228] sm:$0xff]
  %v105 = vld [vmem:[%s1 + $0x230] sm:$0xff]
  %v106 = vld [vmem:[%s1 + $0x238] sm:$0xff]
  %v107 = vld [vmem:[%s2] sm:$0xf]
  %v108 = vld [vmem:[%s2 + $0x4] sm:$0x3]
  %v109 = vld [vmem:[%s3] sm:$0xff]
  %v110 = vld [vmem:[%s3 + $0x8] sm:$0xff]
  %v111 = vld [vmem:[%s3 + $0x10] sm:$0xff]
  %v112 = vld [vmem:[%s3 + $0x18] sm:$0xff]
  %v113 = vld [vmem:[%s3 + $0x20] sm:$0xff]
  %v114 = vld [vmem:[%s3 + $0x28] sm:$0xff]
  %v115 = vld [vmem:[%s3 + $0x30] sm:$0xff]
  %v116 = vld [vmem:[%s3 + $0x38] sm:$0xff]
  %v117 = vld [vmem:[%s3 + $0x40] sm:$0xff]
  %v118 = vld [vmem:[%s3 + $0x48] sm:$0xff]
  %v119 = vld [vmem:[%s3 + $0x50] sm:$0xff]
  %v120 = vld [vmem:[%s3 + $0x58] sm:$0xff]
  %v121 = vld [vmem:[%s3 + $0x60] sm:$0xff]
  %v122 = vld [vmem:[%s3 + $0x68] sm:$0xff]
  %v123 = vld [vmem:[%s3 + $0x70] sm:$0xff]
  %v124 = vld [vmem:[%s3 + $0x78] sm:$0xff]
  %v125 = vld [vmem:[%s3 + $0x80] sm:$0xff]
  %v126 = vld [vmem:[%s3 + $0x88] sm:$0xff]
  %v127 = vld [vmem:[%s3 + $0x90] sm:$0xff]
  %v128 = vld [vmem:[%s3 + $0x98] sm:$0xff]
  %v129 = vld [vmem:[%s3 + $0xa0] sm:$0xff]
  %v130 = vld [vmem:[%s3 + $0xa8] sm:$0xff]
  %v131 = vld [vmem:[%s3 + $0xb0] sm:$0xff]
  %v132 = vld [vmem:[%s3 + $0xb8] sm:$0xff]
  %v133 = vld [vmem:[%s3 + $0xc0] sm:$0xff]
  %v134 = vld [vmem:[%s3 + $0xc8] sm:$0xff]
  %v135 = vld [vmem:[%s3 + $0xd0] sm:$0xff]
  %v136 = vld [vmem:[%s3 + $0xd8] sm:$0xff]
  %v137 = vld [vmem:[%s3 + $0xe0] sm:$0xff]
  %v138 = vld [vmem:[%s3 + $0xe8] sm:$0xff]
  %v139 = vld [vmem:[%s3 + $0xf0] sm:$0xff]
  %v140 = vld [vmem:[%s3 + $0xf8] sm:$0xff]
  %v141 = vld [vmem:[%s3 + $0x100] sm:$0xff]
  %v142 = vld [vmem:[%s3 + $0x108] sm:$0xff]
  %v143 = vld [vmem:[%s3 + $0x110] sm:$0xff]
  %v144 = vld [vmem:[%s3 + $0x118] sm:$0xff]
  %v145 = vld [vmem:[%s3 + $0x120] sm:$0xff]
  %v146 = vld [vmem:[%s3 + $0x128] sm:$0xff]
  %v147 = vld [vmem:[%s3 + $0x130] sm:$0xff]
  %v148 = vld [vmem:[%s3 + $0x138] sm:$0xff]
  %v149 = vld [vmem:[%s3 + $0x140] sm:$0xff]
  %v150 = vld [vmem:[%s3 + $0x148] sm:$0xff]
  %v151 = vld [vmem:[%s3 + $0x150] sm:$0xff]
  %v152 = vld [vmem:[%s3 + $0x158] sm:$0xff]
  %v153 = vld [vmem:[%s3 + $0x160] sm:$0xff]
  %v154 = vld [vmem:[%s3 + $0x168] sm:$0xff]
  %v155 = vld [vmem:[%s3 + $0x170] sm:$0xff]
  %v156 = vld [vmem:[%s3 + $0x178] sm:$0xff]
  %v157 = vld [vmem:[%s3 + $0x180] sm:$0xff]
  %v158 = vld [vmem:[%s3 + $0x188] sm:$0xff]
  %v159 = vld [vmem:[%s3 + $0x190] sm:$0xff]
  %v160 = vld [vmem:[%s3 + $0x198] sm:$0xff]
  %v161 = vld [vmem:[%s3 + $0x1a0] sm:$0xff]
  %v162 = vld [vmem:[%s3 + $0x1a8] sm:$0xff]
  %v163 = vld [vmem:[%s3 + $0x1b0] sm:$0xff]
  %v164 = vld [vmem:[%s3 + $0x1b8] sm:$0xff]
  %v165 = vld [vmem:[%s3 + $0x1c0] sm:$0xff]
  %v166 = vld [vmem:[%s3 + $0x1c8] sm:$0xff]
  %v167 = vld [vmem:[%s3 + $0x1d0] sm:$0xff]
  %v168 = vld [vmem:[%s3 + $0x1d8] sm:$0xff]
  %v169 = vld [vmem:[%s3 + $0x1e0] sm:$0xff]
  %v170 = vld [vmem:[%s3 + $0x1e8] sm:$0xff]
  %v171 = vld [vmem:[%s3 + $0x1f0] sm:$0xff]
  %v172 = vld [vmem:[%s3 + $0x1f8] sm:$0xff]
  %v173 = vld [vmem:[%s3 + $0x200] sm:$0xff]
  %v174 = vld [vmem:[%s3 + $0x208] sm:$0xff]
  %v175 = vld [vmem:[%s3 + $0x210] sm:$0xff]
  %v176 = vld [vmem:[%s3 + $0x218] sm:$0xff]
  %v177 = vld [vmem:[%s3 + $0x220] sm:$0xff]
  %v178 = vld [vmem:[%s3 + $0x228] sm:$0xff]
  %v179 = vld [vmem:[%s3 + $0x230] sm:$0xff]
  %v180 = vld [vmem:[%s3 + $0x238] sm:$0xff]
  %v183 = vunpack.c.l.b16 %v107
  %v184 = vunpack.c.l.b16 %v108
  %v185 = vpack.c.b16 %v184, %v183
  %v258 = vunpack.c.l.b16 %v109
  %v259 = vunpack.c.h.b16 %v109
  %v260 = vunpack.c.l.b16 %v110
  %v261 = vunpack.c.h.b16 %v110
  %v262 = vunpack.c.l.b16 %v111
  %v263 = vunpack.c.h.b16 %v111
  %v264 = vunpack.c.l.b16 %v112
  %v265 = vunpack.c.h.b16 %v112
  %v266 = vunpack.c.l.b16 %v113
  %v267 = vunpack.c.h.b16 %v113
  %v268 = vunpack.c.l.b16 %v114
  %v269 = vunpack.c.h.b16 %v114
  %v270 = vunpack.c.l.b16 %v115
  %v271 = vunpack.c.h.b16 %v115
  %v272 = vunpack.c.l.b16 %v116
  %v273 = vunpack.c.h.b16 %v116
  %v274 = vunpack.c.l.b16 %v117
  %v275 = vunpack.c.h.b16 %v117
  %v276 = vunpack.c.l.b16 %v118
  %v277 = vunpack.c.h.b16 %v118
  %v278 = vunpack.c.l.b16 %v119
  %v279 = vunpack.c.h.b16 %v119
  %v280 = vunpack.c.l.b16 %v120
  %v281 = vunpack.c.h.b16 %v120
  %v282 = vunpack.c.l.b16 %v121
  %v283 = vunpack.c.h.b16 %v121
  %v284 = vunpack.c.l.b16 %v122
  %v285 = vunpack.c.h.b16 %v122
  %v286 = vunpack.c.l.b16 %v123
  %v287 = vunpack.c.h.b16 %v123
  %v288 = vunpack.c.l.b16 %v124
  %v289 = vunpack.c.h.b16 %v124
  %v290 = vunpack.c.l.b16 %v125
  %v291 = vunpack.c.h.b16 %v125
  %v292 = vunpack.c.l.b16 %v126
  %v293 = vunpack.c.h.b16 %v126
  %v294 = vunpack.c.l.b16 %v127
  %v295 = vunpack.c.h.b16 %v127
  %v296 = vunpack.c.l.b16 %v128
  %v297 = vunpack.c.h.b16 %v128
  %v298 = vunpack.c.l.b16 %v129
  %v299 = vunpack.c.h.b16 %v129
  %v300 = vunpack.c.l.b16 %v130
  %v301 = vunpack.c.h.b16 %v130
  %v302 = vunpack.c.l.b16 %v131
  %v303 = vunpack.c.h.b16 %v131
  %v304 = vunpack.c.l.b16 %v132
  %v305 = vunpack.c.h.b16 %v132
  %v306 = vunpack.c.l.b16 %v133
  %v307 = vunpack.c.h.b16 %v133
  %v308 = vunpack.c.l.b16 %v134
  %v309 = vunpack.c.h.b16 %v134
  %v310 = vunpack.c.l.b16 %v135
  %v311 = vunpack.c.h.b16 %v135
  %v312 = vunpack.c.l.b16 %v136
  %v313 = vunpack.c.h.b16 %v136
  %v314 = vunpack.c.l.b16 %v137
  %v315 = vunpack.c.h.b16 %v137
  %v316 = vunpack.c.l.b16 %v138
  %v317 = vunpack.c.h.b16 %v138
  %v318 = vunpack.c.l.b16 %v139
  %v319 = vunpack.c.h.b16 %v139
  %v320 = vunpack.c.l.b16 %v140
  %v321 = vunpack.c.h.b16 %v140
  %v322 = vunpack.c.l.b16 %v141
  %v323 = vunpack.c.h.b16 %v141
  %v324 = vunpack.c.l.b16 %v142
  %v325 = vunpack.c.h.b16 %v142
  %v326 = vunpack.c.l.b16 %v143
  %v327 = vunpack.c.h.b16 %v143
  %v328 = vunpack.c.l.b16 %v144
  %v329 = vunpack.c.h.b16 %v144
  %v330 = vunpack.c.l.b16 %v145
  %v331 = vunpack.c.h.b16 %v145
  %v332 = vunpack.c.l.b16 %v146
  %v333 = vunpack.c.h.b16 %v146
  %v334 = vunpack.c.l.b16 %v147
  %v335 = vunpack.c.h.b16 %v147
  %v336 = vunpack.c.l.b16 %v148
  %v337 = vunpack.c.h.b16 %v148
  %v338 = vunpack.c.l.b16 %v149
  %v339 = vunpack.c.h.b16 %v149
  %v340 = vunpack.c.l.b16 %v150
  %v341 = vunpack.c.h.b16 %v150
  %v342 = vunpack.c.l.b16 %v151
  %v343 = vunpack.c.h.b16 %v151
  %v344 = vunpack.c.l.b16 %v152
  %v345 = vunpack.c.h.b16 %v152
  %v346 = vunpack.c.l.b16 %v153
  %v347 = vunpack.c.h.b16 %v153
  %v348 = vunpack.c.l.b16 %v154
  %v349 = vunpack.c.h.b16 %v154
  %v350 = vunpack.c.l.b16 %v155
  %v351 = vunpack.c.h.b16 %v155
  %v352 = vunpack.c.l.b16 %v156
  %v353 = vunpack.c.h.b16 %v156
  %v354 = vunpack.c.l.b16 %v157
  %v355 = vunpack.c.h.b16 %v157
  %v356 = vunpack.c.l.b16 %v158
  %v357 = vunpack.c.h.b16 %v158
  %v358 = vunpack.c.l.b16 %v159
  %v359 = vunpack.c.h.b16 %v159
  %v360 = vunpack.c.l.b16 %v160
  %v361 = vunpack.c.h.b16 %v160
  %v362 = vunpack.c.l.b16 %v161
  %v363 = vunpack.c.h.b16 %v161
  %v364 = vunpack.c.l.b16 %v162
  %v365 = vunpack.c.h.b16 %v162
  %v366 = vunpack.c.l.b16 %v163
  %v367 = vunpack.c.h.b16 %v163
  %v368 = vunpack.c.l.b16 %v164
  %v369 = vunpack.c.h.b16 %v164
  %v370 = vunpack.c.l.b16 %v165
  %v371 = vunpack.c.h.b16 %v165
  %v372 = vunpack.c.l.b16 %v166
  %v373 = vunpack.c.h.b16 %v166
  %v374 = vunpack.c.l.b16 %v167
  %v375 = vunpack.c.h.b16 %v167
  %v376 = vunpack.c.l.b16 %v168
  %v377 = vunpack.c.h.b16 %v168
  %v378 = vunpack.c.l.b16 %v169
  %v379 = vunpack.c.h.b16 %v169
  %v380 = vunpack.c.l.b16 %v170
  %v381 = vunpack.c.h.b16 %v170
  %v382 = vunpack.c.l.b16 %v171
  %v383 = vunpack.c.h.b16 %v171
  %v384 = vunpack.c.l.b16 %v172
  %v385 = vunpack.c.h.b16 %v172
  %v386 = vunpack.c.l.b16 %v173
  %v387 = vunpack.c.h.b16 %v173
  %v388 = vunpack.c.l.b16 %v174
  %v389 = vunpack.c.h.b16 %v174
  %v390 = vunpack.c.l.b16 %v175
  %v391 = vunpack.c.h.b16 %v175
  %v392 = vunpack.c.l.b16 %v176
  %v393 = vunpack.c.h.b16 %v176
  %v394 = vunpack.c.l.b16 %v177
  %v395 = vunpack.c.h.b16 %v177
  %v396 = vunpack.c.l.b16 %v178
  %v397 = vunpack.c.h.b16 %v178
  %v398 = vunpack.c.l.b16 %v179
  %v399 = vunpack.c.h.b16 %v179
  %v400 = vunpack.c.l.b16 %v180
  %v401 = vunpack.c.h.b16 %v180
  %v402 = vpack.c.b16 %v274, %v258
  %v403 = vpack.c.b16 %v275, %v259
  %v404 = vpack.c.b16 %v276, %v260
  %v405 = vpack.c.b16 %v277, %v261
  %v406 = vpack.c.b16 %v278, %v262
  %v407 = vpack.c.b16 %v279, %v263
  %v408 = vpack.c.b16 %v280, %v264
  %v409 = vpack.c.b16 %v281, %v265
  %v410 = vpack.c.b16 %v282, %v266
  %v411 = vpack.c.b16 %v283, %v267
  %v412 = vpack.c.b16 %v284, %v268
  %v413 = vpack.c.b16 %v285, %v269
  %v414 = vpack.c.b16 %v286, %v270
  %v415 = vpack.c.b16 %v287, %v271
  %v416 = vpack.c.b16 %v288, %v272
  %v417 = vpack.c.b16 %v289, %v273
  %v418 = vpack.c.b16 %v306, %v290
  %v419 = vpack.c.b16 %v307, %v291
  %v420 = vpack.c.b16 %v308, %v292
  %v421 = vpack.c.b16 %v309, %v293
  %v422 = vpack.c.b16 %v310, %v294
  %v423 = vpack.c.b16 %v311, %v295
  %v424 = vpack.c.b16 %v312, %v296
  %v425 = vpack.c.b16 %v313, %v297
  %v426 = vpack.c.b16 %v314, %v298
  %v427 = vpack.c.b16 %v315, %v299
  %v428 = vpack.c.b16 %v316, %v300
  %v429 = vpack.c.b16 %v317, %v301
  %v430 = vpack.c.b16 %v318, %v302
  %v431 = vpack.c.b16 %v319, %v303
  %v432 = vpack.c.b16 %v320, %v304
  %v433 = vpack.c.b16 %v321, %v305
  %v434 = vpack.c.b16 %v338, %v322
  %v435 = vpack.c.b16 %v339, %v323
  %v436 = vpack.c.b16 %v340, %v324
  %v437 = vpack.c.b16 %v341, %v325
  %v438 = vpack.c.b16 %v342, %v326
  %v439 = vpack.c.b16 %v343, %v327
  %v440 = vpack.c.b16 %v344, %v328
  %v441 = vpack.c.b16 %v345, %v329
  %v442 = vpack.c.b16 %v346, %v330
  %v443 = vpack.c.b16 %v347, %v331
  %v444 = vpack.c.b16 %v348, %v332
  %v445 = vpack.c.b16 %v349, %v333
  %v446 = vpack.c.b16 %v350, %v334
  %v447 = vpack.c.b16 %v351, %v335
  %v448 = vpack.c.b16 %v352, %v336
  %v449 = vpack.c.b16 %v353, %v337
  %v450 = vpack.c.b16 %v370, %v354
  %v451 = vpack.c.b16 %v371, %v355
  %v452 = vpack.c.b16 %v372, %v356
  %v453 = vpack.c.b16 %v373, %v357
  %v454 = vpack.c.b16 %v374, %v358
  %v455 = vpack.c.b16 %v375, %v359
  %v456 = vpack.c.b16 %v376, %v360
  %v457 = vpack.c.b16 %v377, %v361
  %v458 = vpack.c.b16 %v378, %v362
  %v459 = vpack.c.b16 %v379, %v363
  %v460 = vpack.c.b16 %v380, %v364
  %v461 = vpack.c.b16 %v381, %v365
  %v462 = vpack.c.b16 %v382, %v366
  %v463 = vpack.c.b16 %v383, %v367
  %v464 = vpack.c.b16 %v384, %v368
  %v465 = vpack.c.b16 %v385, %v369
  %v466 = vpack.c.b16 %v386, %v386
  %v467 = vpack.c.b16 %v387, %v387
  %v468 = vpack.c.b16 %v388, %v388
  %v469 = vpack.c.b16 %v389, %v389
  %v470 = vpack.c.b16 %v390, %v390
  %v471 = vpack.c.b16 %v391, %v391
  %v472 = vpack.c.b16 %v392, %v392
  %v473 = vpack.c.b16 %v393, %v393
  %v474 = vpack.c.b16 %v394, %v394
  %v475 = vpack.c.b16 %v395, %v395
  %v476 = vpack.c.b16 %v396, %v396
  %v477 = vpack.c.b16 %v397, %v397
  %v478 = vpack.c.b16 %v398, %v398
  %v479 = vpack.c.b16 %v399, %v399
  %v480 = vpack.c.b16 %v400, %v400
  %v481 = vpack.c.b16 %v401, %v401
  %vm546 = vcmask 588800
  %v548 = vsel %vm546, %v185, 0
  %vm550 = vcmask 1043456
  %v552 = vsel %vm550, %v466, 0
  %v555 = vsel %vm550, %v467, 0
  %v558 = vsel %vm550, %v468, 0
  %v561 = vsel %vm550, %v469, 0
  %v564 = vsel %vm550, %v470, 0
  %v567 = vsel %vm550, %v471, 0
  %v570 = vsel %vm550, %v472, 0
  %v573 = vsel %vm550, %v473, 0
  %v576 = vsel %vm550, %v474, 0
  %v579 = vsel %vm550, %v475, 0
  %v582 = vsel %vm550, %v476, 0
  %v585 = vsel %vm550, %v477, 0
  %v588 = vsel %vm550, %v478, 0
  %v591 = vsel %vm550, %v479, 0
  %v594 = vsel %vm550, %v480, 0
  %v597 = vsel %vm550, %v481, 0
  %599 = vmatprep.subr.bf16.mxu0 0
  %600 = vmatpush1.bf16.msra.mxu0 0
  %601 = vmatprep.subr.bf16.mxu0 0
  %602 = vmatpush1.bf16.msra.mxu0 0
  %603 = vmatprep.subr.bf16.mxu0 0
  %604 = vmatpush1.bf16.msra.mxu0 0
  %605 = vmatprep.subr.bf16.mxu0 %v555
  %606 = vmatpush1.bf16.msra.mxu0 %v552
  %607 = vmatprep.subr.bf16.mxu0 %v451
  %608 = vmatpush1.bf16.msra.mxu0 %v450
  %609 = vmatprep.subr.bf16.mxu0 %v435
  %610 = vmatpush1.bf16.msra.mxu0 %v434
  %611 = vmatprep.subr.bf16.mxu0 %v419
  %612 = vmatpush1.bf16.msra.mxu0 %v418
  %613 = vmatprep.subr.bf16.mxu0 %v403
  %614 = vmatpush1.bf16.msra.mxu0 %v402
  %615 = vmatprep.subr.bf16.mxu0 0
  %616 = vmatpush2.bf16.msra.mxu0 0
  %617 = vmatprep.subr.bf16.mxu0 0
  %618 = vmatpush2.bf16.msra.mxu0 0
  %619 = vmatprep.subr.bf16.mxu0 0
  %620 = vmatpush2.bf16.msra.mxu0 0
  %621 = vmatprep.subr.bf16.mxu0 0
  %622 = vmatpush2.bf16.msra.mxu0 0
  %623 = vmatprep.subr.bf16.mxu0 0
  %624 = vmatpush2.bf16.msra.mxu0 0
  %625 = vmatprep.subr.bf16.mxu0 0
  %626 = vmatpush2.bf16.msra.mxu0 0
  %627 = vmatprep.subr.bf16.mxu0 0
  %628 = vmatpush2.bf16.msra.mxu0 0
  %629 = vmatprep.subr.bf16.mxu0 0
  %630 = vmatpush2.bf16.msra.mxu0 0
  %631 = vmatprep.mubr.bf16.mxu0 0
  %632 = vmatmul.mubr.bf16.gmra.mxu0 %v548
  %v633 = vpop.f32.mrf.mxu0
  %v634 = vadd.f32 0.0, %v633
  %v635 = vpop.f32.mrf.mxu0
  %v636 = vadd.f32 0.0, %v635
  %v637 = vpop.f32.mrf.mxu0
  %v638 = vadd.f32 0.0, %v637
  %v639 = vpop.f32.mrf.mxu0
  %v640 = vadd.f32 0.0, %v639
  %641 = vdwg.mxu0
  %642 = vmatprep.subr.bf16.mxu0 0
  %643 = vmatpush1.bf16.msra.mxu0 0
  %644 = vmatprep.subr.bf16.mxu0 0
  %645 = vmatpush1.bf16.msra.mxu0 0
  %646 = vmatprep.subr.bf16.mxu0 0
  %647 = vmatpush1.bf16.msra.mxu0 0
  %648 = vmatprep.subr.bf16.mxu0 %v561
  %649 = vmatpush1.bf16.msra.mxu0 %v558
  %650 = vmatprep.subr.bf16.mxu0 %v453
  %651 = vmatpush1.bf16.msra.mxu0 %v452
  %652 = vmatprep.subr.bf16.mxu0 %v437
  %653 = vmatpush1.bf16.msra.mxu0 %v436
  %654 = vmatprep.subr.bf16.mxu0 %v421
  %655 = vmatpush1.bf16.msra.mxu0 %v420
  %656 = vmatprep.subr.bf16.mxu0 %v405
  %657 = vmatpush1.bf16.msra.mxu0 %v404
  %658 = vmatprep.subr.bf16.mxu0 0
  %659 = vmatpush2.bf16.msra.mxu0 0
  %660 = vmatprep.subr.bf16.mxu0 0
  %661 = vmatpush2.bf16.msra.mxu0 0
  %662 = vmatprep.subr.bf16.mxu0 0
  %663 = vmatpush2.bf16.msra.mxu0 0
  %664 = vmatprep.subr.bf16.mxu0 0
  %665 = vmatpush2.bf16.msra.mxu0 0
  %666 = vmatprep.subr.bf16.mxu0 0
  %667 = vmatpush2.bf16.msra.mxu0 0
  %668 = vmatprep.subr.bf16.mxu0 0
  %669 = vmatpush2.bf16.msra.mxu0 0
  %670 = vmatprep.subr.bf16.mxu0 0
  %671 = vmatpush2.bf16.msra.mxu0 0
  %672 = vmatprep.subr.bf16.mxu0 0
  %673 = vmatpush2.bf16.msra.mxu0 0
  %674 = vmatprep.mubr.bf16.mxu0 0
  %675 = vmatmul.mubr.bf16.gmra.mxu0 %v548
  %v676 = vpop.f32.mrf.mxu0
  %v677 = vadd.f32 0.0, %v676
  %v678 = vpop.f32.mrf.mxu0
  %v679 = vadd.f32 0.0, %v678
  %v680 = vpop.f32.mrf.mxu0
  %v681 = vadd.f32 0.0, %v680
  %v682 = vpop.f32.mrf.mxu0
  %v683 = vadd.f32 0.0, %v682
  %684 = vdwg.mxu0
  %685 = vmatprep.subr.bf16.mxu0 0
  %686 = vmatpush1.bf16.msra.mxu0 0
  %687 = vmatprep.subr.bf16.mxu0 0
  %688 = vmatpush1.bf16.msra.mxu0 0
  %689 = vmatprep.subr.bf16.mxu0 0
  %690 = vmatpush1.bf16.msra.mxu0 0
  %691 = vmatprep.subr.bf16.mxu0 %v567
  %692 = vmatpush1.bf16.msra.mxu0 %v564
  %693 = vmatprep.subr.bf16.mxu0 %v455
  %694 = vmatpush1.bf16.msra.mxu0 %v454
  %695 = vmatprep.subr.bf16.mxu0 %v439
  %696 = vmatpush1.bf16.msra.mxu0 %v438
  %697 = vmatprep.subr.bf16.mxu0 %v423
  %698 = vmatpush1.bf16.msra.mxu0 %v422
  %699 = vmatprep.subr.bf16.mxu0 %v407
  %700 = vmatpush1.bf16.msra.mxu0 %v406
  %701 = vmatprep.subr.bf16.mxu0 0
  %702 = vmatpush2.bf16.msra.mxu0 0
  %703 = vmatprep.subr.bf16.mxu0 0
  %704 = vmatpush2.bf16.msra.mxu0 0
  %705 = vmatprep.subr.bf16.mxu0 0
  %706 = vmatpush2.bf16.msra.mxu0 0
  %707 = vmatprep.subr.bf16.mxu0 0
  %708 = vmatpush2.bf16.msra.mxu0 0
  %709 = vmatprep.subr.bf16.mxu0 0
  %710 = vmatpush2.bf16.msra.mxu0 0
  %711 = vmatprep.subr.bf16.mxu0 0
  %712 = vmatpush2.bf16.msra.mxu0 0
  %713 = vmatprep.subr.bf16.mxu0 0
  %714 = vmatpush2.bf16.msra.mxu0 0
  %715 = vmatprep.subr.bf16.mxu0 0
  %716 = vmatpush2.bf16.msra.mxu0 0
  %717 = vmatprep.mubr.bf16.mxu0 0
  %718 = vmatmul.mubr.bf16.gmra.mxu0 %v548
  %v719 = vpop.f32.mrf.mxu0
  %v720 = vadd.f32 0.0, %v719
  %v721 = vpop.f32.mrf.mxu0
  %v722 = vadd.f32 0.0, %v721
  %v723 = vpop.f32.mrf.mxu0
  %v724 = vadd.f32 0.0, %v723
  %v725 = vpop.f32.mrf.mxu0
  %v726 = vadd.f32 0.0, %v725
  %727 = vdwg.mxu0
  %728 = vmatprep.subr.bf16.mxu0 0
  %729 = vmatpush1.bf16.msra.mxu0 0
  %730 = vmatprep.subr.bf16.mxu0 0
  %731 = vmatpush1.bf16.msra.mxu0 0
  %732 = vmatprep.subr.bf16.mxu0 0
  %733 = vmatpush1.bf16.msra.mxu0 0
  %734 = vmatprep.subr.bf16.mxu0 %v573
  %735 = vmatpush1.bf16.msra.mxu0 %v570
  %736 = vmatprep.subr.bf16.mxu0 %v457
  %737 = vmatpush1.bf16.msra.mxu0 %v456
  %738 = vmatprep.subr.bf16.mxu0 %v441
  %739 = vmatpush1.bf16.msra.mxu0 %v440
  %740 = vmatprep.subr.bf16.mxu0 %v425
  %741 = vmatpush1.bf16.msra.mxu0 %v424
  %742 = vmatprep.subr.bf16.mxu0 %v409
  %743 = vmatpush1.bf16.msra.mxu0 %v408
  %744 = vmatprep.subr.bf16.mxu0 0
  %745 = vmatpush2.bf16.msra.mxu0 0
  %746 = vmatprep.subr.bf16.mxu0 0
  %747 = vmatpush2.bf16.msra.mxu0 0
  %748 = vmatprep.subr.bf16.mxu0 0
  %749 = vmatpush2.bf16.msra.mxu0 0
  %750 = vmatprep.subr.bf16.mxu0 0
  %751 = vmatpush2.bf16.msra.mxu0 0
  %752 = vmatprep.subr.bf16.mxu0 0
  %753 = vmatpush2.bf16.msra.mxu0 0
  %754 = vmatprep.subr.bf16.mxu0 0
  %755 = vmatpush2.bf16.msra.mxu0 0
  %756 = vmatprep.subr.bf16.mxu0 0
  %757 = vmatpush2.bf16.msra.mxu0 0
  %758 = vmatprep.subr.bf16.mxu0 0
  %759 = vmatpush2.bf16.msra.mxu0 0
  %760 = vmatprep.mubr.bf16.mxu0 0
  %761 = vmatmul.mubr.bf16.gmra.mxu0 %v548
  %v762 = vpop.f32.mrf.mxu0
  %v763 = vadd.f32 0.0, %v762
  %v764 = vpop.f32.mrf.mxu0
  %v765 = vadd.f32 0.0, %v764
  %v766 = vpop.f32.mrf.mxu0
  %v767 = vadd.f32 0.0, %v766
  %v768 = vpop.f32.mrf.mxu0
  %v769 = vadd.f32 0.0, %v768
  %770 = vdwg.mxu0
  %771 = vmatprep.subr.bf16.mxu0 0
  %772 = vmatpush1.bf16.msra.mxu0 0
  %773 = vmatprep.subr.bf16.mxu0 0
  %774 = vmatpush1.bf16.msra.mxu0 0
  %775 = vmatprep.subr.bf16.mxu0 0
  %776 = vmatpush1.bf16.msra.mxu0 0
  %777 = vmatprep.subr.bf16.mxu0 %v579
  %778 = vmatpush1.bf16.msra.mxu0 %v576
  %779 = vmatprep.subr.bf16.mxu0 %v459
  %780 = vmatpush1.bf16.msra.mxu0 %v458
  %781 = vmatprep.subr.bf16.mxu0 %v443
  %782 = vmatpush1.bf16.msra.mxu0 %v442
  %783 = vmatprep.subr.bf16.mxu0 %v427
  %784 = vmatpush1.bf16.msra.mxu0 %v426
  %785 = vmatprep.subr.bf16.mxu0 %v411
  %786 = vmatpush1.bf16.msra.mxu0 %v410
  %787 = vmatprep.subr.bf16.mxu0 0
  %788 = vmatpush2.bf16.msra.mxu0 0
  %789 = vmatprep.subr.bf16.mxu0 0
  %790 = vmatpush2.bf16.msra.mxu0 0
  %791 = vmatprep.subr.bf16.mxu0 0
  %792 = vmatpush2.bf16.msra.mxu0 0
  %793 = vmatprep.subr.bf16.mxu0 0
  %794 = vmatpush2.bf16.msra.mxu0 0
  %795 = vmatprep.subr.bf16.mxu0 0
  %796 = vmatpush2.bf16.msra.mxu0 0
  %797 = vmatprep.subr.bf16.mxu0 0
  %798 = vmatpush2.bf16.msra.mxu0 0
  %799 = vmatprep.subr.bf16.mxu0 0
  %800 = vmatpush2.bf16.msra.mxu0 0
  %801 = vmatprep.subr.bf16.mxu0 0
  %802 = vmatpush2.bf16.msra.mxu0 0
  %803 = vmatprep.mubr.bf16.mxu0 0
  %804 = vmatmul.mubr.bf16.gmra.mxu0 %v548
  %v805 = vpop.f32.mrf.mxu0
  %v806 = vadd.f32 0.0, %v805
  %v807 = vpop.f32.mrf.mxu0
  %v808 = vadd.f32 0.0, %v807
  %v809 = vpop.f32.mrf.mxu0
  %v810 = vadd.f32 0.0, %v809
  %v811 = vpop.f32.mrf.mxu0
  %v812 = vadd.f32 0.0, %v811
  %813 = vdwg.mxu0
  %814 = vmatprep.subr.bf16.mxu0 0
  %815 = vmatpush1.bf16.msra.mxu0 0
  %816 = vmatprep.subr.bf16.mxu0 0
  %817 = vmatpush1.bf16.msra.mxu0 0
  %818 = vmatprep.subr.bf16.mxu0 0
  %819 = vmatpush1.bf16.msra.mxu0 0
  %820 = vmatprep.subr.bf16.mxu0 %v585
  %821 = vmatpush1.bf16.msra.mxu0 %v582
  %822 = vmatprep.subr.bf16.mxu0 %v461
  %823 = vmatpush1.bf16.msra.mxu0 %v460
  %824 = vmatprep.subr.bf16.mxu0 %v445
  %825 = vmatpush1.bf16.msra.mxu0 %v444
  %826 = vmatprep.subr.bf16.mxu0 %v429
  %827 = vmatpush1.bf16.msra.mxu0 %v428
  %828 = vmatprep.subr.bf16.mxu0 %v413
  %829 = vmatpush1.bf16.msra.mxu0 %v412
  %830 = vmatprep.subr.bf16.mxu0 0
  %831 = vmatpush2.bf16.msra.mxu0 0
  %832 = vmatprep.subr.bf16.mxu0 0
  %833 = vmatpush2.bf16.msra.mxu0 0
  %834 = vmatprep.subr.bf16.mxu0 0
  %835 = vmatpush2.bf16.msra.mxu0 0
  %836 = vmatprep.subr.bf16.mxu0 0
  %837 = vmatpush2.bf16.msra.mxu0 0
  %838 = vmatprep.subr.bf16.mxu0 0
  %839 = vmatpush2.bf16.msra.mxu0 0
  %840 = vmatprep.subr.bf16.mxu0 0
  %841 = vmatpush2.bf16.msra.mxu0 0
  %842 = vmatprep.subr.bf16.mxu0 0
  %843 = vmatpush2.bf16.msra.mxu0 0
  %844 = vmatprep.subr.bf16.mxu0 0
  %845 = vmatpush2.bf16.msra.mxu0 0
  %846 = vmatprep.mubr.bf16.mxu0 0
  %847 = vmatmul.mubr.bf16.gmra.mxu0 %v548
  %v848 = vpop.f32.mrf.mxu0
  %v849 = vadd.f32 0.0, %v848
  %v850 = vpop.f32.mrf.mxu0
  %v851 = vadd.f32 0.0, %v850
  %v852 = vpop.f32.mrf.mxu0
  %v853 = vadd.f32 0.0, %v852
  %v854 = vpop.f32.mrf.mxu0
  %v855 = vadd.f32 0.0, %v854
  %856 = vdwg.mxu0
  %857 = vmatprep.subr.bf16.mxu0 0
  %858 = vmatpush1.bf16.msra.mxu0 0
  %859 = vmatprep.subr.bf16.mxu0 0
  %860 = vmatpush1.bf16.msra.mxu0 0
  %861 = vmatprep.subr.bf16.mxu0 0
  %862 = vmatpush1.bf16.msra.mxu0 0
  %863 = vmatprep.subr.bf16.mxu0 %v591
  %864 = vmatpush1.bf16.msra.mxu0 %v588
  %865 = vmatprep.subr.bf16.mxu0 %v463
  %866 = vmatpush1.bf16.msra.mxu0 %v462
  %867 = vmatprep.subr.bf16.mxu0 %v447
  %868 = vmatpush1.bf16.msra.mxu0 %v446
  %869 = vmatprep.subr.bf16.mxu0 %v431
  %870 = vmatpush1.bf16.msra.mxu0 %v430
  %871 = vmatprep.subr.bf16.mxu0 %v415
  %872 = vmatpush1.bf16.msra.mxu0 %v414
  %873 = vmatprep.subr.bf16.mxu0 0
  %874 = vmatpush2.bf16.msra.mxu0 0
  %875 = vmatprep.subr.bf16.mxu0 0
  %876 = vmatpush2.bf16.msra.mxu0 0
  %877 = vmatprep.subr.bf16.mxu0 0
  %878 = vmatpush2.bf16.msra.mxu0 0
  %879 = vmatprep.subr.bf16.mxu0 0
  %880 = vmatpush2.bf16.msra.mxu0 0
  %881 = vmatprep.subr.bf16.mxu0 0
  %882 = vmatpush2.bf16.msra.mxu0 0
  %883 = vmatprep.subr.bf16.mxu0 0
  %884 = vmatpush2.bf16.msra.mxu0 0
  %885 = vmatprep.subr.bf16.mxu0 0
  %886 = vmatpush2.bf16.msra.mxu0 0
  %887 = vmatprep.subr.bf16.mxu0 0
  %888 = vmatpush2.bf16.msra.mxu0 0
  %889 = vmatprep.mubr.bf16.mxu0 0
  %890 = vmatmul.mubr.bf16.gmra.mxu0 %v548
  %v891 = vpop.f32.mrf.mxu0
  %v892 = vadd.f32 0.0, %v891
  %v893 = vpop.f32.mrf.mxu0
  %v894 = vadd.f32 0.0, %v893
  %v895 = vpop.f32.mrf.mxu0
  %v896 = vadd.f32 0.0, %v895
  %v897 = vpop.f32.mrf.mxu0
  %v898 = vadd.f32 0.0, %v897
  %899 = vdwg.mxu0
  %900 = vmatprep.subr.bf16.mxu0 0
  %901 = vmatpush1.bf16.msra.mxu0 0
  %902 = vmatprep.subr.bf16.mxu0 0
  %903 = vmatpush1.bf16.msra.mxu0 0
  %904 = vmatprep.subr.bf16.mxu0 0
  %905 = vmatpush1.bf16.msra.mxu0 0
  %906 = vmatprep.subr.bf16.mxu0 %v597
  %907 = vmatpush1.bf16.msra.mxu0 %v594
  %908 = vmatprep.subr.bf16.mxu0 %v465
  %909 = vmatpush1.bf16.msra.mxu0 %v464
  %910 = vmatprep.subr.bf16.mxu0 %v449
  %911 = vmatpush1.bf16.msra.mxu0 %v448
  %912 = vmatprep.subr.bf16.mxu0 %v433
  %913 = vmatpush1.bf16.msra.mxu0 %v432
  %914 = vmatprep.subr.bf16.mxu0 %v417
  %915 = vmatpush1.bf16.msra.mxu0 %v416
  %916 = vmatprep.subr.bf16.mxu0 0
  %917 = vmatpush2.bf16.msra.mxu0 0
  %918 = vmatprep.subr.bf16.mxu0 0
  %919 = vmatpush2.bf16.msra.mxu0 0
  %920 = vmatprep.subr.bf16.mxu0 0
  %921 = vmatpush2.bf16.msra.mxu0 0
  %922 = vmatprep.subr.bf16.mxu0 0
  %923 = vmatpush2.bf16.msra.mxu0 0
  %924 = vmatprep.subr.bf16.mxu0 0
  %925 = vmatpush2.bf16.msra.mxu0 0
  %926 = vmatprep.subr.bf16.mxu0 0
  %927 = vmatpush2.bf16.msra.mxu0 0
  %928 = vmatprep.subr.bf16.mxu0 0
  %929 = vmatpush2.bf16.msra.mxu0 0
  %930 = vmatprep.subr.bf16.mxu0 0
  %931 = vmatpush2.bf16.msra.mxu0 0
  %932 = vmatprep.mubr.bf16.mxu0 0
  %933 = vmatmul.mubr.bf16.gmra.mxu0 %v548
  %v934 = vpop.f32.mrf.mxu0
  %v935 = vadd.f32 0.0, %v934
  %v936 = vpop.f32.mrf.mxu0
  %v937 = vadd.f32 0.0, %v936
  %v938 = vpop.f32.mrf.mxu0
  %v939 = vadd.f32 0.0, %v938
  %v940 = vpop.f32.mrf.mxu0
  %v941 = vadd.f32 0.0, %v940
  %942 = vdwg.mxu0
  %v945 = vunpack.c.l.b16 %v33
  %v946 = vunpack.c.l.b16 %v34
  %v947 = vpack.c.b16 %v946, %v945
  %v1020 = vunpack.c.l.b16 %v35
  %v1021 = vunpack.c.h.b16 %v35
  %v1022 = vunpack.c.l.b16 %v36
  %v1023 = vunpack.c.h.b16 %v36
  %v1024 = vunpack.c.l.b16 %v37
  %v1025 = vunpack.c.h.b16 %v37
  %v1026 = vunpack.c.l.b16 %v38
  %v1027 = vunpack.c.h.b16 %v38
  %v1028 = vunpack.c.l.b16 %v39
  %v1029 = vunpack.c.h.b16 %v39
  %v1030 = vunpack.c.l.b16 %v40
  %v1031 = vunpack.c.h.b16 %v40
  %v1032 = vunpack.c.l.b16 %v41
  %v1033 = vunpack.c.h.b16 %v41
  %v1034 = vunpack.c.l.b16 %v42
  %v1035 = vunpack.c.h.b16 %v42
  %v1036 = vunpack.c.l.b16 %v43
  %v1037 = vunpack.c.h.b16 %v43
  %v1038 = vunpack.c.l.b16 %v44
  %v1039 = vunpack.c.h.b16 %v44
  %v1040 = vunpack.c.l.b16 %v45
  %v1041 = vunpack.c.h.b16 %v45
  %v1042 = vunpack.c.l.b16 %v46
  %v1043 = vunpack.c.h.b16 %v46
  %v1044 = vunpack.c.l.b16 %v47
  %v1045 = vunpack.c.h.b16 %v47
  %v1046 = vunpack.c.l.b16 %v48
  %v1047 = vunpack.c.h.b16 %v48
  %v1048 = vunpack.c.l.b16 %v49
  %v1049 = vunpack.c.h.b16 %v49
  %v1050 = vunpack.c.l.b16 %v50
  %v1051 = vunpack.c.h.b16 %v50
  %v1052 = vunpack.c.l.b16 %v51
  %v1053 = vunpack.c.h.b16 %v51
  %v1054 = vunpack.c.l.b16 %v52
  %v1055 = vunpack.c.h.b16 %v52
  %v1056 = vunpack.c.l.b16 %v53
  %v1057 = vunpack.c.h.b16 %v53
  %v1058 = vunpack.c.l.b16 %v54
  %v1059 = vunpack.c.h.b16 %v54
  %v1060 = vunpack.c.l.b16 %v55
  %v1061 = vunpack.c.h.b16 %v55
  %v1062 = vunpack.c.l.b16 %v56
  %v1063 = vunpack.c.h.b16 %v56
  %v1064 = vunpack.c.l.b16 %v57
  %v1065 = vunpack.c.h.b16 %v57
  %v1066 = vunpack.c.l.b16 %v58
  %v1067 = vunpack.c.h.b16 %v58
  %v1068 = vunpack.c.l.b16 %v59
  %v1069 = vunpack.c.h.b16 %v59
  %v1070 = vunpack.c.l.b16 %v60
  %v1071 = vunpack.c.h.b16 %v60
  %v1072 = vunpack.c.l.b16 %v61
  %v1073 = vunpack.c.h.b16 %v61
  %v1074 = vunpack.c.l.b16 %v62
  %v1075 = vunpack.c.h.b16 %v62
  %v1076 = vunpack.c.l.b16 %v63
  %v1077 = vunpack.c.h.b16 %v63
  %v1078 = vunpack.c.l.b16 %v64
  %v1079 = vunpack.c.h.b16 %v64
  %v1080 = vunpack.c.l.b16 %v65
  %v1081 = vunpack.c.h.b16 %v65
  %v1082 = vunpack.c.l.b16 %v66
  %v1083 = vunpack.c.h.b16 %v66
  %v1084 = vunpack.c.l.b16 %v67
  %v1085 = vunpack.c.h.b16 %v67
  %v1086 = vunpack.c.l.b16 %v68
  %v1087 = vunpack.c.h.b16 %v68
  %v1088 = vunpack.c.l.b16 %v69
  %v1089 = vunpack.c.h.b16 %v69
  %v1090 = vunpack.c.l.b16 %v70
  %v1091 = vunpack.c.h.b16 %v70
  %v1092 = vunpack.c.l.b16 %v71
  %v1093 = vunpack.c.h.b16 %v71
  %v1094 = vunpack.c.l.b16 %v72
  %v1095 = vunpack.c.h.b16 %v72
  %v1096 = vunpack.c.l.b16 %v73
  %v1097 = vunpack.c.h.b16 %v73
  %v1098 = vunpack.c.l.b16 %v74
  %v1099 = vunpack.c.h.b16 %v74
  %v1100 = vunpack.c.l.b16 %v75
  %v1101 = vunpack.c.h.b16 %v75
  %v1102 = vunpack.c.l.b16 %v76
  %v1103 = vunpack.c.h.b16 %v76
  %v1104 = vunpack.c.l.b16 %v77
  %v1105 = vunpack.c.h.b16 %v77
  %v1106 = vunpack.c.l.b16 %v78
  %v1107 = vunpack.c.h.b16 %v78
  %v1108 = vunpack.c.l.b16 %v79
  %v1109 = vunpack.c.h.b16 %v79
  %v1110 = vunpack.c.l.b16 %v80
  %v1111 = vunpack.c.h.b16 %v80
  %v1112 = vunpack.c.l.b16 %v81
  %v1113 = vunpack.c.h.b16 %v81
  %v1114 = vunpack.c.l.b16 %v82
  %v1115 = vunpack.c.h.b16 %v82
  %v1116 = vunpack.c.l.b16 %v83
  %v1117 = vunpack.c.h.b16 %v83
  %v1118 = vunpack.c.l.b16 %v84
  %v1119 = vunpack.c.h.b16 %v84
  %v1120 = vunpack.c.l.b16 %v85
  %v1121 = vunpack.c.h.b16 %v85
  %v1122 = vunpack.c.l.b16 %v86
  %v1123 = vunpack.c.h.b16 %v86
  %v1124 = vunpack.c.l.b16 %v87
  %v1125 = vunpack.c.h.b16 %v87
  %v1126 = vunpack.c.l.b16 %v88
  %v1127 = vunpack.c.h.b16 %v88
  %v1128 = vunpack.c.l.b16 %v89
  %v1129 = vunpack.c.h.b16 %v89
  %v1130 = vunpack.c.l.b16 %v90
  %v1131 = vunpack.c.h.b16 %v90
  %v1132 = vunpack.c.l.b16 %v91
  %v1133 = vunpack.c.h.b16 %v91
  %v1134 = vunpack.c.l.b16 %v92
  %v1135 = vunpack.c.h.b16 %v92
  %v1136 = vunpack.c.l.b16 %v93
  %v1137 = vunpack.c.h.b16 %v93
  %v1138 = vunpack.c.l.b16 %v94
  %v1139 = vunpack.c.h.b16 %v94
  %v1140 = vunpack.c.l.b16 %v95
  %v1141 = vunpack.c.h.b16 %v95
  %v1142 = vunpack.c.l.b16 %v96
  %v1143 = vunpack.c.h.b16 %v96
  %v1144 = vunpack.c.l.b16 %v97
  %v1145 = vunpack.c.h.b16 %v97
  %v1146 = vunpack.c.l.b16 %v98
  %v1147 = vunpack.c.h.b16 %v98
  %v1148 = vunpack.c.l.b16 %v99
  %v1149 = vunpack.c.h.b16 %v99
  %v1150 = vunpack.c.l.b16 %v100
  %v1151 = vunpack.c.h.b16 %v100
  %v1152 = vunpack.c.l.b16 %v101
  %v1153 = vunpack.c.h.b16 %v101
  %v1154 = vunpack.c.l.b16 %v102
  %v1155 = vunpack.c.h.b16 %v102
  %v1156 = vunpack.c.l.b16 %v103
  %v1157 = vunpack.c.h.b16 %v103
  %v1158 = vunpack.c.l.b16 %v104
  %v1159 = vunpack.c.h.b16 %v104
  %v1160 = vunpack.c.l.b16 %v105
  %v1161 = vunpack.c.h.b16 %v105
  %v1162 = vunpack.c.l.b16 %v106
  %v1163 = vunpack.c.h.b16 %v106
  %v1164 = vpack.c.b16 %v1036, %v1020
  %v1165 = vpack.c.b16 %v1037, %v1021
  %v1166 = vpack.c.b16 %v1038, %v1022
  %v1167 = vpack.c.b16 %v1039, %v1023
  %v1168 = vpack.c.b16 %v1040, %v1024
  %v1169 = vpack.c.b16 %v1041, %v1025
  %v1170 = vpack.c.b16 %v1042, %v1026
  %v1171 = vpack.c.b16 %v1043, %v1027
  %v1172 = vpack.c.b16 %v1044, %v1028
  %v1173 = vpack.c.b16 %v1045, %v1029
  %v1174 = vpack.c.b16 %v1046, %v1030
  %v1175 = vpack.c.b16 %v1047, %v1031
  %v1176 = vpack.c.b16 %v1048, %v1032
  %v1177 = vpack.c.b16 %v1049, %v1033
  %v1178 = vpack.c.b16 %v1050, %v1034
  %v1179 = vpack.c.b16 %v1051, %v1035
  %v1180 = vpack.c.b16 %v1068, %v1052
  %v1181 = vpack.c.b16 %v1069, %v1053
  %v1182 = vpack.c.b16 %v1070, %v1054
  %v1183 = vpack.c.b16 %v1071, %v1055
  %v1184 = vpack.c.b16 %v1072, %v1056
  %v1185 = vpack.c.b16 %v1073, %v1057
  %v1186 = vpack.c.b16 %v1074, %v1058
  %v1187 = vpack.c.b16 %v1075, %v1059
  %v1188 = vpack.c.b16 %v1076, %v1060
  %v1189 = vpack.c.b16 %v1077, %v1061
  %v1190 = vpack.c.b16 %v1078, %v1062
  %v1191 = vpack.c.b16 %v1079, %v1063
  %v1192 = vpack.c.b16 %v1080, %v1064
  %v1193 = vpack.c.b16 %v1081, %v1065
  %v1194 = vpack.c.b16 %v1082, %v1066
  %v1195 = vpack.c.b16 %v1083, %v1067
  %v1196 = vpack.c.b16 %v1100, %v1084
  %v1197 = vpack.c.b16 %v1101, %v1085
  %v1198 = vpack.c.b16 %v1102, %v1086
  %v1199 = vpack.c.b16 %v1103, %v1087
  %v1200 = vpack.c.b16 %v1104, %v1088
  %v1201 = vpack.c.b16 %v1105, %v1089
  %v1202 = vpack.c.b16 %v1106, %v1090
  %v1203 = vpack.c.b16 %v1107, %v1091
  %v1204 = vpack.c.b16 %v1108, %v1092
  %v1205 = vpack.c.b16 %v1109, %v1093
  %v1206 = vpack.c.b16 %v1110, %v1094
  %v1207 = vpack.c.b16 %v1111, %v1095
  %v1208 = vpack.c.b16 %v1112, %v1096
  %v1209 = vpack.c.b16 %v1113, %v1097
  %v1210 = vpack.c.b16 %v1114, %v1098
  %v1211 = vpack.c.b16 %v1115, %v1099
  %v1212 = vpack.c.b16 %v1132, %v1116
  %v1213 = vpack.c.b16 %v1133, %v1117
  %v1214 = vpack.c.b16 %v1134, %v1118
  %v1215 = vpack.c.b16 %v1135, %v1119
  %v1216 = vpack.c.b16 %v1136, %v1120
  %v1217 = vpack.c.b16 %v1137, %v1121
  %v1218 = vpack.c.b16 %v1138, %v1122
  %v1219 = vpack.c.b16 %v1139, %v1123
  %v1220 = vpack.c.b16 %v1140, %v1124
  %v1221 = vpack.c.b16 %v1141, %v1125
  %v1222 = vpack.c.b16 %v1142, %v1126
  %v1223 = vpack.c.b16 %v1143, %v1127
  %v1224 = vpack.c.b16 %v1144, %v1128
  %v1225 = vpack.c.b16 %v1145, %v1129
  %v1226 = vpack.c.b16 %v1146, %v1130
  %v1227 = vpack.c.b16 %v1147, %v1131
  %v1228 = vpack.c.b16 %v1148, %v1148
  %v1229 = vpack.c.b16 %v1149, %v1149
  %v1230 = vpack.c.b16 %v1150, %v1150
  %v1231 = vpack.c.b16 %v1151, %v1151
  %v1232 = vpack.c.b16 %v1152, %v1152
  %v1233 = vpack.c.b16 %v1153, %v1153
  %v1234 = vpack.c.b16 %v1154, %v1154
  %v1235 = vpack.c.b16 %v1155, %v1155
  %v1236 = vpack.c.b16 %v1156, %v1156
  %v1237 = vpack.c.b16 %v1157, %v1157
  %v1238 = vpack.c.b16 %v1158, %v1158
  %v1239 = vpack.c.b16 %v1159, %v1159
  %v1240 = vpack.c.b16 %v1160, %v1160
  %v1241 = vpack.c.b16 %v1161, %v1161
  %v1242 = vpack.c.b16 %v1162, %v1162
  %v1243 = vpack.c.b16 %v1163, %v1163
  %v1309 = vsel %vm546, %v947, 0
  %v1312 = vsel %vm550, %v1228, 0
  %v1315 = vsel %vm550, %v1229, 0
  %v1318 = vsel %vm550, %v1230, 0
  %v1321 = vsel %vm550, %v1231, 0
  %v1324 = vsel %vm550, %v1232, 0
  %v1327 = vsel %vm550, %v1233, 0
  %v1330 = vsel %vm550, %v1234, 0
  %v1333 = vsel %vm550, %v1235, 0
  %v1336 = vsel %vm550, %v1236, 0
  %v1339 = vsel %vm550, %v1237, 0
  %v1342 = vsel %vm550, %v1238, 0
  %v1345 = vsel %vm550, %v1239, 0
  %v1348 = vsel %vm550, %v1240, 0
  %v1351 = vsel %vm550, %v1241, 0
  %v1354 = vsel %vm550, %v1242, 0
  %v1357 = vsel %vm550, %v1243, 0
  %1359 = vmatprep.subr.bf16.mxu0 0
  %1360 = vmatpush1.bf16.msra.mxu0 0
  %1361 = vmatprep.subr.bf16.mxu0 0
  %1362 = vmatpush1.bf16.msra.mxu0 0
  %1363 = vmatprep.subr.bf16.mxu0 0
  %1364 = vmatpush1.bf16.msra.mxu0 0
  %1365 = vmatprep.subr.bf16.mxu0 %v1315
  %1366 = vmatpush1.bf16.msra.mxu0 %v1312
  %1367 = vmatprep.subr.bf16.mxu0 %v1213
  %1368 = vmatpush1.bf16.msra.mxu0 %v1212
  %1369 = vmatprep.subr.bf16.mxu0 %v1197
  %1370 = vmatpush1.bf16.msra.mxu0 %v1196
  %1371 = vmatprep.subr.bf16.mxu0 %v1181
  %1372 = vmatpush1.bf16.msra.mxu0 %v1180
  %1373 = vmatprep.subr.bf16.mxu0 %v1165
  %1374 = vmatpush1.bf16.msra.mxu0 %v1164
  %1375 = vmatprep.subr.bf16.mxu0 0
  %1376 = vmatpush2.bf16.msra.mxu0 0
  %1377 = vmatprep.subr.bf16.mxu0 0
  %1378 = vmatpush2.bf16.msra.mxu0 0
  %1379 = vmatprep.subr.bf16.mxu0 0
  %1380 = vmatpush2.bf16.msra.mxu0 0
  %1381 = vmatprep.subr.bf16.mxu0 0
  %1382 = vmatpush2.bf16.msra.mxu0 0
  %1383 = vmatprep.subr.bf16.mxu0 0
  %1384 = vmatpush2.bf16.msra.mxu0 0
  %1385 = vmatprep.subr.bf16.mxu0 0
  %1386 = vmatpush2.bf16.msra.mxu0 0
  %1387 = vmatprep.subr.bf16.mxu0 0
  %1388 = vmatpush2.bf16.msra.mxu0 0
  %1389 = vmatprep.subr.bf16.mxu0 0
  %1390 = vmatpush2.bf16.msra.mxu0 0
  %1391 = vmatprep.mubr.bf16.mxu0 0
  %1392 = vmatmul.mubr.bf16.gmra.mxu0 %v1309
  %v1393 = vpop.f32.mrf.mxu0
  %v1394 = vadd.f32 %v634, %v1393
  %v1395 = vpop.f32.mrf.mxu0
  %v1396 = vadd.f32 %v636, %v1395
  %v1397 = vpop.f32.mrf.mxu0
  %v1398 = vadd.f32 %v638, %v1397
  %v1399 = vpop.f32.mrf.mxu0
  %v1400 = vadd.f32 %v640, %v1399
  %1401 = vdwg.mxu0
  %1402 = vmatprep.subr.bf16.mxu0 0
  %1403 = vmatpush1.bf16.msra.mxu0 0
  %1404 = vmatprep.subr.bf16.mxu0 0
  %1405 = vmatpush1.bf16.msra.mxu0 0
  %1406 = vmatprep.subr.bf16.mxu0 0
  %1407 = vmatpush1.bf16.msra.mxu0 0
  %1408 = vmatprep.subr.bf16.mxu0 %v1321
  %1409 = vmatpush1.bf16.msra.mxu0 %v1318
  %1410 = vmatprep.subr.bf16.mxu0 %v1215
  %1411 = vmatpush1.bf16.msra.mxu0 %v1214
  %1412 = vmatprep.subr.bf16.mxu0 %v1199
  %1413 = vmatpush1.bf16.msra.mxu0 %v1198
  %1414 = vmatprep.subr.bf16.mxu0 %v1183
  %1415 = vmatpush1.bf16.msra.mxu0 %v1182
  %1416 = vmatprep.subr.bf16.mxu0 %v1167
  %1417 = vmatpush1.bf16.msra.mxu0 %v1166
  %1418 = vmatprep.subr.bf16.mxu0 0
  %1419 = vmatpush2.bf16.msra.mxu0 0
  %1420 = vmatprep.subr.bf16.mxu0 0
  %1421 = vmatpush2.bf16.msra.mxu0 0
  %1422 = vmatprep.subr.bf16.mxu0 0
  %1423 = vmatpush2.bf16.msra.mxu0 0
  %1424 = vmatprep.subr.bf16.mxu0 0
  %1425 = vmatpush2.bf16.msra.mxu0 0
  %1426 = vmatprep.subr.bf16.mxu0 0
  %1427 = vmatpush2.bf16.msra.mxu0 0
  %1428 = vmatprep.subr.bf16.mxu0 0
  %1429 = vmatpush2.bf16.msra.mxu0 0
  %1430 = vmatprep.subr.bf16.mxu0 0
  %1431 = vmatpush2.bf16.msra.mxu0 0
  %1432 = vmatprep.subr.bf16.mxu0 0
  %1433 = vmatpush2.bf16.msra.mxu0 0
  %1434 = vmatprep.mubr.bf16.mxu0 0
  %1435 = vmatmul.mubr.bf16.gmra.mxu0 %v1309
  %v1436 = vpop.f32.mrf.mxu0
  %v1437 = vadd.f32 %v677, %v1436
  %v1438 = vpop.f32.mrf.mxu0
  %v1439 = vadd.f32 %v679, %v1438
  %v1440 = vpop.f32.mrf.mxu0
  %v1441 = vadd.f32 %v681, %v1440
  %v1442 = vpop.f32.mrf.mxu0
  %v1443 = vadd.f32 %v683, %v1442
  %1444 = vdwg.mxu0
  %1445 = vmatprep.subr.bf16.mxu0 0
  %1446 = vmatpush1.bf16.msra.mxu0 0
  %1447 = vmatprep.subr.bf16.mxu0 0
  %1448 = vmatpush1.bf16.msra.mxu0 0
  %1449 = vmatprep.subr.bf16.mxu0 0
  %1450 = vmatpush1.bf16.msra.mxu0 0
  %1451 = vmatprep.subr.bf16.mxu0 %v1327
  %1452 = vmatpush1.bf16.msra.mxu0 %v1324
  %1453 = vmatprep.subr.bf16.mxu0 %v1217
  %1454 = vmatpush1.bf16.msra.mxu0 %v1216
  %1455 = vmatprep.subr.bf16.mxu0 %v1201
  %1456 = vmatpush1.bf16.msra.mxu0 %v1200
  %1457 = vmatprep.subr.bf16.mxu0 %v1185
  %1458 = vmatpush1.bf16.msra.mxu0 %v1184
  %1459 = vmatprep.subr.bf16.mxu0 %v1169
  %1460 = vmatpush1.bf16.msra.mxu0 %v1168
  %1461 = vmatprep.subr.bf16.mxu0 0
  %1462 = vmatpush2.bf16.msra.mxu0 0
  %1463 = vmatprep.subr.bf16.mxu0 0
  %1464 = vmatpush2.bf16.msra.mxu0 0
  %1465 = vmatprep.subr.bf16.mxu0 0
  %1466 = vmatpush2.bf16.msra.mxu0 0
  %1467 = vmatprep.subr.bf16.mxu0 0
  %1468 = vmatpush2.bf16.msra.mxu0 0
  %1469 = vmatprep.subr.bf16.mxu0 0
  %1470 = vmatpush2.bf16.msra.mxu0 0
  %1471 = vmatprep.subr.bf16.mxu0 0
  %1472 = vmatpush2.bf16.msra.mxu0 0
  %1473 = vmatprep.subr.bf16.mxu0 0
  %1474 = vmatpush2.bf16.msra.mxu0 0
  %1475 = vmatprep.subr.bf16.mxu0 0
  %1476 = vmatpush2.bf16.msra.mxu0 0
  %1477 = vmatprep.mubr.bf16.mxu0 0
  %1478 = vmatmul.mubr.bf16.gmra.mxu0 %v1309
  %v1479 = vpop.f32.mrf.mxu0
  %v1480 = vadd.f32 %v720, %v1479
  %v1481 = vpop.f32.mrf.mxu0
  %v1482 = vadd.f32 %v722, %v1481
  %v1483 = vpop.f32.mrf.mxu0
  %v1484 = vadd.f32 %v724, %v1483
  %v1485 = vpop.f32.mrf.mxu0
  %v1486 = vadd.f32 %v726, %v1485
  %1487 = vdwg.mxu0
  %1488 = vmatprep.subr.bf16.mxu0 0
  %1489 = vmatpush1.bf16.msra.mxu0 0
  %1490 = vmatprep.subr.bf16.mxu0 0
  %1491 = vmatpush1.bf16.msra.mxu0 0
  %1492 = vmatprep.subr.bf16.mxu0 0
  %1493 = vmatpush1.bf16.msra.mxu0 0
  %1494 = vmatprep.subr.bf16.mxu0 %v1333
  %1495 = vmatpush1.bf16.msra.mxu0 %v1330
  %1496 = vmatprep.subr.bf16.mxu0 %v1219
  %1497 = vmatpush1.bf16.msra.mxu0 %v1218
  %1498 = vmatprep.subr.bf16.mxu0 %v1203
  %1499 = vmatpush1.bf16.msra.mxu0 %v1202
  %1500 = vmatprep.subr.bf16.mxu0 %v1187
  %1501 = vmatpush1.bf16.msra.mxu0 %v1186
  %1502 = vmatprep.subr.bf16.mxu0 %v1171
  %1503 = vmatpush1.bf16.msra.mxu0 %v1170
  %1504 = vmatprep.subr.bf16.mxu0 0
  %1505 = vmatpush2.bf16.msra.mxu0 0
  %1506 = vmatprep.subr.bf16.mxu0 0
  %1507 = vmatpush2.bf16.msra.mxu0 0
  %1508 = vmatprep.subr.bf16.mxu0 0
  %1509 = vmatpush2.bf16.msra.mxu0 0
  %1510 = vmatprep.subr.bf16.mxu0 0
  %1511 = vmatpush2.bf16.msra.mxu0 0
  %1512 = vmatprep.subr.bf16.mxu0 0
  %1513 = vmatpush2.bf16.msra.mxu0 0
  %1514 = vmatprep.subr.bf16.mxu0 0
  %1515 = vmatpush2.bf16.msra.mxu0 0
  %1516 = vmatprep.subr.bf16.mxu0 0
  %1517 = vmatpush2.bf16.msra.mxu0 0
  %1518 = vmatprep.subr.bf16.mxu0 0
  %1519 = vmatpush2.bf16.msra.mxu0 0
  %1520 = vmatprep.mubr.bf16.mxu0 0
  %1521 = vmatmul.mubr.bf16.gmra.mxu0 %v1309
  %v1522 = vpop.f32.mrf.mxu0
  %v1523 = vadd.f32 %v763, %v1522
  %v1524 = vpop.f32.mrf.mxu0
  %v1525 = vadd.f32 %v765, %v1524
  %v1526 = vpop.f32.mrf.mxu0
  %v1527 = vadd.f32 %v767, %v1526
  %v1528 = vpop.f32.mrf.mxu0
  %v1529 = vadd.f32 %v769, %v1528
  %1530 = vdwg.mxu0
  %1531 = vmatprep.subr.bf16.mxu0 0
  %1532 = vmatpush1.bf16.msra.mxu0 0
  %1533 = vmatprep.subr.bf16.mxu0 0
  %1534 = vmatpush1.bf16.msra.mxu0 0
  %1535 = vmatprep.subr.bf16.mxu0 0
  %1536 = vmatpush1.bf16.msra.mxu0 0
  %1537 = vmatprep.subr.bf16.mxu0 %v1339
  %1538 = vmatpush1.bf16.msra.mxu0 %v1336
  %1539 = vmatprep.subr.bf16.mxu0 %v1221
  %1540 = vmatpush1.bf16.msra.mxu0 %v1220
  %1541 = vmatprep.subr.bf16.mxu0 %v1205
  %1542 = vmatpush1.bf16.msra.mxu0 %v1204
  %1543 = vmatprep.subr.bf16.mxu0 %v1189
  %1544 = vmatpush1.bf16.msra.mxu0 %v1188
  %1545 = vmatprep.subr.bf16.mxu0 %v1173
  %1546 = vmatpush1.bf16.msra.mxu0 %v1172
  %1547 = vmatprep.subr.bf16.mxu0 0
  %1548 = vmatpush2.bf16.msra.mxu0 0
  %1549 = vmatprep.subr.bf16.mxu0 0
  %1550 = vmatpush2.bf16.msra.mxu0 0
  %1551 = vmatprep.subr.bf16.mxu0 0
  %1552 = vmatpush2.bf16.msra.mxu0 0
  %1553 = vmatprep.subr.bf16.mxu0 0
  %1554 = vmatpush2.bf16.msra.mxu0 0
  %1555 = vmatprep.subr.bf16.mxu0 0
  %1556 = vmatpush2.bf16.msra.mxu0 0
  %1557 = vmatprep.subr.bf16.mxu0 0
  %1558 = vmatpush2.bf16.msra.mxu0 0
  %1559 = vmatprep.subr.bf16.mxu0 0
  %1560 = vmatpush2.bf16.msra.mxu0 0
  %1561 = vmatprep.subr.bf16.mxu0 0
  %1562 = vmatpush2.bf16.msra.mxu0 0
  %1563 = vmatprep.mubr.bf16.mxu0 0
  %1564 = vmatmul.mubr.bf16.gmra.mxu0 %v1309
  %v1565 = vpop.f32.mrf.mxu0
  %v1566 = vadd.f32 %v806, %v1565
  %v1567 = vpop.f32.mrf.mxu0
  %v1568 = vadd.f32 %v808, %v1567
  %v1569 = vpop.f32.mrf.mxu0
  %v1570 = vadd.f32 %v810, %v1569
  %v1571 = vpop.f32.mrf.mxu0
  %v1572 = vadd.f32 %v812, %v1571
  %1573 = vdwg.mxu0
  %1574 = vmatprep.subr.bf16.mxu0 0
  %1575 = vmatpush1.bf16.msra.mxu0 0
  %1576 = vmatprep.subr.bf16.mxu0 0
  %1577 = vmatpush1.bf16.msra.mxu0 0
  %1578 = vmatprep.subr.bf16.mxu0 0
  %1579 = vmatpush1.bf16.msra.mxu0 0
  %1580 = vmatprep.subr.bf16.mxu0 %v1345
  %1581 = vmatpush1.bf16.msra.mxu0 %v1342
  %1582 = vmatprep.subr.bf16.mxu0 %v1223
  %1583 = vmatpush1.bf16.msra.mxu0 %v1222
  %1584 = vmatprep.subr.bf16.mxu0 %v1207
  %1585 = vmatpush1.bf16.msra.mxu0 %v1206
  %1586 = vmatprep.subr.bf16.mxu0 %v1191
  %1587 = vmatpush1.bf16.msra.mxu0 %v1190
  %1588 = vmatprep.subr.bf16.mxu0 %v1175
  %1589 = vmatpush1.bf16.msra.mxu0 %v1174
  %1590 = vmatprep.subr.bf16.mxu0 0
  %1591 = vmatpush2.bf16.msra.mxu0 0
  %1592 = vmatprep.subr.bf16.mxu0 0
  %1593 = vmatpush2.bf16.msra.mxu0 0
  %1594 = vmatprep.subr.bf16.mxu0 0
  %1595 = vmatpush2.bf16.msra.mxu0 0
  %1596 = vmatprep.subr.bf16.mxu0 0
  %1597 = vmatpush2.bf16.msra.mxu0 0
  %1598 = vmatprep.subr.bf16.mxu0 0
  %1599 = vmatpush2.bf16.msra.mxu0 0
  %1600 = vmatprep.subr.bf16.mxu0 0
  %1601 = vmatpush2.bf16.msra.mxu0 0
  %1602 = vmatprep.subr.bf16.mxu0 0
  %1603 = vmatpush2.bf16.msra.mxu0 0
  %1604 = vmatprep.subr.bf16.mxu0 0
  %1605 = vmatpush2.bf16.msra.mxu0 0
  %1606 = vmatprep.mubr.bf16.mxu0 0
  %1607 = vmatmul.mubr.bf16.gmra.mxu0 %v1309
  %v1608 = vpop.f32.mrf.mxu0
  %v1609 = vadd.f32 %v849, %v1608
  %v1610 = vpop.f32.mrf.mxu0
  %v1611 = vadd.f32 %v851, %v1610
  %v1612 = vpop.f32.mrf.mxu0
  %v1613 = vadd.f32 %v853, %v1612
  %v1614 = vpop.f32.mrf.mxu0
  %v1615 = vadd.f32 %v855, %v1614
  %1616 = vdwg.mxu0
  %1617 = vmatprep.subr.bf16.mxu0 0
  %1618 = vmatpush1.bf16.msra.mxu0 0
  %1619 = vmatprep.subr.bf16.mxu0 0
  %1620 = vmatpush1.bf16.msra.mxu0 0
  %1621 = vmatprep.subr.bf16.mxu0 0
  %1622 = vmatpush1.bf16.msra.mxu0 0
  %1623 = vmatprep.subr.bf16.mxu0 %v1351
  %1624 = vmatpush1.bf16.msra.mxu0 %v1348
  %1625 = vmatprep.subr.bf16.mxu0 %v1225
  %1626 = vmatpush1.bf16.msra.mxu0 %v1224
  %1627 = vmatprep.subr.bf16.mxu0 %v1209
  %1628 = vmatpush1.bf16.msra.mxu0 %v1208
  %1629 = vmatprep.subr.bf16.mxu0 %v1193
  %1630 = vmatpush1.bf16.msra.mxu0 %v1192
  %1631 = vmatprep.subr.bf16.mxu0 %v1177
  %1632 = vmatpush1.bf16.msra.mxu0 %v1176
  %1633 = vmatprep.subr.bf16.mxu0 0
  %1634 = vmatpush2.bf16.msra.mxu0 0
  %1635 = vmatprep.subr.bf16.mxu0 0
  %1636 = vmatpush2.bf16.msra.mxu0 0
  %1637 = vmatprep.subr.bf16.mxu0 0
  %1638 = vmatpush2.bf16.msra.mxu0 0
  %1639 = vmatprep.subr.bf16.mxu0 0
  %1640 = vmatpush2.bf16.msra.mxu0 0
  %1641 = vmatprep.subr.bf16.mxu0 0
  %1642 = vmatpush2.bf16.msra.mxu0 0
  %1643 = vmatprep.subr.bf16.mxu0 0
  %1644 = vmatpush2.bf16.msra.mxu0 0
  %1645 = vmatprep.subr.bf16.mxu0 0
  %1646 = vmatpush2.bf16.msra.mxu0 0
  %1647 = vmatprep.subr.bf16.mxu0 0
  %1648 = vmatpush2.bf16.msra.mxu0 0
  %1649 = vmatprep.mubr.bf16.mxu0 0
  %1650 = vmatmul.mubr.bf16.gmra.mxu0 %v1309
  %v1651 = vpop.f32.mrf.mxu0
  %v1652 = vadd.f32 %v892, %v1651
  %v1653 = vpop.f32.mrf.mxu0
  %v1654 = vadd.f32 %v894, %v1653
  %v1655 = vpop.f32.mrf.mxu0
  %v1656 = vadd.f32 %v896, %v1655
  %v1657 = vpop.f32.mrf.mxu0
  %v1658 = vadd.f32 %v898, %v1657
  %1659 = vdwg.mxu0
  %1660 = vmatprep.subr.bf16.mxu0 0
  %1661 = vmatpush1.bf16.msra.mxu0 0
  %1662 = vmatprep.subr.bf16.mxu0 0
  %1663 = vmatpush1.bf16.msra.mxu0 0
  %1664 = vmatprep.subr.bf16.mxu0 0
  %1665 = vmatpush1.bf16.msra.mxu0 0
  %1666 = vmatprep.subr.bf16.mxu0 %v1357
  %1667 = vmatpush1.bf16.msra.mxu0 %v1354
  %1668 = vmatprep.subr.bf16.mxu0 %v1227
  %1669 = vmatpush1.bf16.msra.mxu0 %v1226
  %1670 = vmatprep.subr.bf16.mxu0 %v1211
  %1671 = vmatpush1.bf16.msra.mxu0 %v1210
  %1672 = vmatprep.subr.bf16.mxu0 %v1195
  %1673 = vmatpush1.bf16.msra.mxu0 %v1194
  %1674 = vmatprep.subr.bf16.mxu0 %v1179
  %1675 = vmatpush1.bf16.msra.mxu0 %v1178
  %1676 = vmatprep.subr.bf16.mxu0 0
  %1677 = vmatpush2.bf16.msra.mxu0 0
  %1678 = vmatprep.subr.bf16.mxu0 0
  %1679 = vmatpush2.bf16.msra.mxu0 0
  %1680 = vmatprep.subr.bf16.mxu0 0
  %1681 = vmatpush2.bf16.msra.mxu0 0
  %1682 = vmatprep.subr.bf16.mxu0 0
  %1683 = vmatpush2.bf16.msra.mxu0 0
  %1684 = vmatprep.subr.bf16.mxu0 0
  %1685 = vmatpush2.bf16.msra.mxu0 0
  %1686 = vmatprep.subr.bf16.mxu0 0
  %1687 = vmatpush2.bf16.msra.mxu0 0
  %1688 = vmatprep.subr.bf16.mxu0 0
  %1689 = vmatpush2.bf16.msra.mxu0 0
  %1690 = vmatprep.subr.bf16.mxu0 0
  %1691 = vmatpush2.bf16.msra.mxu0 0
  %1692 = vmatprep.mubr.bf16.mxu0 0
  %1693 = vmatmul.mubr.bf16.gmra.mxu0 %v1309
  %v1694 = vpop.f32.mrf.mxu0
  %v1695 = vadd.f32 %v935, %v1694
  %v1696 = vpop.f32.mrf.mxu0
  %v1697 = vadd.f32 %v937, %v1696
  %v1698 = vpop.f32.mrf.mxu0
  %v1699 = vadd.f32 %v939, %v1698
  %v1700 = vpop.f32.mrf.mxu0
  %v1701 = vadd.f32 %v941, %v1700
  %1702 = vdwg.mxu0
  %v1703 = vld [vmem:[%s4] sm:$0xff]
  %v1704 = vld [vmem:[%s4 + $0x8] sm:$0xf]
  %1706 = vset.pattern.permute.xlu0 0
  %1707 = vperm.xlu0 %1706, %v1703
  %v1708 = vpop.permute.xlu0 %1707
  %1711 = vset.pattern.permute.xlu0 0
  %1712 = vperm.xlu0 %1711, %v1704
  %v1713 = vpop.permute.xlu0 %1712
  %v1715 = vadd.f32 %v1394, %v1708
  %v1716 = vadd.f32 %v1396, %v1708
  %v1717 = vadd.f32 %v1437, %v1708
  %v1718 = vadd.f32 %v1439, %v1708
  %v1719 = vadd.f32 %v1480, %v1708
  %v1720 = vadd.f32 %v1482, %v1708
  %v1721 = vadd.f32 %v1523, %v1708
  %v1722 = vadd.f32 %v1525, %v1708
  %v1723 = vadd.f32 %v1566, %v1708
  %v1724 = vadd.f32 %v1568, %v1708
  %v1725 = vadd.f32 %v1609, %v1708
  %v1726 = vadd.f32 %v1611, %v1708
  %v1727 = vadd.f32 %v1652, %v1708
  %v1728 = vadd.f32 %v1654, %v1708
  %v1729 = vadd.f32 %v1695, %v1708
  %v1730 = vadd.f32 %v1697, %v1708
  %v1731 = vadd.f32 %v1398, %v1713
  %v1732 = vadd.f32 %v1400, %v1713
  %v1733 = vadd.f32 %v1441, %v1713
  %v1734 = vadd.f32 %v1443, %v1713
  %v1735 = vadd.f32 %v1484, %v1713
  %v1736 = vadd.f32 %v1486, %v1713
  %v1737 = vadd.f32 %v1527, %v1713
  %v1738 = vadd.f32 %v1529, %v1713
  %v1739 = vadd.f32 %v1570, %v1713
  %v1740 = vadd.f32 %v1572, %v1713
  %v1741 = vadd.f32 %v1613, %v1713
  %v1742 = vadd.f32 %v1615, %v1713
  %v1743 = vadd.f32 %v1656, %v1713
  %v1744 = vadd.f32 %v1658, %v1713
  %v1745 = vadd.f32 %v1699, %v1713
  %v1746 = vadd.f32 %v1701, %v1713
  %v1747 = vmax.f32 %v1715, 0.0
  %v1748 = vmax.f32 %v1716, 0.0
  %v1749 = vmax.f32 %v1717, 0.0
  %v1750 = vmax.f32 %v1718, 0.0
  %v1751 = vmax.f32 %v1719, 0.0
  %v1752 = vmax.f32 %v1720, 0.0
  %v1753 = vmax.f32 %v1721, 0.0
  %v1754 = vmax.f32 %v1722, 0.0
  %v1755 = vmax.f32 %v1723, 0.0
  %v1756 = vmax.f32 %v1724, 0.0
  %v1757 = vmax.f32 %v1725, 0.0
  %v1758 = vmax.f32 %v1726, 0.0
  %v1759 = vmax.f32 %v1727, 0.0
  %v1760 = vmax.f32 %v1728, 0.0
  %v1761 = vmax.f32 %v1729, 0.0
  %v1762 = vmax.f32 %v1730, 0.0
  %v1763 = vmax.f32 %v1731, 0.0
  %v1764 = vmax.f32 %v1732, 0.0
  %v1765 = vmax.f32 %v1733, 0.0
  %v1766 = vmax.f32 %v1734, 0.0
  %v1767 = vmax.f32 %v1735, 0.0
  %v1768 = vmax.f32 %v1736, 0.0
  %v1769 = vmax.f32 %v1737, 0.0
  %v1770 = vmax.f32 %v1738, 0.0
  %v1771 = vmax.f32 %v1739, 0.0
  %v1772 = vmax.f32 %v1740, 0.0
  %v1773 = vmax.f32 %v1741, 0.0
  %v1774 = vmax.f32 %v1742, 0.0
  %v1775 = vmax.f32 %v1743, 0.0
  %v1776 = vmax.f32 %v1744, 0.0
  %v1777 = vmax.f32 %v1745, 0.0
  %v1778 = vmax.f32 %v1746, 0.0
  %v1779 = vld [vmem:[%s5] sm:$0xf]
  %v1780 = vld [vmem:[%s5 + $0x4] sm:$0x3]
  %v1781 = vpack.c.bf16 %v1763, %v1747
  %v1782 = vpack.c.bf16 %v1764, %v1748
  %v1783 = vpack.c.bf16 %v1765, %v1749
  %v1784 = vpack.c.bf16 %v1766, %v1750
  %v1785 = vpack.c.bf16 %v1767, %v1751
  %v1786 = vpack.c.bf16 %v1768, %v1752
  %v1787 = vpack.c.bf16 %v1769, %v1753
  %v1788 = vpack.c.bf16 %v1770, %v1754
  %v1789 = vpack.c.bf16 %v1771, %v1755
  %v1790 = vpack.c.bf16 %v1772, %v1756
  %v1791 = vpack.c.bf16 %v1773, %v1757
  %v1792 = vpack.c.bf16 %v1774, %v1758
  %v1793 = vpack.c.bf16 %v1775, %v1759
  %v1794 = vpack.c.bf16 %v1776, %v1760
  %v1795 = vpack.c.bf16 %v1777, %v1761
  %v1796 = vpack.c.bf16 %v1778, %v1762
  %v1797 = vld [vmem:[%s6] sm:$0xf]
  %v1798 = vld [vmem:[%s6 + $0x4] sm:$0x3]
  %v1799 = vld [vmem:[%s7] sm:$0xff]
  %v1800 = vld [vmem:[%s7 + $0x8] sm:$0xff]
  %v1801 = vld [vmem:[%s7 + $0x10] sm:$0xff]
  %v1802 = vld [vmem:[%s7 + $0x18] sm:$0xff]
  %v1803 = vld [vmem:[%s7 + $0x20] sm:$0xff]
  %v1804 = vld [vmem:[%s7 + $0x28] sm:$0xff]
  %v1805 = vld [vmem:[%s7 + $0x30] sm:$0xff]
  %v1806 = vld [vmem:[%s7 + $0x38] sm:$0xff]
  %v1807 = vld [vmem:[%s7 + $0x40] sm:$0x33]
  %v1808 = vld [vmem:[%s7 + $0x48] sm:$0x33]
  %v1809 = vld [vmem:[%s7 + $0x50] sm:$0x33]
  %v1810 = vld [vmem:[%s7 + $0x58] sm:$0x33]
  %v1811 = vld [vmem:[%s7 + $0x60] sm:$0x33]
  %v1812 = vld [vmem:[%s7 + $0x68] sm:$0x33]
  %v1813 = vld [vmem:[%s7 + $0x70] sm:$0x33]
  %v1814 = vld [vmem:[%s7 + $0x78] sm:$0x33]
  %v1817 = vunpack.c.l.b16 %v1797
  %v1818 = vunpack.c.l.b16 %v1798
  %v1819 = vpack.c.b16 %v1818, %v1817
  %v1836 = vunpack.c.l.b16 %v1799
  %v1837 = vunpack.c.h.b16 %v1799
  %v1838 = vunpack.c.l.b16 %v1800
  %v1839 = vunpack.c.h.b16 %v1800
  %v1840 = vunpack.c.l.b16 %v1801
  %v1841 = vunpack.c.h.b16 %v1801
  %v1842 = vunpack.c.l.b16 %v1802
  %v1843 = vunpack.c.h.b16 %v1802
  %v1844 = vunpack.c.l.b16 %v1803
  %v1845 = vunpack.c.h.b16 %v1803
  %v1846 = vunpack.c.l.b16 %v1804
  %v1847 = vunpack.c.h.b16 %v1804
  %v1848 = vunpack.c.l.b16 %v1805
  %v1849 = vunpack.c.h.b16 %v1805
  %v1850 = vunpack.c.l.b16 %v1806
  %v1851 = vunpack.c.h.b16 %v1806
  %v1852 = vunpack.c.l.b16 %v1807
  %v1853 = vunpack.c.h.b16 %v1807
  %v1854 = vunpack.c.l.b16 %v1808
  %v1855 = vunpack.c.h.b16 %v1808
  %v1856 = vunpack.c.l.b16 %v1809
  %v1857 = vunpack.c.h.b16 %v1809
  %v1858 = vunpack.c.l.b16 %v1810
  %v1859 = vunpack.c.h.b16 %v1810
  %v1860 = vunpack.c.l.b16 %v1811
  %v1861 = vunpack.c.h.b16 %v1811
  %v1862 = vunpack.c.l.b16 %v1812
  %v1863 = vunpack.c.h.b16 %v1812
  %v1864 = vunpack.c.l.b16 %v1813
  %v1865 = vunpack.c.h.b16 %v1813
  %v1866 = vunpack.c.l.b16 %v1814
  %v1867 = vunpack.c.h.b16 %v1814
  %v1868 = vpack.c.b16 %v1852, %v1836
  %v1869 = vpack.c.b16 %v1853, %v1837
  %v1870 = vpack.c.b16 %v1854, %v1838
  %v1871 = vpack.c.b16 %v1855, %v1839
  %v1872 = vpack.c.b16 %v1856, %v1840
  %v1873 = vpack.c.b16 %v1857, %v1841
  %v1874 = vpack.c.b16 %v1858, %v1842
  %v1875 = vpack.c.b16 %v1859, %v1843
  %v1876 = vpack.c.b16 %v1860, %v1844
  %v1877 = vpack.c.b16 %v1861, %v1845
  %v1878 = vpack.c.b16 %v1862, %v1846
  %v1879 = vpack.c.b16 %v1863, %v1847
  %v1880 = vpack.c.b16 %v1864, %v1848
  %v1881 = vpack.c.b16 %v1865, %v1849
  %v1882 = vpack.c.b16 %v1866, %v1850
  %v1883 = vpack.c.b16 %v1867, %v1851
  %vm1884 = vcmask 97280
  %v1886 = vsel %vm1884, %v1819, 0
  %vm1888 = vcmask 1045504
  %v1890 = vsel %vm1888, %v1868, 0
  %v1893 = vsel %vm1888, %v1869, 0
  %v1896 = vsel %vm1888, %v1870, 0
  %v1899 = vsel %vm1888, %v1871, 0
  %v1902 = vsel %vm1888, %v1872, 0
  %v1905 = vsel %vm1888, %v1873, 0
  %v1908 = vsel %vm1888, %v1874, 0
  %v1911 = vsel %vm1888, %v1875, 0
  %v1914 = vsel %vm1888, %v1876, 0
  %v1917 = vsel %vm1888, %v1877, 0
  %v1920 = vsel %vm1888, %v1878, 0
  %v1923 = vsel %vm1888, %v1879, 0
  %v1926 = vsel %vm1888, %v1880, 0
  %v1929 = vsel %vm1888, %v1881, 0
  %v1932 = vsel %vm1888, %v1882, 0
  %v1935 = vsel %vm1888, %v1883, 0
  %1937 = vmatprep.subr.bf16.mxu0 0
  %1938 = vmatpush1.bf16.msra.mxu0 0
  %1939 = vmatprep.subr.bf16.mxu0 0
  %1940 = vmatpush1.bf16.msra.mxu0 0
  %1941 = vmatprep.subr.bf16.mxu0 0
  %1942 = vmatpush1.bf16.msra.mxu0 0
  %1943 = vmatprep.subr.bf16.mxu0 0
  %1944 = vmatpush1.bf16.msra.mxu0 0
  %1945 = vmatprep.subr.bf16.mxu0 0
  %1946 = vmatpush1.bf16.msra.mxu0 0
  %1947 = vmatprep.subr.bf16.mxu0 0
  %1948 = vmatpush1.bf16.msra.mxu0 0
  %1949 = vmatprep.subr.bf16.mxu0 0
  %1950 = vmatpush1.bf16.msra.mxu0 0
  %1951 = vmatprep.subr.bf16.mxu0 %v1893
  %1952 = vmatpush1.bf16.msra.mxu0 %v1890
  %1953 = vmatprep.subr.bf16.mxu0 0
  %1954 = vmatpush2.bf16.msra.mxu0 0
  %1955 = vmatprep.subr.bf16.mxu0 0
  %1956 = vmatpush2.bf16.msra.mxu0 0
  %1957 = vmatprep.subr.bf16.mxu0 0
  %1958 = vmatpush2.bf16.msra.mxu0 0
  %1959 = vmatprep.subr.bf16.mxu0 0
  %1960 = vmatpush2.bf16.msra.mxu0 0
  %1961 = vmatprep.subr.bf16.mxu0 0
  %1962 = vmatpush2.bf16.msra.mxu0 0
  %1963 = vmatprep.subr.bf16.mxu0 0
  %1964 = vmatpush2.bf16.msra.mxu0 0
  %1965 = vmatprep.subr.bf16.mxu0 0
  %1966 = vmatpush2.bf16.msra.mxu0 0
  %1967 = vmatprep.subr.bf16.mxu0 0
  %1968 = vmatpush2.bf16.msra.mxu0 0
  %1969 = vmatprep.mubr.bf16.mxu0 0
  %1970 = vmatmul.mubr.bf16.gmra.mxu0 %v1886
  %v1971 = vpop.f32.mrf.mxu0
  %v1972 = vadd.f32 0.0, %v1971
  %v1973 = vpop.f32.mrf.mxu0
  %v1974 = vadd.f32 0.0, %v1973
  %v1975 = vpop.f32.mrf.mxu0
  %v1976 = vadd.f32 0.0, %v1975
  %v1977 = vpop.f32.mrf.mxu0
  %v1978 = vadd.f32 0.0, %v1977
  %1979 = vdwg.mxu0
  %1980 = vmatprep.subr.bf16.mxu0 0
  %1981 = vmatpush1.bf16.msra.mxu0 0
  %1982 = vmatprep.subr.bf16.mxu0 0
  %1983 = vmatpush1.bf16.msra.mxu0 0
  %1984 = vmatprep.subr.bf16.mxu0 0
  %1985 = vmatpush1.bf16.msra.mxu0 0
  %1986 = vmatprep.subr.bf16.mxu0 0
  %1987 = vmatpush1.bf16.msra.mxu0 0
  %1988 = vmatprep.subr.bf16.mxu0 0
  %1989 = vmatpush1.bf16.msra.mxu0 0
  %1990 = vmatprep.subr.bf16.mxu0 0
  %1991 = vmatpush1.bf16.msra.mxu0 0
  %1992 = vmatprep.subr.bf16.mxu0 0
  %1993 = vmatpush1.bf16.msra.mxu0 0
  %1994 = vmatprep.subr.bf16.mxu0 %v1899
  %1995 = vmatpush1.bf16.msra.mxu0 %v1896
  %1996 = vmatprep.subr.bf16.mxu0 0
  %1997 = vmatpush2.bf16.msra.mxu0 0
  %1998 = vmatprep.subr.bf16.mxu0 0
  %1999 = vmatpush2.bf16.msra.mxu0 0
  %2000 = vmatprep.subr.bf16.mxu0 0
  %2001 = vmatpush2.bf16.msra.mxu0 0
  %2002 = vmatprep.subr.bf16.mxu0 0
  %2003 = vmatpush2.bf16.msra.mxu0 0
  %2004 = vmatprep.subr.bf16.mxu0 0
  %2005 = vmatpush2.bf16.msra.mxu0 0
  %2006 = vmatprep.subr.bf16.mxu0 0
  %2007 = vmatpush2.bf16.msra.mxu0 0
  %2008 = vmatprep.subr.bf16.mxu0 0
  %2009 = vmatpush2.bf16.msra.mxu0 0
  %2010 = vmatprep.subr.bf16.mxu0 0
  %2011 = vmatpush2.bf16.msra.mxu0 0
  %2012 = vmatprep.mubr.bf16.mxu0 0
  %2013 = vmatmul.mubr.bf16.gmra.mxu0 %v1886
  %v2014 = vpop.f32.mrf.mxu0
  %v2015 = vadd.f32 0.0, %v2014
  %v2016 = vpop.f32.mrf.mxu0
  %v2017 = vadd.f32 0.0, %v2016
  %v2018 = vpop.f32.mrf.mxu0
  %v2019 = vadd.f32 0.0, %v2018
  %v2020 = vpop.f32.mrf.mxu0
  %v2021 = vadd.f32 0.0, %v2020
  %2022 = vdwg.mxu0
  %2023 = vmatprep.subr.bf16.mxu0 0
  %2024 = vmatpush1.bf16.msra.mxu0 0
  %2025 = vmatprep.subr.bf16.mxu0 0
  %2026 = vmatpush1.bf16.msra.mxu0 0
  %2027 = vmatprep.subr.bf16.mxu0 0
  %2028 = vmatpush1.bf16.msra.mxu0 0
  %2029 = vmatprep.subr.bf16.mxu0 0
  %2030 = vmatpush1.bf16.msra.mxu0 0
  %2031 = vmatprep.subr.bf16.mxu0 0
  %2032 = vmatpush1.bf16.msra.mxu0 0
  %2033 = vmatprep.subr.bf16.mxu0 0
  %2034 = vmatpush1.bf16.msra.mxu0 0
  %2035 = vmatprep.subr.bf16.mxu0 0
  %2036 = vmatpush1.bf16.msra.mxu0 0
  %2037 = vmatprep.subr.bf16.mxu0 %v1905
  %2038 = vmatpush1.bf16.msra.mxu0 %v1902
  %2039 = vmatprep.subr.bf16.mxu0 0
  %2040 = vmatpush2.bf16.msra.mxu0 0
  %2041 = vmatprep.subr.bf16.mxu0 0
  %2042 = vmatpush2.bf16.msra.mxu0 0
  %2043 = vmatprep.subr.bf16.mxu0 0
  %2044 = vmatpush2.bf16.msra.mxu0 0
  %2045 = vmatprep.subr.bf16.mxu0 0
  %2046 = vmatpush2.bf16.msra.mxu0 0
  %2047 = vmatprep.subr.bf16.mxu0 0
  %2048 = vmatpush2.bf16.msra.mxu0 0
  %2049 = vmatprep.subr.bf16.mxu0 0
  %2050 = vmatpush2.bf16.msra.mxu0 0
  %2051 = vmatprep.subr.bf16.mxu0 0
  %2052 = vmatpush2.bf16.msra.mxu0 0
  %2053 = vmatprep.subr.bf16.mxu0 0
  %2054 = vmatpush2.bf16.msra.mxu0 0
  %2055 = vmatprep.mubr.bf16.mxu0 0
  %2056 = vmatmul.mubr.bf16.gmra.mxu0 %v1886
  %v2057 = vpop.f32.mrf.mxu0
  %v2058 = vadd.f32 0.0, %v2057
  %v2059 = vpop.f32.mrf.mxu0
  %v2060 = vadd.f32 0.0, %v2059
  %v2061 = vpop.f32.mrf.mxu0
  %v2062 = vadd.f32 0.0, %v2061
  %v2063 = vpop.f32.mrf.mxu0
  %v2064 = vadd.f32 0.0, %v2063
  %2065 = vdwg.mxu0
  %2066 = vmatprep.subr.bf16.mxu0 0
  %2067 = vmatpush1.bf16.msra.mxu0 0
  %2068 = vmatprep.subr.bf16.mxu0 0
  %2069 = vmatpush1.bf16.msra.mxu0 0
  %2070 = vmatprep.subr.bf16.mxu0 0
  %2071 = vmatpush1.bf16.msra.mxu0 0
  %2072 = vmatprep.subr.bf16.mxu0 0
  %2073 = vmatpush1.bf16.msra.mxu0 0
  %2074 = vmatprep.subr.bf16.mxu0 0
  %2075 = vmatpush1.bf16.msra.mxu0 0
  %2076 = vmatprep.subr.bf16.mxu0 0
  %2077 = vmatpush1.bf16.msra.mxu0 0
  %2078 = vmatprep.subr.bf16.mxu0 0
  %2079 = vmatpush1.bf16.msra.mxu0 0
  %2080 = vmatprep.subr.bf16.mxu0 %v1911
  %2081 = vmatpush1.bf16.msra.mxu0 %v1908
  %2082 = vmatprep.subr.bf16.mxu0 0
  %2083 = vmatpush2.bf16.msra.mxu0 0
  %2084 = vmatprep.subr.bf16.mxu0 0
  %2085 = vmatpush2.bf16.msra.mxu0 0
  %2086 = vmatprep.subr.bf16.mxu0 0
  %2087 = vmatpush2.bf16.msra.mxu0 0
  %2088 = vmatprep.subr.bf16.mxu0 0
  %2089 = vmatpush2.bf16.msra.mxu0 0
  %2090 = vmatprep.subr.bf16.mxu0 0
  %2091 = vmatpush2.bf16.msra.mxu0 0
  %2092 = vmatprep.subr.bf16.mxu0 0
  %2093 = vmatpush2.bf16.msra.mxu0 0
  %2094 = vmatprep.subr.bf16.mxu0 0
  %2095 = vmatpush2.bf16.msra.mxu0 0
  %2096 = vmatprep.subr.bf16.mxu0 0
  %2097 = vmatpush2.bf16.msra.mxu0 0
  %2098 = vmatprep.mubr.bf16.mxu0 0
  %2099 = vmatmul.mubr.bf16.gmra.mxu0 %v1886
  %v2100 = vpop.f32.mrf.mxu0
  %v2101 = vadd.f32 0.0, %v2100
  %v2102 = vpop.f32.mrf.mxu0
  %v2103 = vadd.f32 0.0, %v2102
  %v2104 = vpop.f32.mrf.mxu0
  %v2105 = vadd.f32 0.0, %v2104
  %v2106 = vpop.f32.mrf.mxu0
  %v2107 = vadd.f32 0.0, %v2106
  %2108 = vdwg.mxu0
  %2109 = vmatprep.subr.bf16.mxu0 0
  %2110 = vmatpush1.bf16.msra.mxu0 0
  %2111 = vmatprep.subr.bf16.mxu0 0
  %2112 = vmatpush1.bf16.msra.mxu0 0
  %2113 = vmatprep.subr.bf16.mxu0 0
  %2114 = vmatpush1.bf16.msra.mxu0 0
  %2115 = vmatprep.subr.bf16.mxu0 0
  %2116 = vmatpush1.bf16.msra.mxu0 0
  %2117 = vmatprep.subr.bf16.mxu0 0
  %2118 = vmatpush1.bf16.msra.mxu0 0
  %2119 = vmatprep.subr.bf16.mxu0 0
  %2120 = vmatpush1.bf16.msra.mxu0 0
  %2121 = vmatprep.subr.bf16.mxu0 0
  %2122 = vmatpush1.bf16.msra.mxu0 0
  %2123 = vmatprep.subr.bf16.mxu0 %v1917
  %2124 = vmatpush1.bf16.msra.mxu0 %v1914
  %2125 = vmatprep.subr.bf16.mxu0 0
  %2126 = vmatpush2.bf16.msra.mxu0 0
  %2127 = vmatprep.subr.bf16.mxu0 0
  %2128 = vmatpush2.bf16.msra.mxu0 0
  %2129 = vmatprep.subr.bf16.mxu0 0
  %2130 = vmatpush2.bf16.msra.mxu0 0
  %2131 = vmatprep.subr.bf16.mxu0 0
  %2132 = vmatpush2.bf16.msra.mxu0 0
  %2133 = vmatprep.subr.bf16.mxu0 0
  %2134 = vmatpush2.bf16.msra.mxu0 0
  %2135 = vmatprep.subr.bf16.mxu0 0
  %2136 = vmatpush2.bf16.msra.mxu0 0
  %2137 = vmatprep.subr.bf16.mxu0 0
  %2138 = vmatpush2.bf16.msra.mxu0 0
  %2139 = vmatprep.subr.bf16.mxu0 0
  %2140 = vmatpush2.bf16.msra.mxu0 0
  %2141 = vmatprep.mubr.bf16.mxu0 0
  %2142 = vmatmul.mubr.bf16.gmra.mxu0 %v1886
  %v2143 = vpop.f32.mrf.mxu0
  %v2144 = vadd.f32 0.0, %v2143
  %v2145 = vpop.f32.mrf.mxu0
  %v2146 = vadd.f32 0.0, %v2145
  %v2147 = vpop.f32.mrf.mxu0
  %v2148 = vadd.f32 0.0, %v2147
  %v2149 = vpop.f32.mrf.mxu0
  %v2150 = vadd.f32 0.0, %v2149
  %2151 = vdwg.mxu0
  %2152 = vmatprep.subr.bf16.mxu0 0
  %2153 = vmatpush1.bf16.msra.mxu0 0
  %2154 = vmatprep.subr.bf16.mxu0 0
  %2155 = vmatpush1.bf16.msra.mxu0 0
  %2156 = vmatprep.subr.bf16.mxu0 0
  %2157 = vmatpush1.bf16.msra.mxu0 0
  %2158 = vmatprep.subr.bf16.mxu0 0
  %2159 = vmatpush1.bf16.msra.mxu0 0
  %2160 = vmatprep.subr.bf16.mxu0 0
  %2161 = vmatpush1.bf16.msra.mxu0 0
  %2162 = vmatprep.subr.bf16.mxu0 0
  %2163 = vmatpush1.bf16.msra.mxu0 0
  %2164 = vmatprep.subr.bf16.mxu0 0
  %2165 = vmatpush1.bf16.msra.mxu0 0
  %2166 = vmatprep.subr.bf16.mxu0 %v1923
  %2167 = vmatpush1.bf16.msra.mxu0 %v1920
  %2168 = vmatprep.subr.bf16.mxu0 0
  %2169 = vmatpush2.bf16.msra.mxu0 0
  %2170 = vmatprep.subr.bf16.mxu0 0
  %2171 = vmatpush2.bf16.msra.mxu0 0
  %2172 = vmatprep.subr.bf16.mxu0 0
  %2173 = vmatpush2.bf16.msra.mxu0 0
  %2174 = vmatprep.subr.bf16.mxu0 0
  %2175 = vmatpush2.bf16.msra.mxu0 0
  %2176 = vmatprep.subr.bf16.mxu0 0
  %2177 = vmatpush2.bf16.msra.mxu0 0
  %2178 = vmatprep.subr.bf16.mxu0 0
  %2179 = vmatpush2.bf16.msra.mxu0 0
  %2180 = vmatprep.subr.bf16.mxu0 0
  %2181 = vmatpush2.bf16.msra.mxu0 0
  %2182 = vmatprep.subr.bf16.mxu0 0
  %2183 = vmatpush2.bf16.msra.mxu0 0
  %2184 = vmatprep.mubr.bf16.mxu0 0
  %2185 = vmatmul.mubr.bf16.gmra.mxu0 %v1886
  %v2186 = vpop.f32.mrf.mxu0
  %v2187 = vadd.f32 0.0, %v2186
  %v2188 = vpop.f32.mrf.mxu0
  %v2189 = vadd.f32 0.0, %v2188
  %v2190 = vpop.f32.mrf.mxu0
  %v2191 = vadd.f32 0.0, %v2190
  %v2192 = vpop.f32.mrf.mxu0
  %v2193 = vadd.f32 0.0, %v2192
  %2194 = vdwg.mxu0
  %2195 = vmatprep.subr.bf16.mxu0 0
  %2196 = vmatpush1.bf16.msra.mxu0 0
  %2197 = vmatprep.subr.bf16.mxu0 0
  %2198 = vmatpush1.bf16.msra.mxu0 0
  %2199 = vmatprep.subr.bf16.mxu0 0
  %2200 = vmatpush1.bf16.msra.mxu0 0
  %2201 = vmatprep.subr.bf16.mxu0 0
  %2202 = vmatpush1.bf16.msra.mxu0 0
  %2203 = vmatprep.subr.bf16.mxu0 0
  %2204 = vmatpush1.bf16.msra.mxu0 0
  %2205 = vmatprep.subr.bf16.mxu0 0
  %2206 = vmatpush1.bf16.msra.mxu0 0
  %2207 = vmatprep.subr.bf16.mxu0 0
  %2208 = vmatpush1.bf16.msra.mxu0 0
  %2209 = vmatprep.subr.bf16.mxu0 %v1929
  %2210 = vmatpush1.bf16.msra.mxu0 %v1926
  %2211 = vmatprep.subr.bf16.mxu0 0
  %2212 = vmatpush2.bf16.msra.mxu0 0
  %2213 = vmatprep.subr.bf16.mxu0 0
  %2214 = vmatpush2.bf16.msra.mxu0 0
  %2215 = vmatprep.subr.bf16.mxu0 0
  %2216 = vmatpush2.bf16.msra.mxu0 0
  %2217 = vmatprep.subr.bf16.mxu0 0
  %2218 = vmatpush2.bf16.msra.mxu0 0
  %2219 = vmatprep.subr.bf16.mxu0 0
  %2220 = vmatpush2.bf16.msra.mxu0 0
  %2221 = vmatprep.subr.bf16.mxu0 0
  %2222 = vmatpush2.bf16.msra.mxu0 0
  %2223 = vmatprep.subr.bf16.mxu0 0
  %2224 = vmatpush2.bf16.msra.mxu0 0
  %2225 = vmatprep.subr.bf16.mxu0 0
  %2226 = vmatpush2.bf16.msra.mxu0 0
  %2227 = vmatprep.mubr.bf16.mxu0 0
  %2228 = vmatmul.mubr.bf16.gmra.mxu0 %v1886
  %v2229 = vpop.f32.mrf.mxu0
  %v2230 = vadd.f32 0.0, %v2229
  %v2231 = vpop.f32.mrf.mxu0
  %v2232 = vadd.f32 0.0, %v2231
  %v2233 = vpop.f32.mrf.mxu0
  %v2234 = vadd.f32 0.0, %v2233
  %v2235 = vpop.f32.mrf.mxu0
  %v2236 = vadd.f32 0.0, %v2235
  %2237 = vdwg.mxu0
  %2238 = vmatprep.subr.bf16.mxu0 0
  %2239 = vmatpush1.bf16.msra.mxu0 0
  %2240 = vmatprep.subr.bf16.mxu0 0
  %2241 = vmatpush1.bf16.msra.mxu0 0
  %2242 = vmatprep.subr.bf16.mxu0 0
  %2243 = vmatpush1.bf16.msra.mxu0 0
  %2244 = vmatprep.subr.bf16.mxu0 0
  %2245 = vmatpush1.bf16.msra.mxu0 0
  %2246 = vmatprep.subr.bf16.mxu0 0
  %2247 = vmatpush1.bf16.msra.mxu0 0
  %2248 = vmatprep.subr.bf16.mxu0 0
  %2249 = vmatpush1.bf16.msra.mxu0 0
  %2250 = vmatprep.subr.bf16.mxu0 0
  %2251 = vmatpush1.bf16.msra.mxu0 0
  %2252 = vmatprep.subr.bf16.mxu0 %v1935
  %2253 = vmatpush1.bf16.msra.mxu0 %v1932
  %2254 = vmatprep.subr.bf16.mxu0 0
  %2255 = vmatpush2.bf16.msra.mxu0 0
  %2256 = vmatprep.subr.bf16.mxu0 0
  %2257 = vmatpush2.bf16.msra.mxu0 0
  %2258 = vmatprep.subr.bf16.mxu0 0
  %2259 = vmatpush2.bf16.msra.mxu0 0
  %2260 = vmatprep.subr.bf16.mxu0 0
  %2261 = vmatpush2.bf16.msra.mxu0 0
  %2262 = vmatprep.subr.bf16.mxu0 0
  %2263 = vmatpush2.bf16.msra.mxu0 0
  %2264 = vmatprep.subr.bf16.mxu0 0
  %2265 = vmatpush2.bf16.msra.mxu0 0
  %2266 = vmatprep.subr.bf16.mxu0 0
  %2267 = vmatpush2.bf16.msra.mxu0 0
  %2268 = vmatprep.subr.bf16.mxu0 0
  %2269 = vmatpush2.bf16.msra.mxu0 0
  %2270 = vmatprep.mubr.bf16.mxu0 0
  %2271 = vmatmul.mubr.bf16.gmra.mxu0 %v1886
  %v2272 = vpop.f32.mrf.mxu0
  %v2273 = vadd.f32 0.0, %v2272
  %v2274 = vpop.f32.mrf.mxu0
  %v2275 = vadd.f32 0.0, %v2274
  %v2276 = vpop.f32.mrf.mxu0
  %v2277 = vadd.f32 0.0, %v2276
  %v2278 = vpop.f32.mrf.mxu0
  %v2279 = vadd.f32 0.0, %v2278
  %2280 = vdwg.mxu0
  %v2283 = vunpack.c.l.b16 %v1779
  %v2284 = vunpack.c.l.b16 %v1780
  %v2285 = vpack.c.b16 %v2284, %v2283
  %v2287 = vsel %vm1884, %v2285, 0
  %v2290 = vsel %vm1888, %v1781, 0
  %v2293 = vsel %vm1888, %v1782, 0
  %v2296 = vsel %vm1888, %v1783, 0
  %v2299 = vsel %vm1888, %v1784, 0
  %v2302 = vsel %vm1888, %v1785, 0
  %v2305 = vsel %vm1888, %v1786, 0
  %v2308 = vsel %vm1888, %v1787, 0
  %v2311 = vsel %vm1888, %v1788, 0
  %v2314 = vsel %vm1888, %v1789, 0
  %v2317 = vsel %vm1888, %v1790, 0
  %v2320 = vsel %vm1888, %v1791, 0
  %v2323 = vsel %vm1888, %v1792, 0
  %v2326 = vsel %vm1888, %v1793, 0
  %v2329 = vsel %vm1888, %v1794, 0
  %v2332 = vsel %vm1888, %v1795, 0
  %v2335 = vsel %vm1888, %v1796, 0
  %2337 = vmatprep.subr.bf16.mxu0 0
  %2338 = vmatpush1.bf16.msra.mxu0 0
  %2339 = vmatprep.subr.bf16.mxu0 0
  %2340 = vmatpush1.bf16.msra.mxu0 0
  %2341 = vmatprep.subr.bf16.mxu0 0
  %2342 = vmatpush1.bf16.msra.mxu0 0
  %2343 = vmatprep.subr.bf16.mxu0 0
  %2344 = vmatpush1.bf16.msra.mxu0 0
  %2345 = vmatprep.subr.bf16.mxu0 0
  %2346 = vmatpush1.bf16.msra.mxu0 0
  %2347 = vmatprep.subr.bf16.mxu0 0
  %2348 = vmatpush1.bf16.msra.mxu0 0
  %2349 = vmatprep.subr.bf16.mxu0 0
  %2350 = vmatpush1.bf16.msra.mxu0 0
  %2351 = vmatprep.subr.bf16.mxu0 %v2293
  %2352 = vmatpush1.bf16.msra.mxu0 %v2290
  %2353 = vmatprep.subr.bf16.mxu0 0
  %2354 = vmatpush2.bf16.msra.mxu0 0
  %2355 = vmatprep.subr.bf16.mxu0 0
  %2356 = vmatpush2.bf16.msra.mxu0 0
  %2357 = vmatprep.subr.bf16.mxu0 0
  %2358 = vmatpush2.bf16.msra.mxu0 0
  %2359 = vmatprep.subr.bf16.mxu0 0
  %2360 = vmatpush2.bf16.msra.mxu0 0
  %2361 = vmatprep.subr.bf16.mxu0 0
  %2362 = vmatpush2.bf16.msra.mxu0 0
  %2363 = vmatprep.subr.bf16.mxu0 0
  %2364 = vmatpush2.bf16.msra.mxu0 0
  %2365 = vmatprep.subr.bf16.mxu0 0
  %2366 = vmatpush2.bf16.msra.mxu0 0
  %2367 = vmatprep.subr.bf16.mxu0 0
  %2368 = vmatpush2.bf16.msra.mxu0 0
  %2369 = vmatprep.mubr.bf16.mxu0 0
  %2370 = vmatmul.mubr.bf16.gmra.mxu0 %v2287
  %v2371 = vpop.f32.mrf.mxu0
  %v2372 = vadd.f32 %v1972, %v2371
  %v2373 = vpop.f32.mrf.mxu0
  %v2374 = vadd.f32 %v1974, %v2373
  %v2375 = vpop.f32.mrf.mxu0
  %v2376 = vadd.f32 %v1976, %v2375
  %v2377 = vpop.f32.mrf.mxu0
  %v2378 = vadd.f32 %v1978, %v2377
  %2379 = vdwg.mxu0
  %2380 = vmatprep.subr.bf16.mxu0 0
  %2381 = vmatpush1.bf16.msra.mxu0 0
  %2382 = vmatprep.subr.bf16.mxu0 0
  %2383 = vmatpush1.bf16.msra.mxu0 0
  %2384 = vmatprep.subr.bf16.mxu0 0
  %2385 = vmatpush1.bf16.msra.mxu0 0
  %2386 = vmatprep.subr.bf16.mxu0 0
  %2387 = vmatpush1.bf16.msra.mxu0 0
  %2388 = vmatprep.subr.bf16.mxu0 0
  %2389 = vmatpush1.bf16.msra.mxu0 0
  %2390 = vmatprep.subr.bf16.mxu0 0
  %2391 = vmatpush1.bf16.msra.mxu0 0
  %2392 = vmatprep.subr.bf16.mxu0 0
  %2393 = vmatpush1.bf16.msra.mxu0 0
  %2394 = vmatprep.subr.bf16.mxu0 %v2299
  %2395 = vmatpush1.bf16.msra.mxu0 %v2296
  %2396 = vmatprep.subr.bf16.mxu0 0
  %2397 = vmatpush2.bf16.msra.mxu0 0
  %2398 = vmatprep.subr.bf16.mxu0 0
  %2399 = vmatpush2.bf16.msra.mxu0 0
  %2400 = vmatprep.subr.bf16.mxu0 0
  %2401 = vmatpush2.bf16.msra.mxu0 0
  %2402 = vmatprep.subr.bf16.mxu0 0
  %2403 = vmatpush2.bf16.msra.mxu0 0
  %2404 = vmatprep.subr.bf16.mxu0 0
  %2405 = vmatpush2.bf16.msra.mxu0 0
  %2406 = vmatprep.subr.bf16.mxu0 0
  %2407 = vmatpush2.bf16.msra.mxu0 0
  %2408 = vmatprep.subr.bf16.mxu0 0
  %2409 = vmatpush2.bf16.msra.mxu0 0
  %2410 = vmatprep.subr.bf16.mxu0 0
  %2411 = vmatpush2.bf16.msra.mxu0 0
  %2412 = vmatprep.mubr.bf16.mxu0 0
  %2413 = vmatmul.mubr.bf16.gmra.mxu0 %v2287
  %v2414 = vpop.f32.mrf.mxu0
  %v2415 = vadd.f32 %v2015, %v2414
  %v2416 = vpop.f32.mrf.mxu0
  %v2417 = vadd.f32 %v2017, %v2416
  %v2418 = vpop.f32.mrf.mxu0
  %v2419 = vadd.f32 %v2019, %v2418
  %v2420 = vpop.f32.mrf.mxu0
  %v2421 = vadd.f32 %v2021, %v2420
  %2422 = vdwg.mxu0
  %2423 = vmatprep.subr.bf16.mxu0 0
  %2424 = vmatpush1.bf16.msra.mxu0 0
  %2425 = vmatprep.subr.bf16.mxu0 0
  %2426 = vmatpush1.bf16.msra.mxu0 0
  %2427 = vmatprep.subr.bf16.mxu0 0
  %2428 = vmatpush1.bf16.msra.mxu0 0
  %2429 = vmatprep.subr.bf16.mxu0 0
  %2430 = vmatpush1.bf16.msra.mxu0 0
  %2431 = vmatprep.subr.bf16.mxu0 0
  %2432 = vmatpush1.bf16.msra.mxu0 0
  %2433 = vmatprep.subr.bf16.mxu0 0
  %2434 = vmatpush1.bf16.msra.mxu0 0
  %2435 = vmatprep.subr.bf16.mxu0 0
  %2436 = vmatpush1.bf16.msra.mxu0 0
  %2437 = vmatprep.subr.bf16.mxu0 %v2305
  %2438 = vmatpush1.bf16.msra.mxu0 %v2302
  %2439 = vmatprep.subr.bf16.mxu0 0
  %2440 = vmatpush2.bf16.msra.mxu0 0
  %2441 = vmatprep.subr.bf16.mxu0 0
  %2442 = vmatpush2.bf16.msra.mxu0 0
  %2443 = vmatprep.subr.bf16.mxu0 0
  %2444 = vmatpush2.bf16.msra.mxu0 0
  %2445 = vmatprep.subr.bf16.mxu0 0
  %2446 = vmatpush2.bf16.msra.mxu0 0
  %2447 = vmatprep.subr.bf16.mxu0 0
  %2448 = vmatpush2.bf16.msra.mxu0 0
  %2449 = vmatprep.subr.bf16.mxu0 0
  %2450 = vmatpush2.bf16.msra.mxu0 0
  %2451 = vmatprep.subr.bf16.mxu0 0
  %2452 = vmatpush2.bf16.msra.mxu0 0
  %2453 = vmatprep.subr.bf16.mxu0 0
  %2454 = vmatpush2.bf16.msra.mxu0 0
  %2455 = vmatprep.mubr.bf16.mxu0 0
  %2456 = vmatmul.mubr.bf16.gmra.mxu0 %v2287
  %v2457 = vpop.f32.mrf.mxu0
  %v2458 = vadd.f32 %v2058, %v2457
  %v2459 = vpop.f32.mrf.mxu0
  %v2460 = vadd.f32 %v2060, %v2459
  %v2461 = vpop.f32.mrf.mxu0
  %v2462 = vadd.f32 %v2062, %v2461
  %v2463 = vpop.f32.mrf.mxu0
  %v2464 = vadd.f32 %v2064, %v2463
  %2465 = vdwg.mxu0
  %2466 = vmatprep.subr.bf16.mxu0 0
  %2467 = vmatpush1.bf16.msra.mxu0 0
  %2468 = vmatprep.subr.bf16.mxu0 0
  %2469 = vmatpush1.bf16.msra.mxu0 0
  %2470 = vmatprep.subr.bf16.mxu0 0
  %2471 = vmatpush1.bf16.msra.mxu0 0
  %2472 = vmatprep.subr.bf16.mxu0 0
  %2473 = vmatpush1.bf16.msra.mxu0 0
  %2474 = vmatprep.subr.bf16.mxu0 0
  %2475 = vmatpush1.bf16.msra.mxu0 0
  %2476 = vmatprep.subr.bf16.mxu0 0
  %2477 = vmatpush1.bf16.msra.mxu0 0
  %2478 = vmatprep.subr.bf16.mxu0 0
  %2479 = vmatpush1.bf16.msra.mxu0 0
  %2480 = vmatprep.subr.bf16.mxu0 %v2311
  %2481 = vmatpush1.bf16.msra.mxu0 %v2308
  %2482 = vmatprep.subr.bf16.mxu0 0
  %2483 = vmatpush2.bf16.msra.mxu0 0
  %2484 = vmatprep.subr.bf16.mxu0 0
  %2485 = vmatpush2.bf16.msra.mxu0 0
  %2486 = vmatprep.subr.bf16.mxu0 0
  %2487 = vmatpush2.bf16.msra.mxu0 0
  %2488 = vmatprep.subr.bf16.mxu0 0
  %2489 = vmatpush2.bf16.msra.mxu0 0
  %2490 = vmatprep.subr.bf16.mxu0 0
  %2491 = vmatpush2.bf16.msra.mxu0 0
  %2492 = vmatprep.subr.bf16.mxu0 0
  %2493 = vmatpush2.bf16.msra.mxu0 0
  %2494 = vmatprep.subr.bf16.mxu0 0
  %2495 = vmatpush2.bf16.msra.mxu0 0
  %2496 = vmatprep.subr.bf16.mxu0 0
  %2497 = vmatpush2.bf16.msra.mxu0 0
  %2498 = vmatprep.mubr.bf16.mxu0 0
  %2499 = vmatmul.mubr.bf16.gmra.mxu0 %v2287
  %v2500 = vpop.f32.mrf.mxu0
  %v2501 = vadd.f32 %v2101, %v2500
  %v2502 = vpop.f32.mrf.mxu0
  %v2503 = vadd.f32 %v2103, %v2502
  %v2504 = vpop.f32.mrf.mxu0
  %v2505 = vadd.f32 %v2105, %v2504
  %v2506 = vpop.f32.mrf.mxu0
  %v2507 = vadd.f32 %v2107, %v2506
  %2508 = vdwg.mxu0
  %2509 = vmatprep.subr.bf16.mxu0 0
  %2510 = vmatpush1.bf16.msra.mxu0 0
  %2511 = vmatprep.subr.bf16.mxu0 0
  %2512 = vmatpush1.bf16.msra.mxu0 0
  %2513 = vmatprep.subr.bf16.mxu0 0
  %2514 = vmatpush1.bf16.msra.mxu0 0
  %2515 = vmatprep.subr.bf16.mxu0 0
  %2516 = vmatpush1.bf16.msra.mxu0 0
  %2517 = vmatprep.subr.bf16.mxu0 0
  %2518 = vmatpush1.bf16.msra.mxu0 0
  %2519 = vmatprep.subr.bf16.mxu0 0
  %2520 = vmatpush1.bf16.msra.mxu0 0
  %2521 = vmatprep.subr.bf16.mxu0 0
  %2522 = vmatpush1.bf16.msra.mxu0 0
  %2523 = vmatprep.subr.bf16.mxu0 %v2317
  %2524 = vmatpush1.bf16.msra.mxu0 %v2314
  %2525 = vmatprep.subr.bf16.mxu0 0
  %2526 = vmatpush2.bf16.msra.mxu0 0
  %2527 = vmatprep.subr.bf16.mxu0 0
  %2528 = vmatpush2.bf16.msra.mxu0 0
  %2529 = vmatprep.subr.bf16.mxu0 0
  %2530 = vmatpush2.bf16.msra.mxu0 0
  %2531 = vmatprep.subr.bf16.mxu0 0
  %2532 = vmatpush2.bf16.msra.mxu0 0
  %2533 = vmatprep.subr.bf16.mxu0 0
  %2534 = vmatpush2.bf16.msra.mxu0 0
  %2535 = vmatprep.subr.bf16.mxu0 0
  %2536 = vmatpush2.bf16.msra.mxu0 0
  %2537 = vmatprep.subr.bf16.mxu0 0
  %2538 = vmatpush2.bf16.msra.mxu0 0
  %2539 = vmatprep.subr.bf16.mxu0 0
  %2540 = vmatpush2.bf16.msra.mxu0 0
  %2541 = vmatprep.mubr.bf16.mxu0 0
  %2542 = vmatmul.mubr.bf16.gmra.mxu0 %v2287
  %v2543 = vpop.f32.mrf.mxu0
  %v2544 = vadd.f32 %v2144, %v2543
  %v2545 = vpop.f32.mrf.mxu0
  %v2546 = vadd.f32 %v2146, %v2545
  %v2547 = vpop.f32.mrf.mxu0
  %v2548 = vadd.f32 %v2148, %v2547
  %v2549 = vpop.f32.mrf.mxu0
  %v2550 = vadd.f32 %v2150, %v2549
  %2551 = vdwg.mxu0
  %2552 = vmatprep.subr.bf16.mxu0 0
  %2553 = vmatpush1.bf16.msra.mxu0 0
  %2554 = vmatprep.subr.bf16.mxu0 0
  %2555 = vmatpush1.bf16.msra.mxu0 0
  %2556 = vmatprep.subr.bf16.mxu0 0
  %2557 = vmatpush1.bf16.msra.mxu0 0
  %2558 = vmatprep.subr.bf16.mxu0 0
  %2559 = vmatpush1.bf16.msra.mxu0 0
  %2560 = vmatprep.subr.bf16.mxu0 0
  %2561 = vmatpush1.bf16.msra.mxu0 0
  %2562 = vmatprep.subr.bf16.mxu0 0
  %2563 = vmatpush1.bf16.msra.mxu0 0
  %2564 = vmatprep.subr.bf16.mxu0 0
  %2565 = vmatpush1.bf16.msra.mxu0 0
  %2566 = vmatprep.subr.bf16.mxu0 %v2323
  %2567 = vmatpush1.bf16.msra.mxu0 %v2320
  %2568 = vmatprep.subr.bf16.mxu0 0
  %2569 = vmatpush2.bf16.msra.mxu0 0
  %2570 = vmatprep.subr.bf16.mxu0 0
  %2571 = vmatpush2.bf16.msra.mxu0 0
  %2572 = vmatprep.subr.bf16.mxu0 0
  %2573 = vmatpush2.bf16.msra.mxu0 0
  %2574 = vmatprep.subr.bf16.mxu0 0
  %2575 = vmatpush2.bf16.msra.mxu0 0
  %2576 = vmatprep.subr.bf16.mxu0 0
  %2577 = vmatpush2.bf16.msra.mxu0 0
  %2578 = vmatprep.subr.bf16.mxu0 0
  %2579 = vmatpush2.bf16.msra.mxu0 0
  %2580 = vmatprep.subr.bf16.mxu0 0
  %2581 = vmatpush2.bf16.msra.mxu0 0
  %2582 = vmatprep.subr.bf16.mxu0 0
  %2583 = vmatpush2.bf16.msra.mxu0 0
  %2584 = vmatprep.mubr.bf16.mxu0 0
  %2585 = vmatmul.mubr.bf16.gmra.mxu0 %v2287
  %v2586 = vpop.f32.mrf.mxu0
  %v2587 = vadd.f32 %v2187, %v2586
  %v2588 = vpop.f32.mrf.mxu0
  %v2589 = vadd.f32 %v2189, %v2588
  %v2590 = vpop.f32.mrf.mxu0
  %v2591 = vadd.f32 %v2191, %v2590
  %v2592 = vpop.f32.mrf.mxu0
  %v2593 = vadd.f32 %v2193, %v2592
  %2594 = vdwg.mxu0
  %2595 = vmatprep.subr.bf16.mxu0 0
  %2596 = vmatpush1.bf16.msra.mxu0 0
  %2597 = vmatprep.subr.bf16.mxu0 0
  %2598 = vmatpush1.bf16.msra.mxu0 0
  %2599 = vmatprep.subr.bf16.mxu0 0
  %2600 = vmatpush1.bf16.msra.mxu0 0
  %2601 = vmatprep.subr.bf16.mxu0 0
  %2602 = vmatpush1.bf16.msra.mxu0 0
  %2603 = vmatprep.subr.bf16.mxu0 0
  %2604 = vmatpush1.bf16.msra.mxu0 0
  %2605 = vmatprep.subr.bf16.mxu0 0
  %2606 = vmatpush1.bf16.msra.mxu0 0
  %2607 = vmatprep.subr.bf16.mxu0 0
  %2608 = vmatpush1.bf16.msra.mxu0 0
  %2609 = vmatprep.subr.bf16.mxu0 %v2329
  %2610 = vmatpush1.bf16.msra.mxu0 %v2326
  %2611 = vmatprep.subr.bf16.mxu0 0
  %2612 = vmatpush2.bf16.msra.mxu0 0
  %2613 = vmatprep.subr.bf16.mxu0 0
  %2614 = vmatpush2.bf16.msra.mxu0 0
  %2615 = vmatprep.subr.bf16.mxu0 0
  %2616 = vmatpush2.bf16.msra.mxu0 0
  %2617 = vmatprep.subr.bf16.mxu0 0
  %2618 = vmatpush2.bf16.msra.mxu0 0
  %2619 = vmatprep.subr.bf16.mxu0 0
  %2620 = vmatpush2.bf16.msra.mxu0 0
  %2621 = vmatprep.subr.bf16.mxu0 0
  %2622 = vmatpush2.bf16.msra.mxu0 0
  %2623 = vmatprep.subr.bf16.mxu0 0
  %2624 = vmatpush2.bf16.msra.mxu0 0
  %2625 = vmatprep.subr.bf16.mxu0 0
  %2626 = vmatpush2.bf16.msra.mxu0 0
  %2627 = vmatprep.mubr.bf16.mxu0 0
  %2628 = vmatmul.mubr.bf16.gmra.mxu0 %v2287
  %v2629 = vpop.f32.mrf.mxu0
  %v2630 = vadd.f32 %v2230, %v2629
  %v2631 = vpop.f32.mrf.mxu0
  %v2632 = vadd.f32 %v2232, %v2631
  %v2633 = vpop.f32.mrf.mxu0
  %v2634 = vadd.f32 %v2234, %v2633
  %v2635 = vpop.f32.mrf.mxu0
  %v2636 = vadd.f32 %v2236, %v2635
  %2637 = vdwg.mxu0
  %2638 = vmatprep.subr.bf16.mxu0 0
  %2639 = vmatpush1.bf16.msra.mxu0 0
  %2640 = vmatprep.subr.bf16.mxu0 0
  %2641 = vmatpush1.bf16.msra.mxu0 0
  %2642 = vmatprep.subr.bf16.mxu0 0
  %2643 = vmatpush1.bf16.msra.mxu0 0
  %2644 = vmatprep.subr.bf16.mxu0 0
  %2645 = vmatpush1.bf16.msra.mxu0 0
  %2646 = vmatprep.subr.bf16.mxu0 0
  %2647 = vmatpush1.bf16.msra.mxu0 0
  %2648 = vmatprep.subr.bf16.mxu0 0
  %2649 = vmatpush1.bf16.msra.mxu0 0
  %2650 = vmatprep.subr.bf16.mxu0 0
  %2651 = vmatpush1.bf16.msra.mxu0 0
  %2652 = vmatprep.subr.bf16.mxu0 %v2335
  %2653 = vmatpush1.bf16.msra.mxu0 %v2332
  %2654 = vmatprep.subr.bf16.mxu0 0
  %2655 = vmatpush2.bf16.msra.mxu0 0
  %2656 = vmatprep.subr.bf16.mxu0 0
  %2657 = vmatpush2.bf16.msra.mxu0 0
  %2658 = vmatprep.subr.bf16.mxu0 0
  %2659 = vmatpush2.bf16.msra.mxu0 0
  %2660 = vmatprep.subr.bf16.mxu0 0
  %2661 = vmatpush2.bf16.msra.mxu0 0
  %2662 = vmatprep.subr.bf16.mxu0 0
  %2663 = vmatpush2.bf16.msra.mxu0 0
  %2664 = vmatprep.subr.bf16.mxu0 0
  %2665 = vmatpush2.bf16.msra.mxu0 0
  %2666 = vmatprep.subr.bf16.mxu0 0
  %2667 = vmatpush2.bf16.msra.mxu0 0
  %2668 = vmatprep.subr.bf16.mxu0 0
  %2669 = vmatpush2.bf16.msra.mxu0 0
  %2670 = vmatprep.mubr.bf16.mxu0 0
  %2671 = vmatmul.mubr.bf16.gmra.mxu0 %v2287
  %v2672 = vpop.f32.mrf.mxu0
  %v2673 = vadd.f32 %v2273, %v2672
  %v2674 = vpop.f32.mrf.mxu0
  %v2675 = vadd.f32 %v2275, %v2674
  %v2676 = vpop.f32.mrf.mxu0
  %v2677 = vadd.f32 %v2277, %v2676
  %v2678 = vpop.f32.mrf.mxu0
  %v2679 = vadd.f32 %v2279, %v2678
  %2680 = vdwg.mxu0
  %v2681 = vld [vmem:[%s8] sm:$0xff]
  %v2682 = vld [vmem:[%s8 + $0x8] sm:$0xf]
  %2684 = vset.pattern.permute.xlu0 0
  %2685 = vperm.xlu0 %2684, %v2681
  %v2686 = vpop.permute.xlu0 %2685
  %2689 = vset.pattern.permute.xlu0 0
  %2690 = vperm.xlu0 %2689, %v2682
  %v2691 = vpop.permute.xlu0 %2690
  %v2693 = vadd.f32 %v2372, %v2686
  %v2694 = vadd.f32 %v2374, %v2686
  %v2695 = vadd.f32 %v2415, %v2686
  %v2696 = vadd.f32 %v2417, %v2686
  %v2697 = vadd.f32 %v2458, %v2686
  %v2698 = vadd.f32 %v2460, %v2686
  %v2699 = vadd.f32 %v2501, %v2686
  %v2700 = vadd.f32 %v2503, %v2686
  %v2701 = vadd.f32 %v2544, %v2686
  %v2702 = vadd.f32 %v2546, %v2686
  %v2703 = vadd.f32 %v2587, %v2686
  %v2704 = vadd.f32 %v2589, %v2686
  %v2705 = vadd.f32 %v2630, %v2686
  %v2706 = vadd.f32 %v2632, %v2686
  %v2707 = vadd.f32 %v2673, %v2686
  %v2708 = vadd.f32 %v2675, %v2686
  %v2709 = vadd.f32 %v2376, %v2691
  %v2710 = vadd.f32 %v2378, %v2691
  %v2711 = vadd.f32 %v2419, %v2691
  %v2712 = vadd.f32 %v2421, %v2691
  %v2713 = vadd.f32 %v2462, %v2691
  %v2714 = vadd.f32 %v2464, %v2691
  %v2715 = vadd.f32 %v2505, %v2691
  %v2716 = vadd.f32 %v2507, %v2691
  %v2717 = vadd.f32 %v2548, %v2691
  %v2718 = vadd.f32 %v2550, %v2691
  %v2719 = vadd.f32 %v2591, %v2691
  %v2720 = vadd.f32 %v2593, %v2691
  %v2721 = vadd.f32 %v2634, %v2691
  %v2722 = vadd.f32 %v2636, %v2691
  %v2723 = vadd.f32 %v2677, %v2691
  %v2724 = vadd.f32 %v2679, %v2691
  %2725 = vst [vmem:[%s9] sm:$0xff] %v2693
  %2726 = vst [vmem:[%s9 + $0x8] sm:$0xff] %v2694
  %2727 = vst [vmem:[%s9 + $0x10] sm:$0xff] %v2695
  %2728 = vst [vmem:[%s9 + $0x18] sm:$0xff] %v2696
  %2729 = vst [vmem:[%s9 + $0x20] sm:$0xff] %v2697
  %2730 = vst [vmem:[%s9 + $0x28] sm:$0xff] %v2698
  %2731 = vst [vmem:[%s9 + $0x30] sm:$0xff] %v2699
  %2732 = vst [vmem:[%s9 + $0x38] sm:$0xff] %v2700
  %2733 = vst [vmem:[%s9 + $0x40] sm:$0xff] %v2701
  %2734 = vst [vmem:[%s9 + $0x48] sm:$0xff] %v2702
  %2735 = vst [vmem:[%s9 + $0x50] sm:$0xff] %v2703
  %2736 = vst [vmem:[%s9 + $0x58] sm:$0xff] %v2704
  %2737 = vst [vmem:[%s9 + $0x60] sm:$0xff] %v2705
  %2738 = vst [vmem:[%s9 + $0x68] sm:$0xff] %v2706
  %2739 = vst [vmem:[%s9 + $0x70] sm:$0xff] %v2707
  %2740 = vst [vmem:[%s9 + $0x78] sm:$0xff] %v2708
  %2741 = vst [vmem:[%s9 + $0x80] sm:$0xf] %v2709
  %2742 = vst [vmem:[%s9 + $0x88] sm:$0xf] %v2710
  %2743 = vst [vmem:[%s9 + $0x90] sm:$0xf] %v2711
  %2744 = vst [vmem:[%s9 + $0x98] sm:$0xf] %v2712
  %2745 = vst [vmem:[%s9 + $0xa0] sm:$0xf] %v2713
  %2746 = vst [vmem:[%s9 + $0xa8] sm:$0xf] %v2714
  %2747 = vst [vmem:[%s9 + $0xb0] sm:$0xf] %v2715
  %2748 = vst [vmem:[%s9 + $0xb8] sm:$0xf] %v2716
  %2749 = vst [vmem:[%s9 + $0xc0] sm:$0xf] %v2717
  %2750 = vst [vmem:[%s9 + $0xc8] sm:$0xf] %v2718
  %2751 = vst [vmem:[%s9 + $0xd0] sm:$0xf] %v2719
  %2752 = vst [vmem:[%s9 + $0xd8] sm:$0xf] %v2720
  %2753 = vst [vmem:[%s9 + $0xe0] sm:$0xf] %v2721
  %2754 = vst [vmem:[%s9 + $0xe8] sm:$0xf] %v2722
  %2755 = vst [vmem:[%s9 + $0xf0] sm:$0xf] %v2723
  %2756 = vst [vmem:[%s9 + $0xf8] sm:$0xf] %v2724
  // Predicated region
  $region38: #{generator_forward.17} parent=0 // pred_check
    _
  $region39: #{generator_forward.17} parent=0 // pred_check_branch
    %2758 = sbr.rel (0) target = $region41
  $region40: #{generator_forward.17} parent=0 // pred_region
    _
  $region41: #{generator_forward.17} parent=0 // pred_fallthru
    _
  // Predicated region
  $region42: #{generator_forward.17} parent=0 // pred_check
    _
  $region43: #{generator_forward.17} parent=0 // pred_check_branch
    %2760 = sbr.rel (0) target = $region45
  $region44: #{generator_forward.17} parent=0 // pred_region
    _
  $region45: #{generator_forward.17} parent=0 // pred_fallthru
    _

</llo_original>
